<compile_context>
chip_gen: v7x
topology: tpu7x:2x2x1
jax: 0.10.0
libtpu: 0.0.40
codegen_flags: <defaults>
</compile_context>

<pallas_src>
import math

import jax
import jax.numpy as jnp
import numpy as np
from jax.experimental import pallas as pl
from jax.experimental.pallas import tpu as pltpu

dim = 64          # per-head dim (D)
embed_size = 768  # E
num_heads = 12    # H

_VMEM_LIMIT = 32 * 1024 * 1024   # fits v5e/v6e/v7x; well above what these blocks need


# ----------------------------------------------------------------------------
# One-time parameter preparation (OUTSIDE jit): bf16 cast, QKV concat, W_P head split.
# ----------------------------------------------------------------------------
def prepare_params(params):
    H, D, E = num_heads, dim, embed_size
    w_qkv = jnp.concatenate(
        [params["W_Q"], params["W_K"], params["W_V"]], axis=0
    ).astype(jnp.bfloat16)                                          # (3*H*D, E), torch layout
    wp_heads = jnp.transpose(params["W_P"]).reshape(H, D, E).astype(jnp.bfloat16)
    b_p = params["b_P"].reshape(1, E).astype(jnp.float32)
    return {"w_qkv": w_qkv, "wp_heads": wp_heads, "b_p": b_p}


# ----------------------------------------------------------------------------
# Kernel A: bias-free linear  y = x @ w.T  with w in torch (out, in) layout.
# Gridded over M rows; weight resident in VMEM (constant index map).
# ----------------------------------------------------------------------------
def _linear_kernel(x_ref, w_ref, o_ref):
    o_ref[...] = jax.lax.dot_general(
        x_ref[...].astype(jnp.bfloat16), w_ref[...],
        dimension_numbers=(((1,), (1,)), ((), ())),      # contract x dim1 with w dim1 (no .T)
        preferred_element_type=jnp.float32,
    ).astype(o_ref.dtype)


def _row_tile(M):
    for t in (512, 256, 128):
        if M % t == 0:
            return t
    return M


def linear_nobias(x, w):
    """x: (M, E) f32, w: (Nout, E) bf16 (torch layout). Returns (M, Nout) bf16."""
    M, E = x.shape
    Nout = w.shape[0]
    tm = _row_tile(M)
    return pl.pallas_call(
        _linear_kernel,
        out_shape=jax.ShapeDtypeStruct((M, Nout), jnp.bfloat16),
        grid=(M // tm,),
        in_specs=[pl.BlockSpec((tm, E), lambda i: (i, 0)),
                  pl.BlockSpec((Nout, E), lambda i: (0, 0))],        # resident weight
        out_specs=pl.BlockSpec((tm, Nout), lambda i: (i, 0)),        # lane-dense stores
        compiler_params=pltpu.CompilerParams(
            dimension_semantics=("parallel",),
            vmem_limit_bytes=_VMEM_LIMIT),
    )(x, w)


# ----------------------------------------------------------------------------
# Kernel B: attention + per-head-accumulated output projection (+bias)
#           + softmax over the sequence axis + residual + LayerNorm(eps=1e-5).
# Processes Bblk batch elements per grid step.
# ----------------------------------------------------------------------------
def _fused_attention_kernel(q_ref, k_ref, v_ref, mask_ref, resid_ref,
                            wp_ref, bp_ref, o_ref):
    Bb, H, Lq, D = q_ref.shape
    Lk = k_ref.shape[2]
    E = wp_ref.shape[2]

    # Collapse (batch, head) into one batch dim for the MXU einsums (free leading reshape).
    q = q_ref[...].reshape(Bb * H, Lq, D)       # bf16
    k = k_ref[...].reshape(Bb * H, Lk, D)
    v = v_ref[...].reshape(Bb * H, Lk, D)

    inv_sqrt_dim = 1.0 / math.sqrt(dim)
    if Lk > D:   # fold the scale into the smaller operand
        q = (q.astype(jnp.float32) * inv_sqrt_dim).astype(jnp.bfloat16)

    # scores = Q @ K^T / sqrt(dim)   (contract last dims directly, f32 accumulate)
    scores = jnp.einsum("nqd,nkd->nqk", q, k, preferred_element_type=jnp.float32)
    if Lk <= D:
        scores = scores * inv_sqrt_dim
    scores = scores.reshape(Bb, H, Lq, Lk)

    # masked_fill_(mask, 0) BEFORE softmax (module quirk) == multiply by (1 - mask).
    keep = 1.0 - mask_ref[...].astype(jnp.float32)          # (Bb, Lq, Lk)
    scores = scores * keep[:, None, :, :]

    # Softmax over keys; denominator as per-row reciprocal broadcast-multiply (EUP).
    m = jnp.max(scores, axis=-1, keepdims=True)
    p = jnp.exp(scores - m)
    attn = p * pl.reciprocal(jnp.sum(p, axis=-1, keepdims=True), approx=False)

    ctx = jnp.einsum("nqk,nkd->nqd",
                     attn.reshape(Bb * H, Lq, Lk).astype(jnp.bfloat16), v,
                     preferred_element_type=jnp.float32)     # (Bb*H, Lq, D) f32
    ctx = ctx.reshape(Bb, H, Lq, D)

    # Output projection accumulated per head:
    #   proj = sum_h ctx[:, h] @ W_P_head[h]   (== torch: transpose(1,2).reshape(...) @ W_P.T)
    # This replaces the scratch re-layout + masked 64-lane stores of the previous version.
    proj = None
    for h in range(H):                                       # static unroll, H=12
        ctx_h = ctx[:, h].reshape(Bb * Lq, D).astype(jnp.bfloat16)
        part = jax.lax.dot_general(
            ctx_h, wp_ref[h],                                # (D, E) head slab, leading-dim index
            dimension_numbers=(((1,), (0,)), ((), ())),
            preferred_element_type=jnp.float32)              # (Bb*Lq, E)
        proj = part if proj is None else proj + part
    proj = proj.reshape(Bb, Lq, E) + bp_ref[...]             # +bias, broadcasts (1, E)

    # torch.softmax(atten, dim=1): softmax over the sequence axis.
    sm = jnp.exp(proj - jnp.max(proj, axis=1, keepdims=True))
    sm = sm * pl.reciprocal(jnp.sum(sm, axis=1, keepdims=True), approx=False)

    y = resid_ref[...] + sm                                  # residual add (f32)

    # LayerNorm over last dim; fresh nn.LayerNorm => identity affine, eps=1e-5.
    mu = jnp.mean(y, axis=-1, keepdims=True)
    var = jnp.mean(jnp.square(y - mu), axis=-1, keepdims=True)
    o_ref[...] = ((y - mu) * jax.lax.rsqrt(var + 1e-5)).astype(o_ref.dtype)


def _batch_tile(B, Lq):
    # Enough batches per step that Bblk*Lq approaches ~256 MXU rows, while dividing B.
    bblk = min(B, max(1, 256 // max(Lq, 1)))
    while B % bblk:
        bblk -= 1
    return max(bblk, 1)


def fused_attention_output(Q, K, V, mask_i8, residual, wp_heads, b_p):
    B, H, Lq, D = Q.shape
    Lk = K.shape[2]
    E = residual.shape[-1]
    Bblk = _batch_tile(B, Lq)
    return pl.pallas_call(
        _fused_attention_kernel,
        out_shape=jax.ShapeDtypeStruct((B, Lq, E), jnp.float32),
        grid=(B // Bblk,),
        in_specs=[
            pl.BlockSpec((Bblk, H, Lq, D), lambda b: (b, 0, 0, 0)),   # Q  (bf16)
            pl.BlockSpec((Bblk, H, Lk, D), lambda b: (b, 0, 0, 0)),   # K  (bf16)
            pl.BlockSpec((Bblk, H, Lk, D), lambda b: (b, 0, 0, 0)),   # V  (bf16)
            pl.BlockSpec((Bblk, Lq, Lk), lambda b: (b, 0, 0)),        # mask (int8)
            pl.BlockSpec((Bblk, Lq, E), lambda b: (b, 0, 0)),         # residual (f32)
            pl.BlockSpec((H, D, E), lambda b: (0, 0, 0)),             # W_P heads (resident)
            pl.BlockSpec((1, E), lambda b: (0, 0)),                   # b_P       (resident)
        ],
        out_specs=pl.BlockSpec((Bblk, Lq, E), lambda b: (b, 0, 0)),   # lane-dense 768 stores
        compiler_params=pltpu.CompilerParams(
            dimension_semantics=("parallel",),                        # shard batch blocks on v7x
            vmem_limit_bytes=_VMEM_LIMIT),
    )(Q, K, V, mask_i8, residual, wp_heads, b_p)


# ----------------------------------------------------------------------------
# Full forward pass.  Row-major reshapes reproduce torch's quirky .view() exactly.
# ----------------------------------------------------------------------------
@jax.jit
def _forward_self(x, atten_mask, prepared):
    B, L, E = x.shape
    H, D = num_heads, dim
    N = H * D
    qkv = linear_nobias(x.reshape(B * L, E), prepared["w_qkv"])      # (B*L, 3N) bf16
    Q = qkv[:, 0 * N:1 * N].reshape(B, H, L, D)    # == torch .view(B, H, len, D) (quirk)
    K = qkv[:, 1 * N:2 * N].reshape(B, H, L, D)
    V = qkv[:, 2 * N:3 * N].reshape(B, H, L, D)
    return fused_attention_output(Q, K, V, atten_mask.astype(jnp.int8), x,
                                  prepared["wp_heads"], prepared["b_p"])


@jax.jit
def _forward_cross(xq, xk, xv, atten_mask, prepared):
    B, Lq, E = xq.shape
    _, Lk, _ = xk.shape
    H, D = num_heads, dim
    N = H * D
    w = prepared["w_qkv"]
    Q = linear_nobias(xq.reshape(B * Lq, E), w[0 * N:1 * N]).reshape(B, H, Lq, D)
    K = linear_nobias(xk.reshape(B * Lk, E), w[1 * N:2 * N]).reshape(B, H, Lk, D)
    V = linear_nobias(xv.reshape(B * Lk, E), w[2 * N:3 * N]).reshape(B, H, Lk, D)
    return fused_attention_output(Q, K, V, atten_mask.astype(jnp.int8), xq,
                                  prepared["wp_heads"], prepared["b_p"])


def multi_head_attention_forward(input_Q, input_K, input_V, atten_mask, prepared):
    if (input_K is input_Q) and (input_V is input_Q):
        return _forward_self(input_Q, atten_mask, prepared)          # fused QKV matmul
    return _forward_cross(input_Q, input_K, input_V, atten_mask, prepared)


# ----------------------------------------------------------------------------
# Pure-jnp f32 reference (mirrors the PyTorch forward exactly) for validation.
# ----------------------------------------------------------------------------
def reference_forward(input_Q, input_K, input_V, atten_mask, params):
    B, len_q, E = input_Q.shape
    _, len_k, _ = input_K.shape
    _, atten_len_k, _ = atten_mask.shape
    H, D = num_heads, dim

    Q = (input_Q @ params["W_Q"].T).reshape(B, H, len_q, D)
    K = (input_K @ params["W_K"].T).reshape(B, H, len_k, D)
    V = (input_V @ params["W_V"].T).reshape(B, H, len_k, D)

    scores = jnp.einsum("bhqd,bhkd->bhqk", Q, K) / np.sqrt(dim)
    scores = jnp.where(atten_mask[:, None, :, :], 0.0, scores)
    attn = jax.nn.softmax(scores, axis=-1)
    ctx = jnp.einsum("bhqk,bhkd->bhqd", attn, V)

    ctx = jnp.transpose(ctx, (0, 2, 1, 3)).reshape(B, atten_len_k, H * D)
    proj = ctx @ params["W_P"].T + params["b_P"]
    y = input_Q + jax.nn.softmax(proj, axis=1)
    mu = jnp.mean(y, axis=-1, keepdims=True)
    var = jnp.mean(jnp.square(y - mu), axis=-1, keepdims=True)
    return (y - mu) * jax.lax.rsqrt(var + 1e-5)


if __name__ == "__main__":
    B, L = 2, 8
    key = jax.random.PRNGKey(0)
    k_wq, k_wk, k_wv, k_wp, k_bp, k_x, k_m = jax.random.split(key, 7)

    params = {
        "W_Q": 0.02 * jax.random.normal(k_wq, (num_heads * dim, embed_size), jnp.float32),
        "W_K": 0.02 * jax.random.normal(k_wk, (num_heads * dim, embed_size), jnp.float32),
        "W_V": 0.02 * jax.random.normal(k_wv, (num_heads * dim, embed_size), jnp.float32),
        "W_P": 0.02 * jax.random.normal(k_wp, (embed_size, num_heads * dim), jnp.float32),
        "b_P": 0.01 * jax.random.normal(k_bp, (embed_size,), jnp.float32),
    }
    prepared = prepare_params(params)          # bf16 cast / concat / head-split, once, outside jit

    x = jax.random.normal(k_x, (B, L, embed_size), jnp.float32)
    atten_mask = jax.random.uniform(k_m, (B, L, L)) > 0.7   # bool mask

    out = multi_head_attention_forward(x, x, x, atten_mask, prepared)
    out = jax.block_until_ready(out)

    ref = reference_forward(x, x, x, atten_mask, params)
    # bf16 MXU operands (per perf review) -> looser tolerance than the f32-only version.
    np.testing.assert_allclose(np.asarray(out), np.asarray(ref), rtol=2e-2, atol=2e-2)

    print("KERNEL_OK")
</pallas_src>

<mosaic_0001>
module attributes {stable_mosaic.version = 11 : i64} {
  func.func @_linear_kernel(%arg0: i32, %arg1: memref<16x768xf32, #tpu.memory_space<vmem>>, %arg2: memref<2304x768xbf16, #tpu.memory_space<vmem>>, %arg3: memref<16x2304xbf16, #tpu.memory_space<vmem>>) attributes {dimension_semantics = [#tpu.dimension_semantics<parallel>], iteration_bounds = array<i64: 1>, scalar_prefetch = 0 : i64, scratch_operands = 0 : i64, tpu.core_type = #tpu.core_type<tc>, window_params = [{transform_indices = @transform_0, window_bounds = array<i64: 16, 768>}, {pipeline_mode = #tpu.pipeline_mode<synchronous>, transform_indices = @transform_1, window_bounds = array<i64: 2304, 768>}, {transform_indices = @transform_2, window_bounds = array<i64: 16, 2304>}]} {
    %c0 = arith.constant 0 : index
    %c0_0 = arith.constant 0 : index
    %0 = vector.load %arg1[%c0, %c0_0] : memref<16x768xf32, #tpu.memory_space<vmem>>, vector<16x768xf32>
    %1 = arith.truncf %0 : vector<16x768xf32> to vector<16x768xbf16>
    %c0_1 = arith.constant 0 : index
    %c0_2 = arith.constant 0 : index
    %2 = vector.load %arg2[%c0_1, %c0_2] : memref<2304x768xbf16, #tpu.memory_space<vmem>>, vector<2304x768xbf16>
    %cst = arith.constant dense<0.000000e+00> : vector<16x2304xf32>
    %3 = tpu.matmul %1, %2, %cst {dimension_numbers = #tpu.dot_dimension_numbers<[1], [1], [0], [0], [0, 0, 1, 0], [], []>} : vector<16x768xbf16>, vector<2304x768xbf16>, vector<16x2304xf32> -> vector<16x2304xf32>
    %4 = arith.truncf %3 : vector<16x2304xf32> to vector<16x2304xbf16>
    %c0_3 = arith.constant 0 : index
    %c0_4 = arith.constant 0 : index
    %5 = vector.load %arg3[%c0_3, %c0_4] : memref<16x2304xbf16, #tpu.memory_space<vmem>>, vector<16x2304xbf16>
    tpu.vector_store %arg3[%c0_3, %c0_4], %4 {strides = array<i32>} : memref<16x2304xbf16, #tpu.memory_space<vmem>>, vector<16x2304xbf16>,
    return
  }
  func.func @transform_0(%arg0: i32) -> (i32, i32) {
    %c0_i32 = arith.constant 0 : i32
    %c0_i32_0 = arith.constant 0 : i32
    return %arg0, %c0_i32 : i32, i32
  }
  func.func @transform_1(%arg0: i32) -> (i32, i32) {
    %c0_i32 = arith.constant 0 : i32
    %c0_i32_0 = arith.constant 0 : i32
    %c0_i32_1 = arith.constant 0 : i32
    return %c0_i32, %c0_i32_0 : i32, i32
  }
  func.func @transform_2(%arg0: i32) -> (i32, i32) {
    %c0_i32 = arith.constant 0 : i32
    %c0_i32_0 = arith.constant 0 : i32
    return %arg0, %c0_i32 : i32, i32
  }
}

module attributes {stable_mosaic.version = 11 : i64} {
  func.func @_fused_attention_kernel(%arg0: i32, %arg1: memref<2x12x8x64xbf16, #tpu.memory_space<vmem>>, %arg2: memref<2x12x8x64xbf16, #tpu.memory_space<vmem>>, %arg3: memref<2x12x8x64xbf16, #tpu.memory_space<vmem>>, %arg4: memref<2x8x8xi8, #tpu.memory_space<vmem>>, %arg5: memref<2x8x768xf32, #tpu.memory_space<vmem>>, %arg6: memref<12x64x768xbf16, #tpu.memory_space<vmem>>, %arg7: memref<1x768xf32, #tpu.memory_space<vmem>>, %arg8: memref<2x8x768xf32, #tpu.memory_space<vmem>>) attributes {dimension_semantics = [#tpu.dimension_semantics<parallel>], iteration_bounds = array<i64: 1>, scalar_prefetch = 0 : i64, scratch_operands = 0 : i64, tpu.core_type = #tpu.core_type<tc>, window_params = [{transform_indices = @transform_0, window_bounds = array<i64: 2, 12, 8, 64>}, {transform_indices = @transform_1, window_bounds = array<i64: 2, 12, 8, 64>}, {transform_indices = @transform_2, window_bounds = array<i64: 2, 12, 8, 64>}, {transform_indices = @transform_3, window_bounds = array<i64: 2, 8, 8>}, {transform_indices = @transform_4, window_bounds = array<i64: 2, 8, 768>}, {pipeline_mode = #tpu.pipeline_mode<synchronous>, transform_indices = @transform_5, window_bounds = array<i64: 12, 64, 768>}, {pipeline_mode = #tpu.pipeline_mode<synchronous>, transform_indices = @transform_6, window_bounds = array<i64: 1, 768>}, {transform_indices = @transform_7, window_bounds = array<i64: 2, 8, 768>}]} {
    %c0 = arith.constant 0 : index
    %c0_0 = arith.constant 0 : index
    %c0_1 = arith.constant 0 : index
    %c0_2 = arith.constant 0 : index
    %0 = vector.load %arg1[%c0, %c0_0, %c0_1, %c0_2] : memref<2x12x8x64xbf16, #tpu.memory_space<vmem>>, vector<2x12x8x64xbf16>
    %1 = vector.shape_cast %0 : vector<2x12x8x64xbf16> to vector<24x8x64xbf16>
    %c0_3 = arith.constant 0 : index
    %c0_4 = arith.constant 0 : index
    %c0_5 = arith.constant 0 : index
    %c0_6 = arith.constant 0 : index
    %2 = vector.load %arg2[%c0_3, %c0_4, %c0_5, %c0_6] : memref<2x12x8x64xbf16, #tpu.memory_space<vmem>>, vector<2x12x8x64xbf16>
    %3 = vector.shape_cast %2 : vector<2x12x8x64xbf16> to vector<24x8x64xbf16>
    %c0_7 = arith.constant 0 : index
    %c0_8 = arith.constant 0 : index
    %c0_9 = arith.constant 0 : index
    %c0_10 = arith.constant 0 : index
    %4 = vector.load %arg3[%c0_7, %c0_8, %c0_9, %c0_10] : memref<2x12x8x64xbf16, #tpu.memory_space<vmem>>, vector<2x12x8x64xbf16>
    %5 = vector.shape_cast %4 : vector<2x12x8x64xbf16> to vector<24x8x64xbf16>
    "tpu.trace_start"() <{level = 10 : i32, message = "nqd,nkd->nqk"}> : () -> ()
    %cst = arith.constant dense<0.000000e+00> : vector<24x8x8xf32>
    %6 = tpu.matmul %1, %3, %cst {dimension_numbers = #tpu.dot_dimension_numbers<[2], [2], [1], [1], [0, 0, 0, 1, 1, 1], [0], [0]>} : vector<24x8x64xbf16>, vector<24x8x64xbf16>, vector<24x8x8xf32> -> vector<24x8x8xf32>
    "tpu.trace_stop"() : () -> ()
    %cst_11 = arith.constant 1.250000e-01 : f32
    %7 = vector.broadcast %cst_11 : f32 to vector<24x8x8xf32>
    %8 = arith.mulf %6, %7 : vector<24x8x8xf32>
    %9 = vector.shape_cast %8 : vector<24x8x8xf32> to vector<2x12x8x8xf32>
    %c0_12 = arith.constant 0 : index
    %c0_13 = arith.constant 0 : index
    %c0_14 = arith.constant 0 : index
    %10 = vector.load %arg4[%c0_12, %c0_13, %c0_14] : memref<2x8x8xi8, #tpu.memory_space<vmem>>, vector<2x8x8xi8>
    %11 = arith.sitofp %10 : vector<2x8x8xi8> to vector<2x8x8xf32>
    %cst_15 = arith.constant 1.000000e+00 : f32
    %12 = vector.broadcast %cst_15 : f32 to vector<2x8x8xf32>
    %13 = arith.subf %12, %11 : vector<2x8x8xf32>
    %14 = vector.shape_cast %13 : vector<2x8x8xf32> to vector<2x1x8x8xf32>
    %15 = vector.broadcast %14 : vector<2x1x8x8xf32> to vector<2x12x8x8xf32>
    %16 = arith.mulf %9, %15 : vector<2x12x8x8xf32>
    %cst_16 = arith.constant dense<0xFF800000> : vector<2x12x8xf32>
    %17 = vector.multi_reduction <maximumf>, %16, %cst_16 [3] : vector<2x12x8x8xf32> to vector<2x12x8xf32>
    %18 = vector.shape_cast %17 : vector<2x12x8xf32> to vector<2x12x8x1xf32>
    %19 = vector.broadcast %18 : vector<2x12x8x1xf32> to vector<2x12x8x8xf32>
    %20 = arith.subf %16, %19 : vector<2x12x8x8xf32>
    %21 = math.exp %20 : vector<2x12x8x8xf32>
    %cst_17 = arith.constant dense<0.000000e+00> : vector<2x12x8xf32>
    %22 = vector.multi_reduction <add>, %21, %cst_17 [3] : vector<2x12x8x8xf32> to vector<2x12x8xf32>
    %23 = vector.shape_cast %22 : vector<2x12x8xf32> to vector<2x12x8x1xf32>
    %24 = tpu.reciprocal %23 : vector<2x12x8x1xf32> -> vector<2x12x8x1xf32>
    %25 = vector.broadcast %24 : vector<2x12x8x1xf32> to vector<2x12x8x8xf32>
    %26 = arith.mulf %21, %25 : vector<2x12x8x8xf32>
    %27 = vector.shape_cast %26 : vector<2x12x8x8xf32> to vector<24x8x8xf32>
    %28 = arith.truncf %27 : vector<24x8x8xf32> to vector<24x8x8xbf16>
    "tpu.trace_start"() <{level = 10 : i32, message = "nqk,nkd->nqd"}> : () -> ()
    %cst_18 = arith.constant dense<0.000000e+00> : vector<24x8x64xf32>
    %29 = tpu.matmul %28, %5, %cst_18 {dimension_numbers = #tpu.dot_dimension_numbers<[2], [1], [1], [2], [0, 0, 0, 1, 1, 2], [0], [0]>} : vector<24x8x8xbf16>, vector<24x8x64xbf16>, vector<24x8x64xf32> -> vector<24x8x64xf32>
    "tpu.trace_stop"() : () -> ()
    %30 = vector.shape_cast %29 : vector<24x8x64xf32> to vector<2x12x8x64xf32>
    %31 = vector.extract_strided_slice %30 {offsets = [0, 0, 0, 0], sizes = [2, 1, 8, 64], strides = [1, 1, 1, 1]} : vector<2x12x8x64xf32> to vector<2x1x8x64xf32>
    %32 = vector.shape_cast %31 : vector<2x1x8x64xf32> to vector<2x8x64xf32>
    %33 = vector.shape_cast %32 : vector<2x8x64xf32> to vector<16x64xf32>
    %34 = arith.truncf %33 : vector<16x64xf32> to vector<16x64xbf16>
    %c0_19 = arith.constant 0 : index
    %c0_20 = arith.constant 0 : index
    %c0_21 = arith.constant 0 : index
    %35 = vector.load %arg6[%c0_19, %c0_20, %c0_21] : memref<12x64x768xbf16, #tpu.memory_space<vmem>>, vector<1x64x768xbf16>
    %36 = vector.shape_cast %35 : vector<1x64x768xbf16> to vector<64x768xbf16>
    %cst_22 = arith.constant dense<0.000000e+00> : vector<16x768xf32>
    %37 = tpu.matmul %34, %36, %cst_22 {dimension_numbers = #tpu.dot_dimension_numbers<[1], [0], [0], [1], [0, 0, 1, 1], [], []>} : vector<16x64xbf16>, vector<64x768xbf16>, vector<16x768xf32> -> vector<16x768xf32>
    %38 = vector.extract_strided_slice %30 {offsets = [0, 1, 0, 0], sizes = [2, 1, 8, 64], strides = [1, 1, 1, 1]} : vector<2x12x8x64xf32> to vector<2x1x8x64xf32>
    %39 = vector.shape_cast %38 : vector<2x1x8x64xf32> to vector<2x8x64xf32>
    %40 = vector.shape_cast %39 : vector<2x8x64xf32> to vector<16x64xf32>
    %41 = arith.truncf %40 : vector<16x64xf32> to vector<16x64xbf16>
    %c1 = arith.constant 1 : index
    %c0_23 = arith.constant 0 : index
    %c0_24 = arith.constant 0 : index
    %42 = vector.load %arg6[%c1, %c0_23, %c0_24] : memref<12x64x768xbf16, #tpu.memory_space<vmem>>, vector<1x64x768xbf16>
    %43 = vector.shape_cast %42 : vector<1x64x768xbf16> to vector<64x768xbf16>
    %cst_25 = arith.constant dense<0.000000e+00> : vector<16x768xf32>
    %44 = tpu.matmul %41, %43, %cst_25 {dimension_numbers = #tpu.dot_dimension_numbers<[1], [0], [0], [1], [0, 0, 1, 1], [], []>} : vector<16x64xbf16>, vector<64x768xbf16>, vector<16x768xf32> -> vector<16x768xf32>
    %45 = arith.addf %37, %44 : vector<16x768xf32>
    %46 = vector.extract_strided_slice %30 {offsets = [0, 2, 0, 0], sizes = [2, 1, 8, 64], strides = [1, 1, 1, 1]} : vector<2x12x8x64xf32> to vector<2x1x8x64xf32>
    %47 = vector.shape_cast %46 : vector<2x1x8x64xf32> to vector<2x8x64xf32>
    %48 = vector.shape_cast %47 : vector<2x8x64xf32> to vector<16x64xf32>
    %49 = arith.truncf %48 : vector<16x64xf32> to vector<16x64xbf16>
    %c2 = arith.constant 2 : index
    %c0_26 = arith.constant 0 : index
    %c0_27 = arith.constant 0 : index
    %50 = vector.load %arg6[%c2, %c0_26, %c0_27] : memref<12x64x768xbf16, #tpu.memory_space<vmem>>, vector<1x64x768xbf16>
    %51 = vector.shape_cast %50 : vector<1x64x768xbf16> to vector<64x768xbf16>
    %cst_28 = arith.constant dense<0.000000e+00> : vector<16x768xf32>
    %52 = tpu.matmul %49, %51, %cst_28 {dimension_numbers = #tpu.dot_dimension_numbers<[1], [0], [0], [1], [0, 0, 1, 1], [], []>} : vector<16x64xbf16>, vector<64x768xbf16>, vector<16x768xf32> -> vector<16x768xf32>
    %53 = arith.addf %45, %52 : vector<16x768xf32>
    %54 = vector.extract_strided_slice %30 {offsets = [0, 3, 0, 0], sizes = [2, 1, 8, 64], strides = [1, 1, 1, 1]} : vector<2x12x8x64xf32> to vector<2x1x8x64xf32>
    %55 = vector.shape_cast %54 : vector<2x1x8x64xf32> to vector<2x8x64xf32>
    %56 = vector.shape_cast %55 : vector<2x8x64xf32> to vector<16x64xf32>
    %57 = arith.truncf %56 : vector<16x64xf32> to vector<16x64xbf16>
    %c3 = arith.constant 3 : index
    %c0_29 = arith.constant 0 : index
    %c0_30 = arith.constant 0 : index
    %58 = vector.load %arg6[%c3, %c0_29, %c0_30] : memref<12x64x768xbf16, #tpu.memory_space<vmem>>, vector<1x64x768xbf16>
    %59 = vector.shape_cast %58 : vector<1x64x768xbf16> to vector<64x768xbf16>
    %cst_31 = arith.constant dense<0.000000e+00> : vector<16x768xf32>
    %60 = tpu.matmul %57, %59, %cst_31 {dimension_numbers = #tpu.dot_dimension_numbers<[1], [0], [0], [1], [0, 0, 1, 1], [], []>} : vector<16x64xbf16>, vector<64x768xbf16>, vector<16x768xf32> -> vector<16x768xf32>
    %61 = arith.addf %53, %60 : vector<16x768xf32>
    %62 = vector.extract_strided_slice %30 {offsets = [0, 4, 0, 0], sizes = [2, 1, 8, 64], strides = [1, 1, 1, 1]} : vector<2x12x8x64xf32> to vector<2x1x8x64xf32>
    %63 = vector.shape_cast %62 : vector<2x1x8x64xf32> to vector<2x8x64xf32>
    %64 = vector.shape_cast %63 : vector<2x8x64xf32> to vector<16x64xf32>
    %65 = arith.truncf %64 : vector<16x64xf32> to vector<16x64xbf16>
    %c4 = arith.constant 4 : index
    %c0_32 = arith.constant 0 : index
    %c0_33 = arith.constant 0 : index
    %66 = vector.load %arg6[%c4, %c0_32, %c0_33] : memref<12x64x768xbf16, #tpu.memory_space<vmem>>, vector<1x64x768xbf16>
    %67 = vector.shape_cast %66 : vector<1x64x768xbf16> to vector<64x768xbf16>
    %cst_34 = arith.constant dense<0.000000e+00> : vector<16x768xf32>
    %68 = tpu.matmul %65, %67, %cst_34 {dimension_numbers = #tpu.dot_dimension_numbers<[1], [0], [0], [1], [0, 0, 1, 1], [], []>} : vector<16x64xbf16>, vector<64x768xbf16>, vector<16x768xf32> -> vector<16x768xf32>
    %69 = arith.addf %61, %68 : vector<16x768xf32>
    %70 = vector.extract_strided_slice %30 {offsets = [0, 5, 0, 0], sizes = [2, 1, 8, 64], strides = [1, 1, 1, 1]} : vector<2x12x8x64xf32> to vector<2x1x8x64xf32>
    %71 = vector.shape_cast %70 : vector<2x1x8x64xf32> to vector<2x8x64xf32>
    %72 = vector.shape_cast %71 : vector<2x8x64xf32> to vector<16x64xf32>
    %73 = arith.truncf %72 : vector<16x64xf32> to vector<16x64xbf16>
    %c5 = arith.constant 5 : index
    %c0_35 = arith.constant 0 : index
    %c0_36 = arith.constant 0 : index
    %74 = vector.load %arg6[%c5, %c0_35, %c0_36] : memref<12x64x768xbf16, #tpu.memory_space<vmem>>, vector<1x64x768xbf16>
    %75 = vector.shape_cast %74 : vector<1x64x768xbf16> to vector<64x768xbf16>
    %cst_37 = arith.constant dense<0.000000e+00> : vector<16x768xf32>
    %76 = tpu.matmul %73, %75, %cst_37 {dimension_numbers = #tpu.dot_dimension_numbers<[1], [0], [0], [1], [0, 0, 1, 1], [], []>} : vector<16x64xbf16>, vector<64x768xbf16>, vector<16x768xf32> -> vector<16x768xf32>
    %77 = arith.addf %69, %76 : vector<16x768xf32>
    %78 = vector.extract_strided_slice %30 {offsets = [0, 6, 0, 0], sizes = [2, 1, 8, 64], strides = [1, 1, 1, 1]} : vector<2x12x8x64xf32> to vector<2x1x8x64xf32>
    %79 = vector.shape_cast %78 : vector<2x1x8x64xf32> to vector<2x8x64xf32>
    %80 = vector.shape_cast %79 : vector<2x8x64xf32> to vector<16x64xf32>
    %81 = arith.truncf %80 : vector<16x64xf32> to vector<16x64xbf16>
    %c6 = arith.constant 6 : index
    %c0_38 = arith.constant 0 : index
    %c0_39 = arith.constant 0 : index
    %82 = vector.load %arg6[%c6, %c0_38, %c0_39] : memref<12x64x768xbf16, #tpu.memory_space<vmem>>, vector<1x64x768xbf16>
    %83 = vector.shape_cast %82 : vector<1x64x768xbf16> to vector<64x768xbf16>
    %cst_40 = arith.constant dense<0.000000e+00> : vector<16x768xf32>
    %84 = tpu.matmul %81, %83, %cst_40 {dimension_numbers = #tpu.dot_dimension_numbers<[1], [0], [0], [1], [0, 0, 1, 1], [], []>} : vector<16x64xbf16>, vector<64x768xbf16>, vector<16x768xf32> -> vector<16x768xf32>
    %85 = arith.addf %77, %84 : vector<16x768xf32>
    %86 = vector.extract_strided_slice %30 {offsets = [0, 7, 0, 0], sizes = [2, 1, 8, 64], strides = [1, 1, 1, 1]} : vector<2x12x8x64xf32> to vector<2x1x8x64xf32>
    %87 = vector.shape_cast %86 : vector<2x1x8x64xf32> to vector<2x8x64xf32>
    %88 = vector.shape_cast %87 : vector<2x8x64xf32> to vector<16x64xf32>
    %89 = arith.truncf %88 : vector<16x64xf32> to vector<16x64xbf16>
    %c7 = arith.constant 7 : index
    %c0_41 = arith.constant 0 : index
    %c0_42 = arith.constant 0 : index
    %90 = vector.load %arg6[%c7, %c0_41, %c0_42] : memref<12x64x768xbf16, #tpu.memory_space<vmem>>, vector<1x64x768xbf16>
    %91 = vector.shape_cast %90 : vector<1x64x768xbf16> to vector<64x768xbf16>
    %cst_43 = arith.constant dense<0.000000e+00> : vector<16x768xf32>
    %92 = tpu.matmul %89, %91, %cst_43 {dimension_numbers = #tpu.dot_dimension_numbers<[1], [0], [0], [1], [0, 0, 1, 1], [], []>} : vector<16x64xbf16>, vector<64x768xbf16>, vector<16x768xf32> -> vector<16x768xf32>
    %93 = arith.addf %85, %92 : vector<16x768xf32>
    %94 = vector.extract_strided_slice %30 {offsets = [0, 8, 0, 0], sizes = [2, 1, 8, 64], strides = [1, 1, 1, 1]} : vector<2x12x8x64xf32> to vector<2x1x8x64xf32>
    %95 = vector.shape_cast %94 : vector<2x1x8x64xf32> to vector<2x8x64xf32>
    %96 = vector.shape_cast %95 : vector<2x8x64xf32> to vector<16x64xf32>
    %97 = arith.truncf %96 : vector<16x64xf32> to vector<16x64xbf16>
    %c8 = arith.constant 8 : index
    %c0_44 = arith.constant 0 : index
    %c0_45 = arith.constant 0 : index
    %98 = vector.load %arg6[%c8, %c0_44, %c0_45] : memref<12x64x768xbf16, #tpu.memory_space<vmem>>, vector<1x64x768xbf16>
    %99 = vector.shape_cast %98 : vector<1x64x768xbf16> to vector<64x768xbf16>
    %cst_46 = arith.constant dense<0.000000e+00> : vector<16x768xf32>
    %100 = tpu.matmul %97, %99, %cst_46 {dimension_numbers = #tpu.dot_dimension_numbers<[1], [0], [0], [1], [0, 0, 1, 1], [], []>} : vector<16x64xbf16>, vector<64x768xbf16>, vector<16x768xf32> -> vector<16x768xf32>
    %101 = arith.addf %93, %100 : vector<16x768xf32>
    %102 = vector.extract_strided_slice %30 {offsets = [0, 9, 0, 0], sizes = [2, 1, 8, 64], strides = [1, 1, 1, 1]} : vector<2x12x8x64xf32> to vector<2x1x8x64xf32>
    %103 = vector.shape_cast %102 : vector<2x1x8x64xf32> to vector<2x8x64xf32>
    %104 = vector.shape_cast %103 : vector<2x8x64xf32> to vector<16x64xf32>
    %105 = arith.truncf %104 : vector<16x64xf32> to vector<16x64xbf16>
    %c9 = arith.constant 9 : index
    %c0_47 = arith.constant 0 : index
    %c0_48 = arith.constant 0 : index
    %106 = vector.load %arg6[%c9, %c0_47, %c0_48] : memref<12x64x768xbf16, #tpu.memory_space<vmem>>, vector<1x64x768xbf16>
    %107 = vector.shape_cast %106 : vector<1x64x768xbf16> to vector<64x768xbf16>
    %cst_49 = arith.constant dense<0.000000e+00> : vector<16x768xf32>
    %108 = tpu.matmul %105, %107, %cst_49 {dimension_numbers = #tpu.dot_dimension_numbers<[1], [0], [0], [1], [0, 0, 1, 1], [], []>} : vector<16x64xbf16>, vector<64x768xbf16>, vector<16x768xf32> -> vector<16x768xf32>
    %109 = arith.addf %101, %108 : vector<16x768xf32>
    %110 = vector.extract_strided_slice %30 {offsets = [0, 10, 0, 0], sizes = [2, 1, 8, 64], strides = [1, 1, 1, 1]} : vector<2x12x8x64xf32> to vector<2x1x8x64xf32>
    %111 = vector.shape_cast %110 : vector<2x1x8x64xf32> to vector<2x8x64xf32>
    %112 = vector.shape_cast %111 : vector<2x8x64xf32> to vector<16x64xf32>
    %113 = arith.truncf %112 : vector<16x64xf32> to vector<16x64xbf16>
    %c10 = arith.constant 10 : index
    %c0_50 = arith.constant 0 : index
    %c0_51 = arith.constant 0 : index
    %114 = vector.load %arg6[%c10, %c0_50, %c0_51] : memref<12x64x768xbf16, #tpu.memory_space<vmem>>, vector<1x64x768xbf16>
    %115 = vector.shape_cast %114 : vector<1x64x768xbf16> to vector<64x768xbf16>
    %cst_52 = arith.constant dense<0.000000e+00> : vector<16x768xf32>
    %116 = tpu.matmul %113, %115, %cst_52 {dimension_numbers = #tpu.dot_dimension_numbers<[1], [0], [0], [1], [0, 0, 1, 1], [], []>} : vector<16x64xbf16>, vector<64x768xbf16>, vector<16x768xf32> -> vector<16x768xf32>
    %117 = arith.addf %109, %116 : vector<16x768xf32>
    %118 = vector.extract_strided_slice %30 {offsets = [0, 11, 0, 0], sizes = [2, 1, 8, 64], strides = [1, 1, 1, 1]} : vector<2x12x8x64xf32> to vector<2x1x8x64xf32>
    %119 = vector.shape_cast %118 : vector<2x1x8x64xf32> to vector<2x8x64xf32>
    %120 = vector.shape_cast %119 : vector<2x8x64xf32> to vector<16x64xf32>
    %121 = arith.truncf %120 : vector<16x64xf32> to vector<16x64xbf16>
    %c11 = arith.constant 11 : index
    %c0_53 = arith.constant 0 : index
    %c0_54 = arith.constant 0 : index
    %122 = vector.load %arg6[%c11, %c0_53, %c0_54] : memref<12x64x768xbf16, #tpu.memory_space<vmem>>, vector<1x64x768xbf16>
    %123 = vector.shape_cast %122 : vector<1x64x768xbf16> to vector<64x768xbf16>
    %cst_55 = arith.constant dense<0.000000e+00> : vector<16x768xf32>
    %124 = tpu.matmul %121, %123, %cst_55 {dimension_numbers = #tpu.dot_dimension_numbers<[1], [0], [0], [1], [0, 0, 1, 1], [], []>} : vector<16x64xbf16>, vector<64x768xbf16>, vector<16x768xf32> -> vector<16x768xf32>
    %125 = arith.addf %117, %124 : vector<16x768xf32>
    %126 = vector.shape_cast %125 : vector<16x768xf32> to vector<2x8x768xf32>
    %c0_56 = arith.constant 0 : index
    %c0_57 = arith.constant 0 : index
    %127 = vector.load %arg7[%c0_56, %c0_57] : memref<1x768xf32, #tpu.memory_space<vmem>>, vector<1x768xf32>
    %128 = vector.shape_cast %127 : vector<1x768xf32> to vector<1x1x768xf32>
    %129 = vector.broadcast %128 : vector<1x1x768xf32> to vector<2x8x768xf32>
    %130 = arith.addf %126, %129 : vector<2x8x768xf32>
    %cst_58 = arith.constant dense<0xFF800000> : vector<2x768xf32>
    %131 = vector.multi_reduction <maximumf>, %130, %cst_58 [1] : vector<2x8x768xf32> to vector<2x768xf32>
    %132 = vector.shape_cast %131 : vector<2x768xf32> to vector<2x1x768xf32>
    %133 = vector.broadcast %132 : vector<2x1x768xf32> to vector<2x8x768xf32>
    %134 = arith.subf %130, %133 : vector<2x8x768xf32>
    %135 = math.exp %134 : vector<2x8x768xf32>
    %cst_59 = arith.constant dense<0.000000e+00> : vector<2x768xf32>
    %136 = vector.multi_reduction <add>, %135, %cst_59 [1] : vector<2x8x768xf32> to vector<2x768xf32>
    %137 = vector.shape_cast %136 : vector<2x768xf32> to vector<2x1x768xf32>
    %138 = tpu.reciprocal %137 : vector<2x1x768xf32> -> vector<2x1x768xf32>
    %139 = vector.broadcast %138 : vector<2x1x768xf32> to vector<2x8x768xf32>
    %140 = arith.mulf %135, %139 : vector<2x8x768xf32>
    %c0_60 = arith.constant 0 : index
    %c0_61 = arith.constant 0 : index
    %c0_62 = arith.constant 0 : index
    %141 = vector.load %arg5[%c0_60, %c0_61, %c0_62] : memref<2x8x768xf32, #tpu.memory_space<vmem>>, vector<2x8x768xf32>
    %142 = arith.addf %141, %140 : vector<2x8x768xf32>
    %cst_63 = arith.constant dense<0.000000e+00> : vector<2x8xf32>
    %143 = vector.multi_reduction <add>, %142, %cst_63 [2] : vector<2x8x768xf32> to vector<2x8xf32>
    %144 = vector.shape_cast %143 : vector<2x8xf32> to vector<2x8x1xf32>
    %cst_64 = arith.constant 7.680000e+02 : f32
    %145 = vector.broadcast %cst_64 : f32 to vector<2x8x1xf32>
    %146 = arith.divf %144, %145 : vector<2x8x1xf32>
    %147 = vector.broadcast %146 : vector<2x8x1xf32> to vector<2x8x768xf32>
    %148 = arith.subf %142, %147 : vector<2x8x768xf32>
    %149 = arith.mulf %148, %148 : vector<2x8x768xf32>
    %cst_65 = arith.constant dense<0.000000e+00> : vector<2x8xf32>
    %150 = vector.multi_reduction <add>, %149, %cst_65 [2] : vector<2x8x768xf32> to vector<2x8xf32>
    %151 = vector.shape_cast %150 : vector<2x8xf32> to vector<2x8x1xf32>
    %cst_66 = arith.constant 7.680000e+02 : f32
    %152 = vector.broadcast %cst_66 : f32 to vector<2x8x1xf32>
    %153 = arith.divf %151, %152 : vector<2x8x1xf32>
    %154 = vector.broadcast %146 : vector<2x8x1xf32> to vector<2x8x768xf32>
    %155 = arith.subf %142, %154 : vector<2x8x768xf32>
    %cst_67 = arith.constant 9.99999974E-6 : f32
    %156 = vector.broadcast %cst_67 : f32 to vector<2x8x1xf32>
    %157 = arith.addf %153, %156 : vector<2x8x1xf32>
    %158 = math.rsqrt %157 : vector<2x8x1xf32>
    %159 = vector.broadcast %158 : vector<2x8x1xf32> to vector<2x8x768xf32>
    %160 = arith.mulf %155, %159 : vector<2x8x768xf32>
    %c0_68 = arith.constant 0 : index
    %c0_69 = arith.constant 0 : index
    %c0_70 = arith.constant 0 : index
    %161 = vector.load %arg8[%c0_68, %c0_69, %c0_70] : memref<2x8x768xf32, #tpu.memory_space<vmem>>, vector<2x8x768xf32>
    tpu.vector_store %arg8[%c0_68, %c0_69, %c0_70], %160 {strides = array<i32>} : memref<2x8x768xf32, #tpu.memory_space<vmem>>, vector<2x8x768xf32>,
    return
  }
  func.func @transform_0(%arg0: i32) -> (i32, i32, i32, i32) {
    %c0_i32 = arith.constant 0 : i32
    %c0_i32_0 = arith.constant 0 : i32
    %c0_i32_1 = arith.constant 0 : i32
    %c0_i32_2 = arith.constant 0 : i32
    return %arg0, %c0_i32, %c0_i32_0, %c0_i32_1 : i32, i32, i32, i32
  }
  func.func @transform_1(%arg0: i32) -> (i32, i32, i32, i32) {
    %c0_i32 = arith.constant 0 : i32
    %c0_i32_0 = arith.constant 0 : i32
    %c0_i32_1 = arith.constant 0 : i32
    %c0_i32_2 = arith.constant 0 : i32
    return %arg0, %c0_i32, %c0_i32_0, %c0_i32_1 : i32, i32, i32, i32
  }
  func.func @transform_2(%arg0: i32) -> (i32, i32, i32, i32) {
    %c0_i32 = arith.constant 0 : i32
    %c0_i32_0 = arith.constant 0 : i32
    %c0_i32_1 = arith.constant 0 : i32
    %c0_i32_2 = arith.constant 0 : i32
    return %arg0, %c0_i32, %c0_i32_0, %c0_i32_1 : i32, i32, i32, i32
  }
  func.func @transform_3(%arg0: i32) -> (i32, i32, i32) {
    %c0_i32 = arith.constant 0 : i32
    %c0_i32_0 = arith.constant 0 : i32
    %c0_i32_1 = arith.constant 0 : i32
    return %arg0, %c0_i32, %c0_i32_0 : i32, i32, i32
  }
  func.func @transform_4(%arg0: i32) -> (i32, i32, i32) {
    %c0_i32 = arith.constant 0 : i32
    %c0_i32_0 = arith.constant 0 : i32
    %c0_i32_1 = arith.constant 0 : i32
    return %arg0, %c0_i32, %c0_i32_0 : i32, i32, i32
  }
  func.func @transform_5(%arg0: i32) -> (i32, i32, i32) {
    %c0_i32 = arith.constant 0 : i32
    %c0_i32_0 = arith.constant 0 : i32
    %c0_i32_1 = arith.constant 0 : i32
    %c0_i32_2 = arith.constant 0 : i32
    return %c0_i32, %c0_i32_0, %c0_i32_1 : i32, i32, i32
  }
  func.func @transform_6(%arg0: i32) -> (i32, i32) {
    %c0_i32 = arith.constant 0 : i32
    %c0_i32_0 = arith.constant 0 : i32
    %c0_i32_1 = arith.constant 0 : i32
    return %c0_i32, %c0_i32_0 : i32, i32
  }
  func.func @transform_7(%arg0: i32) -> (i32, i32, i32) {
    %c0_i32 = arith.constant 0 : i32
    %c0_i32_0 = arith.constant 0 : i32
    %c0_i32_1 = arith.constant 0 : i32
    return %arg0, %c0_i32, %c0_i32_0 : i32, i32, i32
  }
}

</mosaic_0001>

<llo_original>
// kernel: _forward_self.3
$region0: #{_forward_self.3}
  #allocation0 [shape = 'u32[]', space=smem, size = 0x4, offset = 0x4, fixed_abs, tag = 'smem constant byte address 0x4 - core index']
  #allocation1 [shape = 'u32[144,128]{1,0:T(1,128)}', space=vmem, size = 0x12000, scoped, tag = 'internal scratch']
  %s0 = inlined_call_operand.vmem [shape: bf16[2,12,8,64], index: 0, kind: input, shape index: {}]
  %s1 = inlined_call_operand.vmem [shape: bf16[2,12,8,64], index: 1, kind: input, shape index: {}]
  %s2 = inlined_call_operand.vmem [shape: bf16[2,12,8,64], index: 2, kind: input, shape index: {}]
  %s3 = inlined_call_operand.vmem [shape: s8[2,8,8], index: 3, kind: input, shape index: {}]
  %s4 = inlined_call_operand.vmem [shape: f32[2,8,768], index: 4, kind: input, shape index: {}]
  %s5 = inlined_call_operand.vmem [shape: bf16[12,64,768], index: 5, kind: input, shape index: {}]
  %s6 = inlined_call_operand.vmem [shape: f32[1,768], index: 6, kind: input, shape index: {}]
  %s7 = inlined_call_operand.hbm [shape: f32[2,8,768], index: 7, kind: output, shape index: {}]
  %s8 = sld [smem:[#allocation0]]
  $region38: #{_forward_self.3} parent=0
    _
  %s10 = ssub.s32 1, %s8
  %s11 = scalar_select 0, %s10, %s8
  $region1: #{_forward_self.3} parent=0
    #allocation2 [shape = 'u8[49152]{0}', space=vmem, size = 0xc000, scoped, tag = 'output window, operand 0, single buffered']
    #allocation3 [shape = 's32[1]{0}', space=sflag, size = 0x4, scoped, tag = 'scoped memory for _forward_self.3']
    %12 = vsyncpa [#allocation3], 0
    // Predicated region
    $region2: #{_forward_self.3} parent=1 // pred_check
      _
    $region3: #{_forward_self.3} parent=1 // pred_check_branch
      %14 = sbr.rel (0) target = $region5
    $region4: #{_forward_self.3} parent=1 // pred_region
      _
    $region5: #{_forward_self.3} parent=1 // pred_fallthru
      _
    // Predicated region
    $region6: #{_forward_self.3} parent=1 // pred_check
      _
    $region7: #{_forward_self.3} parent=1 // pred_check_branch
      %16 = sbr.rel (0) target = $region9
    $region8: #{_forward_self.3} parent=1 // pred_region
      _
    $region9: #{_forward_self.3} parent=1 // pred_fallthru
      _
    // Predicated region
    $region10: #{_forward_self.3} parent=1 // pred_check
      _
    $region11: #{_forward_self.3} parent=1 // pred_check_branch
      %18 = sbr.rel (0) target = $region13
    $region12: #{_forward_self.3} parent=1 // pred_region
      _
    $region13: #{_forward_self.3} parent=1 // pred_fallthru
      _
    // Predicated region
    $region14: #{_forward_self.3} parent=1 // pred_check
      _
    $region15: #{_forward_self.3} parent=1 // pred_check_branch
      %20 = sbr.rel (0) target = $region17
    $region16: #{_forward_self.3} parent=1 // pred_region
      _
    $region17: #{_forward_self.3} parent=1 // pred_fallthru
      _
    // Predicated region
    $region18: #{_forward_self.3} parent=1 // pred_check
      _
    $region19: #{_forward_self.3} parent=1 // pred_check_branch
      %22 = sbr.rel (0) target = $region21
    $region20: #{_forward_self.3} parent=1 // pred_region
      _
    $region21: #{_forward_self.3} parent=1 // pred_fallthru
      _
    // Predicated region
    $region22: #{_forward_self.3} parent=1 // pred_check
      _
    $region23: #{_forward_self.3} parent=1 // pred_check_branch
      %24 = sbr.rel (0) target = $region25
    $region24: #{_forward_self.3} parent=1 // pred_region
      _
    $region25: #{_forward_self.3} parent=1 // pred_fallthru
      _
    // Predicated region
    $region26: #{_forward_self.3} parent=1 // pred_check
      _
    $region27: #{_forward_self.3} parent=1 // pred_check_branch
      %26 = sbr.rel (0) target = $region29
    $region28: #{_forward_self.3} parent=1 // pred_region
      _
    $region29: #{_forward_self.3} parent=1 // pred_fallthru
      _
    %v28 = vld [vmem:[%s0] sm:$0xf]
    %v29 = vld [vmem:[%s0 + $0x4] sm:$0xf]
    %v30 = vld [vmem:[%s0 + $0x8] sm:$0xf]
    %v31 = vld [vmem:[%s0 + $0xc] sm:$0xf]
    %v32 = vld [vmem:[%s0 + $0x10] sm:$0xf]
    %v33 = vld [vmem:[%s0 + $0x14] sm:$0xf]
    %v34 = vld [vmem:[%s0 + $0x18] sm:$0xf]
    %v35 = vld [vmem:[%s0 + $0x1c] sm:$0xf]
    %v36 = vld [vmem:[%s0 + $0x20] sm:$0xf]
    %v37 = vld [vmem:[%s0 + $0x24] sm:$0xf]
    %v38 = vld [vmem:[%s0 + $0x28] sm:$0xf]
    %v39 = vld [vmem:[%s0 + $0x2c] sm:$0xf]
    %v40 = vld [vmem:[%s0 + $0x30] sm:$0xf]
    %v41 = vld [vmem:[%s0 + $0x34] sm:$0xf]
    %v42 = vld [vmem:[%s0 + $0x38] sm:$0xf]
    %v43 = vld [vmem:[%s0 + $0x3c] sm:$0xf]
    %v44 = vld [vmem:[%s0 + $0x40] sm:$0xf]
    %v45 = vld [vmem:[%s0 + $0x44] sm:$0xf]
    %v46 = vld [vmem:[%s0 + $0x48] sm:$0xf]
    %v47 = vld [vmem:[%s0 + $0x4c] sm:$0xf]
    %v48 = vld [vmem:[%s0 + $0x50] sm:$0xf]
    %v49 = vld [vmem:[%s0 + $0x54] sm:$0xf]
    %v50 = vld [vmem:[%s0 + $0x58] sm:$0xf]
    %v51 = vld [vmem:[%s0 + $0x5c] sm:$0xf]
    %v52 = vld [vmem:[%s1] sm:$0xf]
    %v53 = vld [vmem:[%s1 + $0x4] sm:$0xf]
    %v54 = vld [vmem:[%s1 + $0x8] sm:$0xf]
    %v55 = vld [vmem:[%s1 + $0xc] sm:$0xf]
    %v56 = vld [vmem:[%s1 + $0x10] sm:$0xf]
    %v57 = vld [vmem:[%s1 + $0x14] sm:$0xf]
    %v58 = vld [vmem:[%s1 + $0x18] sm:$0xf]
    %v59 = vld [vmem:[%s1 + $0x1c] sm:$0xf]
    %v60 = vld [vmem:[%s1 + $0x20] sm:$0xf]
    %v61 = vld [vmem:[%s1 + $0x24] sm:$0xf]
    %v62 = vld [vmem:[%s1 + $0x28] sm:$0xf]
    %v63 = vld [vmem:[%s1 + $0x2c] sm:$0xf]
    %v64 = vld [vmem:[%s1 + $0x30] sm:$0xf]
    %v65 = vld [vmem:[%s1 + $0x34] sm:$0xf]
    %v66 = vld [vmem:[%s1 + $0x38] sm:$0xf]
    %v67 = vld [vmem:[%s1 + $0x3c] sm:$0xf]
    %v68 = vld [vmem:[%s1 + $0x40] sm:$0xf]
    %v69 = vld [vmem:[%s1 + $0x44] sm:$0xf]
    %v70 = vld [vmem:[%s1 + $0x48] sm:$0xf]
    %v71 = vld [vmem:[%s1 + $0x4c] sm:$0xf]
    %v72 = vld [vmem:[%s1 + $0x50] sm:$0xf]
    %v73 = vld [vmem:[%s1 + $0x54] sm:$0xf]
    %v74 = vld [vmem:[%s1 + $0x58] sm:$0xf]
    %v75 = vld [vmem:[%s1 + $0x5c] sm:$0xf]
    %v76 = vld [vmem:[%s2] sm:$0xf]
    %v77 = vld [vmem:[%s2 + $0x4] sm:$0xf]
    %v78 = vld [vmem:[%s2 + $0x8] sm:$0xf]
    %v79 = vld [vmem:[%s2 + $0xc] sm:$0xf]
    %v80 = vld [vmem:[%s2 + $0x10] sm:$0xf]
    %v81 = vld [vmem:[%s2 + $0x14] sm:$0xf]
    %v82 = vld [vmem:[%s2 + $0x18] sm:$0xf]
    %v83 = vld [vmem:[%s2 + $0x1c] sm:$0xf]
    %v84 = vld [vmem:[%s2 + $0x20] sm:$0xf]
    %v85 = vld [vmem:[%s2 + $0x24] sm:$0xf]
    %v86 = vld [vmem:[%s2 + $0x28] sm:$0xf]
    %v87 = vld [vmem:[%s2 + $0x2c] sm:$0xf]
    %v88 = vld [vmem:[%s2 + $0x30] sm:$0xf]
    %v89 = vld [vmem:[%s2 + $0x34] sm:$0xf]
    %v90 = vld [vmem:[%s2 + $0x38] sm:$0xf]
    %v91 = vld [vmem:[%s2 + $0x3c] sm:$0xf]
    %v92 = vld [vmem:[%s2 + $0x40] sm:$0xf]
    %v93 = vld [vmem:[%s2 + $0x44] sm:$0xf]
    %v94 = vld [vmem:[%s2 + $0x48] sm:$0xf]
    %v95 = vld [vmem:[%s2 + $0x4c] sm:$0xf]
    %v96 = vld [vmem:[%s2 + $0x50] sm:$0xf]
    %v97 = vld [vmem:[%s2 + $0x54] sm:$0xf]
    %v98 = vld [vmem:[%s2 + $0x58] sm:$0xf]
    %v99 = vld [vmem:[%s2 + $0x5c] sm:$0xf]
    %vm100 = vcmask 523264
    %v102 = vsel %vm100, %v28, 0
    %v105 = vsel %vm100, %v52, 0
    %107 = vmatprep.subr.bf16.mxu0 0
    %108 = vmatpush1.bf16.xpose.msra.mxu0 %v105
    %109 = vmatprep.subr.bf16.mxu0 0
    %110 = vmatpush1.bf16.xpose.msra.mxu0 0
    %111 = vmatprep.subr.bf16.mxu0 0
    %112 = vmatpush1.bf16.xpose.msra.mxu0 0
    %113 = vmatprep.subr.bf16.mxu0 0
    %114 = vmatpush1.bf16.xpose.msra.mxu0 0
    %115 = vmatprep.subr.bf16.mxu0 0
    %116 = vmatpush1.bf16.xpose.msra.mxu0 0
    %117 = vmatprep.subr.bf16.mxu0 0
    %118 = vmatpush1.bf16.xpose.msra.mxu0 0
    %119 = vmatprep.subr.bf16.mxu0 0
    %120 = vmatpush1.bf16.xpose.msra.mxu0 0
    %121 = vmatprep.subr.bf16.mxu0 0
    %122 = vmatpush1.bf16.xpose.msra.mxu0 0
    %123 = vmatprep.subr.bf16.mxu0 0
    %124 = vmatpush1.bf16.xpose.msra.mxu0 0
    %125 = vmatprep.subr.bf16.mxu0 0
    %126 = vmatpush1.bf16.xpose.msra.mxu0 0
    %127 = vmatprep.subr.bf16.mxu0 0
    %128 = vmatpush1.bf16.xpose.msra.mxu0 0
    %129 = vmatprep.subr.bf16.mxu0 0
    %130 = vmatpush1.bf16.xpose.msra.mxu0 0
    %131 = vmatprep.subr.bf16.mxu0 0
    %132 = vmatpush1.bf16.xpose.msra.mxu0 0
    %133 = vmatprep.subr.bf16.mxu0 0
    %134 = vmatpush1.bf16.xpose.msra.mxu0 0
    %135 = vmatprep.subr.bf16.mxu0 0
    %136 = vmatpush1.bf16.xpose.msra.mxu0 0
    %137 = vmatprep.subr.bf16.mxu0 0
    %138 = vmatpush1.bf16.xpose.msra.mxu0 0
    %139 = vmatprep.mubr.bf16.mxu0 0
    %140 = vmatmul.mubr.bf16.gmra.mrb[0].mxu0 %v102
    %v141 = vpop.f32.mrb[0].mxu0
    %v142 = vadd.f32 0.0, %v141
    %v143 = vpop.f32.mrb[0].mxu0
    %v144 = vpop.f32.mrb[0].mxu0
    %v145 = vpop.f32.mrb[0].mxu0
    %146 = vdwg.mxu0
    %v148 = vsel %vm100, %v29, 0
    %v151 = vsel %vm100, %v53, 0
    %153 = vmatprep.subr.bf16.mxu0 0
    %154 = vmatpush1.bf16.xpose.msra.mxu0 %v151
    %155 = vmatprep.subr.bf16.mxu0 0
    %156 = vmatpush1.bf16.xpose.msra.mxu0 0
    %157 = vmatprep.subr.bf16.mxu0 0
    %158 = vmatpush1.bf16.xpose.msra.mxu0 0
    %159 = vmatprep.subr.bf16.mxu0 0
    %160 = vmatpush1.bf16.xpose.msra.mxu0 0
    %161 = vmatprep.subr.bf16.mxu0 0
    %162 = vmatpush1.bf16.xpose.msra.mxu0 0
    %163 = vmatprep.subr.bf16.mxu0 0
    %164 = vmatpush1.bf16.xpose.msra.mxu0 0
    %165 = vmatprep.subr.bf16.mxu0 0
    %166 = vmatpush1.bf16.xpose.msra.mxu0 0
    %167 = vmatprep.subr.bf16.mxu0 0
    %168 = vmatpush1.bf16.xpose.msra.mxu0 0
    %169 = vmatprep.subr.bf16.mxu0 0
    %170 = vmatpush1.bf16.xpose.msra.mxu0 0
    %171 = vmatprep.subr.bf16.mxu0 0
    %172 = vmatpush1.bf16.xpose.msra.mxu0 0
    %173 = vmatprep.subr.bf16.mxu0 0
    %174 = vmatpush1.bf16.xpose.msra.mxu0 0
    %175 = vmatprep.subr.bf16.mxu0 0
    %176 = vmatpush1.bf16.xpose.msra.mxu0 0
    %177 = vmatprep.subr.bf16.mxu0 0
    %178 = vmatpush1.bf16.xpose.msra.mxu0 0
    %179 = vmatprep.subr.bf16.mxu0 0
    %180 = vmatpush1.bf16.xpose.msra.mxu0 0
    %181 = vmatprep.subr.bf16.mxu0 0
    %182 = vmatpush1.bf16.xpose.msra.mxu0 0
    %183 = vmatprep.subr.bf16.mxu0 0
    %184 = vmatpush1.bf16.xpose.msra.mxu0 0
    %185 = vmatprep.mubr.bf16.mxu0 0
    %186 = vmatmul.mubr.bf16.gmra.mrb[0].mxu0 %v148
    %v187 = vpop.f32.mrb[0].mxu0
    %v188 = vadd.f32 0.0, %v187
    %v189 = vpop.f32.mrb[0].mxu0
    %v190 = vpop.f32.mrb[0].mxu0
    %v191 = vpop.f32.mrb[0].mxu0
    %192 = vdwg.mxu0
    %v194 = vsel %vm100, %v30, 0
    %v197 = vsel %vm100, %v54, 0
    %199 = vmatprep.subr.bf16.mxu0 0
    %200 = vmatpush1.bf16.xpose.msra.mxu0 %v197
    %201 = vmatprep.subr.bf16.mxu0 0
    %202 = vmatpush1.bf16.xpose.msra.mxu0 0
    %203 = vmatprep.subr.bf16.mxu0 0
    %204 = vmatpush1.bf16.xpose.msra.mxu0 0
    %205 = vmatprep.subr.bf16.mxu0 0
    %206 = vmatpush1.bf16.xpose.msra.mxu0 0
    %207 = vmatprep.subr.bf16.mxu0 0
    %208 = vmatpush1.bf16.xpose.msra.mxu0 0
    %209 = vmatprep.subr.bf16.mxu0 0
    %210 = vmatpush1.bf16.xpose.msra.mxu0 0
    %211 = vmatprep.subr.bf16.mxu0 0
    %212 = vmatpush1.bf16.xpose.msra.mxu0 0
    %213 = vmatprep.subr.bf16.mxu0 0
    %214 = vmatpush1.bf16.xpose.msra.mxu0 0
    %215 = vmatprep.subr.bf16.mxu0 0
    %216 = vmatpush1.bf16.xpose.msra.mxu0 0
    %217 = vmatprep.subr.bf16.mxu0 0
    %218 = vmatpush1.bf16.xpose.msra.mxu0 0
    %219 = vmatprep.subr.bf16.mxu0 0
    %220 = vmatpush1.bf16.xpose.msra.mxu0 0
    %221 = vmatprep.subr.bf16.mxu0 0
    %222 = vmatpush1.bf16.xpose.msra.mxu0 0
    %223 = vmatprep.subr.bf16.mxu0 0
    %224 = vmatpush1.bf16.xpose.msra.mxu0 0
    %225 = vmatprep.subr.bf16.mxu0 0
    %226 = vmatpush1.bf16.xpose.msra.mxu0 0
    %227 = vmatprep.subr.bf16.mxu0 0
    %228 = vmatpush1.bf16.xpose.msra.mxu0 0
    %229 = vmatprep.subr.bf16.mxu0 0
    %230 = vmatpush1.bf16.xpose.msra.mxu0 0
    %231 = vmatprep.mubr.bf16.mxu0 0
    %232 = vmatmul.mubr.bf16.gmra.mrb[0].mxu0 %v194
    %v233 = vpop.f32.mrb[0].mxu0
    %v234 = vadd.f32 0.0, %v233
    %v235 = vpop.f32.mrb[0].mxu0
    %v236 = vpop.f32.mrb[0].mxu0
    %v237 = vpop.f32.mrb[0].mxu0
    %238 = vdwg.mxu0
    %v240 = vsel %vm100, %v31, 0
    %v243 = vsel %vm100, %v55, 0
    %245 = vmatprep.subr.bf16.mxu0 0
    %246 = vmatpush1.bf16.xpose.msra.mxu0 %v243
    %247 = vmatprep.subr.bf16.mxu0 0
    %248 = vmatpush1.bf16.xpose.msra.mxu0 0
    %249 = vmatprep.subr.bf16.mxu0 0
    %250 = vmatpush1.bf16.xpose.msra.mxu0 0
    %251 = vmatprep.subr.bf16.mxu0 0
    %252 = vmatpush1.bf16.xpose.msra.mxu0 0
    %253 = vmatprep.subr.bf16.mxu0 0
    %254 = vmatpush1.bf16.xpose.msra.mxu0 0
    %255 = vmatprep.subr.bf16.mxu0 0
    %256 = vmatpush1.bf16.xpose.msra.mxu0 0
    %257 = vmatprep.subr.bf16.mxu0 0
    %258 = vmatpush1.bf16.xpose.msra.mxu0 0
    %259 = vmatprep.subr.bf16.mxu0 0
    %260 = vmatpush1.bf16.xpose.msra.mxu0 0
    %261 = vmatprep.subr.bf16.mxu0 0
    %262 = vmatpush1.bf16.xpose.msra.mxu0 0
    %263 = vmatprep.subr.bf16.mxu0 0
    %264 = vmatpush1.bf16.xpose.msra.mxu0 0
    %265 = vmatprep.subr.bf16.mxu0 0
    %266 = vmatpush1.bf16.xpose.msra.mxu0 0
    %267 = vmatprep.subr.bf16.mxu0 0
    %268 = vmatpush1.bf16.xpose.msra.mxu0 0
    %269 = vmatprep.subr.bf16.mxu0 0
    %270 = vmatpush1.bf16.xpose.msra.mxu0 0
    %271 = vmatprep.subr.bf16.mxu0 0
    %272 = vmatpush1.bf16.xpose.msra.mxu0 0
    %273 = vmatprep.subr.bf16.mxu0 0
    %274 = vmatpush1.bf16.xpose.msra.mxu0 0
    %275 = vmatprep.subr.bf16.mxu0 0
    %276 = vmatpush1.bf16.xpose.msra.mxu0 0
    %277 = vmatprep.mubr.bf16.mxu0 0
    %278 = vmatmul.mubr.bf16.gmra.mrb[0].mxu0 %v240
    %v279 = vpop.f32.mrb[0].mxu0
    %v280 = vadd.f32 0.0, %v279
    %v281 = vpop.f32.mrb[0].mxu0
    %v282 = vpop.f32.mrb[0].mxu0
    %v283 = vpop.f32.mrb[0].mxu0
    %284 = vdwg.mxu0
    %v286 = vsel %vm100, %v32, 0
    %v289 = vsel %vm100, %v56, 0
    %291 = vmatprep.subr.bf16.mxu0 0
    %292 = vmatpush1.bf16.xpose.msra.mxu0 %v289
    %293 = vmatprep.subr.bf16.mxu0 0
    %294 = vmatpush1.bf16.xpose.msra.mxu0 0
    %295 = vmatprep.subr.bf16.mxu0 0
    %296 = vmatpush1.bf16.xpose.msra.mxu0 0
    %297 = vmatprep.subr.bf16.mxu0 0
    %298 = vmatpush1.bf16.xpose.msra.mxu0 0
    %299 = vmatprep.subr.bf16.mxu0 0
    %300 = vmatpush1.bf16.xpose.msra.mxu0 0
    %301 = vmatprep.subr.bf16.mxu0 0
    %302 = vmatpush1.bf16.xpose.msra.mxu0 0
    %303 = vmatprep.subr.bf16.mxu0 0
    %304 = vmatpush1.bf16.xpose.msra.mxu0 0
    %305 = vmatprep.subr.bf16.mxu0 0
    %306 = vmatpush1.bf16.xpose.msra.mxu0 0
    %307 = vmatprep.subr.bf16.mxu0 0
    %308 = vmatpush1.bf16.xpose.msra.mxu0 0
    %309 = vmatprep.subr.bf16.mxu0 0
    %310 = vmatpush1.bf16.xpose.msra.mxu0 0
    %311 = vmatprep.subr.bf16.mxu0 0
    %312 = vmatpush1.bf16.xpose.msra.mxu0 0
    %313 = vmatprep.subr.bf16.mxu0 0
    %314 = vmatpush1.bf16.xpose.msra.mxu0 0
    %315 = vmatprep.subr.bf16.mxu0 0
    %316 = vmatpush1.bf16.xpose.msra.mxu0 0
    %317 = vmatprep.subr.bf16.mxu0 0
    %318 = vmatpush1.bf16.xpose.msra.mxu0 0
    %319 = vmatprep.subr.bf16.mxu0 0
    %320 = vmatpush1.bf16.xpose.msra.mxu0 0
    %321 = vmatprep.subr.bf16.mxu0 0
    %322 = vmatpush1.bf16.xpose.msra.mxu0 0
    %323 = vmatprep.mubr.bf16.mxu0 0
    %324 = vmatmul.mubr.bf16.gmra.mrb[0].mxu0 %v286
    %v325 = vpop.f32.mrb[0].mxu0
    %v326 = vadd.f32 0.0, %v325
    %v327 = vpop.f32.mrb[0].mxu0
    %v328 = vpop.f32.mrb[0].mxu0
    %v329 = vpop.f32.mrb[0].mxu0
    %330 = vdwg.mxu0
    %v332 = vsel %vm100, %v33, 0
    %v335 = vsel %vm100, %v57, 0
    %337 = vmatprep.subr.bf16.mxu0 0
    %338 = vmatpush1.bf16.xpose.msra.mxu0 %v335
    %339 = vmatprep.subr.bf16.mxu0 0
    %340 = vmatpush1.bf16.xpose.msra.mxu0 0
    %341 = vmatprep.subr.bf16.mxu0 0
    %342 = vmatpush1.bf16.xpose.msra.mxu0 0
    %343 = vmatprep.subr.bf16.mxu0 0
    %344 = vmatpush1.bf16.xpose.msra.mxu0 0
    %345 = vmatprep.subr.bf16.mxu0 0
    %346 = vmatpush1.bf16.xpose.msra.mxu0 0
    %347 = vmatprep.subr.bf16.mxu0 0
    %348 = vmatpush1.bf16.xpose.msra.mxu0 0
    %349 = vmatprep.subr.bf16.mxu0 0
    %350 = vmatpush1.bf16.xpose.msra.mxu0 0
    %351 = vmatprep.subr.bf16.mxu0 0
    %352 = vmatpush1.bf16.xpose.msra.mxu0 0
    %353 = vmatprep.subr.bf16.mxu0 0
    %354 = vmatpush1.bf16.xpose.msra.mxu0 0
    %355 = vmatprep.subr.bf16.mxu0 0
    %356 = vmatpush1.bf16.xpose.msra.mxu0 0
    %357 = vmatprep.subr.bf16.mxu0 0
    %358 = vmatpush1.bf16.xpose.msra.mxu0 0
    %359 = vmatprep.subr.bf16.mxu0 0
    %360 = vmatpush1.bf16.xpose.msra.mxu0 0
    %361 = vmatprep.subr.bf16.mxu0 0
    %362 = vmatpush1.bf16.xpose.msra.mxu0 0
    %363 = vmatprep.subr.bf16.mxu0 0
    %364 = vmatpush1.bf16.xpose.msra.mxu0 0
    %365 = vmatprep.subr.bf16.mxu0 0
    %366 = vmatpush1.bf16.xpose.msra.mxu0 0
    %367 = vmatprep.subr.bf16.mxu0 0
    %368 = vmatpush1.bf16.xpose.msra.mxu0 0
    %369 = vmatprep.mubr.bf16.mxu0 0
    %370 = vmatmul.mubr.bf16.gmra.mrb[0].mxu0 %v332
    %v371 = vpop.f32.mrb[0].mxu0
    %v372 = vadd.f32 0.0, %v371
    %v373 = vpop.f32.mrb[0].mxu0
    %v374 = vpop.f32.mrb[0].mxu0
    %v375 = vpop.f32.mrb[0].mxu0
    %376 = vdwg.mxu0
    %v378 = vsel %vm100, %v34, 0
    %v381 = vsel %vm100, %v58, 0
    %383 = vmatprep.subr.bf16.mxu0 0
    %384 = vmatpush1.bf16.xpose.msra.mxu0 %v381
    %385 = vmatprep.subr.bf16.mxu0 0
    %386 = vmatpush1.bf16.xpose.msra.mxu0 0
    %387 = vmatprep.subr.bf16.mxu0 0
    %388 = vmatpush1.bf16.xpose.msra.mxu0 0
    %389 = vmatprep.subr.bf16.mxu0 0
    %390 = vmatpush1.bf16.xpose.msra.mxu0 0
    %391 = vmatprep.subr.bf16.mxu0 0
    %392 = vmatpush1.bf16.xpose.msra.mxu0 0
    %393 = vmatprep.subr.bf16.mxu0 0
    %394 = vmatpush1.bf16.xpose.msra.mxu0 0
    %395 = vmatprep.subr.bf16.mxu0 0
    %396 = vmatpush1.bf16.xpose.msra.mxu0 0
    %397 = vmatprep.subr.bf16.mxu0 0
    %398 = vmatpush1.bf16.xpose.msra.mxu0 0
    %399 = vmatprep.subr.bf16.mxu0 0
    %400 = vmatpush1.bf16.xpose.msra.mxu0 0
    %401 = vmatprep.subr.bf16.mxu0 0
    %402 = vmatpush1.bf16.xpose.msra.mxu0 0
    %403 = vmatprep.subr.bf16.mxu0 0
    %404 = vmatpush1.bf16.xpose.msra.mxu0 0
    %405 = vmatprep.subr.bf16.mxu0 0
    %406 = vmatpush1.bf16.xpose.msra.mxu0 0
    %407 = vmatprep.subr.bf16.mxu0 0
    %408 = vmatpush1.bf16.xpose.msra.mxu0 0
    %409 = vmatprep.subr.bf16.mxu0 0
    %410 = vmatpush1.bf16.xpose.msra.mxu0 0
    %411 = vmatprep.subr.bf16.mxu0 0
    %412 = vmatpush1.bf16.xpose.msra.mxu0 0
    %413 = vmatprep.subr.bf16.mxu0 0
    %414 = vmatpush1.bf16.xpose.msra.mxu0 0
    %415 = vmatprep.mubr.bf16.mxu0 0
    %416 = vmatmul.mubr.bf16.gmra.mrb[0].mxu0 %v378
    %v417 = vpop.f32.mrb[0].mxu0
    %v418 = vadd.f32 0.0, %v417
    %v419 = vpop.f32.mrb[0].mxu0
    %v420 = vpop.f32.mrb[0].mxu0
    %v421 = vpop.f32.mrb[0].mxu0
    %422 = vdwg.mxu0
    %v424 = vsel %vm100, %v35, 0
    %v427 = vsel %vm100, %v59, 0
    %429 = vmatprep.subr.bf16.mxu0 0
    %430 = vmatpush1.bf16.xpose.msra.mxu0 %v427
    %431 = vmatprep.subr.bf16.mxu0 0
    %432 = vmatpush1.bf16.xpose.msra.mxu0 0
    %433 = vmatprep.subr.bf16.mxu0 0
    %434 = vmatpush1.bf16.xpose.msra.mxu0 0
    %435 = vmatprep.subr.bf16.mxu0 0
    %436 = vmatpush1.bf16.xpose.msra.mxu0 0
    %437 = vmatprep.subr.bf16.mxu0 0
    %438 = vmatpush1.bf16.xpose.msra.mxu0 0
    %439 = vmatprep.subr.bf16.mxu0 0
    %440 = vmatpush1.bf16.xpose.msra.mxu0 0
    %441 = vmatprep.subr.bf16.mxu0 0
    %442 = vmatpush1.bf16.xpose.msra.mxu0 0
    %443 = vmatprep.subr.bf16.mxu0 0
    %444 = vmatpush1.bf16.xpose.msra.mxu0 0
    %445 = vmatprep.subr.bf16.mxu0 0
    %446 = vmatpush1.bf16.xpose.msra.mxu0 0
    %447 = vmatprep.subr.bf16.mxu0 0
    %448 = vmatpush1.bf16.xpose.msra.mxu0 0
    %449 = vmatprep.subr.bf16.mxu0 0
    %450 = vmatpush1.bf16.xpose.msra.mxu0 0
    %451 = vmatprep.subr.bf16.mxu0 0
    %452 = vmatpush1.bf16.xpose.msra.mxu0 0
    %453 = vmatprep.subr.bf16.mxu0 0
    %454 = vmatpush1.bf16.xpose.msra.mxu0 0
    %455 = vmatprep.subr.bf16.mxu0 0
    %456 = vmatpush1.bf16.xpose.msra.mxu0 0
    %457 = vmatprep.subr.bf16.mxu0 0
    %458 = vmatpush1.bf16.xpose.msra.mxu0 0
    %459 = vmatprep.subr.bf16.mxu0 0
    %460 = vmatpush1.bf16.xpose.msra.mxu0 0
    %461 = vmatprep.mubr.bf16.mxu0 0
    %462 = vmatmul.mubr.bf16.gmra.mrb[0].mxu0 %v424
    %v463 = vpop.f32.mrb[0].mxu0
    %v464 = vadd.f32 0.0, %v463
    %v465 = vpop.f32.mrb[0].mxu0
    %v466 = vpop.f32.mrb[0].mxu0
    %v467 = vpop.f32.mrb[0].mxu0
    %468 = vdwg.mxu0
    %v470 = vsel %vm100, %v36, 0
    %v473 = vsel %vm100, %v60, 0
    %475 = vmatprep.subr.bf16.mxu0 0
    %476 = vmatpush1.bf16.xpose.msra.mxu0 %v473
    %477 = vmatprep.subr.bf16.mxu0 0
    %478 = vmatpush1.bf16.xpose.msra.mxu0 0
    %479 = vmatprep.subr.bf16.mxu0 0
    %480 = vmatpush1.bf16.xpose.msra.mxu0 0
    %481 = vmatprep.subr.bf16.mxu0 0
    %482 = vmatpush1.bf16.xpose.msra.mxu0 0
    %483 = vmatprep.subr.bf16.mxu0 0
    %484 = vmatpush1.bf16.xpose.msra.mxu0 0
    %485 = vmatprep.subr.bf16.mxu0 0
    %486 = vmatpush1.bf16.xpose.msra.mxu0 0
    %487 = vmatprep.subr.bf16.mxu0 0
    %488 = vmatpush1.bf16.xpose.msra.mxu0 0
    %489 = vmatprep.subr.bf16.mxu0 0
    %490 = vmatpush1.bf16.xpose.msra.mxu0 0
    %491 = vmatprep.subr.bf16.mxu0 0
    %492 = vmatpush1.bf16.xpose.msra.mxu0 0
    %493 = vmatprep.subr.bf16.mxu0 0
    %494 = vmatpush1.bf16.xpose.msra.mxu0 0
    %495 = vmatprep.subr.bf16.mxu0 0
    %496 = vmatpush1.bf16.xpose.msra.mxu0 0
    %497 = vmatprep.subr.bf16.mxu0 0
    %498 = vmatpush1.bf16.xpose.msra.mxu0 0
    %499 = vmatprep.subr.bf16.mxu0 0
    %500 = vmatpush1.bf16.xpose.msra.mxu0 0
    %501 = vmatprep.subr.bf16.mxu0 0
    %502 = vmatpush1.bf16.xpose.msra.mxu0 0
    %503 = vmatprep.subr.bf16.mxu0 0
    %504 = vmatpush1.bf16.xpose.msra.mxu0 0
    %505 = vmatprep.subr.bf16.mxu0 0
    %506 = vmatpush1.bf16.xpose.msra.mxu0 0
    %507 = vmatprep.mubr.bf16.mxu0 0
    %508 = vmatmul.mubr.bf16.gmra.mrb[0].mxu0 %v470
    %v509 = vpop.f32.mrb[0].mxu0
    %v510 = vadd.f32 0.0, %v509
    %v511 = vpop.f32.mrb[0].mxu0
    %v512 = vpop.f32.mrb[0].mxu0
    %v513 = vpop.f32.mrb[0].mxu0
    %514 = vdwg.mxu0
    %v516 = vsel %vm100, %v37, 0
    %v519 = vsel %vm100, %v61, 0
    %521 = vmatprep.subr.bf16.mxu0 0
    %522 = vmatpush1.bf16.xpose.msra.mxu0 %v519
    %523 = vmatprep.subr.bf16.mxu0 0
    %524 = vmatpush1.bf16.xpose.msra.mxu0 0
    %525 = vmatprep.subr.bf16.mxu0 0
    %526 = vmatpush1.bf16.xpose.msra.mxu0 0
    %527 = vmatprep.subr.bf16.mxu0 0
    %528 = vmatpush1.bf16.xpose.msra.mxu0 0
    %529 = vmatprep.subr.bf16.mxu0 0
    %530 = vmatpush1.bf16.xpose.msra.mxu0 0
    %531 = vmatprep.subr.bf16.mxu0 0
    %532 = vmatpush1.bf16.xpose.msra.mxu0 0
    %533 = vmatprep.subr.bf16.mxu0 0
    %534 = vmatpush1.bf16.xpose.msra.mxu0 0
    %535 = vmatprep.subr.bf16.mxu0 0
    %536 = vmatpush1.bf16.xpose.msra.mxu0 0
    %537 = vmatprep.subr.bf16.mxu0 0
    %538 = vmatpush1.bf16.xpose.msra.mxu0 0
    %539 = vmatprep.subr.bf16.mxu0 0
    %540 = vmatpush1.bf16.xpose.msra.mxu0 0
    %541 = vmatprep.subr.bf16.mxu0 0
    %542 = vmatpush1.bf16.xpose.msra.mxu0 0
    %543 = vmatprep.subr.bf16.mxu0 0
    %544 = vmatpush1.bf16.xpose.msra.mxu0 0
    %545 = vmatprep.subr.bf16.mxu0 0
    %546 = vmatpush1.bf16.xpose.msra.mxu0 0
    %547 = vmatprep.subr.bf16.mxu0 0
    %548 = vmatpush1.bf16.xpose.msra.mxu0 0
    %549 = vmatprep.subr.bf16.mxu0 0
    %550 = vmatpush1.bf16.xpose.msra.mxu0 0
    %551 = vmatprep.subr.bf16.mxu0 0
    %552 = vmatpush1.bf16.xpose.msra.mxu0 0
    %553 = vmatprep.mubr.bf16.mxu0 0
    %554 = vmatmul.mubr.bf16.gmra.mrb[0].mxu0 %v516
    %v555 = vpop.f32.mrb[0].mxu0
    %v556 = vadd.f32 0.0, %v555
    %v557 = vpop.f32.mrb[0].mxu0
    %v558 = vpop.f32.mrb[0].mxu0
    %v559 = vpop.f32.mrb[0].mxu0
    %560 = vdwg.mxu0
    %v562 = vsel %vm100, %v38, 0
    %v565 = vsel %vm100, %v62, 0
    %567 = vmatprep.subr.bf16.mxu0 0
    %568 = vmatpush1.bf16.xpose.msra.mxu0 %v565
    %569 = vmatprep.subr.bf16.mxu0 0
    %570 = vmatpush1.bf16.xpose.msra.mxu0 0
    %571 = vmatprep.subr.bf16.mxu0 0
    %572 = vmatpush1.bf16.xpose.msra.mxu0 0
    %573 = vmatprep.subr.bf16.mxu0 0
    %574 = vmatpush1.bf16.xpose.msra.mxu0 0
    %575 = vmatprep.subr.bf16.mxu0 0
    %576 = vmatpush1.bf16.xpose.msra.mxu0 0
    %577 = vmatprep.subr.bf16.mxu0 0
    %578 = vmatpush1.bf16.xpose.msra.mxu0 0
    %579 = vmatprep.subr.bf16.mxu0 0
    %580 = vmatpush1.bf16.xpose.msra.mxu0 0
    %581 = vmatprep.subr.bf16.mxu0 0
    %582 = vmatpush1.bf16.xpose.msra.mxu0 0
    %583 = vmatprep.subr.bf16.mxu0 0
    %584 = vmatpush1.bf16.xpose.msra.mxu0 0
    %585 = vmatprep.subr.bf16.mxu0 0
    %586 = vmatpush1.bf16.xpose.msra.mxu0 0
    %587 = vmatprep.subr.bf16.mxu0 0
    %588 = vmatpush1.bf16.xpose.msra.mxu0 0
    %589 = vmatprep.subr.bf16.mxu0 0
    %590 = vmatpush1.bf16.xpose.msra.mxu0 0
    %591 = vmatprep.subr.bf16.mxu0 0
    %592 = vmatpush1.bf16.xpose.msra.mxu0 0
    %593 = vmatprep.subr.bf16.mxu0 0
    %594 = vmatpush1.bf16.xpose.msra.mxu0 0
    %595 = vmatprep.subr.bf16.mxu0 0
    %596 = vmatpush1.bf16.xpose.msra.mxu0 0
    %597 = vmatprep.subr.bf16.mxu0 0
    %598 = vmatpush1.bf16.xpose.msra.mxu0 0
    %599 = vmatprep.mubr.bf16.mxu0 0
    %600 = vmatmul.mubr.bf16.gmra.mrb[0].mxu0 %v562
    %v601 = vpop.f32.mrb[0].mxu0
    %v602 = vadd.f32 0.0, %v601
    %v603 = vpop.f32.mrb[0].mxu0
    %v604 = vpop.f32.mrb[0].mxu0
    %v605 = vpop.f32.mrb[0].mxu0
    %606 = vdwg.mxu0
    %v608 = vsel %vm100, %v39, 0
    %v611 = vsel %vm100, %v63, 0
    %613 = vmatprep.subr.bf16.mxu0 0
    %614 = vmatpush1.bf16.xpose.msra.mxu0 %v611
    %615 = vmatprep.subr.bf16.mxu0 0
    %616 = vmatpush1.bf16.xpose.msra.mxu0 0
    %617 = vmatprep.subr.bf16.mxu0 0
    %618 = vmatpush1.bf16.xpose.msra.mxu0 0
    %619 = vmatprep.subr.bf16.mxu0 0
    %620 = vmatpush1.bf16.xpose.msra.mxu0 0
    %621 = vmatprep.subr.bf16.mxu0 0
    %622 = vmatpush1.bf16.xpose.msra.mxu0 0
    %623 = vmatprep.subr.bf16.mxu0 0
    %624 = vmatpush1.bf16.xpose.msra.mxu0 0
    %625 = vmatprep.subr.bf16.mxu0 0
    %626 = vmatpush1.bf16.xpose.msra.mxu0 0
    %627 = vmatprep.subr.bf16.mxu0 0
    %628 = vmatpush1.bf16.xpose.msra.mxu0 0
    %629 = vmatprep.subr.bf16.mxu0 0
    %630 = vmatpush1.bf16.xpose.msra.mxu0 0
    %631 = vmatprep.subr.bf16.mxu0 0
    %632 = vmatpush1.bf16.xpose.msra.mxu0 0
    %633 = vmatprep.subr.bf16.mxu0 0
    %634 = vmatpush1.bf16.xpose.msra.mxu0 0
    %635 = vmatprep.subr.bf16.mxu0 0
    %636 = vmatpush1.bf16.xpose.msra.mxu0 0
    %637 = vmatprep.subr.bf16.mxu0 0
    %638 = vmatpush1.bf16.xpose.msra.mxu0 0
    %639 = vmatprep.subr.bf16.mxu0 0
    %640 = vmatpush1.bf16.xpose.msra.mxu0 0
    %641 = vmatprep.subr.bf16.mxu0 0
    %642 = vmatpush1.bf16.xpose.msra.mxu0 0
    %643 = vmatprep.subr.bf16.mxu0 0
    %644 = vmatpush1.bf16.xpose.msra.mxu0 0
    %645 = vmatprep.mubr.bf16.mxu0 0
    %646 = vmatmul.mubr.bf16.gmra.mrb[0].mxu0 %v608
    %v647 = vpop.f32.mrb[0].mxu0
    %v648 = vadd.f32 0.0, %v647
    %v649 = vpop.f32.mrb[0].mxu0
    %v650 = vpop.f32.mrb[0].mxu0
    %v651 = vpop.f32.mrb[0].mxu0
    %652 = vdwg.mxu0
    %v654 = vsel %vm100, %v40, 0
    %v657 = vsel %vm100, %v64, 0
    %659 = vmatprep.subr.bf16.mxu0 0
    %660 = vmatpush1.bf16.xpose.msra.mxu0 %v657
    %661 = vmatprep.subr.bf16.mxu0 0
    %662 = vmatpush1.bf16.xpose.msra.mxu0 0
    %663 = vmatprep.subr.bf16.mxu0 0
    %664 = vmatpush1.bf16.xpose.msra.mxu0 0
    %665 = vmatprep.subr.bf16.mxu0 0
    %666 = vmatpush1.bf16.xpose.msra.mxu0 0
    %667 = vmatprep.subr.bf16.mxu0 0
    %668 = vmatpush1.bf16.xpose.msra.mxu0 0
    %669 = vmatprep.subr.bf16.mxu0 0
    %670 = vmatpush1.bf16.xpose.msra.mxu0 0
    %671 = vmatprep.subr.bf16.mxu0 0
    %672 = vmatpush1.bf16.xpose.msra.mxu0 0
    %673 = vmatprep.subr.bf16.mxu0 0
    %674 = vmatpush1.bf16.xpose.msra.mxu0 0
    %675 = vmatprep.subr.bf16.mxu0 0
    %676 = vmatpush1.bf16.xpose.msra.mxu0 0
    %677 = vmatprep.subr.bf16.mxu0 0
    %678 = vmatpush1.bf16.xpose.msra.mxu0 0
    %679 = vmatprep.subr.bf16.mxu0 0
    %680 = vmatpush1.bf16.xpose.msra.mxu0 0
    %681 = vmatprep.subr.bf16.mxu0 0
    %682 = vmatpush1.bf16.xpose.msra.mxu0 0
    %683 = vmatprep.subr.bf16.mxu0 0
    %684 = vmatpush1.bf16.xpose.msra.mxu0 0
    %685 = vmatprep.subr.bf16.mxu0 0
    %686 = vmatpush1.bf16.xpose.msra.mxu0 0
    %687 = vmatprep.subr.bf16.mxu0 0
    %688 = vmatpush1.bf16.xpose.msra.mxu0 0
    %689 = vmatprep.subr.bf16.mxu0 0
    %690 = vmatpush1.bf16.xpose.msra.mxu0 0
    %691 = vmatprep.mubr.bf16.mxu0 0
    %692 = vmatmul.mubr.bf16.gmra.mrb[0].mxu0 %v654
    %v693 = vpop.f32.mrb[0].mxu0
    %v694 = vadd.f32 0.0, %v693
    %v695 = vpop.f32.mrb[0].mxu0
    %v696 = vpop.f32.mrb[0].mxu0
    %v697 = vpop.f32.mrb[0].mxu0
    %698 = vdwg.mxu0
    %v700 = vsel %vm100, %v41, 0
    %v703 = vsel %vm100, %v65, 0
    %705 = vmatprep.subr.bf16.mxu0 0
    %706 = vmatpush1.bf16.xpose.msra.mxu0 %v703
    %707 = vmatprep.subr.bf16.mxu0 0
    %708 = vmatpush1.bf16.xpose.msra.mxu0 0
    %709 = vmatprep.subr.bf16.mxu0 0
    %710 = vmatpush1.bf16.xpose.msra.mxu0 0
    %711 = vmatprep.subr.bf16.mxu0 0
    %712 = vmatpush1.bf16.xpose.msra.mxu0 0
    %713 = vmatprep.subr.bf16.mxu0 0
    %714 = vmatpush1.bf16.xpose.msra.mxu0 0
    %715 = vmatprep.subr.bf16.mxu0 0
    %716 = vmatpush1.bf16.xpose.msra.mxu0 0
    %717 = vmatprep.subr.bf16.mxu0 0
    %718 = vmatpush1.bf16.xpose.msra.mxu0 0
    %719 = vmatprep.subr.bf16.mxu0 0
    %720 = vmatpush1.bf16.xpose.msra.mxu0 0
    %721 = vmatprep.subr.bf16.mxu0 0
    %722 = vmatpush1.bf16.xpose.msra.mxu0 0
    %723 = vmatprep.subr.bf16.mxu0 0
    %724 = vmatpush1.bf16.xpose.msra.mxu0 0
    %725 = vmatprep.subr.bf16.mxu0 0
    %726 = vmatpush1.bf16.xpose.msra.mxu0 0
    %727 = vmatprep.subr.bf16.mxu0 0
    %728 = vmatpush1.bf16.xpose.msra.mxu0 0
    %729 = vmatprep.subr.bf16.mxu0 0
    %730 = vmatpush1.bf16.xpose.msra.mxu0 0
    %731 = vmatprep.subr.bf16.mxu0 0
    %732 = vmatpush1.bf16.xpose.msra.mxu0 0
    %733 = vmatprep.subr.bf16.mxu0 0
    %734 = vmatpush1.bf16.xpose.msra.mxu0 0
    %735 = vmatprep.subr.bf16.mxu0 0
    %736 = vmatpush1.bf16.xpose.msra.mxu0 0
    %737 = vmatprep.mubr.bf16.mxu0 0
    %738 = vmatmul.mubr.bf16.gmra.mrb[0].mxu0 %v700
    %v739 = vpop.f32.mrb[0].mxu0
    %v740 = vadd.f32 0.0, %v739
    %v741 = vpop.f32.mrb[0].mxu0
    %v742 = vpop.f32.mrb[0].mxu0
    %v743 = vpop.f32.mrb[0].mxu0
    %744 = vdwg.mxu0
    %v746 = vsel %vm100, %v42, 0
    %v749 = vsel %vm100, %v66, 0
    %751 = vmatprep.subr.bf16.mxu0 0
    %752 = vmatpush1.bf16.xpose.msra.mxu0 %v749
    %753 = vmatprep.subr.bf16.mxu0 0
    %754 = vmatpush1.bf16.xpose.msra.mxu0 0
    %755 = vmatprep.subr.bf16.mxu0 0
    %756 = vmatpush1.bf16.xpose.msra.mxu0 0
    %757 = vmatprep.subr.bf16.mxu0 0
    %758 = vmatpush1.bf16.xpose.msra.mxu0 0
    %759 = vmatprep.subr.bf16.mxu0 0
    %760 = vmatpush1.bf16.xpose.msra.mxu0 0
    %761 = vmatprep.subr.bf16.mxu0 0
    %762 = vmatpush1.bf16.xpose.msra.mxu0 0
    %763 = vmatprep.subr.bf16.mxu0 0
    %764 = vmatpush1.bf16.xpose.msra.mxu0 0
    %765 = vmatprep.subr.bf16.mxu0 0
    %766 = vmatpush1.bf16.xpose.msra.mxu0 0
    %767 = vmatprep.subr.bf16.mxu0 0
    %768 = vmatpush1.bf16.xpose.msra.mxu0 0
    %769 = vmatprep.subr.bf16.mxu0 0
    %770 = vmatpush1.bf16.xpose.msra.mxu0 0
    %771 = vmatprep.subr.bf16.mxu0 0
    %772 = vmatpush1.bf16.xpose.msra.mxu0 0
    %773 = vmatprep.subr.bf16.mxu0 0
    %774 = vmatpush1.bf16.xpose.msra.mxu0 0
    %775 = vmatprep.subr.bf16.mxu0 0
    %776 = vmatpush1.bf16.xpose.msra.mxu0 0
    %777 = vmatprep.subr.bf16.mxu0 0
    %778 = vmatpush1.bf16.xpose.msra.mxu0 0
    %779 = vmatprep.subr.bf16.mxu0 0
    %780 = vmatpush1.bf16.xpose.msra.mxu0 0
    %781 = vmatprep.subr.bf16.mxu0 0
    %782 = vmatpush1.bf16.xpose.msra.mxu0 0
    %783 = vmatprep.mubr.bf16.mxu0 0
    %784 = vmatmul.mubr.bf16.gmra.mrb[0].mxu0 %v746
    %v785 = vpop.f32.mrb[0].mxu0
    %v786 = vadd.f32 0.0, %v785
    %v787 = vpop.f32.mrb[0].mxu0
    %v788 = vpop.f32.mrb[0].mxu0
    %v789 = vpop.f32.mrb[0].mxu0
    %790 = vdwg.mxu0
    %v792 = vsel %vm100, %v43, 0
    %v795 = vsel %vm100, %v67, 0
    %797 = vmatprep.subr.bf16.mxu0 0
    %798 = vmatpush1.bf16.xpose.msra.mxu0 %v795
    %799 = vmatprep.subr.bf16.mxu0 0
    %800 = vmatpush1.bf16.xpose.msra.mxu0 0
    %801 = vmatprep.subr.bf16.mxu0 0
    %802 = vmatpush1.bf16.xpose.msra.mxu0 0
    %803 = vmatprep.subr.bf16.mxu0 0
    %804 = vmatpush1.bf16.xpose.msra.mxu0 0
    %805 = vmatprep.subr.bf16.mxu0 0
    %806 = vmatpush1.bf16.xpose.msra.mxu0 0
    %807 = vmatprep.subr.bf16.mxu0 0
    %808 = vmatpush1.bf16.xpose.msra.mxu0 0
    %809 = vmatprep.subr.bf16.mxu0 0
    %810 = vmatpush1.bf16.xpose.msra.mxu0 0
    %811 = vmatprep.subr.bf16.mxu0 0
    %812 = vmatpush1.bf16.xpose.msra.mxu0 0
    %813 = vmatprep.subr.bf16.mxu0 0
    %814 = vmatpush1.bf16.xpose.msra.mxu0 0
    %815 = vmatprep.subr.bf16.mxu0 0
    %816 = vmatpush1.bf16.xpose.msra.mxu0 0
    %817 = vmatprep.subr.bf16.mxu0 0
    %818 = vmatpush1.bf16.xpose.msra.mxu0 0
    %819 = vmatprep.subr.bf16.mxu0 0
    %820 = vmatpush1.bf16.xpose.msra.mxu0 0
    %821 = vmatprep.subr.bf16.mxu0 0
    %822 = vmatpush1.bf16.xpose.msra.mxu0 0
    %823 = vmatprep.subr.bf16.mxu0 0
    %824 = vmatpush1.bf16.xpose.msra.mxu0 0
    %825 = vmatprep.subr.bf16.mxu0 0
    %826 = vmatpush1.bf16.xpose.msra.mxu0 0
    %827 = vmatprep.subr.bf16.mxu0 0
    %828 = vmatpush1.bf16.xpose.msra.mxu0 0
    %829 = vmatprep.mubr.bf16.mxu0 0
    %830 = vmatmul.mubr.bf16.gmra.mrb[0].mxu0 %v792
    %v831 = vpop.f32.mrb[0].mxu0
    %v832 = vadd.f32 0.0, %v831
    %v833 = vpop.f32.mrb[0].mxu0
    %v834 = vpop.f32.mrb[0].mxu0
    %v835 = vpop.f32.mrb[0].mxu0
    %836 = vdwg.mxu0
    %v838 = vsel %vm100, %v44, 0
    %v841 = vsel %vm100, %v68, 0
    %843 = vmatprep.subr.bf16.mxu0 0
    %844 = vmatpush1.bf16.xpose.msra.mxu0 %v841
    %845 = vmatprep.subr.bf16.mxu0 0
    %846 = vmatpush1.bf16.xpose.msra.mxu0 0
    %847 = vmatprep.subr.bf16.mxu0 0
    %848 = vmatpush1.bf16.xpose.msra.mxu0 0
    %849 = vmatprep.subr.bf16.mxu0 0
    %850 = vmatpush1.bf16.xpose.msra.mxu0 0
    %851 = vmatprep.subr.bf16.mxu0 0
    %852 = vmatpush1.bf16.xpose.msra.mxu0 0
    %853 = vmatprep.subr.bf16.mxu0 0
    %854 = vmatpush1.bf16.xpose.msra.mxu0 0
    %855 = vmatprep.subr.bf16.mxu0 0
    %856 = vmatpush1.bf16.xpose.msra.mxu0 0
    %857 = vmatprep.subr.bf16.mxu0 0
    %858 = vmatpush1.bf16.xpose.msra.mxu0 0
    %859 = vmatprep.subr.bf16.mxu0 0
    %860 = vmatpush1.bf16.xpose.msra.mxu0 0
    %861 = vmatprep.subr.bf16.mxu0 0
    %862 = vmatpush1.bf16.xpose.msra.mxu0 0
    %863 = vmatprep.subr.bf16.mxu0 0
    %864 = vmatpush1.bf16.xpose.msra.mxu0 0
    %865 = vmatprep.subr.bf16.mxu0 0
    %866 = vmatpush1.bf16.xpose.msra.mxu0 0
    %867 = vmatprep.subr.bf16.mxu0 0
    %868 = vmatpush1.bf16.xpose.msra.mxu0 0
    %869 = vmatprep.subr.bf16.mxu0 0
    %870 = vmatpush1.bf16.xpose.msra.mxu0 0
    %871 = vmatprep.subr.bf16.mxu0 0
    %872 = vmatpush1.bf16.xpose.msra.mxu0 0
    %873 = vmatprep.subr.bf16.mxu0 0
    %874 = vmatpush1.bf16.xpose.msra.mxu0 0
    %875 = vmatprep.mubr.bf16.mxu0 0
    %876 = vmatmul.mubr.bf16.gmra.mrb[0].mxu0 %v838
    %v877 = vpop.f32.mrb[0].mxu0
    %v878 = vadd.f32 0.0, %v877
    %v879 = vpop.f32.mrb[0].mxu0
    %v880 = vpop.f32.mrb[0].mxu0
    %v881 = vpop.f32.mrb[0].mxu0
    %882 = vdwg.mxu0
    %v884 = vsel %vm100, %v45, 0
    %v887 = vsel %vm100, %v69, 0
    %889 = vmatprep.subr.bf16.mxu0 0
    %890 = vmatpush1.bf16.xpose.msra.mxu0 %v887
    %891 = vmatprep.subr.bf16.mxu0 0
    %892 = vmatpush1.bf16.xpose.msra.mxu0 0
    %893 = vmatprep.subr.bf16.mxu0 0
    %894 = vmatpush1.bf16.xpose.msra.mxu0 0
    %895 = vmatprep.subr.bf16.mxu0 0
    %896 = vmatpush1.bf16.xpose.msra.mxu0 0
    %897 = vmatprep.subr.bf16.mxu0 0
    %898 = vmatpush1.bf16.xpose.msra.mxu0 0
    %899 = vmatprep.subr.bf16.mxu0 0
    %900 = vmatpush1.bf16.xpose.msra.mxu0 0
    %901 = vmatprep.subr.bf16.mxu0 0
    %902 = vmatpush1.bf16.xpose.msra.mxu0 0
    %903 = vmatprep.subr.bf16.mxu0 0
    %904 = vmatpush1.bf16.xpose.msra.mxu0 0
    %905 = vmatprep.subr.bf16.mxu0 0
    %906 = vmatpush1.bf16.xpose.msra.mxu0 0
    %907 = vmatprep.subr.bf16.mxu0 0
    %908 = vmatpush1.bf16.xpose.msra.mxu0 0
    %909 = vmatprep.subr.bf16.mxu0 0
    %910 = vmatpush1.bf16.xpose.msra.mxu0 0
    %911 = vmatprep.subr.bf16.mxu0 0
    %912 = vmatpush1.bf16.xpose.msra.mxu0 0
    %913 = vmatprep.subr.bf16.mxu0 0
    %914 = vmatpush1.bf16.xpose.msra.mxu0 0
    %915 = vmatprep.subr.bf16.mxu0 0
    %916 = vmatpush1.bf16.xpose.msra.mxu0 0
    %917 = vmatprep.subr.bf16.mxu0 0
    %918 = vmatpush1.bf16.xpose.msra.mxu0 0
    %919 = vmatprep.subr.bf16.mxu0 0
    %920 = vmatpush1.bf16.xpose.msra.mxu0 0
    %921 = vmatprep.mubr.bf16.mxu0 0
    %922 = vmatmul.mubr.bf16.gmra.mrb[0].mxu0 %v884
    %v923 = vpop.f32.mrb[0].mxu0
    %v924 = vadd.f32 0.0, %v923
    %v925 = vpop.f32.mrb[0].mxu0
    %v926 = vpop.f32.mrb[0].mxu0
    %v927 = vpop.f32.mrb[0].mxu0
    %928 = vdwg.mxu0
    %v930 = vsel %vm100, %v46, 0
    %v933 = vsel %vm100, %v70, 0
    %935 = vmatprep.subr.bf16.mxu0 0
    %936 = vmatpush1.bf16.xpose.msra.mxu0 %v933
    %937 = vmatprep.subr.bf16.mxu0 0
    %938 = vmatpush1.bf16.xpose.msra.mxu0 0
    %939 = vmatprep.subr.bf16.mxu0 0
    %940 = vmatpush1.bf16.xpose.msra.mxu0 0
    %941 = vmatprep.subr.bf16.mxu0 0
    %942 = vmatpush1.bf16.xpose.msra.mxu0 0
    %943 = vmatprep.subr.bf16.mxu0 0
    %944 = vmatpush1.bf16.xpose.msra.mxu0 0
    %945 = vmatprep.subr.bf16.mxu0 0
    %946 = vmatpush1.bf16.xpose.msra.mxu0 0
    %947 = vmatprep.subr.bf16.mxu0 0
    %948 = vmatpush1.bf16.xpose.msra.mxu0 0
    %949 = vmatprep.subr.bf16.mxu0 0
    %950 = vmatpush1.bf16.xpose.msra.mxu0 0
    %951 = vmatprep.subr.bf16.mxu0 0
    %952 = vmatpush1.bf16.xpose.msra.mxu0 0
    %953 = vmatprep.subr.bf16.mxu0 0
    %954 = vmatpush1.bf16.xpose.msra.mxu0 0
    %955 = vmatprep.subr.bf16.mxu0 0
    %956 = vmatpush1.bf16.xpose.msra.mxu0 0
    %957 = vmatprep.subr.bf16.mxu0 0
    %958 = vmatpush1.bf16.xpose.msra.mxu0 0
    %959 = vmatprep.subr.bf16.mxu0 0
    %960 = vmatpush1.bf16.xpose.msra.mxu0 0
    %961 = vmatprep.subr.bf16.mxu0 0
    %962 = vmatpush1.bf16.xpose.msra.mxu0 0
    %963 = vmatprep.subr.bf16.mxu0 0
    %964 = vmatpush1.bf16.xpose.msra.mxu0 0
    %965 = vmatprep.subr.bf16.mxu0 0
    %966 = vmatpush1.bf16.xpose.msra.mxu0 0
    %967 = vmatprep.mubr.bf16.mxu0 0
    %968 = vmatmul.mubr.bf16.gmra.mrb[0].mxu0 %v930
    %v969 = vpop.f32.mrb[0].mxu0
    %v970 = vadd.f32 0.0, %v969
    %v971 = vpop.f32.mrb[0].mxu0
    %v972 = vpop.f32.mrb[0].mxu0
    %v973 = vpop.f32.mrb[0].mxu0
    %974 = vdwg.mxu0
    %v976 = vsel %vm100, %v47, 0
    %v979 = vsel %vm100, %v71, 0
    %981 = vmatprep.subr.bf16.mxu0 0
    %982 = vmatpush1.bf16.xpose.msra.mxu0 %v979
    %983 = vmatprep.subr.bf16.mxu0 0
    %984 = vmatpush1.bf16.xpose.msra.mxu0 0
    %985 = vmatprep.subr.bf16.mxu0 0
    %986 = vmatpush1.bf16.xpose.msra.mxu0 0
    %987 = vmatprep.subr.bf16.mxu0 0
    %988 = vmatpush1.bf16.xpose.msra.mxu0 0
    %989 = vmatprep.subr.bf16.mxu0 0
    %990 = vmatpush1.bf16.xpose.msra.mxu0 0
    %991 = vmatprep.subr.bf16.mxu0 0
    %992 = vmatpush1.bf16.xpose.msra.mxu0 0
    %993 = vmatprep.subr.bf16.mxu0 0
    %994 = vmatpush1.bf16.xpose.msra.mxu0 0
    %995 = vmatprep.subr.bf16.mxu0 0
    %996 = vmatpush1.bf16.xpose.msra.mxu0 0
    %997 = vmatprep.subr.bf16.mxu0 0
    %998 = vmatpush1.bf16.xpose.msra.mxu0 0
    %999 = vmatprep.subr.bf16.mxu0 0
    %1000 = vmatpush1.bf16.xpose.msra.mxu0 0
    %1001 = vmatprep.subr.bf16.mxu0 0
    %1002 = vmatpush1.bf16.xpose.msra.mxu0 0
    %1003 = vmatprep.subr.bf16.mxu0 0
    %1004 = vmatpush1.bf16.xpose.msra.mxu0 0
    %1005 = vmatprep.subr.bf16.mxu0 0
    %1006 = vmatpush1.bf16.xpose.msra.mxu0 0
    %1007 = vmatprep.subr.bf16.mxu0 0
    %1008 = vmatpush1.bf16.xpose.msra.mxu0 0
    %1009 = vmatprep.subr.bf16.mxu0 0
    %1010 = vmatpush1.bf16.xpose.msra.mxu0 0
    %1011 = vmatprep.subr.bf16.mxu0 0
    %1012 = vmatpush1.bf16.xpose.msra.mxu0 0
    %1013 = vmatprep.mubr.bf16.mxu0 0
    %1014 = vmatmul.mubr.bf16.gmra.mrb[0].mxu0 %v976
    %v1015 = vpop.f32.mrb[0].mxu0
    %v1016 = vadd.f32 0.0, %v1015
    %v1017 = vpop.f32.mrb[0].mxu0
    %v1018 = vpop.f32.mrb[0].mxu0
    %v1019 = vpop.f32.mrb[0].mxu0
    %1020 = vdwg.mxu0
    %v1022 = vsel %vm100, %v48, 0
    %v1025 = vsel %vm100, %v72, 0
    %1027 = vmatprep.subr.bf16.mxu0 0
    %1028 = vmatpush1.bf16.xpose.msra.mxu0 %v1025
    %1029 = vmatprep.subr.bf16.mxu0 0
    %1030 = vmatpush1.bf16.xpose.msra.mxu0 0
    %1031 = vmatprep.subr.bf16.mxu0 0
    %1032 = vmatpush1.bf16.xpose.msra.mxu0 0
    %1033 = vmatprep.subr.bf16.mxu0 0
    %1034 = vmatpush1.bf16.xpose.msra.mxu0 0
    %1035 = vmatprep.subr.bf16.mxu0 0
    %1036 = vmatpush1.bf16.xpose.msra.mxu0 0
    %1037 = vmatprep.subr.bf16.mxu0 0
    %1038 = vmatpush1.bf16.xpose.msra.mxu0 0
    %1039 = vmatprep.subr.bf16.mxu0 0
    %1040 = vmatpush1.bf16.xpose.msra.mxu0 0
    %1041 = vmatprep.subr.bf16.mxu0 0
    %1042 = vmatpush1.bf16.xpose.msra.mxu0 0
    %1043 = vmatprep.subr.bf16.mxu0 0
    %1044 = vmatpush1.bf16.xpose.msra.mxu0 0
    %1045 = vmatprep.subr.bf16.mxu0 0
    %1046 = vmatpush1.bf16.xpose.msra.mxu0 0
    %1047 = vmatprep.subr.bf16.mxu0 0
    %1048 = vmatpush1.bf16.xpose.msra.mxu0 0
    %1049 = vmatprep.subr.bf16.mxu0 0
    %1050 = vmatpush1.bf16.xpose.msra.mxu0 0
    %1051 = vmatprep.subr.bf16.mxu0 0
    %1052 = vmatpush1.bf16.xpose.msra.mxu0 0
    %1053 = vmatprep.subr.bf16.mxu0 0
    %1054 = vmatpush1.bf16.xpose.msra.mxu0 0
    %1055 = vmatprep.subr.bf16.mxu0 0
    %1056 = vmatpush1.bf16.xpose.msra.mxu0 0
    %1057 = vmatprep.subr.bf16.mxu0 0
    %1058 = vmatpush1.bf16.xpose.msra.mxu0 0
    %1059 = vmatprep.mubr.bf16.mxu0 0
    %1060 = vmatmul.mubr.bf16.gmra.mrb[0].mxu0 %v1022
    %v1061 = vpop.f32.mrb[0].mxu0
    %v1062 = vadd.f32 0.0, %v1061
    %v1063 = vpop.f32.mrb[0].mxu0
    %v1064 = vpop.f32.mrb[0].mxu0
    %v1065 = vpop.f32.mrb[0].mxu0
    %1066 = vdwg.mxu0
    %v1068 = vsel %vm100, %v49, 0
    %v1071 = vsel %vm100, %v73, 0
    %1073 = vmatprep.subr.bf16.mxu0 0
    %1074 = vmatpush1.bf16.xpose.msra.mxu0 %v1071
    %1075 = vmatprep.subr.bf16.mxu0 0
    %1076 = vmatpush1.bf16.xpose.msra.mxu0 0
    %1077 = vmatprep.subr.bf16.mxu0 0
    %1078 = vmatpush1.bf16.xpose.msra.mxu0 0
    %1079 = vmatprep.subr.bf16.mxu0 0
    %1080 = vmatpush1.bf16.xpose.msra.mxu0 0
    %1081 = vmatprep.subr.bf16.mxu0 0
    %1082 = vmatpush1.bf16.xpose.msra.mxu0 0
    %1083 = vmatprep.subr.bf16.mxu0 0
    %1084 = vmatpush1.bf16.xpose.msra.mxu0 0
    %1085 = vmatprep.subr.bf16.mxu0 0
    %1086 = vmatpush1.bf16.xpose.msra.mxu0 0
    %1087 = vmatprep.subr.bf16.mxu0 0
    %1088 = vmatpush1.bf16.xpose.msra.mxu0 0
    %1089 = vmatprep.subr.bf16.mxu0 0
    %1090 = vmatpush1.bf16.xpose.msra.mxu0 0
    %1091 = vmatprep.subr.bf16.mxu0 0
    %1092 = vmatpush1.bf16.xpose.msra.mxu0 0
    %1093 = vmatprep.subr.bf16.mxu0 0
    %1094 = vmatpush1.bf16.xpose.msra.mxu0 0
    %1095 = vmatprep.subr.bf16.mxu0 0
    %1096 = vmatpush1.bf16.xpose.msra.mxu0 0
    %1097 = vmatprep.subr.bf16.mxu0 0
    %1098 = vmatpush1.bf16.xpose.msra.mxu0 0
    %1099 = vmatprep.subr.bf16.mxu0 0
    %1100 = vmatpush1.bf16.xpose.msra.mxu0 0
    %1101 = vmatprep.subr.bf16.mxu0 0
    %1102 = vmatpush1.bf16.xpose.msra.mxu0 0
    %1103 = vmatprep.subr.bf16.mxu0 0
    %1104 = vmatpush1.bf16.xpose.msra.mxu0 0
    %1105 = vmatprep.mubr.bf16.mxu0 0
    %1106 = vmatmul.mubr.bf16.gmra.mrb[0].mxu0 %v1068
    %v1107 = vpop.f32.mrb[0].mxu0
    %v1108 = vadd.f32 0.0, %v1107
    %v1109 = vpop.f32.mrb[0].mxu0
    %v1110 = vpop.f32.mrb[0].mxu0
    %v1111 = vpop.f32.mrb[0].mxu0
    %1112 = vdwg.mxu0
    %v1114 = vsel %vm100, %v50, 0
    %v1117 = vsel %vm100, %v74, 0
    %1119 = vmatprep.subr.bf16.mxu0 0
    %1120 = vmatpush1.bf16.xpose.msra.mxu0 %v1117
    %1121 = vmatprep.subr.bf16.mxu0 0
    %1122 = vmatpush1.bf16.xpose.msra.mxu0 0
    %1123 = vmatprep.subr.bf16.mxu0 0
    %1124 = vmatpush1.bf16.xpose.msra.mxu0 0
    %1125 = vmatprep.subr.bf16.mxu0 0
    %1126 = vmatpush1.bf16.xpose.msra.mxu0 0
    %1127 = vmatprep.subr.bf16.mxu0 0
    %1128 = vmatpush1.bf16.xpose.msra.mxu0 0
    %1129 = vmatprep.subr.bf16.mxu0 0
    %1130 = vmatpush1.bf16.xpose.msra.mxu0 0
    %1131 = vmatprep.subr.bf16.mxu0 0
    %1132 = vmatpush1.bf16.xpose.msra.mxu0 0
    %1133 = vmatprep.subr.bf16.mxu0 0
    %1134 = vmatpush1.bf16.xpose.msra.mxu0 0
    %1135 = vmatprep.subr.bf16.mxu0 0
    %1136 = vmatpush1.bf16.xpose.msra.mxu0 0
    %1137 = vmatprep.subr.bf16.mxu0 0
    %1138 = vmatpush1.bf16.xpose.msra.mxu0 0
    %1139 = vmatprep.subr.bf16.mxu0 0
    %1140 = vmatpush1.bf16.xpose.msra.mxu0 0
    %1141 = vmatprep.subr.bf16.mxu0 0
    %1142 = vmatpush1.bf16.xpose.msra.mxu0 0
    %1143 = vmatprep.subr.bf16.mxu0 0
    %1144 = vmatpush1.bf16.xpose.msra.mxu0 0
    %1145 = vmatprep.subr.bf16.mxu0 0
    %1146 = vmatpush1.bf16.xpose.msra.mxu0 0
    %1147 = vmatprep.subr.bf16.mxu0 0
    %1148 = vmatpush1.bf16.xpose.msra.mxu0 0
    %1149 = vmatprep.subr.bf16.mxu0 0
    %1150 = vmatpush1.bf16.xpose.msra.mxu0 0
    %1151 = vmatprep.mubr.bf16.mxu0 0
    %1152 = vmatmul.mubr.bf16.gmra.mrb[0].mxu0 %v1114
    %v1153 = vpop.f32.mrb[0].mxu0
    %v1154 = vadd.f32 0.0, %v1153
    %v1155 = vpop.f32.mrb[0].mxu0
    %v1156 = vpop.f32.mrb[0].mxu0
    %v1157 = vpop.f32.mrb[0].mxu0
    %1158 = vdwg.mxu0
    %v1160 = vsel %vm100, %v51, 0
    %v1163 = vsel %vm100, %v75, 0
    %1165 = vmatprep.subr.bf16.mxu0 0
    %1166 = vmatpush1.bf16.xpose.msra.mxu0 %v1163
    %1167 = vmatprep.subr.bf16.mxu0 0
    %1168 = vmatpush1.bf16.xpose.msra.mxu0 0
    %1169 = vmatprep.subr.bf16.mxu0 0
    %1170 = vmatpush1.bf16.xpose.msra.mxu0 0
    %1171 = vmatprep.subr.bf16.mxu0 0
    %1172 = vmatpush1.bf16.xpose.msra.mxu0 0
    %1173 = vmatprep.subr.bf16.mxu0 0
    %1174 = vmatpush1.bf16.xpose.msra.mxu0 0
    %1175 = vmatprep.subr.bf16.mxu0 0
    %1176 = vmatpush1.bf16.xpose.msra.mxu0 0
    %1177 = vmatprep.subr.bf16.mxu0 0
    %1178 = vmatpush1.bf16.xpose.msra.mxu0 0
    %1179 = vmatprep.subr.bf16.mxu0 0
    %1180 = vmatpush1.bf16.xpose.msra.mxu0 0
    %1181 = vmatprep.subr.bf16.mxu0 0
    %1182 = vmatpush1.bf16.xpose.msra.mxu0 0
    %1183 = vmatprep.subr.bf16.mxu0 0
    %1184 = vmatpush1.bf16.xpose.msra.mxu0 0
    %1185 = vmatprep.subr.bf16.mxu0 0
    %1186 = vmatpush1.bf16.xpose.msra.mxu0 0
    %1187 = vmatprep.subr.bf16.mxu0 0
    %1188 = vmatpush1.bf16.xpose.msra.mxu0 0
    %1189 = vmatprep.subr.bf16.mxu0 0
    %1190 = vmatpush1.bf16.xpose.msra.mxu0 0
    %1191 = vmatprep.subr.bf16.mxu0 0
    %1192 = vmatpush1.bf16.xpose.msra.mxu0 0
    %1193 = vmatprep.subr.bf16.mxu0 0
    %1194 = vmatpush1.bf16.xpose.msra.mxu0 0
    %1195 = vmatprep.subr.bf16.mxu0 0
    %1196 = vmatpush1.bf16.xpose.msra.mxu0 0
    %1197 = vmatprep.mubr.bf16.mxu0 0
    %1198 = vmatmul.mubr.bf16.gmra.mrb[0].mxu0 %v1160
    %v1199 = vpop.f32.mrb[0].mxu0
    %v1200 = vadd.f32 0.0, %v1199
    %v1201 = vpop.f32.mrb[0].mxu0
    %v1202 = vpop.f32.mrb[0].mxu0
    %v1203 = vpop.f32.mrb[0].mxu0
    %1204 = vdwg.mxu0
    %v1205 = vmul.f32 %v142, 0.125
    %v1206 = vmul.f32 %v188, 0.125
    %v1207 = vmul.f32 %v234, 0.125
    %v1208 = vmul.f32 %v280, 0.125
    %v1209 = vmul.f32 %v326, 0.125
    %v1210 = vmul.f32 %v372, 0.125
    %v1211 = vmul.f32 %v418, 0.125
    %v1212 = vmul.f32 %v464, 0.125
    %v1213 = vmul.f32 %v510, 0.125
    %v1214 = vmul.f32 %v556, 0.125
    %v1215 = vmul.f32 %v602, 0.125
    %v1216 = vmul.f32 %v648, 0.125
    %v1217 = vmul.f32 %v694, 0.125
    %v1218 = vmul.f32 %v740, 0.125
    %v1219 = vmul.f32 %v786, 0.125
    %v1220 = vmul.f32 %v832, 0.125
    %v1221 = vmul.f32 %v878, 0.125
    %v1222 = vmul.f32 %v924, 0.125
    %v1223 = vmul.f32 %v970, 0.125
    %v1224 = vmul.f32 %v1016, 0.125
    %v1225 = vmul.f32 %v1062, 0.125
    %v1226 = vmul.f32 %v1108, 0.125
    %v1227 = vmul.f32 %v1154, 0.125
    %v1228 = vmul.f32 %v1200, 0.125
    %v1229 = vld [vmem:[%s3] sm:$0x3]
    %v1230 = vld [vmem:[%s3 + $0x2] sm:$0x3]
    %v1231 = vunpack.c.0.s8 %v1229
    %v1232 = vunpack.c.0.s8 %v1230
    %v1233 = vcvt.s32.f32 %v1231
    %v1234 = vcvt.s32.f32 %v1232
    %v1235 = vsub.f32 1.0, %v1233
    %v1236 = vsub.f32 1.0, %v1234
    %v1237 = vmul.f32 %v1205, %v1235
    %v1238 = vmul.f32 %v1206, %v1235
    %v1239 = vmul.f32 %v1207, %v1235
    %v1240 = vmul.f32 %v1208, %v1235
    %v1241 = vmul.f32 %v1209, %v1235
    %v1242 = vmul.f32 %v1210, %v1235
    %v1243 = vmul.f32 %v1211, %v1235
    %v1244 = vmul.f32 %v1212, %v1235
    %v1245 = vmul.f32 %v1213, %v1235
    %v1246 = vmul.f32 %v1214, %v1235
    %v1247 = vmul.f32 %v1215, %v1235
    %v1248 = vmul.f32 %v1216, %v1235
    %v1249 = vmul.f32 %v1217, %v1236
    %v1250 = vmul.f32 %v1218, %v1236
    %v1251 = vmul.f32 %v1219, %v1236
    %v1252 = vmul.f32 %v1220, %v1236
    %v1253 = vmul.f32 %v1221, %v1236
    %v1254 = vmul.f32 %v1222, %v1236
    %v1255 = vmul.f32 %v1223, %v1236
    %v1256 = vmul.f32 %v1224, %v1236
    %v1257 = vmul.f32 %v1225, %v1236
    %v1258 = vmul.f32 %v1226, %v1236
    %v1259 = vmul.f32 %v1227, %v1236
    %v1260 = vmul.f32 %v1228, %v1236
    %vm1261 = vcmask 64512
    %v1262 = vsel %vm1261, %v1237, -inf
    %1263 = vmax.xlane.f32.xlu0 %v1262
    %v1264 = vpop.xlane.xlu0 %1263
    %v1265 = vsel %vm1261, %v1238, -inf
    %1266 = vmax.xlane.f32.xlu0 %v1265
    %v1267 = vpop.xlane.xlu0 %1266
    %v1268 = vsel %vm1261, %v1239, -inf
    %1269 = vmax.xlane.f32.xlu0 %v1268
    %v1270 = vpop.xlane.xlu0 %1269
    %v1271 = vsel %vm1261, %v1240, -inf
    %1272 = vmax.xlane.f32.xlu0 %v1271
    %v1273 = vpop.xlane.xlu0 %1272
    %v1274 = vsel %vm1261, %v1241, -inf
    %1275 = vmax.xlane.f32.xlu0 %v1274
    %v1276 = vpop.xlane.xlu0 %1275
    %v1277 = vsel %vm1261, %v1242, -inf
    %1278 = vmax.xlane.f32.xlu0 %v1277
    %v1279 = vpop.xlane.xlu0 %1278
    %v1280 = vsel %vm1261, %v1243, -inf
    %1281 = vmax.xlane.f32.xlu0 %v1280
    %v1282 = vpop.xlane.xlu0 %1281
    %v1283 = vsel %vm1261, %v1244, -inf
    %1284 = vmax.xlane.f32.xlu0 %v1283
    %v1285 = vpop.xlane.xlu0 %1284
    %v1286 = vsel %vm1261, %v1245, -inf
    %1287 = vmax.xlane.f32.xlu0 %v1286
    %v1288 = vpop.xlane.xlu0 %1287
    %v1289 = vsel %vm1261, %v1246, -inf
    %1290 = vmax.xlane.f32.xlu0 %v1289
    %v1291 = vpop.xlane.xlu0 %1290
    %v1292 = vsel %vm1261, %v1247, -inf
    %1293 = vmax.xlane.f32.xlu0 %v1292
    %v1294 = vpop.xlane.xlu0 %1293
    %v1295 = vsel %vm1261, %v1248, -inf
    %1296 = vmax.xlane.f32.xlu0 %v1295
    %v1297 = vpop.xlane.xlu0 %1296
    %v1298 = vsel %vm1261, %v1249, -inf
    %1299 = vmax.xlane.f32.xlu0 %v1298
    %v1300 = vpop.xlane.xlu0 %1299
    %v1301 = vsel %vm1261, %v1250, -inf
    %1302 = vmax.xlane.f32.xlu0 %v1301
    %v1303 = vpop.xlane.xlu0 %1302
    %v1304 = vsel %vm1261, %v1251, -inf
    %1305 = vmax.xlane.f32.xlu0 %v1304
    %v1306 = vpop.xlane.xlu0 %1305
    %v1307 = vsel %vm1261, %v1252, -inf
    %1308 = vmax.xlane.f32.xlu0 %v1307
    %v1309 = vpop.xlane.xlu0 %1308
    %v1310 = vsel %vm1261, %v1253, -inf
    %1311 = vmax.xlane.f32.xlu0 %v1310
    %v1312 = vpop.xlane.xlu0 %1311
    %v1313 = vsel %vm1261, %v1254, -inf
    %1314 = vmax.xlane.f32.xlu0 %v1313
    %v1315 = vpop.xlane.xlu0 %1314
    %v1316 = vsel %vm1261, %v1255, -inf
    %1317 = vmax.xlane.f32.xlu0 %v1316
    %v1318 = vpop.xlane.xlu0 %1317
    %v1319 = vsel %vm1261, %v1256, -inf
    %1320 = vmax.xlane.f32.xlu0 %v1319
    %v1321 = vpop.xlane.xlu0 %1320
    %v1322 = vsel %vm1261, %v1257, -inf
    %1323 = vmax.xlane.f32.xlu0 %v1322
    %v1324 = vpop.xlane.xlu0 %1323
    %v1325 = vsel %vm1261, %v1258, -inf
    %1326 = vmax.xlane.f32.xlu0 %v1325
    %v1327 = vpop.xlane.xlu0 %1326
    %v1328 = vsel %vm1261, %v1259, -inf
    %1329 = vmax.xlane.f32.xlu0 %v1328
    %v1330 = vpop.xlane.xlu0 %1329
    %v1331 = vsel %vm1261, %v1260, -inf
    %1332 = vmax.xlane.f32.xlu0 %v1331
    %v1333 = vpop.xlane.xlu0 %1332
    %v1334 = vsub.f32 %v1237, %v1264
    %v1335 = vsub.f32 %v1238, %v1267
    %v1336 = vsub.f32 %v1239, %v1270
    %v1337 = vsub.f32 %v1240, %v1273
    %v1338 = vsub.f32 %v1241, %v1276
    %v1339 = vsub.f32 %v1242, %v1279
    %v1340 = vsub.f32 %v1243, %v1282
    %v1341 = vsub.f32 %v1244, %v1285
    %v1342 = vsub.f32 %v1245, %v1288
    %v1343 = vsub.f32 %v1246, %v1291
    %v1344 = vsub.f32 %v1247, %v1294
    %v1345 = vsub.f32 %v1248, %v1297
    %v1346 = vsub.f32 %v1249, %v1300
    %v1347 = vsub.f32 %v1250, %v1303
    %v1348 = vsub.f32 %v1251, %v1306
    %v1349 = vsub.f32 %v1252, %v1309
    %v1350 = vsub.f32 %v1253, %v1312
    %v1351 = vsub.f32 %v1254, %v1315
    %v1352 = vsub.f32 %v1255, %v1318
    %v1353 = vsub.f32 %v1256, %v1321
    %v1354 = vsub.f32 %v1257, %v1324
    %v1355 = vsub.f32 %v1258, %v1327
    %v1356 = vsub.f32 %v1259, %v1330
    %v1357 = vsub.f32 %v1260, %v1333
    %v1358 = vmul.f32 %v1334, 1.442695
    %v1359 = vpow.pop %v1358
    %v1360 = vmul.f32 %v1335, 1.442695
    %v1361 = vpow.pop %v1360
    %v1362 = vmul.f32 %v1336, 1.442695
    %v1363 = vpow.pop %v1362
    %v1364 = vmul.f32 %v1337, 1.442695
    %v1365 = vpow.pop %v1364
    %v1366 = vmul.f32 %v1338, 1.442695
    %v1367 = vpow.pop %v1366
    %v1368 = vmul.f32 %v1339, 1.442695
    %v1369 = vpow.pop %v1368
    %v1370 = vmul.f32 %v1340, 1.442695
    %v1371 = vpow.pop %v1370
    %v1372 = vmul.f32 %v1341, 1.442695
    %v1373 = vpow.pop %v1372
    %v1374 = vmul.f32 %v1342, 1.442695
    %v1375 = vpow.pop %v1374
    %v1376 = vmul.f32 %v1343, 1.442695
    %v1377 = vpow.pop %v1376
    %v1378 = vmul.f32 %v1344, 1.442695
    %v1379 = vpow.pop %v1378
    %v1380 = vmul.f32 %v1345, 1.442695
    %v1381 = vpow.pop %v1380
    %v1382 = vmul.f32 %v1346, 1.442695
    %v1383 = vpow.pop %v1382
    %v1384 = vmul.f32 %v1347, 1.442695
    %v1385 = vpow.pop %v1384
    %v1386 = vmul.f32 %v1348, 1.442695
    %v1387 = vpow.pop %v1386
    %v1388 = vmul.f32 %v1349, 1.442695
    %v1389 = vpow.pop %v1388
    %v1390 = vmul.f32 %v1350, 1.442695
    %v1391 = vpow.pop %v1390
    %v1392 = vmul.f32 %v1351, 1.442695
    %v1393 = vpow.pop %v1392
    %v1394 = vmul.f32 %v1352, 1.442695
    %v1395 = vpow.pop %v1394
    %v1396 = vmul.f32 %v1353, 1.442695
    %v1397 = vpow.pop %v1396
    %v1398 = vmul.f32 %v1354, 1.442695
    %v1399 = vpow.pop %v1398
    %v1400 = vmul.f32 %v1355, 1.442695
    %v1401 = vpow.pop %v1400
    %v1402 = vmul.f32 %v1356, 1.442695
    %v1403 = vpow.pop %v1402
    %v1404 = vmul.f32 %v1357, 1.442695
    %v1405 = vpow.pop %v1404
    %v1406 = vsel %vm1261, %v1359, 0.0
    %1407 = vadd.xlane.f32.xlu0 %v1406
    %v1408 = vpop.xlane.xlu0 %1407
    %v1409 = vsel %vm1261, %v1361, 0.0
    %1410 = vadd.xlane.f32.xlu0 %v1409
    %v1411 = vpop.xlane.xlu0 %1410
    %v1412 = vsel %vm1261, %v1363, 0.0
    %1413 = vadd.xlane.f32.xlu0 %v1412
    %v1414 = vpop.xlane.xlu0 %1413
    %v1415 = vsel %vm1261, %v1365, 0.0
    %1416 = vadd.xlane.f32.xlu0 %v1415
    %v1417 = vpop.xlane.xlu0 %1416
    %v1418 = vsel %vm1261, %v1367, 0.0
    %1419 = vadd.xlane.f32.xlu0 %v1418
    %v1420 = vpop.xlane.xlu0 %1419
    %v1421 = vsel %vm1261, %v1369, 0.0
    %1422 = vadd.xlane.f32.xlu0 %v1421
    %v1423 = vpop.xlane.xlu0 %1422
    %v1424 = vsel %vm1261, %v1371, 0.0
    %1425 = vadd.xlane.f32.xlu0 %v1424
    %v1426 = vpop.xlane.xlu0 %1425
    %v1427 = vsel %vm1261, %v1373, 0.0
    %1428 = vadd.xlane.f32.xlu0 %v1427
    %v1429 = vpop.xlane.xlu0 %1428
    %v1430 = vsel %vm1261, %v1375, 0.0
    %1431 = vadd.xlane.f32.xlu0 %v1430
    %v1432 = vpop.xlane.xlu0 %1431
    %v1433 = vsel %vm1261, %v1377, 0.0
    %1434 = vadd.xlane.f32.xlu0 %v1433
    %v1435 = vpop.xlane.xlu0 %1434
    %v1436 = vsel %vm1261, %v1379, 0.0
    %1437 = vadd.xlane.f32.xlu0 %v1436
    %v1438 = vpop.xlane.xlu0 %1437
    %v1439 = vsel %vm1261, %v1381, 0.0
    %1440 = vadd.xlane.f32.xlu0 %v1439
    %v1441 = vpop.xlane.xlu0 %1440
    %v1442 = vsel %vm1261, %v1383, 0.0
    %1443 = vadd.xlane.f32.xlu0 %v1442
    %v1444 = vpop.xlane.xlu0 %1443
    %v1445 = vsel %vm1261, %v1385, 0.0
    %1446 = vadd.xlane.f32.xlu0 %v1445
    %v1447 = vpop.xlane.xlu0 %1446
    %v1448 = vsel %vm1261, %v1387, 0.0
    %1449 = vadd.xlane.f32.xlu0 %v1448
    %v1450 = vpop.xlane.xlu0 %1449
    %v1451 = vsel %vm1261, %v1389, 0.0
    %1452 = vadd.xlane.f32.xlu0 %v1451
    %v1453 = vpop.xlane.xlu0 %1452
    %v1454 = vsel %vm1261, %v1391, 0.0
    %1455 = vadd.xlane.f32.xlu0 %v1454
    %v1456 = vpop.xlane.xlu0 %1455
    %v1457 = vsel %vm1261, %v1393, 0.0
    %1458 = vadd.xlane.f32.xlu0 %v1457
    %v1459 = vpop.xlane.xlu0 %1458
    %v1460 = vsel %vm1261, %v1395, 0.0
    %1461 = vadd.xlane.f32.xlu0 %v1460
    %v1462 = vpop.xlane.xlu0 %1461
    %v1463 = vsel %vm1261, %v1397, 0.0
    %1464 = vadd.xlane.f32.xlu0 %v1463
    %v1465 = vpop.xlane.xlu0 %1464
    %v1466 = vsel %vm1261, %v1399, 0.0
    %1467 = vadd.xlane.f32.xlu0 %v1466
    %v1468 = vpop.xlane.xlu0 %1467
    %v1469 = vsel %vm1261, %v1401, 0.0
    %1470 = vadd.xlane.f32.xlu0 %v1469
    %v1471 = vpop.xlane.xlu0 %1470
    %v1472 = vsel %vm1261, %v1403, 0.0
    %1473 = vadd.xlane.f32.xlu0 %v1472
    %v1474 = vpop.xlane.xlu0 %1473
    %v1475 = vsel %vm1261, %v1405, 0.0
    %1476 = vadd.xlane.f32.xlu0 %v1475
    %v1477 = vpop.xlane.xlu0 %1476
    %v1478 = vrcp.pop %v1408
    %v1479 = vrcp.pop %v1411
    %v1480 = vrcp.pop %v1414
    %v1481 = vrcp.pop %v1417
    %v1482 = vrcp.pop %v1420
    %v1483 = vrcp.pop %v1423
    %v1484 = vrcp.pop %v1426
    %v1485 = vrcp.pop %v1429
    %v1486 = vrcp.pop %v1432
    %v1487 = vrcp.pop %v1435
    %v1488 = vrcp.pop %v1438
    %v1489 = vrcp.pop %v1441
    %v1490 = vrcp.pop %v1444
    %v1491 = vrcp.pop %v1447
    %v1492 = vrcp.pop %v1450
    %v1493 = vrcp.pop %v1453
    %v1494 = vrcp.pop %v1456
    %v1495 = vrcp.pop %v1459
    %v1496 = vrcp.pop %v1462
    %v1497 = vrcp.pop %v1465
    %v1498 = vrcp.pop %v1468
    %v1499 = vrcp.pop %v1471
    %v1500 = vrcp.pop %v1474
    %v1501 = vrcp.pop %v1477
    %v1502 = vmul.f32 %v1359, %v1478
    %v1503 = vmul.f32 %v1361, %v1479
    %v1504 = vmul.f32 %v1363, %v1480
    %v1505 = vmul.f32 %v1365, %v1481
    %v1506 = vmul.f32 %v1367, %v1482
    %v1507 = vmul.f32 %v1369, %v1483
    %v1508 = vmul.f32 %v1371, %v1484
    %v1509 = vmul.f32 %v1373, %v1485
    %v1510 = vmul.f32 %v1375, %v1486
    %v1511 = vmul.f32 %v1377, %v1487
    %v1512 = vmul.f32 %v1379, %v1488
    %v1513 = vmul.f32 %v1381, %v1489
    %v1514 = vmul.f32 %v1383, %v1490
    %v1515 = vmul.f32 %v1385, %v1491
    %v1516 = vmul.f32 %v1387, %v1492
    %v1517 = vmul.f32 %v1389, %v1493
    %v1518 = vmul.f32 %v1391, %v1494
    %v1519 = vmul.f32 %v1393, %v1495
    %v1520 = vmul.f32 %v1395, %v1496
    %v1521 = vmul.f32 %v1397, %v1497
    %v1522 = vmul.f32 %v1399, %v1498
    %v1523 = vmul.f32 %v1401, %v1499
    %v1524 = vmul.f32 %v1403, %v1500
    %v1525 = vmul.f32 %v1405, %v1501
    %v1526 = vpack.c.bf16 %v1502, %v1502
    %v1527 = vpack.c.bf16 %v1503, %v1503
    %v1528 = vpack.c.bf16 %v1504, %v1504
    %v1529 = vpack.c.bf16 %v1505, %v1505
    %v1530 = vpack.c.bf16 %v1506, %v1506
    %v1531 = vpack.c.bf16 %v1507, %v1507
    %v1532 = vpack.c.bf16 %v1508, %v1508
    %v1533 = vpack.c.bf16 %v1509, %v1509
    %v1534 = vpack.c.bf16 %v1510, %v1510
    %v1535 = vpack.c.bf16 %v1511, %v1511
    %v1536 = vpack.c.bf16 %v1512, %v1512
    %v1537 = vpack.c.bf16 %v1513, %v1513
    %v1538 = vpack.c.bf16 %v1514, %v1514
    %v1539 = vpack.c.bf16 %v1515, %v1515
    %v1540 = vpack.c.bf16 %v1516, %v1516
    %v1541 = vpack.c.bf16 %v1517, %v1517
    %v1542 = vpack.c.bf16 %v1518, %v1518
    %v1543 = vpack.c.bf16 %v1519, %v1519
    %v1544 = vpack.c.bf16 %v1520, %v1520
    %v1545 = vpack.c.bf16 %v1521, %v1521
    %v1546 = vpack.c.bf16 %v1522, %v1522
    %v1547 = vpack.c.bf16 %v1523, %v1523
    %v1548 = vpack.c.bf16 %v1524, %v1524
    %v1549 = vpack.c.bf16 %v1525, %v1525
    %v1551 = vsel %vm1261, %v1526, 0
    %vm1553 = vcmask 1043456
    %v1555 = vsel %vm1553, %v76, 0
    %1557 = vmatprep.subr.bf16.mxu0 0
    %1558 = vmatpush1.bf16.msra.mxu0 %v1555
    %1559 = vmatprep.subr.bf16.mxu0 0
    %1560 = vmatpush1.bf16.msra.mxu0 0
    %1561 = vmatprep.subr.bf16.mxu0 0
    %1562 = vmatpush1.bf16.msra.mxu0 0
    %1563 = vmatprep.subr.bf16.mxu0 0
    %1564 = vmatpush1.bf16.msra.mxu0 0
    %1565 = vmatprep.subr.bf16.mxu0 0
    %1566 = vmatpush1.bf16.msra.mxu0 0
    %1567 = vmatprep.subr.bf16.mxu0 0
    %1568 = vmatpush1.bf16.msra.mxu0 0
    %1569 = vmatprep.subr.bf16.mxu0 0
    %1570 = vmatpush1.bf16.msra.mxu0 0
    %1571 = vmatprep.subr.bf16.mxu0 0
    %1572 = vmatpush1.bf16.msra.mxu0 0
    %1573 = vmatprep.subr.bf16.mxu0 0
    %1574 = vmatpush1.bf16.msra.mxu0 0
    %1575 = vmatprep.subr.bf16.mxu0 0
    %1576 = vmatpush1.bf16.msra.mxu0 0
    %1577 = vmatprep.subr.bf16.mxu0 0
    %1578 = vmatpush1.bf16.msra.mxu0 0
    %1579 = vmatprep.subr.bf16.mxu0 0
    %1580 = vmatpush1.bf16.msra.mxu0 0
    %1581 = vmatprep.subr.bf16.mxu0 0
    %1582 = vmatpush1.bf16.msra.mxu0 0
    %1583 = vmatprep.subr.bf16.mxu0 0
    %1584 = vmatpush1.bf16.msra.mxu0 0
    %1585 = vmatprep.subr.bf16.mxu0 0
    %1586 = vmatpush1.bf16.msra.mxu0 0
    %1587 = vmatprep.subr.bf16.mxu0 0
    %1588 = vmatpush1.bf16.msra.mxu0 0
    %1589 = vmatprep.mubr.bf16.mxu0 0
    %1590 = vmatmul.mubr.bf16.gmra.mrb[0].mxu0 %v1551
    %v1591 = vpop.f32.mrb[0].mxu0
    %v1592 = vadd.f32 0.0, %v1591
    %v1593 = vpop.f32.mrb[0].mxu0
    %v1594 = vpop.f32.mrb[0].mxu0
    %v1595 = vpop.f32.mrb[0].mxu0
    %1596 = vdwg.mxu0
    %v1598 = vsel %vm1261, %v1527, 0
    %v1601 = vsel %vm1553, %v77, 0
    %1603 = vmatprep.subr.bf16.mxu0 0
    %1604 = vmatpush1.bf16.msra.mxu0 %v1601
    %1605 = vmatprep.subr.bf16.mxu0 0
    %1606 = vmatpush1.bf16.msra.mxu0 0
    %1607 = vmatprep.subr.bf16.mxu0 0
    %1608 = vmatpush1.bf16.msra.mxu0 0
    %1609 = vmatprep.subr.bf16.mxu0 0
    %1610 = vmatpush1.bf16.msra.mxu0 0
    %1611 = vmatprep.subr.bf16.mxu0 0
    %1612 = vmatpush1.bf16.msra.mxu0 0
    %1613 = vmatprep.subr.bf16.mxu0 0
    %1614 = vmatpush1.bf16.msra.mxu0 0
    %1615 = vmatprep.subr.bf16.mxu0 0
    %1616 = vmatpush1.bf16.msra.mxu0 0
    %1617 = vmatprep.subr.bf16.mxu0 0
    %1618 = vmatpush1.bf16.msra.mxu0 0
    %1619 = vmatprep.subr.bf16.mxu0 0
    %1620 = vmatpush1.bf16.msra.mxu0 0
    %1621 = vmatprep.subr.bf16.mxu0 0
    %1622 = vmatpush1.bf16.msra.mxu0 0
    %1623 = vmatprep.subr.bf16.mxu0 0
    %1624 = vmatpush1.bf16.msra.mxu0 0
    %1625 = vmatprep.subr.bf16.mxu0 0
    %1626 = vmatpush1.bf16.msra.mxu0 0
    %1627 = vmatprep.subr.bf16.mxu0 0
    %1628 = vmatpush1.bf16.msra.mxu0 0
    %1629 = vmatprep.subr.bf16.mxu0 0
    %1630 = vmatpush1.bf16.msra.mxu0 0
    %1631 = vmatprep.subr.bf16.mxu0 0
    %1632 = vmatpush1.bf16.msra.mxu0 0
    %1633 = vmatprep.subr.bf16.mxu0 0
    %1634 = vmatpush1.bf16.msra.mxu0 0
    %1635 = vmatprep.mubr.bf16.mxu0 0
    %1636 = vmatmul.mubr.bf16.gmra.mrb[0].mxu0 %v1598
    %v1637 = vpop.f32.mrb[0].mxu0
    %v1638 = vadd.f32 0.0, %v1637
    %v1639 = vpop.f32.mrb[0].mxu0
    %v1640 = vpop.f32.mrb[0].mxu0
    %v1641 = vpop.f32.mrb[0].mxu0
    %1642 = vdwg.mxu0
    %v1644 = vsel %vm1261, %v1528, 0
    %v1647 = vsel %vm1553, %v78, 0
    %1649 = vmatprep.subr.bf16.mxu0 0
    %1650 = vmatpush1.bf16.msra.mxu0 %v1647
    %1651 = vmatprep.subr.bf16.mxu0 0
    %1652 = vmatpush1.bf16.msra.mxu0 0
    %1653 = vmatprep.subr.bf16.mxu0 0
    %1654 = vmatpush1.bf16.msra.mxu0 0
    %1655 = vmatprep.subr.bf16.mxu0 0
    %1656 = vmatpush1.bf16.msra.mxu0 0
    %1657 = vmatprep.subr.bf16.mxu0 0
    %1658 = vmatpush1.bf16.msra.mxu0 0
    %1659 = vmatprep.subr.bf16.mxu0 0
    %1660 = vmatpush1.bf16.msra.mxu0 0
    %1661 = vmatprep.subr.bf16.mxu0 0
    %1662 = vmatpush1.bf16.msra.mxu0 0
    %1663 = vmatprep.subr.bf16.mxu0 0
    %1664 = vmatpush1.bf16.msra.mxu0 0
    %1665 = vmatprep.subr.bf16.mxu0 0
    %1666 = vmatpush1.bf16.msra.mxu0 0
    %1667 = vmatprep.subr.bf16.mxu0 0
    %1668 = vmatpush1.bf16.msra.mxu0 0
    %1669 = vmatprep.subr.bf16.mxu0 0
    %1670 = vmatpush1.bf16.msra.mxu0 0
    %1671 = vmatprep.subr.bf16.mxu0 0
    %1672 = vmatpush1.bf16.msra.mxu0 0
    %1673 = vmatprep.subr.bf16.mxu0 0
    %1674 = vmatpush1.bf16.msra.mxu0 0
    %1675 = vmatprep.subr.bf16.mxu0 0
    %1676 = vmatpush1.bf16.msra.mxu0 0
    %1677 = vmatprep.subr.bf16.mxu0 0
    %1678 = vmatpush1.bf16.msra.mxu0 0
    %1679 = vmatprep.subr.bf16.mxu0 0
    %1680 = vmatpush1.bf16.msra.mxu0 0
    %1681 = vmatprep.mubr.bf16.mxu0 0
    %1682 = vmatmul.mubr.bf16.gmra.mrb[0].mxu0 %v1644
    %v1683 = vpop.f32.mrb[0].mxu0
    %v1684 = vadd.f32 0.0, %v1683
    %v1685 = vpop.f32.mrb[0].mxu0
    %v1686 = vpop.f32.mrb[0].mxu0
    %v1687 = vpop.f32.mrb[0].mxu0
    %1688 = vdwg.mxu0
    %v1690 = vsel %vm1261, %v1529, 0
    %v1693 = vsel %vm1553, %v79, 0
    %1695 = vmatprep.subr.bf16.mxu0 0
    %1696 = vmatpush1.bf16.msra.mxu0 %v1693
    %1697 = vmatprep.subr.bf16.mxu0 0
    %1698 = vmatpush1.bf16.msra.mxu0 0
    %1699 = vmatprep.subr.bf16.mxu0 0
    %1700 = vmatpush1.bf16.msra.mxu0 0
    %1701 = vmatprep.subr.bf16.mxu0 0
    %1702 = vmatpush1.bf16.msra.mxu0 0
    %1703 = vmatprep.subr.bf16.mxu0 0
    %1704 = vmatpush1.bf16.msra.mxu0 0
    %1705 = vmatprep.subr.bf16.mxu0 0
    %1706 = vmatpush1.bf16.msra.mxu0 0
    %1707 = vmatprep.subr.bf16.mxu0 0
    %1708 = vmatpush1.bf16.msra.mxu0 0
    %1709 = vmatprep.subr.bf16.mxu0 0
    %1710 = vmatpush1.bf16.msra.mxu0 0
    %1711 = vmatprep.subr.bf16.mxu0 0
    %1712 = vmatpush1.bf16.msra.mxu0 0
    %1713 = vmatprep.subr.bf16.mxu0 0
    %1714 = vmatpush1.bf16.msra.mxu0 0
    %1715 = vmatprep.subr.bf16.mxu0 0
    %1716 = vmatpush1.bf16.msra.mxu0 0
    %1717 = vmatprep.subr.bf16.mxu0 0
    %1718 = vmatpush1.bf16.msra.mxu0 0
    %1719 = vmatprep.subr.bf16.mxu0 0
    %1720 = vmatpush1.bf16.msra.mxu0 0
    %1721 = vmatprep.subr.bf16.mxu0 0
    %1722 = vmatpush1.bf16.msra.mxu0 0
    %1723 = vmatprep.subr.bf16.mxu0 0
    %1724 = vmatpush1.bf16.msra.mxu0 0
    %1725 = vmatprep.subr.bf16.mxu0 0
    %1726 = vmatpush1.bf16.msra.mxu0 0
    %1727 = vmatprep.mubr.bf16.mxu0 0
    %1728 = vmatmul.mubr.bf16.gmra.mrb[0].mxu0 %v1690
    %v1729 = vpop.f32.mrb[0].mxu0
    %v1730 = vadd.f32 0.0, %v1729
    %v1731 = vpop.f32.mrb[0].mxu0
    %v1732 = vpop.f32.mrb[0].mxu0
    %v1733 = vpop.f32.mrb[0].mxu0
    %1734 = vdwg.mxu0
    %v1736 = vsel %vm1261, %v1530, 0
    %v1739 = vsel %vm1553, %v80, 0
    %1741 = vmatprep.subr.bf16.mxu0 0
    %1742 = vmatpush1.bf16.msra.mxu0 %v1739
    %1743 = vmatprep.subr.bf16.mxu0 0
    %1744 = vmatpush1.bf16.msra.mxu0 0
    %1745 = vmatprep.subr.bf16.mxu0 0
    %1746 = vmatpush1.bf16.msra.mxu0 0
    %1747 = vmatprep.subr.bf16.mxu0 0
    %1748 = vmatpush1.bf16.msra.mxu0 0
    %1749 = vmatprep.subr.bf16.mxu0 0
    %1750 = vmatpush1.bf16.msra.mxu0 0
    %1751 = vmatprep.subr.bf16.mxu0 0
    %1752 = vmatpush1.bf16.msra.mxu0 0
    %1753 = vmatprep.subr.bf16.mxu0 0
    %1754 = vmatpush1.bf16.msra.mxu0 0
    %1755 = vmatprep.subr.bf16.mxu0 0
    %1756 = vmatpush1.bf16.msra.mxu0 0
    %1757 = vmatprep.subr.bf16.mxu0 0
    %1758 = vmatpush1.bf16.msra.mxu0 0
    %1759 = vmatprep.subr.bf16.mxu0 0
    %1760 = vmatpush1.bf16.msra.mxu0 0
    %1761 = vmatprep.subr.bf16.mxu0 0
    %1762 = vmatpush1.bf16.msra.mxu0 0
    %1763 = vmatprep.subr.bf16.mxu0 0
    %1764 = vmatpush1.bf16.msra.mxu0 0
    %1765 = vmatprep.subr.bf16.mxu0 0
    %1766 = vmatpush1.bf16.msra.mxu0 0
    %1767 = vmatprep.subr.bf16.mxu0 0
    %1768 = vmatpush1.bf16.msra.mxu0 0
    %1769 = vmatprep.subr.bf16.mxu0 0
    %1770 = vmatpush1.bf16.msra.mxu0 0
    %1771 = vmatprep.subr.bf16.mxu0 0
    %1772 = vmatpush1.bf16.msra.mxu0 0
    %1773 = vmatprep.mubr.bf16.mxu0 0
    %1774 = vmatmul.mubr.bf16.gmra.mrb[0].mxu0 %v1736
    %v1775 = vpop.f32.mrb[0].mxu0
    %v1776 = vadd.f32 0.0, %v1775
    %v1777 = vpop.f32.mrb[0].mxu0
    %v1778 = vpop.f32.mrb[0].mxu0
    %v1779 = vpop.f32.mrb[0].mxu0
    %1780 = vdwg.mxu0
    %v1782 = vsel %vm1261, %v1531, 0
    %v1785 = vsel %vm1553, %v81, 0
    %1787 = vmatprep.subr.bf16.mxu0 0
    %1788 = vmatpush1.bf16.msra.mxu0 %v1785
    %1789 = vmatprep.subr.bf16.mxu0 0
    %1790 = vmatpush1.bf16.msra.mxu0 0
    %1791 = vmatprep.subr.bf16.mxu0 0
    %1792 = vmatpush1.bf16.msra.mxu0 0
    %1793 = vmatprep.subr.bf16.mxu0 0
    %1794 = vmatpush1.bf16.msra.mxu0 0
    %1795 = vmatprep.subr.bf16.mxu0 0
    %1796 = vmatpush1.bf16.msra.mxu0 0
    %1797 = vmatprep.subr.bf16.mxu0 0
    %1798 = vmatpush1.bf16.msra.mxu0 0
    %1799 = vmatprep.subr.bf16.mxu0 0
    %1800 = vmatpush1.bf16.msra.mxu0 0
    %1801 = vmatprep.subr.bf16.mxu0 0
    %1802 = vmatpush1.bf16.msra.mxu0 0
    %1803 = vmatprep.subr.bf16.mxu0 0
    %1804 = vmatpush1.bf16.msra.mxu0 0
    %1805 = vmatprep.subr.bf16.mxu0 0
    %1806 = vmatpush1.bf16.msra.mxu0 0
    %1807 = vmatprep.subr.bf16.mxu0 0
    %1808 = vmatpush1.bf16.msra.mxu0 0
    %1809 = vmatprep.subr.bf16.mxu0 0
    %1810 = vmatpush1.bf16.msra.mxu0 0
    %1811 = vmatprep.subr.bf16.mxu0 0
    %1812 = vmatpush1.bf16.msra.mxu0 0
    %1813 = vmatprep.subr.bf16.mxu0 0
    %1814 = vmatpush1.bf16.msra.mxu0 0
    %1815 = vmatprep.subr.bf16.mxu0 0
    %1816 = vmatpush1.bf16.msra.mxu0 0
    %1817 = vmatprep.subr.bf16.mxu0 0
    %1818 = vmatpush1.bf16.msra.mxu0 0
    %1819 = vmatprep.mubr.bf16.mxu0 0
    %1820 = vmatmul.mubr.bf16.gmra.mrb[0].mxu0 %v1782
    %v1821 = vpop.f32.mrb[0].mxu0
    %v1822 = vadd.f32 0.0, %v1821
    %v1823 = vpop.f32.mrb[0].mxu0
    %v1824 = vpop.f32.mrb[0].mxu0
    %v1825 = vpop.f32.mrb[0].mxu0
    %1826 = vdwg.mxu0
    %v1828 = vsel %vm1261, %v1532, 0
    %v1831 = vsel %vm1553, %v82, 0
    %1833 = vmatprep.subr.bf16.mxu0 0
    %1834 = vmatpush1.bf16.msra.mxu0 %v1831
    %1835 = vmatprep.subr.bf16.mxu0 0
    %1836 = vmatpush1.bf16.msra.mxu0 0
    %1837 = vmatprep.subr.bf16.mxu0 0
    %1838 = vmatpush1.bf16.msra.mxu0 0
    %1839 = vmatprep.subr.bf16.mxu0 0
    %1840 = vmatpush1.bf16.msra.mxu0 0
    %1841 = vmatprep.subr.bf16.mxu0 0
    %1842 = vmatpush1.bf16.msra.mxu0 0
    %1843 = vmatprep.subr.bf16.mxu0 0
    %1844 = vmatpush1.bf16.msra.mxu0 0
    %1845 = vmatprep.subr.bf16.mxu0 0
    %1846 = vmatpush1.bf16.msra.mxu0 0
    %1847 = vmatprep.subr.bf16.mxu0 0
    %1848 = vmatpush1.bf16.msra.mxu0 0
    %1849 = vmatprep.subr.bf16.mxu0 0
    %1850 = vmatpush1.bf16.msra.mxu0 0
    %1851 = vmatprep.subr.bf16.mxu0 0
    %1852 = vmatpush1.bf16.msra.mxu0 0
    %1853 = vmatprep.subr.bf16.mxu0 0
    %1854 = vmatpush1.bf16.msra.mxu0 0
    %1855 = vmatprep.subr.bf16.mxu0 0
    %1856 = vmatpush1.bf16.msra.mxu0 0
    %1857 = vmatprep.subr.bf16.mxu0 0
    %1858 = vmatpush1.bf16.msra.mxu0 0
    %1859 = vmatprep.subr.bf16.mxu0 0
    %1860 = vmatpush1.bf16.msra.mxu0 0
    %1861 = vmatprep.subr.bf16.mxu0 0
    %1862 = vmatpush1.bf16.msra.mxu0 0
    %1863 = vmatprep.subr.bf16.mxu0 0
    %1864 = vmatpush1.bf16.msra.mxu0 0
    %1865 = vmatprep.mubr.bf16.mxu0 0
    %1866 = vmatmul.mubr.bf16.gmra.mrb[0].mxu0 %v1828
    %v1867 = vpop.f32.mrb[0].mxu0
    %v1868 = vadd.f32 0.0, %v1867
    %v1869 = vpop.f32.mrb[0].mxu0
    %v1870 = vpop.f32.mrb[0].mxu0
    %v1871 = vpop.f32.mrb[0].mxu0
    %1872 = vdwg.mxu0
    %v1874 = vsel %vm1261, %v1533, 0
    %v1877 = vsel %vm1553, %v83, 0
    %1879 = vmatprep.subr.bf16.mxu0 0
    %1880 = vmatpush1.bf16.msra.mxu0 %v1877
    %1881 = vmatprep.subr.bf16.mxu0 0
    %1882 = vmatpush1.bf16.msra.mxu0 0
    %1883 = vmatprep.subr.bf16.mxu0 0
    %1884 = vmatpush1.bf16.msra.mxu0 0
    %1885 = vmatprep.subr.bf16.mxu0 0
    %1886 = vmatpush1.bf16.msra.mxu0 0
    %1887 = vmatprep.subr.bf16.mxu0 0
    %1888 = vmatpush1.bf16.msra.mxu0 0
    %1889 = vmatprep.subr.bf16.mxu0 0
    %1890 = vmatpush1.bf16.msra.mxu0 0
    %1891 = vmatprep.subr.bf16.mxu0 0
    %1892 = vmatpush1.bf16.msra.mxu0 0
    %1893 = vmatprep.subr.bf16.mxu0 0
    %1894 = vmatpush1.bf16.msra.mxu0 0
    %1895 = vmatprep.subr.bf16.mxu0 0
    %1896 = vmatpush1.bf16.msra.mxu0 0
    %1897 = vmatprep.subr.bf16.mxu0 0
    %1898 = vmatpush1.bf16.msra.mxu0 0
    %1899 = vmatprep.subr.bf16.mxu0 0
    %1900 = vmatpush1.bf16.msra.mxu0 0
    %1901 = vmatprep.subr.bf16.mxu0 0
    %1902 = vmatpush1.bf16.msra.mxu0 0
    %1903 = vmatprep.subr.bf16.mxu0 0
    %1904 = vmatpush1.bf16.msra.mxu0 0
    %1905 = vmatprep.subr.bf16.mxu0 0
    %1906 = vmatpush1.bf16.msra.mxu0 0
    %1907 = vmatprep.subr.bf16.mxu0 0
    %1908 = vmatpush1.bf16.msra.mxu0 0
    %1909 = vmatprep.subr.bf16.mxu0 0
    %1910 = vmatpush1.bf16.msra.mxu0 0
    %1911 = vmatprep.mubr.bf16.mxu0 0
    %1912 = vmatmul.mubr.bf16.gmra.mrb[0].mxu0 %v1874
    %v1913 = vpop.f32.mrb[0].mxu0
    %v1914 = vadd.f32 0.0, %v1913
    %v1915 = vpop.f32.mrb[0].mxu0
    %v1916 = vpop.f32.mrb[0].mxu0
    %v1917 = vpop.f32.mrb[0].mxu0
    %1918 = vdwg.mxu0
    %v1920 = vsel %vm1261, %v1534, 0
    %v1923 = vsel %vm1553, %v84, 0
    %1925 = vmatprep.subr.bf16.mxu0 0
    %1926 = vmatpush1.bf16.msra.mxu0 %v1923
    %1927 = vmatprep.subr.bf16.mxu0 0
    %1928 = vmatpush1.bf16.msra.mxu0 0
    %1929 = vmatprep.subr.bf16.mxu0 0
    %1930 = vmatpush1.bf16.msra.mxu0 0
    %1931 = vmatprep.subr.bf16.mxu0 0
    %1932 = vmatpush1.bf16.msra.mxu0 0
    %1933 = vmatprep.subr.bf16.mxu0 0
    %1934 = vmatpush1.bf16.msra.mxu0 0
    %1935 = vmatprep.subr.bf16.mxu0 0
    %1936 = vmatpush1.bf16.msra.mxu0 0
    %1937 = vmatprep.subr.bf16.mxu0 0
    %1938 = vmatpush1.bf16.msra.mxu0 0
    %1939 = vmatprep.subr.bf16.mxu0 0
    %1940 = vmatpush1.bf16.msra.mxu0 0
    %1941 = vmatprep.subr.bf16.mxu0 0
    %1942 = vmatpush1.bf16.msra.mxu0 0
    %1943 = vmatprep.subr.bf16.mxu0 0
    %1944 = vmatpush1.bf16.msra.mxu0 0
    %1945 = vmatprep.subr.bf16.mxu0 0
    %1946 = vmatpush1.bf16.msra.mxu0 0
    %1947 = vmatprep.subr.bf16.mxu0 0
    %1948 = vmatpush1.bf16.msra.mxu0 0
    %1949 = vmatprep.subr.bf16.mxu0 0
    %1950 = vmatpush1.bf16.msra.mxu0 0
    %1951 = vmatprep.subr.bf16.mxu0 0
    %1952 = vmatpush1.bf16.msra.mxu0 0
    %1953 = vmatprep.subr.bf16.mxu0 0
    %1954 = vmatpush1.bf16.msra.mxu0 0
    %1955 = vmatprep.subr.bf16.mxu0 0
    %1956 = vmatpush1.bf16.msra.mxu0 0
    %1957 = vmatprep.mubr.bf16.mxu0 0
    %1958 = vmatmul.mubr.bf16.gmra.mrb[0].mxu0 %v1920
    %v1959 = vpop.f32.mrb[0].mxu0
    %v1960 = vadd.f32 0.0, %v1959
    %v1961 = vpop.f32.mrb[0].mxu0
    %v1962 = vpop.f32.mrb[0].mxu0
    %v1963 = vpop.f32.mrb[0].mxu0
    %1964 = vdwg.mxu0
    %v1966 = vsel %vm1261, %v1535, 0
    %v1969 = vsel %vm1553, %v85, 0
    %1971 = vmatprep.subr.bf16.mxu0 0
    %1972 = vmatpush1.bf16.msra.mxu0 %v1969
    %1973 = vmatprep.subr.bf16.mxu0 0
    %1974 = vmatpush1.bf16.msra.mxu0 0
    %1975 = vmatprep.subr.bf16.mxu0 0
    %1976 = vmatpush1.bf16.msra.mxu0 0
    %1977 = vmatprep.subr.bf16.mxu0 0
    %1978 = vmatpush1.bf16.msra.mxu0 0
    %1979 = vmatprep.subr.bf16.mxu0 0
    %1980 = vmatpush1.bf16.msra.mxu0 0
    %1981 = vmatprep.subr.bf16.mxu0 0
    %1982 = vmatpush1.bf16.msra.mxu0 0
    %1983 = vmatprep.subr.bf16.mxu0 0
    %1984 = vmatpush1.bf16.msra.mxu0 0
    %1985 = vmatprep.subr.bf16.mxu0 0
    %1986 = vmatpush1.bf16.msra.mxu0 0
    %1987 = vmatprep.subr.bf16.mxu0 0
    %1988 = vmatpush1.bf16.msra.mxu0 0
    %1989 = vmatprep.subr.bf16.mxu0 0
    %1990 = vmatpush1.bf16.msra.mxu0 0
    %1991 = vmatprep.subr.bf16.mxu0 0
    %1992 = vmatpush1.bf16.msra.mxu0 0
    %1993 = vmatprep.subr.bf16.mxu0 0
    %1994 = vmatpush1.bf16.msra.mxu0 0
    %1995 = vmatprep.subr.bf16.mxu0 0
    %1996 = vmatpush1.bf16.msra.mxu0 0
    %1997 = vmatprep.subr.bf16.mxu0 0
    %1998 = vmatpush1.bf16.msra.mxu0 0
    %1999 = vmatprep.subr.bf16.mxu0 0
    %2000 = vmatpush1.bf16.msra.mxu0 0
    %2001 = vmatprep.subr.bf16.mxu0 0
    %2002 = vmatpush1.bf16.msra.mxu0 0
    %2003 = vmatprep.mubr.bf16.mxu0 0
    %2004 = vmatmul.mubr.bf16.gmra.mrb[0].mxu0 %v1966
    %v2005 = vpop.f32.mrb[0].mxu0
    %v2006 = vadd.f32 0.0, %v2005
    %v2007 = vpop.f32.mrb[0].mxu0
    %v2008 = vpop.f32.mrb[0].mxu0
    %v2009 = vpop.f32.mrb[0].mxu0
    %2010 = vdwg.mxu0
    %v2012 = vsel %vm1261, %v1536, 0
    %v2015 = vsel %vm1553, %v86, 0
    %2017 = vmatprep.subr.bf16.mxu0 0
    %2018 = vmatpush1.bf16.msra.mxu0 %v2015
    %2019 = vmatprep.subr.bf16.mxu0 0
    %2020 = vmatpush1.bf16.msra.mxu0 0
    %2021 = vmatprep.subr.bf16.mxu0 0
    %2022 = vmatpush1.bf16.msra.mxu0 0
    %2023 = vmatprep.subr.bf16.mxu0 0
    %2024 = vmatpush1.bf16.msra.mxu0 0
    %2025 = vmatprep.subr.bf16.mxu0 0
    %2026 = vmatpush1.bf16.msra.mxu0 0
    %2027 = vmatprep.subr.bf16.mxu0 0
    %2028 = vmatpush1.bf16.msra.mxu0 0
    %2029 = vmatprep.subr.bf16.mxu0 0
    %2030 = vmatpush1.bf16.msra.mxu0 0
    %2031 = vmatprep.subr.bf16.mxu0 0
    %2032 = vmatpush1.bf16.msra.mxu0 0
    %2033 = vmatprep.subr.bf16.mxu0 0
    %2034 = vmatpush1.bf16.msra.mxu0 0
    %2035 = vmatprep.subr.bf16.mxu0 0
    %2036 = vmatpush1.bf16.msra.mxu0 0
    %2037 = vmatprep.subr.bf16.mxu0 0
    %2038 = vmatpush1.bf16.msra.mxu0 0
    %2039 = vmatprep.subr.bf16.mxu0 0
    %2040 = vmatpush1.bf16.msra.mxu0 0
    %2041 = vmatprep.subr.bf16.mxu0 0
    %2042 = vmatpush1.bf16.msra.mxu0 0
    %2043 = vmatprep.subr.bf16.mxu0 0
    %2044 = vmatpush1.bf16.msra.mxu0 0
    %2045 = vmatprep.subr.bf16.mxu0 0
    %2046 = vmatpush1.bf16.msra.mxu0 0
    %2047 = vmatprep.subr.bf16.mxu0 0
    %2048 = vmatpush1.bf16.msra.mxu0 0
    %2049 = vmatprep.mubr.bf16.mxu0 0
    %2050 = vmatmul.mubr.bf16.gmra.mrb[0].mxu0 %v2012
    %v2051 = vpop.f32.mrb[0].mxu0
    %v2052 = vadd.f32 0.0, %v2051
    %v2053 = vpop.f32.mrb[0].mxu0
    %v2054 = vpop.f32.mrb[0].mxu0
    %v2055 = vpop.f32.mrb[0].mxu0
    %2056 = vdwg.mxu0
    %v2058 = vsel %vm1261, %v1537, 0
    %v2061 = vsel %vm1553, %v87, 0
    %2063 = vmatprep.subr.bf16.mxu0 0
    %2064 = vmatpush1.bf16.msra.mxu0 %v2061
    %2065 = vmatprep.subr.bf16.mxu0 0
    %2066 = vmatpush1.bf16.msra.mxu0 0
    %2067 = vmatprep.subr.bf16.mxu0 0
    %2068 = vmatpush1.bf16.msra.mxu0 0
    %2069 = vmatprep.subr.bf16.mxu0 0
    %2070 = vmatpush1.bf16.msra.mxu0 0
    %2071 = vmatprep.subr.bf16.mxu0 0
    %2072 = vmatpush1.bf16.msra.mxu0 0
    %2073 = vmatprep.subr.bf16.mxu0 0
    %2074 = vmatpush1.bf16.msra.mxu0 0
    %2075 = vmatprep.subr.bf16.mxu0 0
    %2076 = vmatpush1.bf16.msra.mxu0 0
    %2077 = vmatprep.subr.bf16.mxu0 0
    %2078 = vmatpush1.bf16.msra.mxu0 0
    %2079 = vmatprep.subr.bf16.mxu0 0
    %2080 = vmatpush1.bf16.msra.mxu0 0
    %2081 = vmatprep.subr.bf16.mxu0 0
    %2082 = vmatpush1.bf16.msra.mxu0 0
    %2083 = vmatprep.subr.bf16.mxu0 0
    %2084 = vmatpush1.bf16.msra.mxu0 0
    %2085 = vmatprep.subr.bf16.mxu0 0
    %2086 = vmatpush1.bf16.msra.mxu0 0
    %2087 = vmatprep.subr.bf16.mxu0 0
    %2088 = vmatpush1.bf16.msra.mxu0 0
    %2089 = vmatprep.subr.bf16.mxu0 0
    %2090 = vmatpush1.bf16.msra.mxu0 0
    %2091 = vmatprep.subr.bf16.mxu0 0
    %2092 = vmatpush1.bf16.msra.mxu0 0
    %2093 = vmatprep.subr.bf16.mxu0 0
    %2094 = vmatpush1.bf16.msra.mxu0 0
    %2095 = vmatprep.mubr.bf16.mxu0 0
    %2096 = vmatmul.mubr.bf16.gmra.mrb[0].mxu0 %v2058
    %v2097 = vpop.f32.mrb[0].mxu0
    %v2098 = vadd.f32 0.0, %v2097
    %v2099 = vpop.f32.mrb[0].mxu0
    %v2100 = vpop.f32.mrb[0].mxu0
    %v2101 = vpop.f32.mrb[0].mxu0
    %2102 = vdwg.mxu0
    %v2104 = vsel %vm1261, %v1538, 0
    %v2107 = vsel %vm1553, %v88, 0
    %2109 = vmatprep.subr.bf16.mxu0 0
    %2110 = vmatpush1.bf16.msra.mxu0 %v2107
    %2111 = vmatprep.subr.bf16.mxu0 0
    %2112 = vmatpush1.bf16.msra.mxu0 0
    %2113 = vmatprep.subr.bf16.mxu0 0
    %2114 = vmatpush1.bf16.msra.mxu0 0
    %2115 = vmatprep.subr.bf16.mxu0 0
    %2116 = vmatpush1.bf16.msra.mxu0 0
    %2117 = vmatprep.subr.bf16.mxu0 0
    %2118 = vmatpush1.bf16.msra.mxu0 0
    %2119 = vmatprep.subr.bf16.mxu0 0
    %2120 = vmatpush1.bf16.msra.mxu0 0
    %2121 = vmatprep.subr.bf16.mxu0 0
    %2122 = vmatpush1.bf16.msra.mxu0 0
    %2123 = vmatprep.subr.bf16.mxu0 0
    %2124 = vmatpush1.bf16.msra.mxu0 0
    %2125 = vmatprep.subr.bf16.mxu0 0
    %2126 = vmatpush1.bf16.msra.mxu0 0
    %2127 = vmatprep.subr.bf16.mxu0 0
    %2128 = vmatpush1.bf16.msra.mxu0 0
    %2129 = vmatprep.subr.bf16.mxu0 0
    %2130 = vmatpush1.bf16.msra.mxu0 0
    %2131 = vmatprep.subr.bf16.mxu0 0
    %2132 = vmatpush1.bf16.msra.mxu0 0
    %2133 = vmatprep.subr.bf16.mxu0 0
    %2134 = vmatpush1.bf16.msra.mxu0 0
    %2135 = vmatprep.subr.bf16.mxu0 0
    %2136 = vmatpush1.bf16.msra.mxu0 0
    %2137 = vmatprep.subr.bf16.mxu0 0
    %2138 = vmatpush1.bf16.msra.mxu0 0
    %2139 = vmatprep.subr.bf16.mxu0 0
    %2140 = vmatpush1.bf16.msra.mxu0 0
    %2141 = vmatprep.mubr.bf16.mxu0 0
    %2142 = vmatmul.mubr.bf16.gmra.mrb[0].mxu0 %v2104
    %v2143 = vpop.f32.mrb[0].mxu0
    %v2144 = vadd.f32 0.0, %v2143
    %v2145 = vpop.f32.mrb[0].mxu0
    %v2146 = vpop.f32.mrb[0].mxu0
    %v2147 = vpop.f32.mrb[0].mxu0
    %2148 = vdwg.mxu0
    %v2150 = vsel %vm1261, %v1539, 0
    %v2153 = vsel %vm1553, %v89, 0
    %2155 = vmatprep.subr.bf16.mxu0 0
    %2156 = vmatpush1.bf16.msra.mxu0 %v2153
    %2157 = vmatprep.subr.bf16.mxu0 0
    %2158 = vmatpush1.bf16.msra.mxu0 0
    %2159 = vmatprep.subr.bf16.mxu0 0
    %2160 = vmatpush1.bf16.msra.mxu0 0
    %2161 = vmatprep.subr.bf16.mxu0 0
    %2162 = vmatpush1.bf16.msra.mxu0 0
    %2163 = vmatprep.subr.bf16.mxu0 0
    %2164 = vmatpush1.bf16.msra.mxu0 0
    %2165 = vmatprep.subr.bf16.mxu0 0
    %2166 = vmatpush1.bf16.msra.mxu0 0
    %2167 = vmatprep.subr.bf16.mxu0 0
    %2168 = vmatpush1.bf16.msra.mxu0 0
    %2169 = vmatprep.subr.bf16.mxu0 0
    %2170 = vmatpush1.bf16.msra.mxu0 0
    %2171 = vmatprep.subr.bf16.mxu0 0
    %2172 = vmatpush1.bf16.msra.mxu0 0
    %2173 = vmatprep.subr.bf16.mxu0 0
    %2174 = vmatpush1.bf16.msra.mxu0 0
    %2175 = vmatprep.subr.bf16.mxu0 0
    %2176 = vmatpush1.bf16.msra.mxu0 0
    %2177 = vmatprep.subr.bf16.mxu0 0
    %2178 = vmatpush1.bf16.msra.mxu0 0
    %2179 = vmatprep.subr.bf16.mxu0 0
    %2180 = vmatpush1.bf16.msra.mxu0 0
    %2181 = vmatprep.subr.bf16.mxu0 0
    %2182 = vmatpush1.bf16.msra.mxu0 0
    %2183 = vmatprep.subr.bf16.mxu0 0
    %2184 = vmatpush1.bf16.msra.mxu0 0
    %2185 = vmatprep.subr.bf16.mxu0 0
    %2186 = vmatpush1.bf16.msra.mxu0 0
    %2187 = vmatprep.mubr.bf16.mxu0 0
    %2188 = vmatmul.mubr.bf16.gmra.mrb[0].mxu0 %v2150
    %v2189 = vpop.f32.mrb[0].mxu0
    %v2190 = vadd.f32 0.0, %v2189
    %v2191 = vpop.f32.mrb[0].mxu0
    %v2192 = vpop.f32.mrb[0].mxu0
    %v2193 = vpop.f32.mrb[0].mxu0
    %2194 = vdwg.mxu0
    %v2196 = vsel %vm1261, %v1540, 0
    %v2199 = vsel %vm1553, %v90, 0
    %2201 = vmatprep.subr.bf16.mxu0 0
    %2202 = vmatpush1.bf16.msra.mxu0 %v2199
    %2203 = vmatprep.subr.bf16.mxu0 0
    %2204 = vmatpush1.bf16.msra.mxu0 0
    %2205 = vmatprep.subr.bf16.mxu0 0
    %2206 = vmatpush1.bf16.msra.mxu0 0
    %2207 = vmatprep.subr.bf16.mxu0 0
    %2208 = vmatpush1.bf16.msra.mxu0 0
    %2209 = vmatprep.subr.bf16.mxu0 0
    %2210 = vmatpush1.bf16.msra.mxu0 0
    %2211 = vmatprep.subr.bf16.mxu0 0
    %2212 = vmatpush1.bf16.msra.mxu0 0
    %2213 = vmatprep.subr.bf16.mxu0 0
    %2214 = vmatpush1.bf16.msra.mxu0 0
    %2215 = vmatprep.subr.bf16.mxu0 0
    %2216 = vmatpush1.bf16.msra.mxu0 0
    %2217 = vmatprep.subr.bf16.mxu0 0
    %2218 = vmatpush1.bf16.msra.mxu0 0
    %2219 = vmatprep.subr.bf16.mxu0 0
    %2220 = vmatpush1.bf16.msra.mxu0 0
    %2221 = vmatprep.subr.bf16.mxu0 0
    %2222 = vmatpush1.bf16.msra.mxu0 0
    %2223 = vmatprep.subr.bf16.mxu0 0
    %2224 = vmatpush1.bf16.msra.mxu0 0
    %2225 = vmatprep.subr.bf16.mxu0 0
    %2226 = vmatpush1.bf16.msra.mxu0 0
    %2227 = vmatprep.subr.bf16.mxu0 0
    %2228 = vmatpush1.bf16.msra.mxu0 0
    %2229 = vmatprep.subr.bf16.mxu0 0
    %2230 = vmatpush1.bf16.msra.mxu0 0
    %2231 = vmatprep.subr.bf16.mxu0 0
    %2232 = vmatpush1.bf16.msra.mxu0 0
    %2233 = vmatprep.mubr.bf16.mxu0 0
    %2234 = vmatmul.mubr.bf16.gmra.mrb[0].mxu0 %v2196
    %v2235 = vpop.f32.mrb[0].mxu0
    %v2236 = vadd.f32 0.0, %v2235
    %v2237 = vpop.f32.mrb[0].mxu0
    %v2238 = vpop.f32.mrb[0].mxu0
    %v2239 = vpop.f32.mrb[0].mxu0
    %2240 = vdwg.mxu0
    %v2242 = vsel %vm1261, %v1541, 0
    %v2245 = vsel %vm1553, %v91, 0
    %2247 = vmatprep.subr.bf16.mxu0 0
    %2248 = vmatpush1.bf16.msra.mxu0 %v2245
    %2249 = vmatprep.subr.bf16.mxu0 0
    %2250 = vmatpush1.bf16.msra.mxu0 0
    %2251 = vmatprep.subr.bf16.mxu0 0
    %2252 = vmatpush1.bf16.msra.mxu0 0
    %2253 = vmatprep.subr.bf16.mxu0 0
    %2254 = vmatpush1.bf16.msra.mxu0 0
    %2255 = vmatprep.subr.bf16.mxu0 0
    %2256 = vmatpush1.bf16.msra.mxu0 0
    %2257 = vmatprep.subr.bf16.mxu0 0
    %2258 = vmatpush1.bf16.msra.mxu0 0
    %2259 = vmatprep.subr.bf16.mxu0 0
    %2260 = vmatpush1.bf16.msra.mxu0 0
    %2261 = vmatprep.subr.bf16.mxu0 0
    %2262 = vmatpush1.bf16.msra.mxu0 0
    %2263 = vmatprep.subr.bf16.mxu0 0
    %2264 = vmatpush1.bf16.msra.mxu0 0
    %2265 = vmatprep.subr.bf16.mxu0 0
    %2266 = vmatpush1.bf16.msra.mxu0 0
    %2267 = vmatprep.subr.bf16.mxu0 0
    %2268 = vmatpush1.bf16.msra.mxu0 0
    %2269 = vmatprep.subr.bf16.mxu0 0
    %2270 = vmatpush1.bf16.msra.mxu0 0
    %2271 = vmatprep.subr.bf16.mxu0 0
    %2272 = vmatpush1.bf16.msra.mxu0 0
    %2273 = vmatprep.subr.bf16.mxu0 0
    %2274 = vmatpush1.bf16.msra.mxu0 0
    %2275 = vmatprep.subr.bf16.mxu0 0
    %2276 = vmatpush1.bf16.msra.mxu0 0
    %2277 = vmatprep.subr.bf16.mxu0 0
    %2278 = vmatpush1.bf16.msra.mxu0 0
    %2279 = vmatprep.mubr.bf16.mxu0 0
    %2280 = vmatmul.mubr.bf16.gmra.mrb[0].mxu0 %v2242
    %v2281 = vpop.f32.mrb[0].mxu0
    %v2282 = vadd.f32 0.0, %v2281
    %v2283 = vpop.f32.mrb[0].mxu0
    %v2284 = vpop.f32.mrb[0].mxu0
    %v2285 = vpop.f32.mrb[0].mxu0
    %2286 = vdwg.mxu0
    %v2288 = vsel %vm1261, %v1542, 0
    %v2291 = vsel %vm1553, %v92, 0
    %2293 = vmatprep.subr.bf16.mxu0 0
    %2294 = vmatpush1.bf16.msra.mxu0 %v2291
    %2295 = vmatprep.subr.bf16.mxu0 0
    %2296 = vmatpush1.bf16.msra.mxu0 0
    %2297 = vmatprep.subr.bf16.mxu0 0
    %2298 = vmatpush1.bf16.msra.mxu0 0
    %2299 = vmatprep.subr.bf16.mxu0 0
    %2300 = vmatpush1.bf16.msra.mxu0 0
    %2301 = vmatprep.subr.bf16.mxu0 0
    %2302 = vmatpush1.bf16.msra.mxu0 0
    %2303 = vmatprep.subr.bf16.mxu0 0
    %2304 = vmatpush1.bf16.msra.mxu0 0
    %2305 = vmatprep.subr.bf16.mxu0 0
    %2306 = vmatpush1.bf16.msra.mxu0 0
    %2307 = vmatprep.subr.bf16.mxu0 0
    %2308 = vmatpush1.bf16.msra.mxu0 0
    %2309 = vmatprep.subr.bf16.mxu0 0
    %2310 = vmatpush1.bf16.msra.mxu0 0
    %2311 = vmatprep.subr.bf16.mxu0 0
    %2312 = vmatpush1.bf16.msra.mxu0 0
    %2313 = vmatprep.subr.bf16.mxu0 0
    %2314 = vmatpush1.bf16.msra.mxu0 0
    %2315 = vmatprep.subr.bf16.mxu0 0
    %2316 = vmatpush1.bf16.msra.mxu0 0
    %2317 = vmatprep.subr.bf16.mxu0 0
    %2318 = vmatpush1.bf16.msra.mxu0 0
    %2319 = vmatprep.subr.bf16.mxu0 0
    %2320 = vmatpush1.bf16.msra.mxu0 0
    %2321 = vmatprep.subr.bf16.mxu0 0
    %2322 = vmatpush1.bf16.msra.mxu0 0
    %2323 = vmatprep.subr.bf16.mxu0 0
    %2324 = vmatpush1.bf16.msra.mxu0 0
    %2325 = vmatprep.mubr.bf16.mxu0 0
    %2326 = vmatmul.mubr.bf16.gmra.mrb[0].mxu0 %v2288
    %v2327 = vpop.f32.mrb[0].mxu0
    %v2328 = vadd.f32 0.0, %v2327
    %v2329 = vpop.f32.mrb[0].mxu0
    %v2330 = vpop.f32.mrb[0].mxu0
    %v2331 = vpop.f32.mrb[0].mxu0
    %2332 = vdwg.mxu0
    %v2334 = vsel %vm1261, %v1543, 0
    %v2337 = vsel %vm1553, %v93, 0
    %2339 = vmatprep.subr.bf16.mxu0 0
    %2340 = vmatpush1.bf16.msra.mxu0 %v2337
    %2341 = vmatprep.subr.bf16.mxu0 0
    %2342 = vmatpush1.bf16.msra.mxu0 0
    %2343 = vmatprep.subr.bf16.mxu0 0
    %2344 = vmatpush1.bf16.msra.mxu0 0
    %2345 = vmatprep.subr.bf16.mxu0 0
    %2346 = vmatpush1.bf16.msra.mxu0 0
    %2347 = vmatprep.subr.bf16.mxu0 0
    %2348 = vmatpush1.bf16.msra.mxu0 0
    %2349 = vmatprep.subr.bf16.mxu0 0
    %2350 = vmatpush1.bf16.msra.mxu0 0
    %2351 = vmatprep.subr.bf16.mxu0 0
    %2352 = vmatpush1.bf16.msra.mxu0 0
    %2353 = vmatprep.subr.bf16.mxu0 0
    %2354 = vmatpush1.bf16.msra.mxu0 0
    %2355 = vmatprep.subr.bf16.mxu0 0
    %2356 = vmatpush1.bf16.msra.mxu0 0
    %2357 = vmatprep.subr.bf16.mxu0 0
    %2358 = vmatpush1.bf16.msra.mxu0 0
    %2359 = vmatprep.subr.bf16.mxu0 0
    %2360 = vmatpush1.bf16.msra.mxu0 0
    %2361 = vmatprep.subr.bf16.mxu0 0
    %2362 = vmatpush1.bf16.msra.mxu0 0
    %2363 = vmatprep.subr.bf16.mxu0 0
    %2364 = vmatpush1.bf16.msra.mxu0 0
    %2365 = vmatprep.subr.bf16.mxu0 0
    %2366 = vmatpush1.bf16.msra.mxu0 0
    %2367 = vmatprep.subr.bf16.mxu0 0
    %2368 = vmatpush1.bf16.msra.mxu0 0
    %2369 = vmatprep.subr.bf16.mxu0 0
    %2370 = vmatpush1.bf16.msra.mxu0 0
    %2371 = vmatprep.mubr.bf16.mxu0 0
    %2372 = vmatmul.mubr.bf16.gmra.mrb[0].mxu0 %v2334
    %v2373 = vpop.f32.mrb[0].mxu0
    %v2374 = vadd.f32 0.0, %v2373
    %v2375 = vpop.f32.mrb[0].mxu0
    %v2376 = vpop.f32.mrb[0].mxu0
    %v2377 = vpop.f32.mrb[0].mxu0
    %2378 = vdwg.mxu0
    %v2380 = vsel %vm1261, %v1544, 0
    %v2383 = vsel %vm1553, %v94, 0
    %2385 = vmatprep.subr.bf16.mxu0 0
    %2386 = vmatpush1.bf16.msra.mxu0 %v2383
    %2387 = vmatprep.subr.bf16.mxu0 0
    %2388 = vmatpush1.bf16.msra.mxu0 0
    %2389 = vmatprep.subr.bf16.mxu0 0
    %2390 = vmatpush1.bf16.msra.mxu0 0
    %2391 = vmatprep.subr.bf16.mxu0 0
    %2392 = vmatpush1.bf16.msra.mxu0 0
    %2393 = vmatprep.subr.bf16.mxu0 0
    %2394 = vmatpush1.bf16.msra.mxu0 0
    %2395 = vmatprep.subr.bf16.mxu0 0
    %2396 = vmatpush1.bf16.msra.mxu0 0
    %2397 = vmatprep.subr.bf16.mxu0 0
    %2398 = vmatpush1.bf16.msra.mxu0 0
    %2399 = vmatprep.subr.bf16.mxu0 0
    %2400 = vmatpush1.bf16.msra.mxu0 0
    %2401 = vmatprep.subr.bf16.mxu0 0
    %2402 = vmatpush1.bf16.msra.mxu0 0
    %2403 = vmatprep.subr.bf16.mxu0 0
    %2404 = vmatpush1.bf16.msra.mxu0 0
    %2405 = vmatprep.subr.bf16.mxu0 0
    %2406 = vmatpush1.bf16.msra.mxu0 0
    %2407 = vmatprep.subr.bf16.mxu0 0
    %2408 = vmatpush1.bf16.msra.mxu0 0
    %2409 = vmatprep.subr.bf16.mxu0 0
    %2410 = vmatpush1.bf16.msra.mxu0 0
    %2411 = vmatprep.subr.bf16.mxu0 0
    %2412 = vmatpush1.bf16.msra.mxu0 0
    %2413 = vmatprep.subr.bf16.mxu0 0
    %2414 = vmatpush1.bf16.msra.mxu0 0
    %2415 = vmatprep.subr.bf16.mxu0 0
    %2416 = vmatpush1.bf16.msra.mxu0 0
    %2417 = vmatprep.mubr.bf16.mxu0 0
    %2418 = vmatmul.mubr.bf16.gmra.mrb[0].mxu0 %v2380
    %v2419 = vpop.f32.mrb[0].mxu0
    %v2420 = vadd.f32 0.0, %v2419
    %v2421 = vpop.f32.mrb[0].mxu0
    %v2422 = vpop.f32.mrb[0].mxu0
    %v2423 = vpop.f32.mrb[0].mxu0
    %2424 = vdwg.mxu0
    %v2426 = vsel %vm1261, %v1545, 0
    %v2429 = vsel %vm1553, %v95, 0
    %2431 = vmatprep.subr.bf16.mxu0 0
    %2432 = vmatpush1.bf16.msra.mxu0 %v2429
    %2433 = vmatprep.subr.bf16.mxu0 0
    %2434 = vmatpush1.bf16.msra.mxu0 0
    %2435 = vmatprep.subr.bf16.mxu0 0
    %2436 = vmatpush1.bf16.msra.mxu0 0
    %2437 = vmatprep.subr.bf16.mxu0 0
    %2438 = vmatpush1.bf16.msra.mxu0 0
    %2439 = vmatprep.subr.bf16.mxu0 0
    %2440 = vmatpush1.bf16.msra.mxu0 0
    %2441 = vmatprep.subr.bf16.mxu0 0
    %2442 = vmatpush1.bf16.msra.mxu0 0
    %2443 = vmatprep.subr.bf16.mxu0 0
    %2444 = vmatpush1.bf16.msra.mxu0 0
    %2445 = vmatprep.subr.bf16.mxu0 0
    %2446 = vmatpush1.bf16.msra.mxu0 0
    %2447 = vmatprep.subr.bf16.mxu0 0
    %2448 = vmatpush1.bf16.msra.mxu0 0
    %2449 = vmatprep.subr.bf16.mxu0 0
    %2450 = vmatpush1.bf16.msra.mxu0 0
    %2451 = vmatprep.subr.bf16.mxu0 0
    %2452 = vmatpush1.bf16.msra.mxu0 0
    %2453 = vmatprep.subr.bf16.mxu0 0
    %2454 = vmatpush1.bf16.msra.mxu0 0
    %2455 = vmatprep.subr.bf16.mxu0 0
    %2456 = vmatpush1.bf16.msra.mxu0 0
    %2457 = vmatprep.subr.bf16.mxu0 0
    %2458 = vmatpush1.bf16.msra.mxu0 0
    %2459 = vmatprep.subr.bf16.mxu0 0
    %2460 = vmatpush1.bf16.msra.mxu0 0
    %2461 = vmatprep.subr.bf16.mxu0 0
    %2462 = vmatpush1.bf16.msra.mxu0 0
    %2463 = vmatprep.mubr.bf16.mxu0 0
    %2464 = vmatmul.mubr.bf16.gmra.mrb[0].mxu0 %v2426
    %v2465 = vpop.f32.mrb[0].mxu0
    %v2466 = vadd.f32 0.0, %v2465
    %v2467 = vpop.f32.mrb[0].mxu0
    %v2468 = vpop.f32.mrb[0].mxu0
    %v2469 = vpop.f32.mrb[0].mxu0
    %2470 = vdwg.mxu0
    %v2472 = vsel %vm1261, %v1546, 0
    %v2475 = vsel %vm1553, %v96, 0
    %2477 = vmatprep.subr.bf16.mxu0 0
    %2478 = vmatpush1.bf16.msra.mxu0 %v2475
    %2479 = vmatprep.subr.bf16.mxu0 0
    %2480 = vmatpush1.bf16.msra.mxu0 0
    %2481 = vmatprep.subr.bf16.mxu0 0
    %2482 = vmatpush1.bf16.msra.mxu0 0
    %2483 = vmatprep.subr.bf16.mxu0 0
    %2484 = vmatpush1.bf16.msra.mxu0 0
    %2485 = vmatprep.subr.bf16.mxu0 0
    %2486 = vmatpush1.bf16.msra.mxu0 0
    %2487 = vmatprep.subr.bf16.mxu0 0
    %2488 = vmatpush1.bf16.msra.mxu0 0
    %2489 = vmatprep.subr.bf16.mxu0 0
    %2490 = vmatpush1.bf16.msra.mxu0 0
    %2491 = vmatprep.subr.bf16.mxu0 0
    %2492 = vmatpush1.bf16.msra.mxu0 0
    %2493 = vmatprep.subr.bf16.mxu0 0
    %2494 = vmatpush1.bf16.msra.mxu0 0
    %2495 = vmatprep.subr.bf16.mxu0 0
    %2496 = vmatpush1.bf16.msra.mxu0 0
    %2497 = vmatprep.subr.bf16.mxu0 0
    %2498 = vmatpush1.bf16.msra.mxu0 0
    %2499 = vmatprep.subr.bf16.mxu0 0
    %2500 = vmatpush1.bf16.msra.mxu0 0
    %2501 = vmatprep.subr.bf16.mxu0 0
    %2502 = vmatpush1.bf16.msra.mxu0 0
    %2503 = vmatprep.subr.bf16.mxu0 0
    %2504 = vmatpush1.bf16.msra.mxu0 0
    %2505 = vmatprep.subr.bf16.mxu0 0
    %2506 = vmatpush1.bf16.msra.mxu0 0
    %2507 = vmatprep.subr.bf16.mxu0 0
    %2508 = vmatpush1.bf16.msra.mxu0 0
    %2509 = vmatprep.mubr.bf16.mxu0 0
    %2510 = vmatmul.mubr.bf16.gmra.mrb[0].mxu0 %v2472
    %v2511 = vpop.f32.mrb[0].mxu0
    %v2512 = vadd.f32 0.0, %v2511
    %v2513 = vpop.f32.mrb[0].mxu0
    %v2514 = vpop.f32.mrb[0].mxu0
    %v2515 = vpop.f32.mrb[0].mxu0
    %2516 = vdwg.mxu0
    %v2518 = vsel %vm1261, %v1547, 0
    %v2521 = vsel %vm1553, %v97, 0
    %2523 = vmatprep.subr.bf16.mxu0 0
    %2524 = vmatpush1.bf16.msra.mxu0 %v2521
    %2525 = vmatprep.subr.bf16.mxu0 0
    %2526 = vmatpush1.bf16.msra.mxu0 0
    %2527 = vmatprep.subr.bf16.mxu0 0
    %2528 = vmatpush1.bf16.msra.mxu0 0
    %2529 = vmatprep.subr.bf16.mxu0 0
    %2530 = vmatpush1.bf16.msra.mxu0 0
    %2531 = vmatprep.subr.bf16.mxu0 0
    %2532 = vmatpush1.bf16.msra.mxu0 0
    %2533 = vmatprep.subr.bf16.mxu0 0
    %2534 = vmatpush1.bf16.msra.mxu0 0
    %2535 = vmatprep.subr.bf16.mxu0 0
    %2536 = vmatpush1.bf16.msra.mxu0 0
    %2537 = vmatprep.subr.bf16.mxu0 0
    %2538 = vmatpush1.bf16.msra.mxu0 0
    %2539 = vmatprep.subr.bf16.mxu0 0
    %2540 = vmatpush1.bf16.msra.mxu0 0
    %2541 = vmatprep.subr.bf16.mxu0 0
    %2542 = vmatpush1.bf16.msra.mxu0 0
    %2543 = vmatprep.subr.bf16.mxu0 0
    %2544 = vmatpush1.bf16.msra.mxu0 0
    %2545 = vmatprep.subr.bf16.mxu0 0
    %2546 = vmatpush1.bf16.msra.mxu0 0
    %2547 = vmatprep.subr.bf16.mxu0 0
    %2548 = vmatpush1.bf16.msra.mxu0 0
    %2549 = vmatprep.subr.bf16.mxu0 0
    %2550 = vmatpush1.bf16.msra.mxu0 0
    %2551 = vmatprep.subr.bf16.mxu0 0
    %2552 = vmatpush1.bf16.msra.mxu0 0
    %2553 = vmatprep.subr.bf16.mxu0 0
    %2554 = vmatpush1.bf16.msra.mxu0 0
    %2555 = vmatprep.mubr.bf16.mxu0 0
    %2556 = vmatmul.mubr.bf16.gmra.mrb[0].mxu0 %v2518
    %v2557 = vpop.f32.mrb[0].mxu0
    %v2558 = vadd.f32 0.0, %v2557
    %v2559 = vpop.f32.mrb[0].mxu0
    %v2560 = vpop.f32.mrb[0].mxu0
    %v2561 = vpop.f32.mrb[0].mxu0
    %2562 = vdwg.mxu0
    %v2564 = vsel %vm1261, %v1548, 0
    %v2567 = vsel %vm1553, %v98, 0
    %2569 = vmatprep.subr.bf16.mxu0 0
    %2570 = vmatpush1.bf16.msra.mxu0 %v2567
    %2571 = vmatprep.subr.bf16.mxu0 0
    %2572 = vmatpush1.bf16.msra.mxu0 0
    %2573 = vmatprep.subr.bf16.mxu0 0
    %2574 = vmatpush1.bf16.msra.mxu0 0
    %2575 = vmatprep.subr.bf16.mxu0 0
    %2576 = vmatpush1.bf16.msra.mxu0 0
    %2577 = vmatprep.subr.bf16.mxu0 0
    %2578 = vmatpush1.bf16.msra.mxu0 0
    %2579 = vmatprep.subr.bf16.mxu0 0
    %2580 = vmatpush1.bf16.msra.mxu0 0
    %2581 = vmatprep.subr.bf16.mxu0 0
    %2582 = vmatpush1.bf16.msra.mxu0 0
    %2583 = vmatprep.subr.bf16.mxu0 0
    %2584 = vmatpush1.bf16.msra.mxu0 0
    %2585 = vmatprep.subr.bf16.mxu0 0
    %2586 = vmatpush1.bf16.msra.mxu0 0
    %2587 = vmatprep.subr.bf16.mxu0 0
    %2588 = vmatpush1.bf16.msra.mxu0 0
    %2589 = vmatprep.subr.bf16.mxu0 0
    %2590 = vmatpush1.bf16.msra.mxu0 0
    %2591 = vmatprep.subr.bf16.mxu0 0
    %2592 = vmatpush1.bf16.msra.mxu0 0
    %2593 = vmatprep.subr.bf16.mxu0 0
    %2594 = vmatpush1.bf16.msra.mxu0 0
    %2595 = vmatprep.subr.bf16.mxu0 0
    %2596 = vmatpush1.bf16.msra.mxu0 0
    %2597 = vmatprep.subr.bf16.mxu0 0
    %2598 = vmatpush1.bf16.msra.mxu0 0
    %2599 = vmatprep.subr.bf16.mxu0 0
    %2600 = vmatpush1.bf16.msra.mxu0 0
    %2601 = vmatprep.mubr.bf16.mxu0 0
    %2602 = vmatmul.mubr.bf16.gmra.mrb[0].mxu0 %v2564
    %v2603 = vpop.f32.mrb[0].mxu0
    %v2604 = vadd.f32 0.0, %v2603
    %v2605 = vpop.f32.mrb[0].mxu0
    %v2606 = vpop.f32.mrb[0].mxu0
    %v2607 = vpop.f32.mrb[0].mxu0
    %2608 = vdwg.mxu0
    %v2610 = vsel %vm1261, %v1549, 0
    %v2613 = vsel %vm1553, %v99, 0
    %2615 = vmatprep.subr.bf16.mxu0 0
    %2616 = vmatpush1.bf16.msra.mxu0 %v2613
    %2617 = vmatprep.subr.bf16.mxu0 0
    %2618 = vmatpush1.bf16.msra.mxu0 0
    %2619 = vmatprep.subr.bf16.mxu0 0
    %2620 = vmatpush1.bf16.msra.mxu0 0
    %2621 = vmatprep.subr.bf16.mxu0 0
    %2622 = vmatpush1.bf16.msra.mxu0 0
    %2623 = vmatprep.subr.bf16.mxu0 0
    %2624 = vmatpush1.bf16.msra.mxu0 0
    %2625 = vmatprep.subr.bf16.mxu0 0
    %2626 = vmatpush1.bf16.msra.mxu0 0
    %2627 = vmatprep.subr.bf16.mxu0 0
    %2628 = vmatpush1.bf16.msra.mxu0 0
    %2629 = vmatprep.subr.bf16.mxu0 0
    %2630 = vmatpush1.bf16.msra.mxu0 0
    %2631 = vmatprep.subr.bf16.mxu0 0
    %2632 = vmatpush1.bf16.msra.mxu0 0
    %2633 = vmatprep.subr.bf16.mxu0 0
    %2634 = vmatpush1.bf16.msra.mxu0 0
    %2635 = vmatprep.subr.bf16.mxu0 0
    %2636 = vmatpush1.bf16.msra.mxu0 0
    %2637 = vmatprep.subr.bf16.mxu0 0
    %2638 = vmatpush1.bf16.msra.mxu0 0
    %2639 = vmatprep.subr.bf16.mxu0 0
    %2640 = vmatpush1.bf16.msra.mxu0 0
    %2641 = vmatprep.subr.bf16.mxu0 0
    %2642 = vmatpush1.bf16.msra.mxu0 0
    %2643 = vmatprep.subr.bf16.mxu0 0
    %2644 = vmatpush1.bf16.msra.mxu0 0
    %2645 = vmatprep.subr.bf16.mxu0 0
    %2646 = vmatpush1.bf16.msra.mxu0 0
    %2647 = vmatprep.mubr.bf16.mxu0 0
    %2648 = vmatmul.mubr.bf16.gmra.mrb[0].mxu0 %v2610
    %v2649 = vpop.f32.mrb[0].mxu0
    %v2650 = vadd.f32 0.0, %v2649
    %v2651 = vpop.f32.mrb[0].mxu0
    %v2652 = vpop.f32.mrb[0].mxu0
    %v2653 = vpop.f32.mrb[0].mxu0
    %2654 = vdwg.mxu0
    %v2655 = vpack.c.bf16 %v2144, %v1592
    %v2656 = vld [vmem:[%s5] sm:$0xff]
    %v2657 = vld [vmem:[%s5 + $0x8] sm:$0xff]
    %v2658 = vld [vmem:[%s5 + $0x10] sm:$0xff]
    %v2659 = vld [vmem:[%s5 + $0x18] sm:$0xff]
    %v2660 = vld [vmem:[%s5 + $0x20] sm:$0xff]
    %v2661 = vld [vmem:[%s5 + $0x28] sm:$0xff]
    %v2662 = vld [vmem:[%s5 + $0x30] sm:$0xff]
    %v2663 = vld [vmem:[%s5 + $0x38] sm:$0xff]
    %v2664 = vld [vmem:[%s5 + $0x40] sm:$0xff]
    %v2665 = vld [vmem:[%s5 + $0x48] sm:$0xff]
    %v2666 = vld [vmem:[%s5 + $0x50] sm:$0xff]
    %v2667 = vld [vmem:[%s5 + $0x58] sm:$0xff]
    %v2668 = vld [vmem:[%s5 + $0x60] sm:$0xff]
    %v2669 = vld [vmem:[%s5 + $0x68] sm:$0xff]
    %v2670 = vld [vmem:[%s5 + $0x70] sm:$0xff]
    %v2671 = vld [vmem:[%s5 + $0x78] sm:$0xff]
    %v2672 = vld [vmem:[%s5 + $0x80] sm:$0xff]
    %v2673 = vld [vmem:[%s5 + $0x88] sm:$0xff]
    %v2674 = vld [vmem:[%s5 + $0x90] sm:$0xff]
    %v2675 = vld [vmem:[%s5 + $0x98] sm:$0xff]
    %v2676 = vld [vmem:[%s5 + $0xa0] sm:$0xff]
    %v2677 = vld [vmem:[%s5 + $0xa8] sm:$0xff]
    %v2678 = vld [vmem:[%s5 + $0xb0] sm:$0xff]
    %v2679 = vld [vmem:[%s5 + $0xb8] sm:$0xff]
    %v2680 = vpack.c.bf16 %v2190, %v1638
    %s2681 = scalar_lea.vmem %s5, 192
    %v2682 = vld [vmem:[%s2681] sm:$0xff]
    %v2683 = vld [vmem:[%s2681 + $0x8] sm:$0xff]
    %v2684 = vld [vmem:[%s2681 + $0x10] sm:$0xff]
    %v2685 = vld [vmem:[%s2681 + $0x18] sm:$0xff]
    %v2686 = vld [vmem:[%s2681 + $0x20] sm:$0xff]
    %v2687 = vld [vmem:[%s2681 + $0x28] sm:$0xff]
    %v2688 = vld [vmem:[%s2681 + $0x30] sm:$0xff]
    %v2689 = vld [vmem:[%s2681 + $0x38] sm:$0xff]
    %v2690 = vld [vmem:[%s2681 + $0x40] sm:$0xff]
    %v2691 = vld [vmem:[%s2681 + $0x48] sm:$0xff]
    %v2692 = vld [vmem:[%s2681 + $0x50] sm:$0xff]
    %v2693 = vld [vmem:[%s2681 + $0x58] sm:$0xff]
    %v2694 = vld [vmem:[%s2681 + $0x60] sm:$0xff]
    %v2695 = vld [vmem:[%s2681 + $0x68] sm:$0xff]
    %v2696 = vld [vmem:[%s2681 + $0x70] sm:$0xff]
    %v2697 = vld [vmem:[%s2681 + $0x78] sm:$0xff]
    %v2698 = vld [vmem:[%s2681 + $0x80] sm:$0xff]
    %v2699 = vld [vmem:[%s2681 + $0x88] sm:$0xff]
    %v2700 = vld [vmem:[%s2681 + $0x90] sm:$0xff]
    %v2701 = vld [vmem:[%s2681 + $0x98] sm:$0xff]
    %v2702 = vld [vmem:[%s2681 + $0xa0] sm:$0xff]
    %v2703 = vld [vmem:[%s2681 + $0xa8] sm:$0xff]
    %v2704 = vld [vmem:[%s2681 + $0xb0] sm:$0xff]
    %v2705 = vld [vmem:[%s2681 + $0xb8] sm:$0xff]
    %v2730 = vunpack.c.l.b16 %v2682
    %v2731 = vunpack.c.h.b16 %v2682
    %v2732 = vunpack.c.l.b16 %v2683
    %v2733 = vunpack.c.h.b16 %v2683
    %v2734 = vunpack.c.l.b16 %v2684
    %v2735 = vunpack.c.h.b16 %v2684
    %v2736 = vunpack.c.l.b16 %v2685
    %v2737 = vunpack.c.h.b16 %v2685
    %v2738 = vunpack.c.l.b16 %v2686
    %v2739 = vunpack.c.h.b16 %v2686
    %v2740 = vunpack.c.l.b16 %v2687
    %v2741 = vunpack.c.h.b16 %v2687
    %v2742 = vunpack.c.l.b16 %v2688
    %v2743 = vunpack.c.h.b16 %v2688
    %v2744 = vunpack.c.l.b16 %v2689
    %v2745 = vunpack.c.h.b16 %v2689
    %v2746 = vunpack.c.l.b16 %v2690
    %v2747 = vunpack.c.h.b16 %v2690
    %v2748 = vunpack.c.l.b16 %v2691
    %v2749 = vunpack.c.h.b16 %v2691
    %v2750 = vunpack.c.l.b16 %v2692
    %v2751 = vunpack.c.h.b16 %v2692
    %v2752 = vunpack.c.l.b16 %v2693
    %v2753 = vunpack.c.h.b16 %v2693
    %v2754 = vunpack.c.l.b16 %v2694
    %v2755 = vunpack.c.h.b16 %v2694
    %v2756 = vunpack.c.l.b16 %v2695
    %v2757 = vunpack.c.h.b16 %v2695
    %v2758 = vunpack.c.l.b16 %v2696
    %v2759 = vunpack.c.h.b16 %v2696
    %v2760 = vunpack.c.l.b16 %v2697
    %v2761 = vunpack.c.h.b16 %v2697
    %v2762 = vunpack.c.l.b16 %v2698
    %v2763 = vunpack.c.h.b16 %v2698
    %v2764 = vunpack.c.l.b16 %v2699
    %v2765 = vunpack.c.h.b16 %v2699
    %v2766 = vunpack.c.l.b16 %v2700
    %v2767 = vunpack.c.h.b16 %v2700
    %v2768 = vunpack.c.l.b16 %v2701
    %v2769 = vunpack.c.h.b16 %v2701
    %v2770 = vunpack.c.l.b16 %v2702
    %v2771 = vunpack.c.h.b16 %v2702
    %v2772 = vunpack.c.l.b16 %v2703
    %v2773 = vunpack.c.h.b16 %v2703
    %v2774 = vunpack.c.l.b16 %v2704
    %v2775 = vunpack.c.h.b16 %v2704
    %v2776 = vunpack.c.l.b16 %v2705
    %v2777 = vunpack.c.h.b16 %v2705
    %v2778 = vpack.c.b16 %v2736, %v2730
    %v2779 = vpack.c.b16 %v2737, %v2731
    %v2780 = vpack.c.b16 %v2738, %v2732
    %v2781 = vpack.c.b16 %v2739, %v2733
    %v2782 = vpack.c.b16 %v2740, %v2734
    %v2783 = vpack.c.b16 %v2741, %v2735
    %v2784 = vpack.c.b16 %v2748, %v2742
    %v2785 = vpack.c.b16 %v2749, %v2743
    %v2786 = vpack.c.b16 %v2750, %v2744
    %v2787 = vpack.c.b16 %v2751, %v2745
    %v2788 = vpack.c.b16 %v2752, %v2746
    %v2789 = vpack.c.b16 %v2753, %v2747
    %v2790 = vpack.c.b16 %v2760, %v2754
    %v2791 = vpack.c.b16 %v2761, %v2755
    %v2792 = vpack.c.b16 %v2762, %v2756
    %v2793 = vpack.c.b16 %v2763, %v2757
    %v2794 = vpack.c.b16 %v2764, %v2758
    %v2795 = vpack.c.b16 %v2765, %v2759
    %v2796 = vpack.c.b16 %v2772, %v2766
    %v2797 = vpack.c.b16 %v2773, %v2767
    %v2798 = vpack.c.b16 %v2774, %v2768
    %v2799 = vpack.c.b16 %v2775, %v2769
    %v2800 = vpack.c.b16 %v2776, %v2770
    %v2801 = vpack.c.b16 %v2777, %v2771
    %v2827 = vsel %vm100, %v2680, 0
    %2829 = vmatprep.subr.bf16.mxu0 %v2779
    %2830 = vmatpush1.bf16.msra.mxu0 %v2778
    %2831 = vmatprep.subr.bf16.mxu0 %v2785
    %2832 = vmatpush1.bf16.msra.mxu0 %v2784
    %2833 = vmatprep.subr.bf16.mxu0 %v2791
    %2834 = vmatpush1.bf16.msra.mxu0 %v2790
    %2835 = vmatprep.subr.bf16.mxu0 %v2797
    %2836 = vmatpush1.bf16.msra.mxu0 %v2796
    %2837 = vmatprep.subr.bf16.mxu0 0
    %2838 = vmatpush1.bf16.msra.mxu0 0
    %2839 = vmatprep.subr.bf16.mxu0 0
    %2840 = vmatpush1.bf16.msra.mxu0 0
    %2841 = vmatprep.subr.bf16.mxu0 0
    %2842 = vmatpush1.bf16.msra.mxu0 0
    %2843 = vmatprep.subr.bf16.mxu0 0
    %2844 = vmatpush1.bf16.msra.mxu0 0
    %2845 = vmatprep.subr.bf16.mxu0 0
    %2846 = vmatpush1.bf16.msra.mxu0 0
    %2847 = vmatprep.subr.bf16.mxu0 0
    %2848 = vmatpush1.bf16.msra.mxu0 0
    %2849 = vmatprep.subr.bf16.mxu0 0
    %2850 = vmatpush1.bf16.msra.mxu0 0
    %2851 = vmatprep.subr.bf16.mxu0 0
    %2852 = vmatpush1.bf16.msra.mxu0 0
    %2853 = vmatprep.subr.bf16.mxu0 0
    %2854 = vmatpush1.bf16.msra.mxu0 0
    %2855 = vmatprep.subr.bf16.mxu0 0
    %2856 = vmatpush1.bf16.msra.mxu0 0
    %2857 = vmatprep.subr.bf16.mxu0 0
    %2858 = vmatpush1.bf16.msra.mxu0 0
    %2859 = vmatprep.subr.bf16.mxu0 0
    %2860 = vmatpush1.bf16.msra.mxu0 0
    %2861 = vmatprep.mubr.bf16.mxu0 0
    %2862 = vmatmul.mubr.bf16.gmra.mrb[0].mxu0 %v2827
    %v2863 = vpop.f32.mrb[0].mxu0
    %v2864 = vadd.f32 0.0, %v2863
    %v2865 = vpop.f32.mrb[0].mxu0
    %v2866 = vadd.f32 0.0, %v2865
    %v2867 = vpop.f32.mrb[0].mxu0
    %v2868 = vadd.f32 0.0, %v2867
    %v2869 = vpop.f32.mrb[0].mxu0
    %v2870 = vadd.f32 0.0, %v2869
    %2871 = vdwg.mxu0
    %2872 = vmatprep.subr.bf16.mxu0 %v2781
    %2873 = vmatpush1.bf16.msra.mxu0 %v2780
    %2874 = vmatprep.subr.bf16.mxu0 %v2787
    %2875 = vmatpush1.bf16.msra.mxu0 %v2786
    %2876 = vmatprep.subr.bf16.mxu0 %v2793
    %2877 = vmatpush1.bf16.msra.mxu0 %v2792
    %2878 = vmatprep.subr.bf16.mxu0 %v2799
    %2879 = vmatpush1.bf16.msra.mxu0 %v2798
    %2880 = vmatprep.subr.bf16.mxu0 0
    %2881 = vmatpush1.bf16.msra.mxu0 0
    %2882 = vmatprep.subr.bf16.mxu0 0
    %2883 = vmatpush1.bf16.msra.mxu0 0
    %2884 = vmatprep.subr.bf16.mxu0 0
    %2885 = vmatpush1.bf16.msra.mxu0 0
    %2886 = vmatprep.subr.bf16.mxu0 0
    %2887 = vmatpush1.bf16.msra.mxu0 0
    %2888 = vmatprep.subr.bf16.mxu0 0
    %2889 = vmatpush1.bf16.msra.mxu0 0
    %2890 = vmatprep.subr.bf16.mxu0 0
    %2891 = vmatpush1.bf16.msra.mxu0 0
    %2892 = vmatprep.subr.bf16.mxu0 0
    %2893 = vmatpush1.bf16.msra.mxu0 0
    %2894 = vmatprep.subr.bf16.mxu0 0
    %2895 = vmatpush1.bf16.msra.mxu0 0
    %2896 = vmatprep.subr.bf16.mxu0 0
    %2897 = vmatpush1.bf16.msra.mxu0 0
    %2898 = vmatprep.subr.bf16.mxu0 0
    %2899 = vmatpush1.bf16.msra.mxu0 0
    %2900 = vmatprep.subr.bf16.mxu0 0
    %2901 = vmatpush1.bf16.msra.mxu0 0
    %2902 = vmatprep.subr.bf16.mxu0 0
    %2903 = vmatpush1.bf16.msra.mxu0 0
    %2904 = vmatprep.mubr.bf16.mxu0 0
    %2905 = vmatmul.mubr.bf16.gmra.mrb[0].mxu0 %v2827
    %v2906 = vpop.f32.mrb[0].mxu0
    %v2907 = vadd.f32 0.0, %v2906
    %v2908 = vpop.f32.mrb[0].mxu0
    %v2909 = vadd.f32 0.0, %v2908
    %v2910 = vpop.f32.mrb[0].mxu0
    %v2911 = vadd.f32 0.0, %v2910
    %v2912 = vpop.f32.mrb[0].mxu0
    %v2913 = vadd.f32 0.0, %v2912
    %2914 = vdwg.mxu0
    %2915 = vmatprep.subr.bf16.mxu0 %v2783
    %2916 = vmatpush1.bf16.msra.mxu0 %v2782
    %2917 = vmatprep.subr.bf16.mxu0 %v2789
    %2918 = vmatpush1.bf16.msra.mxu0 %v2788
    %2919 = vmatprep.subr.bf16.mxu0 %v2795
    %2920 = vmatpush1.bf16.msra.mxu0 %v2794
    %2921 = vmatprep.subr.bf16.mxu0 %v2801
    %2922 = vmatpush1.bf16.msra.mxu0 %v2800
    %2923 = vmatprep.subr.bf16.mxu0 0
    %2924 = vmatpush1.bf16.msra.mxu0 0
    %2925 = vmatprep.subr.bf16.mxu0 0
    %2926 = vmatpush1.bf16.msra.mxu0 0
    %2927 = vmatprep.subr.bf16.mxu0 0
    %2928 = vmatpush1.bf16.msra.mxu0 0
    %2929 = vmatprep.subr.bf16.mxu0 0
    %2930 = vmatpush1.bf16.msra.mxu0 0
    %2931 = vmatprep.subr.bf16.mxu0 0
    %2932 = vmatpush1.bf16.msra.mxu0 0
    %2933 = vmatprep.subr.bf16.mxu0 0
    %2934 = vmatpush1.bf16.msra.mxu0 0
    %2935 = vmatprep.subr.bf16.mxu0 0
    %2936 = vmatpush1.bf16.msra.mxu0 0
    %2937 = vmatprep.subr.bf16.mxu0 0
    %2938 = vmatpush1.bf16.msra.mxu0 0
    %2939 = vmatprep.subr.bf16.mxu0 0
    %2940 = vmatpush1.bf16.msra.mxu0 0
    %2941 = vmatprep.subr.bf16.mxu0 0
    %2942 = vmatpush1.bf16.msra.mxu0 0
    %2943 = vmatprep.subr.bf16.mxu0 0
    %2944 = vmatpush1.bf16.msra.mxu0 0
    %2945 = vmatprep.subr.bf16.mxu0 0
    %2946 = vmatpush1.bf16.msra.mxu0 0
    %2947 = vmatprep.mubr.bf16.mxu0 0
    %2948 = vmatmul.mubr.bf16.gmra.mrb[0].mxu0 %v2827
    %v2949 = vpop.f32.mrb[0].mxu0
    %v2950 = vadd.f32 0.0, %v2949
    %v2951 = vpop.f32.mrb[0].mxu0
    %v2952 = vadd.f32 0.0, %v2951
    %v2953 = vpop.f32.mrb[0].mxu0
    %v2954 = vadd.f32 0.0, %v2953
    %v2955 = vpop.f32.mrb[0].mxu0
    %v2956 = vadd.f32 0.0, %v2955
    %2957 = vdwg.mxu0
    %v2982 = vunpack.c.l.b16 %v2656
    %v2983 = vunpack.c.h.b16 %v2656
    %v2984 = vunpack.c.l.b16 %v2657
    %v2985 = vunpack.c.h.b16 %v2657
    %v2986 = vunpack.c.l.b16 %v2658
    %v2987 = vunpack.c.h.b16 %v2658
    %v2988 = vunpack.c.l.b16 %v2659
    %v2989 = vunpack.c.h.b16 %v2659
    %v2990 = vunpack.c.l.b16 %v2660
    %v2991 = vunpack.c.h.b16 %v2660
    %v2992 = vunpack.c.l.b16 %v2661
    %v2993 = vunpack.c.h.b16 %v2661
    %v2994 = vunpack.c.l.b16 %v2662
    %v2995 = vunpack.c.h.b16 %v2662
    %v2996 = vunpack.c.l.b16 %v2663
    %v2997 = vunpack.c.h.b16 %v2663
    %v2998 = vunpack.c.l.b16 %v2664
    %v2999 = vunpack.c.h.b16 %v2664
    %v3000 = vunpack.c.l.b16 %v2665
    %v3001 = vunpack.c.h.b16 %v2665
    %v3002 = vunpack.c.l.b16 %v2666
    %v3003 = vunpack.c.h.b16 %v2666
    %v3004 = vunpack.c.l.b16 %v2667
    %v3005 = vunpack.c.h.b16 %v2667
    %v3006 = vunpack.c.l.b16 %v2668
    %v3007 = vunpack.c.h.b16 %v2668
    %v3008 = vunpack.c.l.b16 %v2669
    %v3009 = vunpack.c.h.b16 %v2669
    %v3010 = vunpack.c.l.b16 %v2670
    %v3011 = vunpack.c.h.b16 %v2670
    %v3012 = vunpack.c.l.b16 %v2671
    %v3013 = vunpack.c.h.b16 %v2671
    %v3014 = vunpack.c.l.b16 %v2672
    %v3015 = vunpack.c.h.b16 %v2672
    %v3016 = vunpack.c.l.b16 %v2673
    %v3017 = vunpack.c.h.b16 %v2673
    %v3018 = vunpack.c.l.b16 %v2674
    %v3019 = vunpack.c.h.b16 %v2674
    %v3020 = vunpack.c.l.b16 %v2675
    %v3021 = vunpack.c.h.b16 %v2675
    %v3022 = vunpack.c.l.b16 %v2676
    %v3023 = vunpack.c.h.b16 %v2676
    %v3024 = vunpack.c.l.b16 %v2677
    %v3025 = vunpack.c.h.b16 %v2677
    %v3026 = vunpack.c.l.b16 %v2678
    %v3027 = vunpack.c.h.b16 %v2678
    %v3028 = vunpack.c.l.b16 %v2679
    %v3029 = vunpack.c.h.b16 %v2679
    %v3030 = vpack.c.b16 %v2988, %v2982
    %v3031 = vpack.c.b16 %v2989, %v2983
    %v3032 = vpack.c.b16 %v2990, %v2984
    %v3033 = vpack.c.b16 %v2991, %v2985
    %v3034 = vpack.c.b16 %v2992, %v2986
    %v3035 = vpack.c.b16 %v2993, %v2987
    %v3036 = vpack.c.b16 %v3000, %v2994
    %v3037 = vpack.c.b16 %v3001, %v2995
    %v3038 = vpack.c.b16 %v3002, %v2996
    %v3039 = vpack.c.b16 %v3003, %v2997
    %v3040 = vpack.c.b16 %v3004, %v2998
    %v3041 = vpack.c.b16 %v3005, %v2999
    %v3042 = vpack.c.b16 %v3012, %v3006
    %v3043 = vpack.c.b16 %v3013, %v3007
    %v3044 = vpack.c.b16 %v3014, %v3008
    %v3045 = vpack.c.b16 %v3015, %v3009
    %v3046 = vpack.c.b16 %v3016, %v3010
    %v3047 = vpack.c.b16 %v3017, %v3011
    %v3048 = vpack.c.b16 %v3024, %v3018
    %v3049 = vpack.c.b16 %v3025, %v3019
    %v3050 = vpack.c.b16 %v3026, %v3020
    %v3051 = vpack.c.b16 %v3027, %v3021
    %v3052 = vpack.c.b16 %v3028, %v3022
    %v3053 = vpack.c.b16 %v3029, %v3023
    %v3079 = vsel %vm100, %v2655, 0
    %3081 = vmatprep.subr.bf16.mxu0 %v3031
    %3082 = vmatpush1.bf16.msra.mxu0 %v3030
    %3083 = vmatprep.subr.bf16.mxu0 %v3037
    %3084 = vmatpush1.bf16.msra.mxu0 %v3036
    %3085 = vmatprep.subr.bf16.mxu0 %v3043
    %3086 = vmatpush1.bf16.msra.mxu0 %v3042
    %3087 = vmatprep.subr.bf16.mxu0 %v3049
    %3088 = vmatpush1.bf16.msra.mxu0 %v3048
    %3089 = vmatprep.subr.bf16.mxu0 0
    %3090 = vmatpush1.bf16.msra.mxu0 0
    %3091 = vmatprep.subr.bf16.mxu0 0
    %3092 = vmatpush1.bf16.msra.mxu0 0
    %3093 = vmatprep.subr.bf16.mxu0 0
    %3094 = vmatpush1.bf16.msra.mxu0 0
    %3095 = vmatprep.subr.bf16.mxu0 0
    %3096 = vmatpush1.bf16.msra.mxu0 0
    %3097 = vmatprep.subr.bf16.mxu0 0
    %3098 = vmatpush1.bf16.msra.mxu0 0
    %3099 = vmatprep.subr.bf16.mxu0 0
    %3100 = vmatpush1.bf16.msra.mxu0 0
    %3101 = vmatprep.subr.bf16.mxu0 0
    %3102 = vmatpush1.bf16.msra.mxu0 0
    %3103 = vmatprep.subr.bf16.mxu0 0
    %3104 = vmatpush1.bf16.msra.mxu0 0
    %3105 = vmatprep.subr.bf16.mxu0 0
    %3106 = vmatpush1.bf16.msra.mxu0 0
    %3107 = vmatprep.subr.bf16.mxu0 0
    %3108 = vmatpush1.bf16.msra.mxu0 0
    %3109 = vmatprep.subr.bf16.mxu0 0
    %3110 = vmatpush1.bf16.msra.mxu0 0
    %3111 = vmatprep.subr.bf16.mxu0 0
    %3112 = vmatpush1.bf16.msra.mxu0 0
    %3113 = vmatprep.mubr.bf16.mxu0 0
    %3114 = vmatmul.mubr.bf16.gmra.mrb[0].mxu0 %v3079
    %v3115 = vpop.f32.mrb[0].mxu0
    %v3116 = vadd.f32 %v2864, %v3115
    %v3117 = vpop.f32.mrb[0].mxu0
    %v3118 = vadd.f32 %v2866, %v3117
    %v3119 = vpop.f32.mrb[0].mxu0
    %v3120 = vadd.f32 %v2868, %v3119
    %v3121 = vpop.f32.mrb[0].mxu0
    %v3122 = vadd.f32 %v2870, %v3121
    %3123 = vdwg.mxu0
    %3124 = vmatprep.subr.bf16.mxu0 %v3033
    %3125 = vmatpush1.bf16.msra.mxu0 %v3032
    %3126 = vmatprep.subr.bf16.mxu0 %v3039
    %3127 = vmatpush1.bf16.msra.mxu0 %v3038
    %3128 = vmatprep.subr.bf16.mxu0 %v3045
    %3129 = vmatpush1.bf16.msra.mxu0 %v3044
    %3130 = vmatprep.subr.bf16.mxu0 %v3051
    %3131 = vmatpush1.bf16.msra.mxu0 %v3050
    %3132 = vmatprep.subr.bf16.mxu0 0
    %3133 = vmatpush1.bf16.msra.mxu0 0
    %3134 = vmatprep.subr.bf16.mxu0 0
    %3135 = vmatpush1.bf16.msra.mxu0 0
    %3136 = vmatprep.subr.bf16.mxu0 0
    %3137 = vmatpush1.bf16.msra.mxu0 0
    %3138 = vmatprep.subr.bf16.mxu0 0
    %3139 = vmatpush1.bf16.msra.mxu0 0
    %3140 = vmatprep.subr.bf16.mxu0 0
    %3141 = vmatpush1.bf16.msra.mxu0 0
    %3142 = vmatprep.subr.bf16.mxu0 0
    %3143 = vmatpush1.bf16.msra.mxu0 0
    %3144 = vmatprep.subr.bf16.mxu0 0
    %3145 = vmatpush1.bf16.msra.mxu0 0
    %3146 = vmatprep.subr.bf16.mxu0 0
    %3147 = vmatpush1.bf16.msra.mxu0 0
    %3148 = vmatprep.subr.bf16.mxu0 0
    %3149 = vmatpush1.bf16.msra.mxu0 0
    %3150 = vmatprep.subr.bf16.mxu0 0
    %3151 = vmatpush1.bf16.msra.mxu0 0
    %3152 = vmatprep.subr.bf16.mxu0 0
    %3153 = vmatpush1.bf16.msra.mxu0 0
    %3154 = vmatprep.subr.bf16.mxu0 0
    %3155 = vmatpush1.bf16.msra.mxu0 0
    %3156 = vmatprep.mubr.bf16.mxu0 0
    %3157 = vmatmul.mubr.bf16.gmra.mrb[0].mxu0 %v3079
    %v3158 = vpop.f32.mrb[0].mxu0
    %v3159 = vadd.f32 %v2907, %v3158
    %v3160 = vpop.f32.mrb[0].mxu0
    %v3161 = vadd.f32 %v2909, %v3160
    %v3162 = vpop.f32.mrb[0].mxu0
    %v3163 = vadd.f32 %v2911, %v3162
    %v3164 = vpop.f32.mrb[0].mxu0
    %v3165 = vadd.f32 %v2913, %v3164
    %3166 = vdwg.mxu0
    %3167 = vmatprep.subr.bf16.mxu0 %v3035
    %3168 = vmatpush1.bf16.msra.mxu0 %v3034
    %3169 = vmatprep.subr.bf16.mxu0 %v3041
    %3170 = vmatpush1.bf16.msra.mxu0 %v3040
    %3171 = vmatprep.subr.bf16.mxu0 %v3047
    %3172 = vmatpush1.bf16.msra.mxu0 %v3046
    %3173 = vmatprep.subr.bf16.mxu0 %v3053
    %3174 = vmatpush1.bf16.msra.mxu0 %v3052
    %3175 = vmatprep.subr.bf16.mxu0 0
    %3176 = vmatpush1.bf16.msra.mxu0 0
    %3177 = vmatprep.subr.bf16.mxu0 0
    %3178 = vmatpush1.bf16.msra.mxu0 0
    %3179 = vmatprep.subr.bf16.mxu0 0
    %3180 = vmatpush1.bf16.msra.mxu0 0
    %3181 = vmatprep.subr.bf16.mxu0 0
    %3182 = vmatpush1.bf16.msra.mxu0 0
    %3183 = vmatprep.subr.bf16.mxu0 0
    %3184 = vmatpush1.bf16.msra.mxu0 0
    %3185 = vmatprep.subr.bf16.mxu0 0
    %3186 = vmatpush1.bf16.msra.mxu0 0
    %3187 = vmatprep.subr.bf16.mxu0 0
    %3188 = vmatpush1.bf16.msra.mxu0 0
    %3189 = vmatprep.subr.bf16.mxu0 0
    %3190 = vmatpush1.bf16.msra.mxu0 0
    %3191 = vmatprep.subr.bf16.mxu0 0
    %3192 = vmatpush1.bf16.msra.mxu0 0
    %3193 = vmatprep.subr.bf16.mxu0 0
    %3194 = vmatpush1.bf16.msra.mxu0 0
    %3195 = vmatprep.subr.bf16.mxu0 0
    %3196 = vmatpush1.bf16.msra.mxu0 0
    %3197 = vmatprep.subr.bf16.mxu0 0
    %3198 = vmatpush1.bf16.msra.mxu0 0
    %3199 = vmatprep.mubr.bf16.mxu0 0
    %3200 = vmatmul.mubr.bf16.gmra.mrb[0].mxu0 %v3079
    %v3201 = vpop.f32.mrb[0].mxu0
    %v3202 = vadd.f32 %v2950, %v3201
    %v3203 = vpop.f32.mrb[0].mxu0
    %v3204 = vadd.f32 %v2952, %v3203
    %v3205 = vpop.f32.mrb[0].mxu0
    %v3206 = vadd.f32 %v2954, %v3205
    %v3207 = vpop.f32.mrb[0].mxu0
    %v3208 = vadd.f32 %v2956, %v3207
    %3209 = vdwg.mxu0
    %v3210 = vpack.c.bf16 %v2236, %v1684
    %s3211 = scalar_lea.vmem %s5, 384
    %v3212 = vld [vmem:[%s3211] sm:$0xff]
    %v3213 = vld [vmem:[%s3211 + $0x8] sm:$0xff]
    %v3214 = vld [vmem:[%s3211 + $0x10] sm:$0xff]
    %v3215 = vld [vmem:[%s3211 + $0x18] sm:$0xff]
    %v3216 = vld [vmem:[%s3211 + $0x20] sm:$0xff]
    %v3217 = vld [vmem:[%s3211 + $0x28] sm:$0xff]
    %v3218 = vld [vmem:[%s3211 + $0x30] sm:$0xff]
    %v3219 = vld [vmem:[%s3211 + $0x38] sm:$0xff]
    %v3220 = vld [vmem:[%s3211 + $0x40] sm:$0xff]
    %v3221 = vld [vmem:[%s3211 + $0x48] sm:$0xff]
    %v3222 = vld [vmem:[%s3211 + $0x50] sm:$0xff]
    %v3223 = vld [vmem:[%s3211 + $0x58] sm:$0xff]
    %v3224 = vld [vmem:[%s3211 + $0x60] sm:$0xff]
    %v3225 = vld [vmem:[%s3211 + $0x68] sm:$0xff]
    %v3226 = vld [vmem:[%s3211 + $0x70] sm:$0xff]
    %v3227 = vld [vmem:[%s3211 + $0x78] sm:$0xff]
    %v3228 = vld [vmem:[%s3211 + $0x80] sm:$0xff]
    %v3229 = vld [vmem:[%s3211 + $0x88] sm:$0xff]
    %v3230 = vld [vmem:[%s3211 + $0x90] sm:$0xff]
    %v3231 = vld [vmem:[%s3211 + $0x98] sm:$0xff]
    %v3232 = vld [vmem:[%s3211 + $0xa0] sm:$0xff]
    %v3233 = vld [vmem:[%s3211 + $0xa8] sm:$0xff]
    %v3234 = vld [vmem:[%s3211 + $0xb0] sm:$0xff]
    %v3235 = vld [vmem:[%s3211 + $0xb8] sm:$0xff]
    %v3260 = vunpack.c.l.b16 %v3212
    %v3261 = vunpack.c.h.b16 %v3212
    %v3262 = vunpack.c.l.b16 %v3213
    %v3263 = vunpack.c.h.b16 %v3213
    %v3264 = vunpack.c.l.b16 %v3214
    %v3265 = vunpack.c.h.b16 %v3214
    %v3266 = vunpack.c.l.b16 %v3215
    %v3267 = vunpack.c.h.b16 %v3215
    %v3268 = vunpack.c.l.b16 %v3216
    %v3269 = vunpack.c.h.b16 %v3216
    %v3270 = vunpack.c.l.b16 %v3217
    %v3271 = vunpack.c.h.b16 %v3217
    %v3272 = vunpack.c.l.b16 %v3218
    %v3273 = vunpack.c.h.b16 %v3218
    %v3274 = vunpack.c.l.b16 %v3219
    %v3275 = vunpack.c.h.b16 %v3219
    %v3276 = vunpack.c.l.b16 %v3220
    %v3277 = vunpack.c.h.b16 %v3220
    %v3278 = vunpack.c.l.b16 %v3221
    %v3279 = vunpack.c.h.b16 %v3221
    %v3280 = vunpack.c.l.b16 %v3222
    %v3281 = vunpack.c.h.b16 %v3222
    %v3282 = vunpack.c.l.b16 %v3223
    %v3283 = vunpack.c.h.b16 %v3223
    %v3284 = vunpack.c.l.b16 %v3224
    %v3285 = vunpack.c.h.b16 %v3224
    %v3286 = vunpack.c.l.b16 %v3225
    %v3287 = vunpack.c.h.b16 %v3225
    %v3288 = vunpack.c.l.b16 %v3226
    %v3289 = vunpack.c.h.b16 %v3226
    %v3290 = vunpack.c.l.b16 %v3227
    %v3291 = vunpack.c.h.b16 %v3227
    %v3292 = vunpack.c.l.b16 %v3228
    %v3293 = vunpack.c.h.b16 %v3228
    %v3294 = vunpack.c.l.b16 %v3229
    %v3295 = vunpack.c.h.b16 %v3229
    %v3296 = vunpack.c.l.b16 %v3230
    %v3297 = vunpack.c.h.b16 %v3230
    %v3298 = vunpack.c.l.b16 %v3231
    %v3299 = vunpack.c.h.b16 %v3231
    %v3300 = vunpack.c.l.b16 %v3232
    %v3301 = vunpack.c.h.b16 %v3232
    %v3302 = vunpack.c.l.b16 %v3233
    %v3303 = vunpack.c.h.b16 %v3233
    %v3304 = vunpack.c.l.b16 %v3234
    %v3305 = vunpack.c.h.b16 %v3234
    %v3306 = vunpack.c.l.b16 %v3235
    %v3307 = vunpack.c.h.b16 %v3235
    %v3308 = vpack.c.b16 %v3266, %v3260
    %v3309 = vpack.c.b16 %v3267, %v3261
    %v3310 = vpack.c.b16 %v3268, %v3262
    %v3311 = vpack.c.b16 %v3269, %v3263
    %v3312 = vpack.c.b16 %v3270, %v3264
    %v3313 = vpack.c.b16 %v3271, %v3265
    %v3314 = vpack.c.b16 %v3278, %v3272
    %v3315 = vpack.c.b16 %v3279, %v3273
    %v3316 = vpack.c.b16 %v3280, %v3274
    %v3317 = vpack.c.b16 %v3281, %v3275
    %v3318 = vpack.c.b16 %v3282, %v3276
    %v3319 = vpack.c.b16 %v3283, %v3277
    %v3320 = vpack.c.b16 %v3290, %v3284
    %v3321 = vpack.c.b16 %v3291, %v3285
    %v3322 = vpack.c.b16 %v3292, %v3286
    %v3323 = vpack.c.b16 %v3293, %v3287
    %v3324 = vpack.c.b16 %v3294, %v3288
    %v3325 = vpack.c.b16 %v3295, %v3289
    %v3326 = vpack.c.b16 %v3302, %v3296
    %v3327 = vpack.c.b16 %v3303, %v3297
    %v3328 = vpack.c.b16 %v3304, %v3298
    %v3329 = vpack.c.b16 %v3305, %v3299
    %v3330 = vpack.c.b16 %v3306, %v3300
    %v3331 = vpack.c.b16 %v3307, %v3301
    %v3357 = vsel %vm100, %v3210, 0
    %3359 = vmatprep.subr.bf16.mxu0 %v3309
    %3360 = vmatpush1.bf16.msra.mxu0 %v3308
    %3361 = vmatprep.subr.bf16.mxu0 %v3315
    %3362 = vmatpush1.bf16.msra.mxu0 %v3314
    %3363 = vmatprep.subr.bf16.mxu0 %v3321
    %3364 = vmatpush1.bf16.msra.mxu0 %v3320
    %3365 = vmatprep.subr.bf16.mxu0 %v3327
    %3366 = vmatpush1.bf16.msra.mxu0 %v3326
    %3367 = vmatprep.subr.bf16.mxu0 0
    %3368 = vmatpush1.bf16.msra.mxu0 0
    %3369 = vmatprep.subr.bf16.mxu0 0
    %3370 = vmatpush1.bf16.msra.mxu0 0
    %3371 = vmatprep.subr.bf16.mxu0 0
    %3372 = vmatpush1.bf16.msra.mxu0 0
    %3373 = vmatprep.subr.bf16.mxu0 0
    %3374 = vmatpush1.bf16.msra.mxu0 0
    %3375 = vmatprep.subr.bf16.mxu0 0
    %3376 = vmatpush1.bf16.msra.mxu0 0
    %3377 = vmatprep.subr.bf16.mxu0 0
    %3378 = vmatpush1.bf16.msra.mxu0 0
    %3379 = vmatprep.subr.bf16.mxu0 0
    %3380 = vmatpush1.bf16.msra.mxu0 0
    %3381 = vmatprep.subr.bf16.mxu0 0
    %3382 = vmatpush1.bf16.msra.mxu0 0
    %3383 = vmatprep.subr.bf16.mxu0 0
    %3384 = vmatpush1.bf16.msra.mxu0 0
    %3385 = vmatprep.subr.bf16.mxu0 0
    %3386 = vmatpush1.bf16.msra.mxu0 0
    %3387 = vmatprep.subr.bf16.mxu0 0
    %3388 = vmatpush1.bf16.msra.mxu0 0
    %3389 = vmatprep.subr.bf16.mxu0 0
    %3390 = vmatpush1.bf16.msra.mxu0 0
    %3391 = vmatprep.mubr.bf16.mxu0 0
    %3392 = vmatmul.mubr.bf16.gmra.mrb[0].mxu0 %v3357
    %v3393 = vpop.f32.mrb[0].mxu0
    %v3394 = vadd.f32 0.0, %v3393
    %v3395 = vpop.f32.mrb[0].mxu0
    %v3396 = vadd.f32 0.0, %v3395
    %v3397 = vpop.f32.mrb[0].mxu0
    %v3398 = vadd.f32 0.0, %v3397
    %v3399 = vpop.f32.mrb[0].mxu0
    %v3400 = vadd.f32 0.0, %v3399
    %3401 = vdwg.mxu0
    %3402 = vmatprep.subr.bf16.mxu0 %v3311
    %3403 = vmatpush1.bf16.msra.mxu0 %v3310
    %3404 = vmatprep.subr.bf16.mxu0 %v3317
    %3405 = vmatpush1.bf16.msra.mxu0 %v3316
    %3406 = vmatprep.subr.bf16.mxu0 %v3323
    %3407 = vmatpush1.bf16.msra.mxu0 %v3322
    %3408 = vmatprep.subr.bf16.mxu0 %v3329
    %3409 = vmatpush1.bf16.msra.mxu0 %v3328
    %3410 = vmatprep.subr.bf16.mxu0 0
    %3411 = vmatpush1.bf16.msra.mxu0 0
    %3412 = vmatprep.subr.bf16.mxu0 0
    %3413 = vmatpush1.bf16.msra.mxu0 0
    %3414 = vmatprep.subr.bf16.mxu0 0
    %3415 = vmatpush1.bf16.msra.mxu0 0
    %3416 = vmatprep.subr.bf16.mxu0 0
    %3417 = vmatpush1.bf16.msra.mxu0 0
    %3418 = vmatprep.subr.bf16.mxu0 0
    %3419 = vmatpush1.bf16.msra.mxu0 0
    %3420 = vmatprep.subr.bf16.mxu0 0
    %3421 = vmatpush1.bf16.msra.mxu0 0
    %3422 = vmatprep.subr.bf16.mxu0 0
    %3423 = vmatpush1.bf16.msra.mxu0 0
    %3424 = vmatprep.subr.bf16.mxu0 0
    %3425 = vmatpush1.bf16.msra.mxu0 0
    %3426 = vmatprep.subr.bf16.mxu0 0
    %3427 = vmatpush1.bf16.msra.mxu0 0
    %3428 = vmatprep.subr.bf16.mxu0 0
    %3429 = vmatpush1.bf16.msra.mxu0 0
    %3430 = vmatprep.subr.bf16.mxu0 0
    %3431 = vmatpush1.bf16.msra.mxu0 0
    %3432 = vmatprep.subr.bf16.mxu0 0
    %3433 = vmatpush1.bf16.msra.mxu0 0
    %3434 = vmatprep.mubr.bf16.mxu0 0
    %3435 = vmatmul.mubr.bf16.gmra.mrb[0].mxu0 %v3357
    %v3436 = vpop.f32.mrb[0].mxu0
    %v3437 = vadd.f32 0.0, %v3436
    %v3438 = vpop.f32.mrb[0].mxu0
    %v3439 = vadd.f32 0.0, %v3438
    %v3440 = vpop.f32.mrb[0].mxu0
    %v3441 = vadd.f32 0.0, %v3440
    %v3442 = vpop.f32.mrb[0].mxu0
    %v3443 = vadd.f32 0.0, %v3442
    %3444 = vdwg.mxu0
    %3445 = vmatprep.subr.bf16.mxu0 %v3313
    %3446 = vmatpush1.bf16.msra.mxu0 %v3312
    %3447 = vmatprep.subr.bf16.mxu0 %v3319
    %3448 = vmatpush1.bf16.msra.mxu0 %v3318
    %3449 = vmatprep.subr.bf16.mxu0 %v3325
    %3450 = vmatpush1.bf16.msra.mxu0 %v3324
    %3451 = vmatprep.subr.bf16.mxu0 %v3331
    %3452 = vmatpush1.bf16.msra.mxu0 %v3330
    %3453 = vmatprep.subr.bf16.mxu0 0
    %3454 = vmatpush1.bf16.msra.mxu0 0
    %3455 = vmatprep.subr.bf16.mxu0 0
    %3456 = vmatpush1.bf16.msra.mxu0 0
    %3457 = vmatprep.subr.bf16.mxu0 0
    %3458 = vmatpush1.bf16.msra.mxu0 0
    %3459 = vmatprep.subr.bf16.mxu0 0
    %3460 = vmatpush1.bf16.msra.mxu0 0
    %3461 = vmatprep.subr.bf16.mxu0 0
    %3462 = vmatpush1.bf16.msra.mxu0 0
    %3463 = vmatprep.subr.bf16.mxu0 0
    %3464 = vmatpush1.bf16.msra.mxu0 0
    %3465 = vmatprep.subr.bf16.mxu0 0
    %3466 = vmatpush1.bf16.msra.mxu0 0
    %3467 = vmatprep.subr.bf16.mxu0 0
    %3468 = vmatpush1.bf16.msra.mxu0 0
    %3469 = vmatprep.subr.bf16.mxu0 0
    %3470 = vmatpush1.bf16.msra.mxu0 0
    %3471 = vmatprep.subr.bf16.mxu0 0
    %3472 = vmatpush1.bf16.msra.mxu0 0
    %3473 = vmatprep.subr.bf16.mxu0 0
    %3474 = vmatpush1.bf16.msra.mxu0 0
    %3475 = vmatprep.subr.bf16.mxu0 0
    %3476 = vmatpush1.bf16.msra.mxu0 0
    %3477 = vmatprep.mubr.bf16.mxu0 0
    %3478 = vmatmul.mubr.bf16.gmra.mrb[0].mxu0 %v3357
    %v3479 = vpop.f32.mrb[0].mxu0
    %v3480 = vadd.f32 0.0, %v3479
    %v3481 = vpop.f32.mrb[0].mxu0
    %v3482 = vadd.f32 0.0, %v3481
    %v3483 = vpop.f32.mrb[0].mxu0
    %v3484 = vadd.f32 0.0, %v3483
    %v3485 = vpop.f32.mrb[0].mxu0
    %v3486 = vadd.f32 0.0, %v3485
    %3487 = vdwg.mxu0
    %v3488 = vadd.f32 %v3116, %v3394
    %v3489 = vadd.f32 %v3118, %v3396
    %v3490 = vadd.f32 %v3159, %v3437
    %v3491 = vadd.f32 %v3161, %v3439
    %v3492 = vadd.f32 %v3202, %v3480
    %v3493 = vadd.f32 %v3204, %v3482
    %v3494 = vadd.f32 %v3120, %v3398
    %v3495 = vadd.f32 %v3122, %v3400
    %v3496 = vadd.f32 %v3163, %v3441
    %v3497 = vadd.f32 %v3165, %v3443
    %v3498 = vadd.f32 %v3206, %v3484
    %v3499 = vadd.f32 %v3208, %v3486
    %v3500 = vpack.c.bf16 %v2282, %v1730
    %s3501 = scalar_lea.vmem %s5, 576
    %v3502 = vld [vmem:[%s3501] sm:$0xff]
    %v3503 = vld [vmem:[%s3501 + $0x8] sm:$0xff]
    %v3504 = vld [vmem:[%s3501 + $0x10] sm:$0xff]
    %v3505 = vld [vmem:[%s3501 + $0x18] sm:$0xff]
    %v3506 = vld [vmem:[%s3501 + $0x20] sm:$0xff]
    %v3507 = vld [vmem:[%s3501 + $0x28] sm:$0xff]
    %v3508 = vld [vmem:[%s3501 + $0x30] sm:$0xff]
    %v3509 = vld [vmem:[%s3501 + $0x38] sm:$0xff]
    %v3510 = vld [vmem:[%s3501 + $0x40] sm:$0xff]
    %v3511 = vld [vmem:[%s3501 + $0x48] sm:$0xff]
    %v3512 = vld [vmem:[%s3501 + $0x50] sm:$0xff]
    %v3513 = vld [vmem:[%s3501 + $0x58] sm:$0xff]
    %v3514 = vld [vmem:[%s3501 + $0x60] sm:$0xff]
    %v3515 = vld [vmem:[%s3501 + $0x68] sm:$0xff]
    %v3516 = vld [vmem:[%s3501 + $0x70] sm:$0xff]
    %v3517 = vld [vmem:[%s3501 + $0x78] sm:$0xff]
    %v3518 = vld [vmem:[%s3501 + $0x80] sm:$0xff]
    %v3519 = vld [vmem:[%s3501 + $0x88] sm:$0xff]
    %v3520 = vld [vmem:[%s3501 + $0x90] sm:$0xff]
    %v3521 = vld [vmem:[%s3501 + $0x98] sm:$0xff]
    %v3522 = vld [vmem:[%s3501 + $0xa0] sm:$0xff]
    %v3523 = vld [vmem:[%s3501 + $0xa8] sm:$0xff]
    %v3524 = vld [vmem:[%s3501 + $0xb0] sm:$0xff]
    %v3525 = vld [vmem:[%s3501 + $0xb8] sm:$0xff]
    %v3550 = vunpack.c.l.b16 %v3502
    %v3551 = vunpack.c.h.b16 %v3502
    %v3552 = vunpack.c.l.b16 %v3503
    %v3553 = vunpack.c.h.b16 %v3503
    %v3554 = vunpack.c.l.b16 %v3504
    %v3555 = vunpack.c.h.b16 %v3504
    %v3556 = vunpack.c.l.b16 %v3505
    %v3557 = vunpack.c.h.b16 %v3505
    %v3558 = vunpack.c.l.b16 %v3506
    %v3559 = vunpack.c.h.b16 %v3506
    %v3560 = vunpack.c.l.b16 %v3507
    %v3561 = vunpack.c.h.b16 %v3507
    %v3562 = vunpack.c.l.b16 %v3508
    %v3563 = vunpack.c.h.b16 %v3508
    %v3564 = vunpack.c.l.b16 %v3509
    %v3565 = vunpack.c.h.b16 %v3509
    %v3566 = vunpack.c.l.b16 %v3510
    %v3567 = vunpack.c.h.b16 %v3510
    %v3568 = vunpack.c.l.b16 %v3511
    %v3569 = vunpack.c.h.b16 %v3511
    %v3570 = vunpack.c.l.b16 %v3512
    %v3571 = vunpack.c.h.b16 %v3512
    %v3572 = vunpack.c.l.b16 %v3513
    %v3573 = vunpack.c.h.b16 %v3513
    %v3574 = vunpack.c.l.b16 %v3514
    %v3575 = vunpack.c.h.b16 %v3514
    %v3576 = vunpack.c.l.b16 %v3515
    %v3577 = vunpack.c.h.b16 %v3515
    %v3578 = vunpack.c.l.b16 %v3516
    %v3579 = vunpack.c.h.b16 %v3516
    %v3580 = vunpack.c.l.b16 %v3517
    %v3581 = vunpack.c.h.b16 %v3517
    %v3582 = vunpack.c.l.b16 %v3518
    %v3583 = vunpack.c.h.b16 %v3518
    %v3584 = vunpack.c.l.b16 %v3519
    %v3585 = vunpack.c.h.b16 %v3519
    %v3586 = vunpack.c.l.b16 %v3520
    %v3587 = vunpack.c.h.b16 %v3520
    %v3588 = vunpack.c.l.b16 %v3521
    %v3589 = vunpack.c.h.b16 %v3521
    %v3590 = vunpack.c.l.b16 %v3522
    %v3591 = vunpack.c.h.b16 %v3522
    %v3592 = vunpack.c.l.b16 %v3523
    %v3593 = vunpack.c.h.b16 %v3523
    %v3594 = vunpack.c.l.b16 %v3524
    %v3595 = vunpack.c.h.b16 %v3524
    %v3596 = vunpack.c.l.b16 %v3525
    %v3597 = vunpack.c.h.b16 %v3525
    %v3598 = vpack.c.b16 %v3556, %v3550
    %v3599 = vpack.c.b16 %v3557, %v3551
    %v3600 = vpack.c.b16 %v3558, %v3552
    %v3601 = vpack.c.b16 %v3559, %v3553
    %v3602 = vpack.c.b16 %v3560, %v3554
    %v3603 = vpack.c.b16 %v3561, %v3555
    %v3604 = vpack.c.b16 %v3568, %v3562
    %v3605 = vpack.c.b16 %v3569, %v3563
    %v3606 = vpack.c.b16 %v3570, %v3564
    %v3607 = vpack.c.b16 %v3571, %v3565
    %v3608 = vpack.c.b16 %v3572, %v3566
    %v3609 = vpack.c.b16 %v3573, %v3567
    %v3610 = vpack.c.b16 %v3580, %v3574
    %v3611 = vpack.c.b16 %v3581, %v3575
    %v3612 = vpack.c.b16 %v3582, %v3576
    %v3613 = vpack.c.b16 %v3583, %v3577
    %v3614 = vpack.c.b16 %v3584, %v3578
    %v3615 = vpack.c.b16 %v3585, %v3579
    %v3616 = vpack.c.b16 %v3592, %v3586
    %v3617 = vpack.c.b16 %v3593, %v3587
    %v3618 = vpack.c.b16 %v3594, %v3588
    %v3619 = vpack.c.b16 %v3595, %v3589
    %v3620 = vpack.c.b16 %v3596, %v3590
    %v3621 = vpack.c.b16 %v3597, %v3591
    %v3647 = vsel %vm100, %v3500, 0
    %3649 = vmatprep.subr.bf16.mxu0 %v3599
    %3650 = vmatpush1.bf16.msra.mxu0 %v3598
    %3651 = vmatprep.subr.bf16.mxu0 %v3605
    %3652 = vmatpush1.bf16.msra.mxu0 %v3604
    %3653 = vmatprep.subr.bf16.mxu0 %v3611
    %3654 = vmatpush1.bf16.msra.mxu0 %v3610
    %3655 = vmatprep.subr.bf16.mxu0 %v3617
    %3656 = vmatpush1.bf16.msra.mxu0 %v3616
    %3657 = vmatprep.subr.bf16.mxu0 0
    %3658 = vmatpush1.bf16.msra.mxu0 0
    %3659 = vmatprep.subr.bf16.mxu0 0
    %3660 = vmatpush1.bf16.msra.mxu0 0
    %3661 = vmatprep.subr.bf16.mxu0 0
    %3662 = vmatpush1.bf16.msra.mxu0 0
    %3663 = vmatprep.subr.bf16.mxu0 0
    %3664 = vmatpush1.bf16.msra.mxu0 0
    %3665 = vmatprep.subr.bf16.mxu0 0
    %3666 = vmatpush1.bf16.msra.mxu0 0
    %3667 = vmatprep.subr.bf16.mxu0 0
    %3668 = vmatpush1.bf16.msra.mxu0 0
    %3669 = vmatprep.subr.bf16.mxu0 0
    %3670 = vmatpush1.bf16.msra.mxu0 0
    %3671 = vmatprep.subr.bf16.mxu0 0
    %3672 = vmatpush1.bf16.msra.mxu0 0
    %3673 = vmatprep.subr.bf16.mxu0 0
    %3674 = vmatpush1.bf16.msra.mxu0 0
    %3675 = vmatprep.subr.bf16.mxu0 0
    %3676 = vmatpush1.bf16.msra.mxu0 0
    %3677 = vmatprep.subr.bf16.mxu0 0
    %3678 = vmatpush1.bf16.msra.mxu0 0
    %3679 = vmatprep.subr.bf16.mxu0 0
    %3680 = vmatpush1.bf16.msra.mxu0 0
    %3681 = vmatprep.mubr.bf16.mxu0 0
    %3682 = vmatmul.mubr.bf16.gmra.mrb[0].mxu0 %v3647
    %v3683 = vpop.f32.mrb[0].mxu0
    %v3684 = vadd.f32 0.0, %v3683
    %v3685 = vpop.f32.mrb[0].mxu0
    %v3686 = vadd.f32 0.0, %v3685
    %v3687 = vpop.f32.mrb[0].mxu0
    %v3688 = vadd.f32 0.0, %v3687
    %v3689 = vpop.f32.mrb[0].mxu0
    %v3690 = vadd.f32 0.0, %v3689
    %3691 = vdwg.mxu0
    %3692 = vmatprep.subr.bf16.mxu0 %v3601
    %3693 = vmatpush1.bf16.msra.mxu0 %v3600
    %3694 = vmatprep.subr.bf16.mxu0 %v3607
    %3695 = vmatpush1.bf16.msra.mxu0 %v3606
    %3696 = vmatprep.subr.bf16.mxu0 %v3613
    %3697 = vmatpush1.bf16.msra.mxu0 %v3612
    %3698 = vmatprep.subr.bf16.mxu0 %v3619
    %3699 = vmatpush1.bf16.msra.mxu0 %v3618
    %3700 = vmatprep.subr.bf16.mxu0 0
    %3701 = vmatpush1.bf16.msra.mxu0 0
    %3702 = vmatprep.subr.bf16.mxu0 0
    %3703 = vmatpush1.bf16.msra.mxu0 0
    %3704 = vmatprep.subr.bf16.mxu0 0
    %3705 = vmatpush1.bf16.msra.mxu0 0
    %3706 = vmatprep.subr.bf16.mxu0 0
    %3707 = vmatpush1.bf16.msra.mxu0 0
    %3708 = vmatprep.subr.bf16.mxu0 0
    %3709 = vmatpush1.bf16.msra.mxu0 0
    %3710 = vmatprep.subr.bf16.mxu0 0
    %3711 = vmatpush1.bf16.msra.mxu0 0
    %3712 = vmatprep.subr.bf16.mxu0 0
    %3713 = vmatpush1.bf16.msra.mxu0 0
    %3714 = vmatprep.subr.bf16.mxu0 0
    %3715 = vmatpush1.bf16.msra.mxu0 0
    %3716 = vmatprep.subr.bf16.mxu0 0
    %3717 = vmatpush1.bf16.msra.mxu0 0
    %3718 = vmatprep.subr.bf16.mxu0 0
    %3719 = vmatpush1.bf16.msra.mxu0 0
    %3720 = vmatprep.subr.bf16.mxu0 0
    %3721 = vmatpush1.bf16.msra.mxu0 0
    %3722 = vmatprep.subr.bf16.mxu0 0
    %3723 = vmatpush1.bf16.msra.mxu0 0
    %3724 = vmatprep.mubr.bf16.mxu0 0
    %3725 = vmatmul.mubr.bf16.gmra.mrb[0].mxu0 %v3647
    %v3726 = vpop.f32.mrb[0].mxu0
    %v3727 = vadd.f32 0.0, %v3726
    %v3728 = vpop.f32.mrb[0].mxu0
    %v3729 = vadd.f32 0.0, %v3728
    %v3730 = vpop.f32.mrb[0].mxu0
    %v3731 = vadd.f32 0.0, %v3730
    %v3732 = vpop.f32.mrb[0].mxu0
    %v3733 = vadd.f32 0.0, %v3732
    %3734 = vdwg.mxu0
    %3735 = vmatprep.subr.bf16.mxu0 %v3603
    %3736 = vmatpush1.bf16.msra.mxu0 %v3602
    %3737 = vmatprep.subr.bf16.mxu0 %v3609
    %3738 = vmatpush1.bf16.msra.mxu0 %v3608
    %3739 = vmatprep.subr.bf16.mxu0 %v3615
    %3740 = vmatpush1.bf16.msra.mxu0 %v3614
    %3741 = vmatprep.subr.bf16.mxu0 %v3621
    %3742 = vmatpush1.bf16.msra.mxu0 %v3620
    %3743 = vmatprep.subr.bf16.mxu0 0
    %3744 = vmatpush1.bf16.msra.mxu0 0
    %3745 = vmatprep.subr.bf16.mxu0 0
    %3746 = vmatpush1.bf16.msra.mxu0 0
    %3747 = vmatprep.subr.bf16.mxu0 0
    %3748 = vmatpush1.bf16.msra.mxu0 0
    %3749 = vmatprep.subr.bf16.mxu0 0
    %3750 = vmatpush1.bf16.msra.mxu0 0
    %3751 = vmatprep.subr.bf16.mxu0 0
    %3752 = vmatpush1.bf16.msra.mxu0 0
    %3753 = vmatprep.subr.bf16.mxu0 0
    %3754 = vmatpush1.bf16.msra.mxu0 0
    %3755 = vmatprep.subr.bf16.mxu0 0
    %3756 = vmatpush1.bf16.msra.mxu0 0
    %3757 = vmatprep.subr.bf16.mxu0 0
    %3758 = vmatpush1.bf16.msra.mxu0 0
    %3759 = vmatprep.subr.bf16.mxu0 0
    %3760 = vmatpush1.bf16.msra.mxu0 0
    %3761 = vmatprep.subr.bf16.mxu0 0
    %3762 = vmatpush1.bf16.msra.mxu0 0
    %3763 = vmatprep.subr.bf16.mxu0 0
    %3764 = vmatpush1.bf16.msra.mxu0 0
    %3765 = vmatprep.subr.bf16.mxu0 0
    %3766 = vmatpush1.bf16.msra.mxu0 0
    %3767 = vmatprep.mubr.bf16.mxu0 0
    %3768 = vmatmul.mubr.bf16.gmra.mrb[0].mxu0 %v3647
    %v3769 = vpop.f32.mrb[0].mxu0
    %v3770 = vadd.f32 0.0, %v3769
    %v3771 = vpop.f32.mrb[0].mxu0
    %v3772 = vadd.f32 0.0, %v3771
    %v3773 = vpop.f32.mrb[0].mxu0
    %v3774 = vadd.f32 0.0, %v3773
    %v3775 = vpop.f32.mrb[0].mxu0
    %v3776 = vadd.f32 0.0, %v3775
    %3777 = vdwg.mxu0
    %v3778 = vadd.f32 %v3488, %v3684
    %v3779 = vadd.f32 %v3489, %v3686
    %v3780 = vadd.f32 %v3490, %v3727
    %v3781 = vadd.f32 %v3491, %v3729
    %v3782 = vadd.f32 %v3492, %v3770
    %v3783 = vadd.f32 %v3493, %v3772
    %v3784 = vadd.f32 %v3494, %v3688
    %v3785 = vadd.f32 %v3495, %v3690
    %v3786 = vadd.f32 %v3496, %v3731
    %v3787 = vadd.f32 %v3497, %v3733
    %v3788 = vadd.f32 %v3498, %v3774
    %v3789 = vadd.f32 %v3499, %v3776
    %v3790 = vpack.c.bf16 %v2328, %v1776
    %s3791 = scalar_lea.vmem %s5, 768
    %v3792 = vld [vmem:[%s3791] sm:$0xff]
    %v3793 = vld [vmem:[%s3791 + $0x8] sm:$0xff]
    %v3794 = vld [vmem:[%s3791 + $0x10] sm:$0xff]
    %v3795 = vld [vmem:[%s3791 + $0x18] sm:$0xff]
    %v3796 = vld [vmem:[%s3791 + $0x20] sm:$0xff]
    %v3797 = vld [vmem:[%s3791 + $0x28] sm:$0xff]
    %v3798 = vld [vmem:[%s3791 + $0x30] sm:$0xff]
    %v3799 = vld [vmem:[%s3791 + $0x38] sm:$0xff]
    %v3800 = vld [vmem:[%s3791 + $0x40] sm:$0xff]
    %v3801 = vld [vmem:[%s3791 + $0x48] sm:$0xff]
    %v3802 = vld [vmem:[%s3791 + $0x50] sm:$0xff]
    %v3803 = vld [vmem:[%s3791 + $0x58] sm:$0xff]
    %v3804 = vld [vmem:[%s3791 + $0x60] sm:$0xff]
    %v3805 = vld [vmem:[%s3791 + $0x68] sm:$0xff]
    %v3806 = vld [vmem:[%s3791 + $0x70] sm:$0xff]
    %v3807 = vld [vmem:[%s3791 + $0x78] sm:$0xff]
    %v3808 = vld [vmem:[%s3791 + $0x80] sm:$0xff]
    %v3809 = vld [vmem:[%s3791 + $0x88] sm:$0xff]
    %v3810 = vld [vmem:[%s3791 + $0x90] sm:$0xff]
    %v3811 = vld [vmem:[%s3791 + $0x98] sm:$0xff]
    %v3812 = vld [vmem:[%s3791 + $0xa0] sm:$0xff]
    %v3813 = vld [vmem:[%s3791 + $0xa8] sm:$0xff]
    %v3814 = vld [vmem:[%s3791 + $0xb0] sm:$0xff]
    %v3815 = vld [vmem:[%s3791 + $0xb8] sm:$0xff]
    %v3840 = vunpack.c.l.b16 %v3792
    %v3841 = vunpack.c.h.b16 %v3792
    %v3842 = vunpack.c.l.b16 %v3793
    %v3843 = vunpack.c.h.b16 %v3793
    %v3844 = vunpack.c.l.b16 %v3794
    %v3845 = vunpack.c.h.b16 %v3794
    %v3846 = vunpack.c.l.b16 %v3795
    %v3847 = vunpack.c.h.b16 %v3795
    %v3848 = vunpack.c.l.b16 %v3796
    %v3849 = vunpack.c.h.b16 %v3796
    %v3850 = vunpack.c.l.b16 %v3797
    %v3851 = vunpack.c.h.b16 %v3797
    %v3852 = vunpack.c.l.b16 %v3798
    %v3853 = vunpack.c.h.b16 %v3798
    %v3854 = vunpack.c.l.b16 %v3799
    %v3855 = vunpack.c.h.b16 %v3799
    %v3856 = vunpack.c.l.b16 %v3800
    %v3857 = vunpack.c.h.b16 %v3800
    %v3858 = vunpack.c.l.b16 %v3801
    %v3859 = vunpack.c.h.b16 %v3801
    %v3860 = vunpack.c.l.b16 %v3802
    %v3861 = vunpack.c.h.b16 %v3802
    %v3862 = vunpack.c.l.b16 %v3803
    %v3863 = vunpack.c.h.b16 %v3803
    %v3864 = vunpack.c.l.b16 %v3804
    %v3865 = vunpack.c.h.b16 %v3804
    %v3866 = vunpack.c.l.b16 %v3805
    %v3867 = vunpack.c.h.b16 %v3805
    %v3868 = vunpack.c.l.b16 %v3806
    %v3869 = vunpack.c.h.b16 %v3806
    %v3870 = vunpack.c.l.b16 %v3807
    %v3871 = vunpack.c.h.b16 %v3807
    %v3872 = vunpack.c.l.b16 %v3808
    %v3873 = vunpack.c.h.b16 %v3808
    %v3874 = vunpack.c.l.b16 %v3809
    %v3875 = vunpack.c.h.b16 %v3809
    %v3876 = vunpack.c.l.b16 %v3810
    %v3877 = vunpack.c.h.b16 %v3810
    %v3878 = vunpack.c.l.b16 %v3811
    %v3879 = vunpack.c.h.b16 %v3811
    %v3880 = vunpack.c.l.b16 %v3812
    %v3881 = vunpack.c.h.b16 %v3812
    %v3882 = vunpack.c.l.b16 %v3813
    %v3883 = vunpack.c.h.b16 %v3813
    %v3884 = vunpack.c.l.b16 %v3814
    %v3885 = vunpack.c.h.b16 %v3814
    %v3886 = vunpack.c.l.b16 %v3815
    %v3887 = vunpack.c.h.b16 %v3815
    %v3888 = vpack.c.b16 %v3846, %v3840
    %v3889 = vpack.c.b16 %v3847, %v3841
    %v3890 = vpack.c.b16 %v3848, %v3842
    %v3891 = vpack.c.b16 %v3849, %v3843
    %v3892 = vpack.c.b16 %v3850, %v3844
    %v3893 = vpack.c.b16 %v3851, %v3845
    %v3894 = vpack.c.b16 %v3858, %v3852
    %v3895 = vpack.c.b16 %v3859, %v3853
    %v3896 = vpack.c.b16 %v3860, %v3854
    %v3897 = vpack.c.b16 %v3861, %v3855
    %v3898 = vpack.c.b16 %v3862, %v3856
    %v3899 = vpack.c.b16 %v3863, %v3857
    %v3900 = vpack.c.b16 %v3870, %v3864
    %v3901 = vpack.c.b16 %v3871, %v3865
    %v3902 = vpack.c.b16 %v3872, %v3866
    %v3903 = vpack.c.b16 %v3873, %v3867
    %v3904 = vpack.c.b16 %v3874, %v3868
    %v3905 = vpack.c.b16 %v3875, %v3869
    %v3906 = vpack.c.b16 %v3882, %v3876
    %v3907 = vpack.c.b16 %v3883, %v3877
    %v3908 = vpack.c.b16 %v3884, %v3878
    %v3909 = vpack.c.b16 %v3885, %v3879
    %v3910 = vpack.c.b16 %v3886, %v3880
    %v3911 = vpack.c.b16 %v3887, %v3881
    %v3937 = vsel %vm100, %v3790, 0
    %3939 = vmatprep.subr.bf16.mxu0 %v3889
    %3940 = vmatpush1.bf16.msra.mxu0 %v3888
    %3941 = vmatprep.subr.bf16.mxu0 %v3895
    %3942 = vmatpush1.bf16.msra.mxu0 %v3894
    %3943 = vmatprep.subr.bf16.mxu0 %v3901
    %3944 = vmatpush1.bf16.msra.mxu0 %v3900
    %3945 = vmatprep.subr.bf16.mxu0 %v3907
    %3946 = vmatpush1.bf16.msra.mxu0 %v3906
    %3947 = vmatprep.subr.bf16.mxu0 0
    %3948 = vmatpush1.bf16.msra.mxu0 0
    %3949 = vmatprep.subr.bf16.mxu0 0
    %3950 = vmatpush1.bf16.msra.mxu0 0
    %3951 = vmatprep.subr.bf16.mxu0 0
    %3952 = vmatpush1.bf16.msra.mxu0 0
    %3953 = vmatprep.subr.bf16.mxu0 0
    %3954 = vmatpush1.bf16.msra.mxu0 0
    %3955 = vmatprep.subr.bf16.mxu0 0
    %3956 = vmatpush1.bf16.msra.mxu0 0
    %3957 = vmatprep.subr.bf16.mxu0 0
    %3958 = vmatpush1.bf16.msra.mxu0 0
    %3959 = vmatprep.subr.bf16.mxu0 0
    %3960 = vmatpush1.bf16.msra.mxu0 0
    %3961 = vmatprep.subr.bf16.mxu0 0
    %3962 = vmatpush1.bf16.msra.mxu0 0
    %3963 = vmatprep.subr.bf16.mxu0 0
    %3964 = vmatpush1.bf16.msra.mxu0 0
    %3965 = vmatprep.subr.bf16.mxu0 0
    %3966 = vmatpush1.bf16.msra.mxu0 0
    %3967 = vmatprep.subr.bf16.mxu0 0
    %3968 = vmatpush1.bf16.msra.mxu0 0
    %3969 = vmatprep.subr.bf16.mxu0 0
    %3970 = vmatpush1.bf16.msra.mxu0 0
    %3971 = vmatprep.mubr.bf16.mxu0 0
    %3972 = vmatmul.mubr.bf16.gmra.mrb[0].mxu0 %v3937
    %v3973 = vpop.f32.mrb[0].mxu0
    %v3974 = vadd.f32 0.0, %v3973
    %v3975 = vpop.f32.mrb[0].mxu0
    %v3976 = vadd.f32 0.0, %v3975
    %v3977 = vpop.f32.mrb[0].mxu0
    %v3978 = vadd.f32 0.0, %v3977
    %v3979 = vpop.f32.mrb[0].mxu0
    %v3980 = vadd.f32 0.0, %v3979
    %3981 = vdwg.mxu0
    %3982 = vmatprep.subr.bf16.mxu0 %v3891
    %3983 = vmatpush1.bf16.msra.mxu0 %v3890
    %3984 = vmatprep.subr.bf16.mxu0 %v3897
    %3985 = vmatpush1.bf16.msra.mxu0 %v3896
    %3986 = vmatprep.subr.bf16.mxu0 %v3903
    %3987 = vmatpush1.bf16.msra.mxu0 %v3902
    %3988 = vmatprep.subr.bf16.mxu0 %v3909
    %3989 = vmatpush1.bf16.msra.mxu0 %v3908
    %3990 = vmatprep.subr.bf16.mxu0 0
    %3991 = vmatpush1.bf16.msra.mxu0 0
    %3992 = vmatprep.subr.bf16.mxu0 0
    %3993 = vmatpush1.bf16.msra.mxu0 0
    %3994 = vmatprep.subr.bf16.mxu0 0
    %3995 = vmatpush1.bf16.msra.mxu0 0
    %3996 = vmatprep.subr.bf16.mxu0 0
    %3997 = vmatpush1.bf16.msra.mxu0 0
    %3998 = vmatprep.subr.bf16.mxu0 0
    %3999 = vmatpush1.bf16.msra.mxu0 0
    %4000 = vmatprep.subr.bf16.mxu0 0
    %4001 = vmatpush1.bf16.msra.mxu0 0
    %4002 = vmatprep.subr.bf16.mxu0 0
    %4003 = vmatpush1.bf16.msra.mxu0 0
    %4004 = vmatprep.subr.bf16.mxu0 0
    %4005 = vmatpush1.bf16.msra.mxu0 0
    %4006 = vmatprep.subr.bf16.mxu0 0
    %4007 = vmatpush1.bf16.msra.mxu0 0
    %4008 = vmatprep.subr.bf16.mxu0 0
    %4009 = vmatpush1.bf16.msra.mxu0 0
    %4010 = vmatprep.subr.bf16.mxu0 0
    %4011 = vmatpush1.bf16.msra.mxu0 0
    %4012 = vmatprep.subr.bf16.mxu0 0
    %4013 = vmatpush1.bf16.msra.mxu0 0
    %4014 = vmatprep.mubr.bf16.mxu0 0
    %4015 = vmatmul.mubr.bf16.gmra.mrb[0].mxu0 %v3937
    %v4016 = vpop.f32.mrb[0].mxu0
    %v4017 = vadd.f32 0.0, %v4016
    %v4018 = vpop.f32.mrb[0].mxu0
    %v4019 = vadd.f32 0.0, %v4018
    %v4020 = vpop.f32.mrb[0].mxu0
    %v4021 = vadd.f32 0.0, %v4020
    %v4022 = vpop.f32.mrb[0].mxu0
    %v4023 = vadd.f32 0.0, %v4022
    %4024 = vdwg.mxu0
    %4025 = vmatprep.subr.bf16.mxu0 %v3893
    %4026 = vmatpush1.bf16.msra.mxu0 %v3892
    %4027 = vmatprep.subr.bf16.mxu0 %v3899
    %4028 = vmatpush1.bf16.msra.mxu0 %v3898
    %4029 = vmatprep.subr.bf16.mxu0 %v3905
    %4030 = vmatpush1.bf16.msra.mxu0 %v3904
    %4031 = vmatprep.subr.bf16.mxu0 %v3911
    %4032 = vmatpush1.bf16.msra.mxu0 %v3910
    %4033 = vmatprep.subr.bf16.mxu0 0
    %4034 = vmatpush1.bf16.msra.mxu0 0
    %4035 = vmatprep.subr.bf16.mxu0 0
    %4036 = vmatpush1.bf16.msra.mxu0 0
    %4037 = vmatprep.subr.bf16.mxu0 0
    %4038 = vmatpush1.bf16.msra.mxu0 0
    %4039 = vmatprep.subr.bf16.mxu0 0
    %4040 = vmatpush1.bf16.msra.mxu0 0
    %4041 = vmatprep.subr.bf16.mxu0 0
    %4042 = vmatpush1.bf16.msra.mxu0 0
    %4043 = vmatprep.subr.bf16.mxu0 0
    %4044 = vmatpush1.bf16.msra.mxu0 0
    %4045 = vmatprep.subr.bf16.mxu0 0
    %4046 = vmatpush1.bf16.msra.mxu0 0
    %4047 = vmatprep.subr.bf16.mxu0 0
    %4048 = vmatpush1.bf16.msra.mxu0 0
    %4049 = vmatprep.subr.bf16.mxu0 0
    %4050 = vmatpush1.bf16.msra.mxu0 0
    %4051 = vmatprep.subr.bf16.mxu0 0
    %4052 = vmatpush1.bf16.msra.mxu0 0
    %4053 = vmatprep.subr.bf16.mxu0 0
    %4054 = vmatpush1.bf16.msra.mxu0 0
    %4055 = vmatprep.subr.bf16.mxu0 0
    %4056 = vmatpush1.bf16.msra.mxu0 0
    %4057 = vmatprep.mubr.bf16.mxu0 0
    %4058 = vmatmul.mubr.bf16.gmra.mrb[0].mxu0 %v3937
    %v4059 = vpop.f32.mrb[0].mxu0
    %v4060 = vadd.f32 0.0, %v4059
    %v4061 = vpop.f32.mrb[0].mxu0
    %v4062 = vadd.f32 0.0, %v4061
    %v4063 = vpop.f32.mrb[0].mxu0
    %v4064 = vadd.f32 0.0, %v4063
    %v4065 = vpop.f32.mrb[0].mxu0
    %v4066 = vadd.f32 0.0, %v4065
    %4067 = vdwg.mxu0
    %v4068 = vadd.f32 %v3778, %v3974
    %v4069 = vadd.f32 %v3779, %v3976
    %v4070 = vadd.f32 %v3780, %v4017
    %v4071 = vadd.f32 %v3781, %v4019
    %v4072 = vadd.f32 %v3782, %v4060
    %v4073 = vadd.f32 %v3783, %v4062
    %v4074 = vadd.f32 %v3784, %v3978
    %v4075 = vadd.f32 %v3785, %v3980
    %v4076 = vadd.f32 %v3786, %v4021
    %v4077 = vadd.f32 %v3787, %v4023
    %v4078 = vadd.f32 %v3788, %v4064
    %v4079 = vadd.f32 %v3789, %v4066
    %v4080 = vpack.c.bf16 %v2374, %v1822
    %s4081 = scalar_lea.vmem %s5, 960
    %v4082 = vld [vmem:[%s4081] sm:$0xff]
    %v4083 = vld [vmem:[%s4081 + $0x8] sm:$0xff]
    %v4084 = vld [vmem:[%s4081 + $0x10] sm:$0xff]
    %v4085 = vld [vmem:[%s4081 + $0x18] sm:$0xff]
    %v4086 = vld [vmem:[%s4081 + $0x20] sm:$0xff]
    %v4087 = vld [vmem:[%s4081 + $0x28] sm:$0xff]
    %v4088 = vld [vmem:[%s4081 + $0x30] sm:$0xff]
    %v4089 = vld [vmem:[%s4081 + $0x38] sm:$0xff]
    %v4090 = vld [vmem:[%s4081 + $0x40] sm:$0xff]
    %v4091 = vld [vmem:[%s4081 + $0x48] sm:$0xff]
    %v4092 = vld [vmem:[%s4081 + $0x50] sm:$0xff]
    %v4093 = vld [vmem:[%s4081 + $0x58] sm:$0xff]
    %v4094 = vld [vmem:[%s4081 + $0x60] sm:$0xff]
    %v4095 = vld [vmem:[%s4081 + $0x68] sm:$0xff]
    %v4096 = vld [vmem:[%s4081 + $0x70] sm:$0xff]
    %v4097 = vld [vmem:[%s4081 + $0x78] sm:$0xff]
    %v4098 = vld [vmem:[%s4081 + $0x80] sm:$0xff]
    %v4099 = vld [vmem:[%s4081 + $0x88] sm:$0xff]
    %v4100 = vld [vmem:[%s4081 + $0x90] sm:$0xff]
    %v4101 = vld [vmem:[%s4081 + $0x98] sm:$0xff]
    %v4102 = vld [vmem:[%s4081 + $0xa0] sm:$0xff]
    %v4103 = vld [vmem:[%s4081 + $0xa8] sm:$0xff]
    %v4104 = vld [vmem:[%s4081 + $0xb0] sm:$0xff]
    %v4105 = vld [vmem:[%s4081 + $0xb8] sm:$0xff]
    %v4130 = vunpack.c.l.b16 %v4082
    %v4131 = vunpack.c.h.b16 %v4082
    %v4132 = vunpack.c.l.b16 %v4083
    %v4133 = vunpack.c.h.b16 %v4083
    %v4134 = vunpack.c.l.b16 %v4084
    %v4135 = vunpack.c.h.b16 %v4084
    %v4136 = vunpack.c.l.b16 %v4085
    %v4137 = vunpack.c.h.b16 %v4085
    %v4138 = vunpack.c.l.b16 %v4086
    %v4139 = vunpack.c.h.b16 %v4086
    %v4140 = vunpack.c.l.b16 %v4087
    %v4141 = vunpack.c.h.b16 %v4087
    %v4142 = vunpack.c.l.b16 %v4088
    %v4143 = vunpack.c.h.b16 %v4088
    %v4144 = vunpack.c.l.b16 %v4089
    %v4145 = vunpack.c.h.b16 %v4089
    %v4146 = vunpack.c.l.b16 %v4090
    %v4147 = vunpack.c.h.b16 %v4090
    %v4148 = vunpack.c.l.b16 %v4091
    %v4149 = vunpack.c.h.b16 %v4091
    %v4150 = vunpack.c.l.b16 %v4092
    %v4151 = vunpack.c.h.b16 %v4092
    %v4152 = vunpack.c.l.b16 %v4093
    %v4153 = vunpack.c.h.b16 %v4093
    %v4154 = vunpack.c.l.b16 %v4094
    %v4155 = vunpack.c.h.b16 %v4094
    %v4156 = vunpack.c.l.b16 %v4095
    %v4157 = vunpack.c.h.b16 %v4095
    %v4158 = vunpack.c.l.b16 %v4096
    %v4159 = vunpack.c.h.b16 %v4096
    %v4160 = vunpack.c.l.b16 %v4097
    %v4161 = vunpack.c.h.b16 %v4097
    %v4162 = vunpack.c.l.b16 %v4098
    %v4163 = vunpack.c.h.b16 %v4098
    %v4164 = vunpack.c.l.b16 %v4099
    %v4165 = vunpack.c.h.b16 %v4099
    %v4166 = vunpack.c.l.b16 %v4100
    %v4167 = vunpack.c.h.b16 %v4100
    %v4168 = vunpack.c.l.b16 %v4101
    %v4169 = vunpack.c.h.b16 %v4101
    %v4170 = vunpack.c.l.b16 %v4102
    %v4171 = vunpack.c.h.b16 %v4102
    %v4172 = vunpack.c.l.b16 %v4103
    %v4173 = vunpack.c.h.b16 %v4103
    %v4174 = vunpack.c.l.b16 %v4104
    %v4175 = vunpack.c.h.b16 %v4104
    %v4176 = vunpack.c.l.b16 %v4105
    %v4177 = vunpack.c.h.b16 %v4105
    %v4178 = vpack.c.b16 %v4136, %v4130
    %v4179 = vpack.c.b16 %v4137, %v4131
    %v4180 = vpack.c.b16 %v4138, %v4132
    %v4181 = vpack.c.b16 %v4139, %v4133
    %v4182 = vpack.c.b16 %v4140, %v4134
    %v4183 = vpack.c.b16 %v4141, %v4135
    %v4184 = vpack.c.b16 %v4148, %v4142
    %v4185 = vpack.c.b16 %v4149, %v4143
    %v4186 = vpack.c.b16 %v4150, %v4144
    %v4187 = vpack.c.b16 %v4151, %v4145
    %v4188 = vpack.c.b16 %v4152, %v4146
    %v4189 = vpack.c.b16 %v4153, %v4147
    %v4190 = vpack.c.b16 %v4160, %v4154
    %v4191 = vpack.c.b16 %v4161, %v4155
    %v4192 = vpack.c.b16 %v4162, %v4156
    %v4193 = vpack.c.b16 %v4163, %v4157
    %v4194 = vpack.c.b16 %v4164, %v4158
    %v4195 = vpack.c.b16 %v4165, %v4159
    %v4196 = vpack.c.b16 %v4172, %v4166
    %v4197 = vpack.c.b16 %v4173, %v4167
    %v4198 = vpack.c.b16 %v4174, %v4168
    %v4199 = vpack.c.b16 %v4175, %v4169
    %v4200 = vpack.c.b16 %v4176, %v4170
    %v4201 = vpack.c.b16 %v4177, %v4171
    %v4227 = vsel %vm100, %v4080, 0
    %4229 = vmatprep.subr.bf16.mxu0 %v4179
    %4230 = vmatpush1.bf16.msra.mxu0 %v4178
    %4231 = vmatprep.subr.bf16.mxu0 %v4185
    %4232 = vmatpush1.bf16.msra.mxu0 %v4184
    %4233 = vmatprep.subr.bf16.mxu0 %v4191
    %4234 = vmatpush1.bf16.msra.mxu0 %v4190
    %4235 = vmatprep.subr.bf16.mxu0 %v4197
    %4236 = vmatpush1.bf16.msra.mxu0 %v4196
    %4237 = vmatprep.subr.bf16.mxu0 0
    %4238 = vmatpush1.bf16.msra.mxu0 0
    %4239 = vmatprep.subr.bf16.mxu0 0
    %4240 = vmatpush1.bf16.msra.mxu0 0
    %4241 = vmatprep.subr.bf16.mxu0 0
    %4242 = vmatpush1.bf16.msra.mxu0 0
    %4243 = vmatprep.subr.bf16.mxu0 0
    %4244 = vmatpush1.bf16.msra.mxu0 0
    %4245 = vmatprep.subr.bf16.mxu0 0
    %4246 = vmatpush1.bf16.msra.mxu0 0
    %4247 = vmatprep.subr.bf16.mxu0 0
    %4248 = vmatpush1.bf16.msra.mxu0 0
    %4249 = vmatprep.subr.bf16.mxu0 0
    %4250 = vmatpush1.bf16.msra.mxu0 0
    %4251 = vmatprep.subr.bf16.mxu0 0
    %4252 = vmatpush1.bf16.msra.mxu0 0
    %4253 = vmatprep.subr.bf16.mxu0 0
    %4254 = vmatpush1.bf16.msra.mxu0 0
    %4255 = vmatprep.subr.bf16.mxu0 0
    %4256 = vmatpush1.bf16.msra.mxu0 0
    %4257 = vmatprep.subr.bf16.mxu0 0
    %4258 = vmatpush1.bf16.msra.mxu0 0
    %4259 = vmatprep.subr.bf16.mxu0 0
    %4260 = vmatpush1.bf16.msra.mxu0 0
    %4261 = vmatprep.mubr.bf16.mxu0 0
    %4262 = vmatmul.mubr.bf16.gmra.mrb[0].mxu0 %v4227
    %v4263 = vpop.f32.mrb[0].mxu0
    %v4264 = vadd.f32 0.0, %v4263
    %v4265 = vpop.f32.mrb[0].mxu0
    %v4266 = vadd.f32 0.0, %v4265
    %v4267 = vpop.f32.mrb[0].mxu0
    %v4268 = vadd.f32 0.0, %v4267
    %v4269 = vpop.f32.mrb[0].mxu0
    %v4270 = vadd.f32 0.0, %v4269
    %4271 = vdwg.mxu0
    %4272 = vmatprep.subr.bf16.mxu0 %v4181
    %4273 = vmatpush1.bf16.msra.mxu0 %v4180
    %4274 = vmatprep.subr.bf16.mxu0 %v4187
    %4275 = vmatpush1.bf16.msra.mxu0 %v4186
    %4276 = vmatprep.subr.bf16.mxu0 %v4193
    %4277 = vmatpush1.bf16.msra.mxu0 %v4192
    %4278 = vmatprep.subr.bf16.mxu0 %v4199
    %4279 = vmatpush1.bf16.msra.mxu0 %v4198
    %4280 = vmatprep.subr.bf16.mxu0 0
    %4281 = vmatpush1.bf16.msra.mxu0 0
    %4282 = vmatprep.subr.bf16.mxu0 0
    %4283 = vmatpush1.bf16.msra.mxu0 0
    %4284 = vmatprep.subr.bf16.mxu0 0
    %4285 = vmatpush1.bf16.msra.mxu0 0
    %4286 = vmatprep.subr.bf16.mxu0 0
    %4287 = vmatpush1.bf16.msra.mxu0 0
    %4288 = vmatprep.subr.bf16.mxu0 0
    %4289 = vmatpush1.bf16.msra.mxu0 0
    %4290 = vmatprep.subr.bf16.mxu0 0
    %4291 = vmatpush1.bf16.msra.mxu0 0
    %4292 = vmatprep.subr.bf16.mxu0 0
    %4293 = vmatpush1.bf16.msra.mxu0 0
    %4294 = vmatprep.subr.bf16.mxu0 0
    %4295 = vmatpush1.bf16.msra.mxu0 0
    %4296 = vmatprep.subr.bf16.mxu0 0
    %4297 = vmatpush1.bf16.msra.mxu0 0
    %4298 = vmatprep.subr.bf16.mxu0 0
    %4299 = vmatpush1.bf16.msra.mxu0 0
    %4300 = vmatprep.subr.bf16.mxu0 0
    %4301 = vmatpush1.bf16.msra.mxu0 0
    %4302 = vmatprep.subr.bf16.mxu0 0
    %4303 = vmatpush1.bf16.msra.mxu0 0
    %4304 = vmatprep.mubr.bf16.mxu0 0
    %4305 = vmatmul.mubr.bf16.gmra.mrb[0].mxu0 %v4227
    %v4306 = vpop.f32.mrb[0].mxu0
    %v4307 = vadd.f32 0.0, %v4306
    %v4308 = vpop.f32.mrb[0].mxu0
    %v4309 = vadd.f32 0.0, %v4308
    %v4310 = vpop.f32.mrb[0].mxu0
    %v4311 = vadd.f32 0.0, %v4310
    %v4312 = vpop.f32.mrb[0].mxu0
    %v4313 = vadd.f32 0.0, %v4312
    %4314 = vdwg.mxu0
    %4315 = vmatprep.subr.bf16.mxu0 %v4183
    %4316 = vmatpush1.bf16.msra.mxu0 %v4182
    %4317 = vmatprep.subr.bf16.mxu0 %v4189
    %4318 = vmatpush1.bf16.msra.mxu0 %v4188
    %4319 = vmatprep.subr.bf16.mxu0 %v4195
    %4320 = vmatpush1.bf16.msra.mxu0 %v4194
    %4321 = vmatprep.subr.bf16.mxu0 %v4201
    %4322 = vmatpush1.bf16.msra.mxu0 %v4200
    %4323 = vmatprep.subr.bf16.mxu0 0
    %4324 = vmatpush1.bf16.msra.mxu0 0
    %4325 = vmatprep.subr.bf16.mxu0 0
    %4326 = vmatpush1.bf16.msra.mxu0 0
    %4327 = vmatprep.subr.bf16.mxu0 0
    %4328 = vmatpush1.bf16.msra.mxu0 0
    %4329 = vmatprep.subr.bf16.mxu0 0
    %4330 = vmatpush1.bf16.msra.mxu0 0
    %4331 = vmatprep.subr.bf16.mxu0 0
    %4332 = vmatpush1.bf16.msra.mxu0 0
    %4333 = vmatprep.subr.bf16.mxu0 0
    %4334 = vmatpush1.bf16.msra.mxu0 0
    %4335 = vmatprep.subr.bf16.mxu0 0
    %4336 = vmatpush1.bf16.msra.mxu0 0
    %4337 = vmatprep.subr.bf16.mxu0 0
    %4338 = vmatpush1.bf16.msra.mxu0 0
    %4339 = vmatprep.subr.bf16.mxu0 0
    %4340 = vmatpush1.bf16.msra.mxu0 0
    %4341 = vmatprep.subr.bf16.mxu0 0
    %4342 = vmatpush1.bf16.msra.mxu0 0
    %4343 = vmatprep.subr.bf16.mxu0 0
    %4344 = vmatpush1.bf16.msra.mxu0 0
    %4345 = vmatprep.subr.bf16.mxu0 0
    %4346 = vmatpush1.bf16.msra.mxu0 0
    %4347 = vmatprep.mubr.bf16.mxu0 0
    %4348 = vmatmul.mubr.bf16.gmra.mrb[0].mxu0 %v4227
    %v4349 = vpop.f32.mrb[0].mxu0
    %v4350 = vadd.f32 0.0, %v4349
    %v4351 = vpop.f32.mrb[0].mxu0
    %v4352 = vadd.f32 0.0, %v4351
    %v4353 = vpop.f32.mrb[0].mxu0
    %v4354 = vadd.f32 0.0, %v4353
    %v4355 = vpop.f32.mrb[0].mxu0
    %v4356 = vadd.f32 0.0, %v4355
    %4357 = vdwg.mxu0
    %v4358 = vadd.f32 %v4068, %v4264
    %v4359 = vadd.f32 %v4069, %v4266
    %v4360 = vadd.f32 %v4070, %v4307
    %v4361 = vadd.f32 %v4071, %v4309
    %v4362 = vadd.f32 %v4072, %v4350
    %v4363 = vadd.f32 %v4073, %v4352
    %v4364 = vadd.f32 %v4074, %v4268
    %v4365 = vadd.f32 %v4075, %v4270
    %v4366 = vadd.f32 %v4076, %v4311
    %v4367 = vadd.f32 %v4077, %v4313
    %v4368 = vadd.f32 %v4078, %v4354
    %v4369 = vadd.f32 %v4079, %v4356
    %v4370 = vpack.c.bf16 %v2420, %v1868
    %s4371 = scalar_lea.vmem %s5, 1152
    %v4372 = vld [vmem:[%s4371] sm:$0xff]
    %v4373 = vld [vmem:[%s4371 + $0x8] sm:$0xff]
    %v4374 = vld [vmem:[%s4371 + $0x10] sm:$0xff]
    %v4375 = vld [vmem:[%s4371 + $0x18] sm:$0xff]
    %v4376 = vld [vmem:[%s4371 + $0x20] sm:$0xff]
    %v4377 = vld [vmem:[%s4371 + $0x28] sm:$0xff]
    %v4378 = vld [vmem:[%s4371 + $0x30] sm:$0xff]
    %v4379 = vld [vmem:[%s4371 + $0x38] sm:$0xff]
    %v4380 = vld [vmem:[%s4371 + $0x40] sm:$0xff]
    %v4381 = vld [vmem:[%s4371 + $0x48] sm:$0xff]
    %v4382 = vld [vmem:[%s4371 + $0x50] sm:$0xff]
    %v4383 = vld [vmem:[%s4371 + $0x58] sm:$0xff]
    %v4384 = vld [vmem:[%s4371 + $0x60] sm:$0xff]
    %v4385 = vld [vmem:[%s4371 + $0x68] sm:$0xff]
    %v4386 = vld [vmem:[%s4371 + $0x70] sm:$0xff]
    %v4387 = vld [vmem:[%s4371 + $0x78] sm:$0xff]
    %v4388 = vld [vmem:[%s4371 + $0x80] sm:$0xff]
    %v4389 = vld [vmem:[%s4371 + $0x88] sm:$0xff]
    %v4390 = vld [vmem:[%s4371 + $0x90] sm:$0xff]
    %v4391 = vld [vmem:[%s4371 + $0x98] sm:$0xff]
    %v4392 = vld [vmem:[%s4371 + $0xa0] sm:$0xff]
    %v4393 = vld [vmem:[%s4371 + $0xa8] sm:$0xff]
    %v4394 = vld [vmem:[%s4371 + $0xb0] sm:$0xff]
    %v4395 = vld [vmem:[%s4371 + $0xb8] sm:$0xff]
    %v4420 = vunpack.c.l.b16 %v4372
    %v4421 = vunpack.c.h.b16 %v4372
    %v4422 = vunpack.c.l.b16 %v4373
    %v4423 = vunpack.c.h.b16 %v4373
    %v4424 = vunpack.c.l.b16 %v4374
    %v4425 = vunpack.c.h.b16 %v4374
    %v4426 = vunpack.c.l.b16 %v4375
    %v4427 = vunpack.c.h.b16 %v4375
    %v4428 = vunpack.c.l.b16 %v4376
    %v4429 = vunpack.c.h.b16 %v4376
    %v4430 = vunpack.c.l.b16 %v4377
    %v4431 = vunpack.c.h.b16 %v4377
    %v4432 = vunpack.c.l.b16 %v4378
    %v4433 = vunpack.c.h.b16 %v4378
    %v4434 = vunpack.c.l.b16 %v4379
    %v4435 = vunpack.c.h.b16 %v4379
    %v4436 = vunpack.c.l.b16 %v4380
    %v4437 = vunpack.c.h.b16 %v4380
    %v4438 = vunpack.c.l.b16 %v4381
    %v4439 = vunpack.c.h.b16 %v4381
    %v4440 = vunpack.c.l.b16 %v4382
    %v4441 = vunpack.c.h.b16 %v4382
    %v4442 = vunpack.c.l.b16 %v4383
    %v4443 = vunpack.c.h.b16 %v4383
    %v4444 = vunpack.c.l.b16 %v4384
    %v4445 = vunpack.c.h.b16 %v4384
    %v4446 = vunpack.c.l.b16 %v4385
    %v4447 = vunpack.c.h.b16 %v4385
    %v4448 = vunpack.c.l.b16 %v4386
    %v4449 = vunpack.c.h.b16 %v4386
    %v4450 = vunpack.c.l.b16 %v4387
    %v4451 = vunpack.c.h.b16 %v4387
    %v4452 = vunpack.c.l.b16 %v4388
    %v4453 = vunpack.c.h.b16 %v4388
    %v4454 = vunpack.c.l.b16 %v4389
    %v4455 = vunpack.c.h.b16 %v4389
    %v4456 = vunpack.c.l.b16 %v4390
    %v4457 = vunpack.c.h.b16 %v4390
    %v4458 = vunpack.c.l.b16 %v4391
    %v4459 = vunpack.c.h.b16 %v4391
    %v4460 = vunpack.c.l.b16 %v4392
    %v4461 = vunpack.c.h.b16 %v4392
    %v4462 = vunpack.c.l.b16 %v4393
    %v4463 = vunpack.c.h.b16 %v4393
    %v4464 = vunpack.c.l.b16 %v4394
    %v4465 = vunpack.c.h.b16 %v4394
    %v4466 = vunpack.c.l.b16 %v4395
    %v4467 = vunpack.c.h.b16 %v4395
    %v4468 = vpack.c.b16 %v4426, %v4420
    %v4469 = vpack.c.b16 %v4427, %v4421
    %v4470 = vpack.c.b16 %v4428, %v4422
    %v4471 = vpack.c.b16 %v4429, %v4423
    %v4472 = vpack.c.b16 %v4430, %v4424
    %v4473 = vpack.c.b16 %v4431, %v4425
    %v4474 = vpack.c.b16 %v4438, %v4432
    %v4475 = vpack.c.b16 %v4439, %v4433
    %v4476 = vpack.c.b16 %v4440, %v4434
    %v4477 = vpack.c.b16 %v4441, %v4435
    %v4478 = vpack.c.b16 %v4442, %v4436
    %v4479 = vpack.c.b16 %v4443, %v4437
    %v4480 = vpack.c.b16 %v4450, %v4444
    %v4481 = vpack.c.b16 %v4451, %v4445
    %v4482 = vpack.c.b16 %v4452, %v4446
    %v4483 = vpack.c.b16 %v4453, %v4447
    %v4484 = vpack.c.b16 %v4454, %v4448
    %v4485 = vpack.c.b16 %v4455, %v4449
    %v4486 = vpack.c.b16 %v4462, %v4456
    %v4487 = vpack.c.b16 %v4463, %v4457
    %v4488 = vpack.c.b16 %v4464, %v4458
    %v4489 = vpack.c.b16 %v4465, %v4459
    %v4490 = vpack.c.b16 %v4466, %v4460
    %v4491 = vpack.c.b16 %v4467, %v4461
    %v4517 = vsel %vm100, %v4370, 0
    %4519 = vmatprep.subr.bf16.mxu0 %v4469
    %4520 = vmatpush1.bf16.msra.mxu0 %v4468
    %4521 = vmatprep.subr.bf16.mxu0 %v4475
    %4522 = vmatpush1.bf16.msra.mxu0 %v4474
    %4523 = vmatprep.subr.bf16.mxu0 %v4481
    %4524 = vmatpush1.bf16.msra.mxu0 %v4480
    %4525 = vmatprep.subr.bf16.mxu0 %v4487
    %4526 = vmatpush1.bf16.msra.mxu0 %v4486
    %4527 = vmatprep.subr.bf16.mxu0 0
    %4528 = vmatpush1.bf16.msra.mxu0 0
    %4529 = vmatprep.subr.bf16.mxu0 0
    %4530 = vmatpush1.bf16.msra.mxu0 0
    %4531 = vmatprep.subr.bf16.mxu0 0
    %4532 = vmatpush1.bf16.msra.mxu0 0
    %4533 = vmatprep.subr.bf16.mxu0 0
    %4534 = vmatpush1.bf16.msra.mxu0 0
    %4535 = vmatprep.subr.bf16.mxu0 0
    %4536 = vmatpush1.bf16.msra.mxu0 0
    %4537 = vmatprep.subr.bf16.mxu0 0
    %4538 = vmatpush1.bf16.msra.mxu0 0
    %4539 = vmatprep.subr.bf16.mxu0 0
    %4540 = vmatpush1.bf16.msra.mxu0 0
    %4541 = vmatprep.subr.bf16.mxu0 0
    %4542 = vmatpush1.bf16.msra.mxu0 0
    %4543 = vmatprep.subr.bf16.mxu0 0
    %4544 = vmatpush1.bf16.msra.mxu0 0
    %4545 = vmatprep.subr.bf16.mxu0 0
    %4546 = vmatpush1.bf16.msra.mxu0 0
    %4547 = vmatprep.subr.bf16.mxu0 0
    %4548 = vmatpush1.bf16.msra.mxu0 0
    %4549 = vmatprep.subr.bf16.mxu0 0
    %4550 = vmatpush1.bf16.msra.mxu0 0
    %4551 = vmatprep.mubr.bf16.mxu0 0
    %4552 = vmatmul.mubr.bf16.gmra.mrb[0].mxu0 %v4517
    %v4553 = vpop.f32.mrb[0].mxu0
    %v4554 = vadd.f32 0.0, %v4553
    %v4555 = vpop.f32.mrb[0].mxu0
    %v4556 = vadd.f32 0.0, %v4555
    %v4557 = vpop.f32.mrb[0].mxu0
    %v4558 = vadd.f32 0.0, %v4557
    %v4559 = vpop.f32.mrb[0].mxu0
    %v4560 = vadd.f32 0.0, %v4559
    %4561 = vdwg.mxu0
    %4562 = vmatprep.subr.bf16.mxu0 %v4471
    %4563 = vmatpush1.bf16.msra.mxu0 %v4470
    %4564 = vmatprep.subr.bf16.mxu0 %v4477
    %4565 = vmatpush1.bf16.msra.mxu0 %v4476
    %4566 = vmatprep.subr.bf16.mxu0 %v4483
    %4567 = vmatpush1.bf16.msra.mxu0 %v4482
    %4568 = vmatprep.subr.bf16.mxu0 %v4489
    %4569 = vmatpush1.bf16.msra.mxu0 %v4488
    %4570 = vmatprep.subr.bf16.mxu0 0
    %4571 = vmatpush1.bf16.msra.mxu0 0
    %4572 = vmatprep.subr.bf16.mxu0 0
    %4573 = vmatpush1.bf16.msra.mxu0 0
    %4574 = vmatprep.subr.bf16.mxu0 0
    %4575 = vmatpush1.bf16.msra.mxu0 0
    %4576 = vmatprep.subr.bf16.mxu0 0
    %4577 = vmatpush1.bf16.msra.mxu0 0
    %4578 = vmatprep.subr.bf16.mxu0 0
    %4579 = vmatpush1.bf16.msra.mxu0 0
    %4580 = vmatprep.subr.bf16.mxu0 0
    %4581 = vmatpush1.bf16.msra.mxu0 0
    %4582 = vmatprep.subr.bf16.mxu0 0
    %4583 = vmatpush1.bf16.msra.mxu0 0
    %4584 = vmatprep.subr.bf16.mxu0 0
    %4585 = vmatpush1.bf16.msra.mxu0 0
    %4586 = vmatprep.subr.bf16.mxu0 0
    %4587 = vmatpush1.bf16.msra.mxu0 0
    %4588 = vmatprep.subr.bf16.mxu0 0
    %4589 = vmatpush1.bf16.msra.mxu0 0
    %4590 = vmatprep.subr.bf16.mxu0 0
    %4591 = vmatpush1.bf16.msra.mxu0 0
    %4592 = vmatprep.subr.bf16.mxu0 0
    %4593 = vmatpush1.bf16.msra.mxu0 0
    %4594 = vmatprep.mubr.bf16.mxu0 0
    %4595 = vmatmul.mubr.bf16.gmra.mrb[0].mxu0 %v4517
    %v4596 = vpop.f32.mrb[0].mxu0
    %v4597 = vadd.f32 0.0, %v4596
    %v4598 = vpop.f32.mrb[0].mxu0
    %v4599 = vadd.f32 0.0, %v4598
    %v4600 = vpop.f32.mrb[0].mxu0
    %v4601 = vadd.f32 0.0, %v4600
    %v4602 = vpop.f32.mrb[0].mxu0
    %v4603 = vadd.f32 0.0, %v4602
    %4604 = vdwg.mxu0
    %4605 = vmatprep.subr.bf16.mxu0 %v4473
    %4606 = vmatpush1.bf16.msra.mxu0 %v4472
    %4607 = vmatprep.subr.bf16.mxu0 %v4479
    %4608 = vmatpush1.bf16.msra.mxu0 %v4478
    %4609 = vmatprep.subr.bf16.mxu0 %v4485
    %4610 = vmatpush1.bf16.msra.mxu0 %v4484
    %4611 = vmatprep.subr.bf16.mxu0 %v4491
    %4612 = vmatpush1.bf16.msra.mxu0 %v4490
    %4613 = vmatprep.subr.bf16.mxu0 0
    %4614 = vmatpush1.bf16.msra.mxu0 0
    %4615 = vmatprep.subr.bf16.mxu0 0
    %4616 = vmatpush1.bf16.msra.mxu0 0
    %4617 = vmatprep.subr.bf16.mxu0 0
    %4618 = vmatpush1.bf16.msra.mxu0 0
    %4619 = vmatprep.subr.bf16.mxu0 0
    %4620 = vmatpush1.bf16.msra.mxu0 0
    %4621 = vmatprep.subr.bf16.mxu0 0
    %4622 = vmatpush1.bf16.msra.mxu0 0
    %4623 = vmatprep.subr.bf16.mxu0 0
    %4624 = vmatpush1.bf16.msra.mxu0 0
    %4625 = vmatprep.subr.bf16.mxu0 0
    %4626 = vmatpush1.bf16.msra.mxu0 0
    %4627 = vmatprep.subr.bf16.mxu0 0
    %4628 = vmatpush1.bf16.msra.mxu0 0
    %4629 = vmatprep.subr.bf16.mxu0 0
    %4630 = vmatpush1.bf16.msra.mxu0 0
    %4631 = vmatprep.subr.bf16.mxu0 0
    %4632 = vmatpush1.bf16.msra.mxu0 0
    %4633 = vmatprep.subr.bf16.mxu0 0
    %4634 = vmatpush1.bf16.msra.mxu0 0
    %4635 = vmatprep.subr.bf16.mxu0 0
    %4636 = vmatpush1.bf16.msra.mxu0 0
    %4637 = vmatprep.mubr.bf16.mxu0 0
    %4638 = vmatmul.mubr.bf16.gmra.mrb[0].mxu0 %v4517
    %v4639 = vpop.f32.mrb[0].mxu0
    %v4640 = vadd.f32 0.0, %v4639
    %v4641 = vpop.f32.mrb[0].mxu0
    %v4642 = vadd.f32 0.0, %v4641
    %v4643 = vpop.f32.mrb[0].mxu0
    %v4644 = vadd.f32 0.0, %v4643
    %v4645 = vpop.f32.mrb[0].mxu0
    %v4646 = vadd.f32 0.0, %v4645
    %4647 = vdwg.mxu0
    %v4648 = vadd.f32 %v4358, %v4554
    %v4649 = vadd.f32 %v4359, %v4556
    %v4650 = vadd.f32 %v4360, %v4597
    %v4651 = vadd.f32 %v4361, %v4599
    %v4652 = vadd.f32 %v4362, %v4640
    %v4653 = vadd.f32 %v4363, %v4642
    %v4654 = vadd.f32 %v4364, %v4558
    %v4655 = vadd.f32 %v4365, %v4560
    %v4656 = vadd.f32 %v4366, %v4601
    %v4657 = vadd.f32 %v4367, %v4603
    %v4658 = vadd.f32 %v4368, %v4644
    %v4659 = vadd.f32 %v4369, %v4646
    %v4660 = vpack.c.bf16 %v2466, %v1914
    %s4661 = scalar_lea.vmem %s5, 1344
    %v4662 = vld [vmem:[%s4661] sm:$0xff]
    %v4663 = vld [vmem:[%s4661 + $0x8] sm:$0xff]
    %v4664 = vld [vmem:[%s4661 + $0x10] sm:$0xff]
    %v4665 = vld [vmem:[%s4661 + $0x18] sm:$0xff]
    %v4666 = vld [vmem:[%s4661 + $0x20] sm:$0xff]
    %v4667 = vld [vmem:[%s4661 + $0x28] sm:$0xff]
    %v4668 = vld [vmem:[%s4661 + $0x30] sm:$0xff]
    %v4669 = vld [vmem:[%s4661 + $0x38] sm:$0xff]
    %v4670 = vld [vmem:[%s4661 + $0x40] sm:$0xff]
    %v4671 = vld [vmem:[%s4661 + $0x48] sm:$0xff]
    %v4672 = vld [vmem:[%s4661 + $0x50] sm:$0xff]
    %v4673 = vld [vmem:[%s4661 + $0x58] sm:$0xff]
    %v4674 = vld [vmem:[%s4661 + $0x60] sm:$0xff]
    %v4675 = vld [vmem:[%s4661 + $0x68] sm:$0xff]
    %v4676 = vld [vmem:[%s4661 + $0x70] sm:$0xff]
    %v4677 = vld [vmem:[%s4661 + $0x78] sm:$0xff]
    %v4678 = vld [vmem:[%s4661 + $0x80] sm:$0xff]
    %v4679 = vld [vmem:[%s4661 + $0x88] sm:$0xff]
    %v4680 = vld [vmem:[%s4661 + $0x90] sm:$0xff]
    %v4681 = vld [vmem:[%s4661 + $0x98] sm:$0xff]
    %v4682 = vld [vmem:[%s4661 + $0xa0] sm:$0xff]
    %v4683 = vld [vmem:[%s4661 + $0xa8] sm:$0xff]
    %v4684 = vld [vmem:[%s4661 + $0xb0] sm:$0xff]
    %v4685 = vld [vmem:[%s4661 + $0xb8] sm:$0xff]
    %v4710 = vunpack.c.l.b16 %v4662
    %v4711 = vunpack.c.h.b16 %v4662
    %v4712 = vunpack.c.l.b16 %v4663
    %v4713 = vunpack.c.h.b16 %v4663
    %v4714 = vunpack.c.l.b16 %v4664
    %v4715 = vunpack.c.h.b16 %v4664
    %v4716 = vunpack.c.l.b16 %v4665
    %v4717 = vunpack.c.h.b16 %v4665
    %v4718 = vunpack.c.l.b16 %v4666
    %v4719 = vunpack.c.h.b16 %v4666
    %v4720 = vunpack.c.l.b16 %v4667
    %v4721 = vunpack.c.h.b16 %v4667
    %v4722 = vunpack.c.l.b16 %v4668
    %v4723 = vunpack.c.h.b16 %v4668
    %v4724 = vunpack.c.l.b16 %v4669
    %v4725 = vunpack.c.h.b16 %v4669
    %v4726 = vunpack.c.l.b16 %v4670
    %v4727 = vunpack.c.h.b16 %v4670
    %v4728 = vunpack.c.l.b16 %v4671
    %v4729 = vunpack.c.h.b16 %v4671
    %v4730 = vunpack.c.l.b16 %v4672
    %v4731 = vunpack.c.h.b16 %v4672
    %v4732 = vunpack.c.l.b16 %v4673
    %v4733 = vunpack.c.h.b16 %v4673
    %v4734 = vunpack.c.l.b16 %v4674
    %v4735 = vunpack.c.h.b16 %v4674
    %v4736 = vunpack.c.l.b16 %v4675
    %v4737 = vunpack.c.h.b16 %v4675
    %v4738 = vunpack.c.l.b16 %v4676
    %v4739 = vunpack.c.h.b16 %v4676
    %v4740 = vunpack.c.l.b16 %v4677
    %v4741 = vunpack.c.h.b16 %v4677
    %v4742 = vunpack.c.l.b16 %v4678
    %v4743 = vunpack.c.h.b16 %v4678
    %v4744 = vunpack.c.l.b16 %v4679
    %v4745 = vunpack.c.h.b16 %v4679
    %v4746 = vunpack.c.l.b16 %v4680
    %v4747 = vunpack.c.h.b16 %v4680
    %v4748 = vunpack.c.l.b16 %v4681
    %v4749 = vunpack.c.h.b16 %v4681
    %v4750 = vunpack.c.l.b16 %v4682
    %v4751 = vunpack.c.h.b16 %v4682
    %v4752 = vunpack.c.l.b16 %v4683
    %v4753 = vunpack.c.h.b16 %v4683
    %v4754 = vunpack.c.l.b16 %v4684
    %v4755 = vunpack.c.h.b16 %v4684
    %v4756 = vunpack.c.l.b16 %v4685
    %v4757 = vunpack.c.h.b16 %v4685
    %v4758 = vpack.c.b16 %v4716, %v4710
    %v4759 = vpack.c.b16 %v4717, %v4711
    %v4760 = vpack.c.b16 %v4718, %v4712
    %v4761 = vpack.c.b16 %v4719, %v4713
    %v4762 = vpack.c.b16 %v4720, %v4714
    %v4763 = vpack.c.b16 %v4721, %v4715
    %v4764 = vpack.c.b16 %v4728, %v4722
    %v4765 = vpack.c.b16 %v4729, %v4723
    %v4766 = vpack.c.b16 %v4730, %v4724
    %v4767 = vpack.c.b16 %v4731, %v4725
    %v4768 = vpack.c.b16 %v4732, %v4726
    %v4769 = vpack.c.b16 %v4733, %v4727
    %v4770 = vpack.c.b16 %v4740, %v4734
    %v4771 = vpack.c.b16 %v4741, %v4735
    %v4772 = vpack.c.b16 %v4742, %v4736
    %v4773 = vpack.c.b16 %v4743, %v4737
    %v4774 = vpack.c.b16 %v4744, %v4738
    %v4775 = vpack.c.b16 %v4745, %v4739
    %v4776 = vpack.c.b16 %v4752, %v4746
    %v4777 = vpack.c.b16 %v4753, %v4747
    %v4778 = vpack.c.b16 %v4754, %v4748
    %v4779 = vpack.c.b16 %v4755, %v4749
    %v4780 = vpack.c.b16 %v4756, %v4750
    %v4781 = vpack.c.b16 %v4757, %v4751
    %v4807 = vsel %vm100, %v4660, 0
    %4809 = vmatprep.subr.bf16.mxu0 %v4759
    %4810 = vmatpush1.bf16.msra.mxu0 %v4758
    %4811 = vmatprep.subr.bf16.mxu0 %v4765
    %4812 = vmatpush1.bf16.msra.mxu0 %v4764
    %4813 = vmatprep.subr.bf16.mxu0 %v4771
    %4814 = vmatpush1.bf16.msra.mxu0 %v4770
    %4815 = vmatprep.subr.bf16.mxu0 %v4777
    %4816 = vmatpush1.bf16.msra.mxu0 %v4776
    %4817 = vmatprep.subr.bf16.mxu0 0
    %4818 = vmatpush1.bf16.msra.mxu0 0
    %4819 = vmatprep.subr.bf16.mxu0 0
    %4820 = vmatpush1.bf16.msra.mxu0 0
    %4821 = vmatprep.subr.bf16.mxu0 0
    %4822 = vmatpush1.bf16.msra.mxu0 0
    %4823 = vmatprep.subr.bf16.mxu0 0
    %4824 = vmatpush1.bf16.msra.mxu0 0
    %4825 = vmatprep.subr.bf16.mxu0 0
    %4826 = vmatpush1.bf16.msra.mxu0 0
    %4827 = vmatprep.subr.bf16.mxu0 0
    %4828 = vmatpush1.bf16.msra.mxu0 0
    %4829 = vmatprep.subr.bf16.mxu0 0
    %4830 = vmatpush1.bf16.msra.mxu0 0
    %4831 = vmatprep.subr.bf16.mxu0 0
    %4832 = vmatpush1.bf16.msra.mxu0 0
    %4833 = vmatprep.subr.bf16.mxu0 0
    %4834 = vmatpush1.bf16.msra.mxu0 0
    %4835 = vmatprep.subr.bf16.mxu0 0
    %4836 = vmatpush1.bf16.msra.mxu0 0
    %4837 = vmatprep.subr.bf16.mxu0 0
    %4838 = vmatpush1.bf16.msra.mxu0 0
    %4839 = vmatprep.subr.bf16.mxu0 0
    %4840 = vmatpush1.bf16.msra.mxu0 0
    %4841 = vmatprep.mubr.bf16.mxu0 0
    %4842 = vmatmul.mubr.bf16.gmra.mrb[0].mxu0 %v4807
    %v4843 = vpop.f32.mrb[0].mxu0
    %v4844 = vadd.f32 0.0, %v4843
    %v4845 = vpop.f32.mrb[0].mxu0
    %v4846 = vadd.f32 0.0, %v4845
    %v4847 = vpop.f32.mrb[0].mxu0
    %v4848 = vadd.f32 0.0, %v4847
    %v4849 = vpop.f32.mrb[0].mxu0
    %v4850 = vadd.f32 0.0, %v4849
    %4851 = vdwg.mxu0
    %4852 = vmatprep.subr.bf16.mxu0 %v4761
    %4853 = vmatpush1.bf16.msra.mxu0 %v4760
    %4854 = vmatprep.subr.bf16.mxu0 %v4767
    %4855 = vmatpush1.bf16.msra.mxu0 %v4766
    %4856 = vmatprep.subr.bf16.mxu0 %v4773
    %4857 = vmatpush1.bf16.msra.mxu0 %v4772
    %4858 = vmatprep.subr.bf16.mxu0 %v4779
    %4859 = vmatpush1.bf16.msra.mxu0 %v4778
    %4860 = vmatprep.subr.bf16.mxu0 0
    %4861 = vmatpush1.bf16.msra.mxu0 0
    %4862 = vmatprep.subr.bf16.mxu0 0
    %4863 = vmatpush1.bf16.msra.mxu0 0
    %4864 = vmatprep.subr.bf16.mxu0 0
    %4865 = vmatpush1.bf16.msra.mxu0 0
    %4866 = vmatprep.subr.bf16.mxu0 0
    %4867 = vmatpush1.bf16.msra.mxu0 0
    %4868 = vmatprep.subr.bf16.mxu0 0
    %4869 = vmatpush1.bf16.msra.mxu0 0
    %4870 = vmatprep.subr.bf16.mxu0 0
    %4871 = vmatpush1.bf16.msra.mxu0 0
    %4872 = vmatprep.subr.bf16.mxu0 0
    %4873 = vmatpush1.bf16.msra.mxu0 0
    %4874 = vmatprep.subr.bf16.mxu0 0
    %4875 = vmatpush1.bf16.msra.mxu0 0
    %4876 = vmatprep.subr.bf16.mxu0 0
    %4877 = vmatpush1.bf16.msra.mxu0 0
    %4878 = vmatprep.subr.bf16.mxu0 0
    %4879 = vmatpush1.bf16.msra.mxu0 0
    %4880 = vmatprep.subr.bf16.mxu0 0
    %4881 = vmatpush1.bf16.msra.mxu0 0
    %4882 = vmatprep.subr.bf16.mxu0 0
    %4883 = vmatpush1.bf16.msra.mxu0 0
    %4884 = vmatprep.mubr.bf16.mxu0 0
    %4885 = vmatmul.mubr.bf16.gmra.mrb[0].mxu0 %v4807
    %v4886 = vpop.f32.mrb[0].mxu0
    %v4887 = vadd.f32 0.0, %v4886
    %v4888 = vpop.f32.mrb[0].mxu0
    %v4889 = vadd.f32 0.0, %v4888
    %v4890 = vpop.f32.mrb[0].mxu0
    %v4891 = vadd.f32 0.0, %v4890
    %v4892 = vpop.f32.mrb[0].mxu0
    %v4893 = vadd.f32 0.0, %v4892
    %4894 = vdwg.mxu0
    %4895 = vmatprep.subr.bf16.mxu0 %v4763
    %4896 = vmatpush1.bf16.msra.mxu0 %v4762
    %4897 = vmatprep.subr.bf16.mxu0 %v4769
    %4898 = vmatpush1.bf16.msra.mxu0 %v4768
    %4899 = vmatprep.subr.bf16.mxu0 %v4775
    %4900 = vmatpush1.bf16.msra.mxu0 %v4774
    %4901 = vmatprep.subr.bf16.mxu0 %v4781
    %4902 = vmatpush1.bf16.msra.mxu0 %v4780
    %4903 = vmatprep.subr.bf16.mxu0 0
    %4904 = vmatpush1.bf16.msra.mxu0 0
    %4905 = vmatprep.subr.bf16.mxu0 0
    %4906 = vmatpush1.bf16.msra.mxu0 0
    %4907 = vmatprep.subr.bf16.mxu0 0
    %4908 = vmatpush1.bf16.msra.mxu0 0
    %4909 = vmatprep.subr.bf16.mxu0 0
    %4910 = vmatpush1.bf16.msra.mxu0 0
    %4911 = vmatprep.subr.bf16.mxu0 0
    %4912 = vmatpush1.bf16.msra.mxu0 0
    %4913 = vmatprep.subr.bf16.mxu0 0
    %4914 = vmatpush1.bf16.msra.mxu0 0
    %4915 = vmatprep.subr.bf16.mxu0 0
    %4916 = vmatpush1.bf16.msra.mxu0 0
    %4917 = vmatprep.subr.bf16.mxu0 0
    %4918 = vmatpush1.bf16.msra.mxu0 0
    %4919 = vmatprep.subr.bf16.mxu0 0
    %4920 = vmatpush1.bf16.msra.mxu0 0
    %4921 = vmatprep.subr.bf16.mxu0 0
    %4922 = vmatpush1.bf16.msra.mxu0 0
    %4923 = vmatprep.subr.bf16.mxu0 0
    %4924 = vmatpush1.bf16.msra.mxu0 0
    %4925 = vmatprep.subr.bf16.mxu0 0
    %4926 = vmatpush1.bf16.msra.mxu0 0
    %4927 = vmatprep.mubr.bf16.mxu0 0
    %4928 = vmatmul.mubr.bf16.gmra.mrb[0].mxu0 %v4807
    %v4929 = vpop.f32.mrb[0].mxu0
    %v4930 = vadd.f32 0.0, %v4929
    %v4931 = vpop.f32.mrb[0].mxu0
    %v4932 = vadd.f32 0.0, %v4931
    %v4933 = vpop.f32.mrb[0].mxu0
    %v4934 = vadd.f32 0.0, %v4933
    %v4935 = vpop.f32.mrb[0].mxu0
    %v4936 = vadd.f32 0.0, %v4935
    %4937 = vdwg.mxu0
    %v4938 = vadd.f32 %v4648, %v4844
    %v4939 = vadd.f32 %v4649, %v4846
    %v4940 = vadd.f32 %v4650, %v4887
    %v4941 = vadd.f32 %v4651, %v4889
    %v4942 = vadd.f32 %v4652, %v4930
    %v4943 = vadd.f32 %v4653, %v4932
    %v4944 = vadd.f32 %v4654, %v4848
    %v4945 = vadd.f32 %v4655, %v4850
    %v4946 = vadd.f32 %v4656, %v4891
    %v4947 = vadd.f32 %v4657, %v4893
    %v4948 = vadd.f32 %v4658, %v4934
    %v4949 = vadd.f32 %v4659, %v4936
    %v4950 = vpack.c.bf16 %v2512, %v1960
    %s4951 = scalar_lea.vmem %s5, 1536
    %v4952 = vld [vmem:[%s4951] sm:$0xff]
    %v4953 = vld [vmem:[%s4951 + $0x8] sm:$0xff]
    %v4954 = vld [vmem:[%s4951 + $0x10] sm:$0xff]
    %v4955 = vld [vmem:[%s4951 + $0x18] sm:$0xff]
    %v4956 = vld [vmem:[%s4951 + $0x20] sm:$0xff]
    %v4957 = vld [vmem:[%s4951 + $0x28] sm:$0xff]
    %v4958 = vld [vmem:[%s4951 + $0x30] sm:$0xff]
    %v4959 = vld [vmem:[%s4951 + $0x38] sm:$0xff]
    %v4960 = vld [vmem:[%s4951 + $0x40] sm:$0xff]
    %v4961 = vld [vmem:[%s4951 + $0x48] sm:$0xff]
    %v4962 = vld [vmem:[%s4951 + $0x50] sm:$0xff]
    %v4963 = vld [vmem:[%s4951 + $0x58] sm:$0xff]
    %v4964 = vld [vmem:[%s4951 + $0x60] sm:$0xff]
    %v4965 = vld [vmem:[%s4951 + $0x68] sm:$0xff]
    %v4966 = vld [vmem:[%s4951 + $0x70] sm:$0xff]
    %v4967 = vld [vmem:[%s4951 + $0x78] sm:$0xff]
    %v4968 = vld [vmem:[%s4951 + $0x80] sm:$0xff]
    %v4969 = vld [vmem:[%s4951 + $0x88] sm:$0xff]
    %v4970 = vld [vmem:[%s4951 + $0x90] sm:$0xff]
    %v4971 = vld [vmem:[%s4951 + $0x98] sm:$0xff]
    %v4972 = vld [vmem:[%s4951 + $0xa0] sm:$0xff]
    %v4973 = vld [vmem:[%s4951 + $0xa8] sm:$0xff]
    %v4974 = vld [vmem:[%s4951 + $0xb0] sm:$0xff]
    %v4975 = vld [vmem:[%s4951 + $0xb8] sm:$0xff]
    %v5000 = vunpack.c.l.b16 %v4952
    %v5001 = vunpack.c.h.b16 %v4952
    %v5002 = vunpack.c.l.b16 %v4953
    %v5003 = vunpack.c.h.b16 %v4953
    %v5004 = vunpack.c.l.b16 %v4954
    %v5005 = vunpack.c.h.b16 %v4954
    %v5006 = vunpack.c.l.b16 %v4955
    %v5007 = vunpack.c.h.b16 %v4955
    %v5008 = vunpack.c.l.b16 %v4956
    %v5009 = vunpack.c.h.b16 %v4956
    %v5010 = vunpack.c.l.b16 %v4957
    %v5011 = vunpack.c.h.b16 %v4957
    %v5012 = vunpack.c.l.b16 %v4958
    %v5013 = vunpack.c.h.b16 %v4958
    %v5014 = vunpack.c.l.b16 %v4959
    %v5015 = vunpack.c.h.b16 %v4959
    %v5016 = vunpack.c.l.b16 %v4960
    %v5017 = vunpack.c.h.b16 %v4960
    %v5018 = vunpack.c.l.b16 %v4961
    %v5019 = vunpack.c.h.b16 %v4961
    %v5020 = vunpack.c.l.b16 %v4962
    %v5021 = vunpack.c.h.b16 %v4962
    %v5022 = vunpack.c.l.b16 %v4963
    %v5023 = vunpack.c.h.b16 %v4963
    %v5024 = vunpack.c.l.b16 %v4964
    %v5025 = vunpack.c.h.b16 %v4964
    %v5026 = vunpack.c.l.b16 %v4965
    %v5027 = vunpack.c.h.b16 %v4965
    %v5028 = vunpack.c.l.b16 %v4966
    %v5029 = vunpack.c.h.b16 %v4966
    %v5030 = vunpack.c.l.b16 %v4967
    %v5031 = vunpack.c.h.b16 %v4967
    %v5032 = vunpack.c.l.b16 %v4968
    %v5033 = vunpack.c.h.b16 %v4968
    %v5034 = vunpack.c.l.b16 %v4969
    %v5035 = vunpack.c.h.b16 %v4969
    %v5036 = vunpack.c.l.b16 %v4970
    %v5037 = vunpack.c.h.b16 %v4970
    %v5038 = vunpack.c.l.b16 %v4971
    %v5039 = vunpack.c.h.b16 %v4971
    %v5040 = vunpack.c.l.b16 %v4972
    %v5041 = vunpack.c.h.b16 %v4972
    %v5042 = vunpack.c.l.b16 %v4973
    %v5043 = vunpack.c.h.b16 %v4973
    %v5044 = vunpack.c.l.b16 %v4974
    %v5045 = vunpack.c.h.b16 %v4974
    %v5046 = vunpack.c.l.b16 %v4975
    %v5047 = vunpack.c.h.b16 %v4975
    %v5048 = vpack.c.b16 %v5006, %v5000
    %v5049 = vpack.c.b16 %v5007, %v5001
    %v5050 = vpack.c.b16 %v5008, %v5002
    %v5051 = vpack.c.b16 %v5009, %v5003
    %v5052 = vpack.c.b16 %v5010, %v5004
    %v5053 = vpack.c.b16 %v5011, %v5005
    %v5054 = vpack.c.b16 %v5018, %v5012
    %v5055 = vpack.c.b16 %v5019, %v5013
    %v5056 = vpack.c.b16 %v5020, %v5014
    %v5057 = vpack.c.b16 %v5021, %v5015
    %v5058 = vpack.c.b16 %v5022, %v5016
    %v5059 = vpack.c.b16 %v5023, %v5017
    %v5060 = vpack.c.b16 %v5030, %v5024
    %v5061 = vpack.c.b16 %v5031, %v5025
    %v5062 = vpack.c.b16 %v5032, %v5026
    %v5063 = vpack.c.b16 %v5033, %v5027
    %v5064 = vpack.c.b16 %v5034, %v5028
    %v5065 = vpack.c.b16 %v5035, %v5029
    %v5066 = vpack.c.b16 %v5042, %v5036
    %v5067 = vpack.c.b16 %v5043, %v5037
    %v5068 = vpack.c.b16 %v5044, %v5038
    %v5069 = vpack.c.b16 %v5045, %v5039
    %v5070 = vpack.c.b16 %v5046, %v5040
    %v5071 = vpack.c.b16 %v5047, %v5041
    %v5097 = vsel %vm100, %v4950, 0
    %5099 = vmatprep.subr.bf16.mxu0 %v5049
    %5100 = vmatpush1.bf16.msra.mxu0 %v5048
    %5101 = vmatprep.subr.bf16.mxu0 %v5055
    %5102 = vmatpush1.bf16.msra.mxu0 %v5054
    %5103 = vmatprep.subr.bf16.mxu0 %v5061
    %5104 = vmatpush1.bf16.msra.mxu0 %v5060
    %5105 = vmatprep.subr.bf16.mxu0 %v5067
    %5106 = vmatpush1.bf16.msra.mxu0 %v5066
    %5107 = vmatprep.subr.bf16.mxu0 0
    %5108 = vmatpush1.bf16.msra.mxu0 0
    %5109 = vmatprep.subr.bf16.mxu0 0
    %5110 = vmatpush1.bf16.msra.mxu0 0
    %5111 = vmatprep.subr.bf16.mxu0 0
    %5112 = vmatpush1.bf16.msra.mxu0 0
    %5113 = vmatprep.subr.bf16.mxu0 0
    %5114 = vmatpush1.bf16.msra.mxu0 0
    %5115 = vmatprep.subr.bf16.mxu0 0
    %5116 = vmatpush1.bf16.msra.mxu0 0
    %5117 = vmatprep.subr.bf16.mxu0 0
    %5118 = vmatpush1.bf16.msra.mxu0 0
    %5119 = vmatprep.subr.bf16.mxu0 0
    %5120 = vmatpush1.bf16.msra.mxu0 0
    %5121 = vmatprep.subr.bf16.mxu0 0
    %5122 = vmatpush1.bf16.msra.mxu0 0
    %5123 = vmatprep.subr.bf16.mxu0 0
    %5124 = vmatpush1.bf16.msra.mxu0 0
    %5125 = vmatprep.subr.bf16.mxu0 0
    %5126 = vmatpush1.bf16.msra.mxu0 0
    %5127 = vmatprep.subr.bf16.mxu0 0
    %5128 = vmatpush1.bf16.msra.mxu0 0
    %5129 = vmatprep.subr.bf16.mxu0 0
    %5130 = vmatpush1.bf16.msra.mxu0 0
    %5131 = vmatprep.mubr.bf16.mxu0 0
    %5132 = vmatmul.mubr.bf16.gmra.mrb[0].mxu0 %v5097
    %v5133 = vpop.f32.mrb[0].mxu0
    %v5134 = vadd.f32 0.0, %v5133
    %v5135 = vpop.f32.mrb[0].mxu0
    %v5136 = vadd.f32 0.0, %v5135
    %v5137 = vpop.f32.mrb[0].mxu0
    %v5138 = vadd.f32 0.0, %v5137
    %v5139 = vpop.f32.mrb[0].mxu0
    %v5140 = vadd.f32 0.0, %v5139
    %5141 = vdwg.mxu0
    %5142 = vmatprep.subr.bf16.mxu0 %v5051
    %5143 = vmatpush1.bf16.msra.mxu0 %v5050
    %5144 = vmatprep.subr.bf16.mxu0 %v5057
    %5145 = vmatpush1.bf16.msra.mxu0 %v5056
    %5146 = vmatprep.subr.bf16.mxu0 %v5063
    %5147 = vmatpush1.bf16.msra.mxu0 %v5062
    %5148 = vmatprep.subr.bf16.mxu0 %v5069
    %5149 = vmatpush1.bf16.msra.mxu0 %v5068
    %5150 = vmatprep.subr.bf16.mxu0 0
    %5151 = vmatpush1.bf16.msra.mxu0 0
    %5152 = vmatprep.subr.bf16.mxu0 0
    %5153 = vmatpush1.bf16.msra.mxu0 0
    %5154 = vmatprep.subr.bf16.mxu0 0
    %5155 = vmatpush1.bf16.msra.mxu0 0
    %5156 = vmatprep.subr.bf16.mxu0 0
    %5157 = vmatpush1.bf16.msra.mxu0 0
    %5158 = vmatprep.subr.bf16.mxu0 0
    %5159 = vmatpush1.bf16.msra.mxu0 0
    %5160 = vmatprep.subr.bf16.mxu0 0
    %5161 = vmatpush1.bf16.msra.mxu0 0
    %5162 = vmatprep.subr.bf16.mxu0 0
    %5163 = vmatpush1.bf16.msra.mxu0 0
    %5164 = vmatprep.subr.bf16.mxu0 0
    %5165 = vmatpush1.bf16.msra.mxu0 0
    %5166 = vmatprep.subr.bf16.mxu0 0
    %5167 = vmatpush1.bf16.msra.mxu0 0
    %5168 = vmatprep.subr.bf16.mxu0 0
    %5169 = vmatpush1.bf16.msra.mxu0 0
    %5170 = vmatprep.subr.bf16.mxu0 0
    %5171 = vmatpush1.bf16.msra.mxu0 0
    %5172 = vmatprep.subr.bf16.mxu0 0
    %5173 = vmatpush1.bf16.msra.mxu0 0
    %5174 = vmatprep.mubr.bf16.mxu0 0
    %5175 = vmatmul.mubr.bf16.gmra.mrb[0].mxu0 %v5097
    %v5176 = vpop.f32.mrb[0].mxu0
    %v5177 = vadd.f32 0.0, %v5176
    %v5178 = vpop.f32.mrb[0].mxu0
    %v5179 = vadd.f32 0.0, %v5178
    %v5180 = vpop.f32.mrb[0].mxu0
    %v5181 = vadd.f32 0.0, %v5180
    %v5182 = vpop.f32.mrb[0].mxu0
    %v5183 = vadd.f32 0.0, %v5182
    %5184 = vdwg.mxu0
    %5185 = vmatprep.subr.bf16.mxu0 %v5053
    %5186 = vmatpush1.bf16.msra.mxu0 %v5052
    %5187 = vmatprep.subr.bf16.mxu0 %v5059
    %5188 = vmatpush1.bf16.msra.mxu0 %v5058
    %5189 = vmatprep.subr.bf16.mxu0 %v5065
    %5190 = vmatpush1.bf16.msra.mxu0 %v5064
    %5191 = vmatprep.subr.bf16.mxu0 %v5071
    %5192 = vmatpush1.bf16.msra.mxu0 %v5070
    %5193 = vmatprep.subr.bf16.mxu0 0
    %5194 = vmatpush1.bf16.msra.mxu0 0
    %5195 = vmatprep.subr.bf16.mxu0 0
    %5196 = vmatpush1.bf16.msra.mxu0 0
    %5197 = vmatprep.subr.bf16.mxu0 0
    %5198 = vmatpush1.bf16.msra.mxu0 0
    %5199 = vmatprep.subr.bf16.mxu0 0
    %5200 = vmatpush1.bf16.msra.mxu0 0
    %5201 = vmatprep.subr.bf16.mxu0 0
    %5202 = vmatpush1.bf16.msra.mxu0 0
    %5203 = vmatprep.subr.bf16.mxu0 0
    %5204 = vmatpush1.bf16.msra.mxu0 0
    %5205 = vmatprep.subr.bf16.mxu0 0
    %5206 = vmatpush1.bf16.msra.mxu0 0
    %5207 = vmatprep.subr.bf16.mxu0 0
    %5208 = vmatpush1.bf16.msra.mxu0 0
    %5209 = vmatprep.subr.bf16.mxu0 0
    %5210 = vmatpush1.bf16.msra.mxu0 0
    %5211 = vmatprep.subr.bf16.mxu0 0
    %5212 = vmatpush1.bf16.msra.mxu0 0
    %5213 = vmatprep.subr.bf16.mxu0 0
    %5214 = vmatpush1.bf16.msra.mxu0 0
    %5215 = vmatprep.subr.bf16.mxu0 0
    %5216 = vmatpush1.bf16.msra.mxu0 0
    %5217 = vmatprep.mubr.bf16.mxu0 0
    %5218 = vmatmul.mubr.bf16.gmra.mrb[0].mxu0 %v5097
    %v5219 = vpop.f32.mrb[0].mxu0
    %v5220 = vadd.f32 0.0, %v5219
    %v5221 = vpop.f32.mrb[0].mxu0
    %v5222 = vadd.f32 0.0, %v5221
    %v5223 = vpop.f32.mrb[0].mxu0
    %v5224 = vadd.f32 0.0, %v5223
    %v5225 = vpop.f32.mrb[0].mxu0
    %v5226 = vadd.f32 0.0, %v5225
    %5227 = vdwg.mxu0
    %v5228 = vadd.f32 %v4938, %v5134
    %v5229 = vadd.f32 %v4939, %v5136
    %v5230 = vadd.f32 %v4940, %v5177
    %v5231 = vadd.f32 %v4941, %v5179
    %v5232 = vadd.f32 %v4942, %v5220
    %v5233 = vadd.f32 %v4943, %v5222
    %v5234 = vadd.f32 %v4944, %v5138
    %v5235 = vadd.f32 %v4945, %v5140
    %v5236 = vadd.f32 %v4946, %v5181
    %v5237 = vadd.f32 %v4947, %v5183
    %v5238 = vadd.f32 %v4948, %v5224
    %v5239 = vadd.f32 %v4949, %v5226
    %v5240 = vpack.c.bf16 %v2558, %v2006
    %s5241 = scalar_lea.vmem %s5, 1728
    %v5242 = vld [vmem:[%s5241] sm:$0xff]
    %v5243 = vld [vmem:[%s5241 + $0x8] sm:$0xff]
    %v5244 = vld [vmem:[%s5241 + $0x10] sm:$0xff]
    %v5245 = vld [vmem:[%s5241 + $0x18] sm:$0xff]
    %v5246 = vld [vmem:[%s5241 + $0x20] sm:$0xff]
    %v5247 = vld [vmem:[%s5241 + $0x28] sm:$0xff]
    %v5248 = vld [vmem:[%s5241 + $0x30] sm:$0xff]
    %v5249 = vld [vmem:[%s5241 + $0x38] sm:$0xff]
    %v5250 = vld [vmem:[%s5241 + $0x40] sm:$0xff]
    %v5251 = vld [vmem:[%s5241 + $0x48] sm:$0xff]
    %v5252 = vld [vmem:[%s5241 + $0x50] sm:$0xff]
    %v5253 = vld [vmem:[%s5241 + $0x58] sm:$0xff]
    %v5254 = vld [vmem:[%s5241 + $0x60] sm:$0xff]
    %v5255 = vld [vmem:[%s5241 + $0x68] sm:$0xff]
    %v5256 = vld [vmem:[%s5241 + $0x70] sm:$0xff]
    %v5257 = vld [vmem:[%s5241 + $0x78] sm:$0xff]
    %v5258 = vld [vmem:[%s5241 + $0x80] sm:$0xff]
    %v5259 = vld [vmem:[%s5241 + $0x88] sm:$0xff]
    %v5260 = vld [vmem:[%s5241 + $0x90] sm:$0xff]
    %v5261 = vld [vmem:[%s5241 + $0x98] sm:$0xff]
    %v5262 = vld [vmem:[%s5241 + $0xa0] sm:$0xff]
    %v5263 = vld [vmem:[%s5241 + $0xa8] sm:$0xff]
    %v5264 = vld [vmem:[%s5241 + $0xb0] sm:$0xff]
    %v5265 = vld [vmem:[%s5241 + $0xb8] sm:$0xff]
    %v5290 = vunpack.c.l.b16 %v5242
    %v5291 = vunpack.c.h.b16 %v5242
    %v5292 = vunpack.c.l.b16 %v5243
    %v5293 = vunpack.c.h.b16 %v5243
    %v5294 = vunpack.c.l.b16 %v5244
    %v5295 = vunpack.c.h.b16 %v5244
    %v5296 = vunpack.c.l.b16 %v5245
    %v5297 = vunpack.c.h.b16 %v5245
    %v5298 = vunpack.c.l.b16 %v5246
    %v5299 = vunpack.c.h.b16 %v5246
    %v5300 = vunpack.c.l.b16 %v5247
    %v5301 = vunpack.c.h.b16 %v5247
    %v5302 = vunpack.c.l.b16 %v5248
    %v5303 = vunpack.c.h.b16 %v5248
    %v5304 = vunpack.c.l.b16 %v5249
    %v5305 = vunpack.c.h.b16 %v5249
    %v5306 = vunpack.c.l.b16 %v5250
    %v5307 = vunpack.c.h.b16 %v5250
    %v5308 = vunpack.c.l.b16 %v5251
    %v5309 = vunpack.c.h.b16 %v5251
    %v5310 = vunpack.c.l.b16 %v5252
    %v5311 = vunpack.c.h.b16 %v5252
    %v5312 = vunpack.c.l.b16 %v5253
    %v5313 = vunpack.c.h.b16 %v5253
    %v5314 = vunpack.c.l.b16 %v5254
    %v5315 = vunpack.c.h.b16 %v5254
    %v5316 = vunpack.c.l.b16 %v5255
    %v5317 = vunpack.c.h.b16 %v5255
    %v5318 = vunpack.c.l.b16 %v5256
    %v5319 = vunpack.c.h.b16 %v5256
    %v5320 = vunpack.c.l.b16 %v5257
    %v5321 = vunpack.c.h.b16 %v5257
    %v5322 = vunpack.c.l.b16 %v5258
    %v5323 = vunpack.c.h.b16 %v5258
    %v5324 = vunpack.c.l.b16 %v5259
    %v5325 = vunpack.c.h.b16 %v5259
    %v5326 = vunpack.c.l.b16 %v5260
    %v5327 = vunpack.c.h.b16 %v5260
    %v5328 = vunpack.c.l.b16 %v5261
    %v5329 = vunpack.c.h.b16 %v5261
    %v5330 = vunpack.c.l.b16 %v5262
    %v5331 = vunpack.c.h.b16 %v5262
    %v5332 = vunpack.c.l.b16 %v5263
    %v5333 = vunpack.c.h.b16 %v5263
    %v5334 = vunpack.c.l.b16 %v5264
    %v5335 = vunpack.c.h.b16 %v5264
    %v5336 = vunpack.c.l.b16 %v5265
    %v5337 = vunpack.c.h.b16 %v5265
    %v5338 = vpack.c.b16 %v5296, %v5290
    %v5339 = vpack.c.b16 %v5297, %v5291
    %v5340 = vpack.c.b16 %v5298, %v5292
    %v5341 = vpack.c.b16 %v5299, %v5293
    %v5342 = vpack.c.b16 %v5300, %v5294
    %v5343 = vpack.c.b16 %v5301, %v5295
    %v5344 = vpack.c.b16 %v5308, %v5302
    %v5345 = vpack.c.b16 %v5309, %v5303
    %v5346 = vpack.c.b16 %v5310, %v5304
    %v5347 = vpack.c.b16 %v5311, %v5305
    %v5348 = vpack.c.b16 %v5312, %v5306
    %v5349 = vpack.c.b16 %v5313, %v5307
    %v5350 = vpack.c.b16 %v5320, %v5314
    %v5351 = vpack.c.b16 %v5321, %v5315
    %v5352 = vpack.c.b16 %v5322, %v5316
    %v5353 = vpack.c.b16 %v5323, %v5317
    %v5354 = vpack.c.b16 %v5324, %v5318
    %v5355 = vpack.c.b16 %v5325, %v5319
    %v5356 = vpack.c.b16 %v5332, %v5326
    %v5357 = vpack.c.b16 %v5333, %v5327
    %v5358 = vpack.c.b16 %v5334, %v5328
    %v5359 = vpack.c.b16 %v5335, %v5329
    %v5360 = vpack.c.b16 %v5336, %v5330
    %v5361 = vpack.c.b16 %v5337, %v5331
    %v5387 = vsel %vm100, %v5240, 0
    %5389 = vmatprep.subr.bf16.mxu0 %v5339
    %5390 = vmatpush1.bf16.msra.mxu0 %v5338
    %5391 = vmatprep.subr.bf16.mxu0 %v5345
    %5392 = vmatpush1.bf16.msra.mxu0 %v5344
    %5393 = vmatprep.subr.bf16.mxu0 %v5351
    %5394 = vmatpush1.bf16.msra.mxu0 %v5350
    %5395 = vmatprep.subr.bf16.mxu0 %v5357
    %5396 = vmatpush1.bf16.msra.mxu0 %v5356
    %5397 = vmatprep.subr.bf16.mxu0 0
    %5398 = vmatpush1.bf16.msra.mxu0 0
    %5399 = vmatprep.subr.bf16.mxu0 0
    %5400 = vmatpush1.bf16.msra.mxu0 0
    %5401 = vmatprep.subr.bf16.mxu0 0
    %5402 = vmatpush1.bf16.msra.mxu0 0
    %5403 = vmatprep.subr.bf16.mxu0 0
    %5404 = vmatpush1.bf16.msra.mxu0 0
    %5405 = vmatprep.subr.bf16.mxu0 0
    %5406 = vmatpush1.bf16.msra.mxu0 0
    %5407 = vmatprep.subr.bf16.mxu0 0
    %5408 = vmatpush1.bf16.msra.mxu0 0
    %5409 = vmatprep.subr.bf16.mxu0 0
    %5410 = vmatpush1.bf16.msra.mxu0 0
    %5411 = vmatprep.subr.bf16.mxu0 0
    %5412 = vmatpush1.bf16.msra.mxu0 0
    %5413 = vmatprep.subr.bf16.mxu0 0
    %5414 = vmatpush1.bf16.msra.mxu0 0
    %5415 = vmatprep.subr.bf16.mxu0 0
    %5416 = vmatpush1.bf16.msra.mxu0 0
    %5417 = vmatprep.subr.bf16.mxu0 0
    %5418 = vmatpush1.bf16.msra.mxu0 0
    %5419 = vmatprep.subr.bf16.mxu0 0
    %5420 = vmatpush1.bf16.msra.mxu0 0
    %5421 = vmatprep.mubr.bf16.mxu0 0
    %5422 = vmatmul.mubr.bf16.gmra.mrb[0].mxu0 %v5387
    %v5423 = vpop.f32.mrb[0].mxu0
    %v5424 = vadd.f32 0.0, %v5423
    %v5425 = vpop.f32.mrb[0].mxu0
    %v5426 = vadd.f32 0.0, %v5425
    %v5427 = vpop.f32.mrb[0].mxu0
    %v5428 = vadd.f32 0.0, %v5427
    %v5429 = vpop.f32.mrb[0].mxu0
    %v5430 = vadd.f32 0.0, %v5429
    %5431 = vdwg.mxu0
    %5432 = vmatprep.subr.bf16.mxu0 %v5341
    %5433 = vmatpush1.bf16.msra.mxu0 %v5340
    %5434 = vmatprep.subr.bf16.mxu0 %v5347
    %5435 = vmatpush1.bf16.msra.mxu0 %v5346
    %5436 = vmatprep.subr.bf16.mxu0 %v5353
    %5437 = vmatpush1.bf16.msra.mxu0 %v5352
    %5438 = vmatprep.subr.bf16.mxu0 %v5359
    %5439 = vmatpush1.bf16.msra.mxu0 %v5358
    %5440 = vmatprep.subr.bf16.mxu0 0
    %5441 = vmatpush1.bf16.msra.mxu0 0
    %5442 = vmatprep.subr.bf16.mxu0 0
    %5443 = vmatpush1.bf16.msra.mxu0 0
    %5444 = vmatprep.subr.bf16.mxu0 0
    %5445 = vmatpush1.bf16.msra.mxu0 0
    %5446 = vmatprep.subr.bf16.mxu0 0
    %5447 = vmatpush1.bf16.msra.mxu0 0
    %5448 = vmatprep.subr.bf16.mxu0 0
    %5449 = vmatpush1.bf16.msra.mxu0 0
    %5450 = vmatprep.subr.bf16.mxu0 0
    %5451 = vmatpush1.bf16.msra.mxu0 0
    %5452 = vmatprep.subr.bf16.mxu0 0
    %5453 = vmatpush1.bf16.msra.mxu0 0
    %5454 = vmatprep.subr.bf16.mxu0 0
    %5455 = vmatpush1.bf16.msra.mxu0 0
    %5456 = vmatprep.subr.bf16.mxu0 0
    %5457 = vmatpush1.bf16.msra.mxu0 0
    %5458 = vmatprep.subr.bf16.mxu0 0
    %5459 = vmatpush1.bf16.msra.mxu0 0
    %5460 = vmatprep.subr.bf16.mxu0 0
    %5461 = vmatpush1.bf16.msra.mxu0 0
    %5462 = vmatprep.subr.bf16.mxu0 0
    %5463 = vmatpush1.bf16.msra.mxu0 0
    %5464 = vmatprep.mubr.bf16.mxu0 0
    %5465 = vmatmul.mubr.bf16.gmra.mrb[0].mxu0 %v5387
    %v5466 = vpop.f32.mrb[0].mxu0
    %v5467 = vadd.f32 0.0, %v5466
    %v5468 = vpop.f32.mrb[0].mxu0
    %v5469 = vadd.f32 0.0, %v5468
    %v5470 = vpop.f32.mrb[0].mxu0
    %v5471 = vadd.f32 0.0, %v5470
    %v5472 = vpop.f32.mrb[0].mxu0
    %v5473 = vadd.f32 0.0, %v5472
    %5474 = vdwg.mxu0
    %5475 = vmatprep.subr.bf16.mxu0 %v5343
    %5476 = vmatpush1.bf16.msra.mxu0 %v5342
    %5477 = vmatprep.subr.bf16.mxu0 %v5349
    %5478 = vmatpush1.bf16.msra.mxu0 %v5348
    %5479 = vmatprep.subr.bf16.mxu0 %v5355
    %5480 = vmatpush1.bf16.msra.mxu0 %v5354
    %5481 = vmatprep.subr.bf16.mxu0 %v5361
    %5482 = vmatpush1.bf16.msra.mxu0 %v5360
    %5483 = vmatprep.subr.bf16.mxu0 0
    %5484 = vmatpush1.bf16.msra.mxu0 0
    %5485 = vmatprep.subr.bf16.mxu0 0
    %5486 = vmatpush1.bf16.msra.mxu0 0
    %5487 = vmatprep.subr.bf16.mxu0 0
    %5488 = vmatpush1.bf16.msra.mxu0 0
    %5489 = vmatprep.subr.bf16.mxu0 0
    %5490 = vmatpush1.bf16.msra.mxu0 0
    %5491 = vmatprep.subr.bf16.mxu0 0
    %5492 = vmatpush1.bf16.msra.mxu0 0
    %5493 = vmatprep.subr.bf16.mxu0 0
    %5494 = vmatpush1.bf16.msra.mxu0 0
    %5495 = vmatprep.subr.bf16.mxu0 0
    %5496 = vmatpush1.bf16.msra.mxu0 0
    %5497 = vmatprep.subr.bf16.mxu0 0
    %5498 = vmatpush1.bf16.msra.mxu0 0
    %5499 = vmatprep.subr.bf16.mxu0 0
    %5500 = vmatpush1.bf16.msra.mxu0 0
    %5501 = vmatprep.subr.bf16.mxu0 0
    %5502 = vmatpush1.bf16.msra.mxu0 0
    %5503 = vmatprep.subr.bf16.mxu0 0
    %5504 = vmatpush1.bf16.msra.mxu0 0
    %5505 = vmatprep.subr.bf16.mxu0 0
    %5506 = vmatpush1.bf16.msra.mxu0 0
    %5507 = vmatprep.mubr.bf16.mxu0 0
    %5508 = vmatmul.mubr.bf16.gmra.mrb[0].mxu0 %v5387
    %v5509 = vpop.f32.mrb[0].mxu0
    %v5510 = vadd.f32 0.0, %v5509
    %v5511 = vpop.f32.mrb[0].mxu0
    %v5512 = vadd.f32 0.0, %v5511
    %v5513 = vpop.f32.mrb[0].mxu0
    %v5514 = vadd.f32 0.0, %v5513
    %v5515 = vpop.f32.mrb[0].mxu0
    %v5516 = vadd.f32 0.0, %v5515
    %5517 = vdwg.mxu0
    %v5518 = vadd.f32 %v5228, %v5424
    %v5519 = vadd.f32 %v5229, %v5426
    %v5520 = vadd.f32 %v5230, %v5467
    %v5521 = vadd.f32 %v5231, %v5469
    %v5522 = vadd.f32 %v5232, %v5510
    %v5523 = vadd.f32 %v5233, %v5512
    %v5524 = vadd.f32 %v5234, %v5428
    %v5525 = vadd.f32 %v5235, %v5430
    %v5526 = vadd.f32 %v5236, %v5471
    %v5527 = vadd.f32 %v5237, %v5473
    %v5528 = vadd.f32 %v5238, %v5514
    %v5529 = vadd.f32 %v5239, %v5516
    %v5530 = vpack.c.bf16 %v2604, %v2052
    %s5531 = scalar_lea.vmem %s5, 1920
    %v5532 = vld [vmem:[%s5531] sm:$0xff]
    %v5533 = vld [vmem:[%s5531 + $0x8] sm:$0xff]
    %v5534 = vld [vmem:[%s5531 + $0x10] sm:$0xff]
    %v5535 = vld [vmem:[%s5531 + $0x18] sm:$0xff]
    %v5536 = vld [vmem:[%s5531 + $0x20] sm:$0xff]
    %v5537 = vld [vmem:[%s5531 + $0x28] sm:$0xff]
    %v5538 = vld [vmem:[%s5531 + $0x30] sm:$0xff]
    %v5539 = vld [vmem:[%s5531 + $0x38] sm:$0xff]
    %v5540 = vld [vmem:[%s5531 + $0x40] sm:$0xff]
    %v5541 = vld [vmem:[%s5531 + $0x48] sm:$0xff]
    %v5542 = vld [vmem:[%s5531 + $0x50] sm:$0xff]
    %v5543 = vld [vmem:[%s5531 + $0x58] sm:$0xff]
    %v5544 = vld [vmem:[%s5531 + $0x60] sm:$0xff]
    %v5545 = vld [vmem:[%s5531 + $0x68] sm:$0xff]
    %v5546 = vld [vmem:[%s5531 + $0x70] sm:$0xff]
    %v5547 = vld [vmem:[%s5531 + $0x78] sm:$0xff]
    %v5548 = vld [vmem:[%s5531 + $0x80] sm:$0xff]
    %v5549 = vld [vmem:[%s5531 + $0x88] sm:$0xff]
    %v5550 = vld [vmem:[%s5531 + $0x90] sm:$0xff]
    %v5551 = vld [vmem:[%s5531 + $0x98] sm:$0xff]
    %v5552 = vld [vmem:[%s5531 + $0xa0] sm:$0xff]
    %v5553 = vld [vmem:[%s5531 + $0xa8] sm:$0xff]
    %v5554 = vld [vmem:[%s5531 + $0xb0] sm:$0xff]
    %v5555 = vld [vmem:[%s5531 + $0xb8] sm:$0xff]
    %v5580 = vunpack.c.l.b16 %v5532
    %v5581 = vunpack.c.h.b16 %v5532
    %v5582 = vunpack.c.l.b16 %v5533
    %v5583 = vunpack.c.h.b16 %v5533
    %v5584 = vunpack.c.l.b16 %v5534
    %v5585 = vunpack.c.h.b16 %v5534
    %v5586 = vunpack.c.l.b16 %v5535
    %v5587 = vunpack.c.h.b16 %v5535
    %v5588 = vunpack.c.l.b16 %v5536
    %v5589 = vunpack.c.h.b16 %v5536
    %v5590 = vunpack.c.l.b16 %v5537
    %v5591 = vunpack.c.h.b16 %v5537
    %v5592 = vunpack.c.l.b16 %v5538
    %v5593 = vunpack.c.h.b16 %v5538
    %v5594 = vunpack.c.l.b16 %v5539
    %v5595 = vunpack.c.h.b16 %v5539
    %v5596 = vunpack.c.l.b16 %v5540
    %v5597 = vunpack.c.h.b16 %v5540
    %v5598 = vunpack.c.l.b16 %v5541
    %v5599 = vunpack.c.h.b16 %v5541
    %v5600 = vunpack.c.l.b16 %v5542
    %v5601 = vunpack.c.h.b16 %v5542
    %v5602 = vunpack.c.l.b16 %v5543
    %v5603 = vunpack.c.h.b16 %v5543
    %v5604 = vunpack.c.l.b16 %v5544
    %v5605 = vunpack.c.h.b16 %v5544
    %v5606 = vunpack.c.l.b16 %v5545
    %v5607 = vunpack.c.h.b16 %v5545
    %v5608 = vunpack.c.l.b16 %v5546
    %v5609 = vunpack.c.h.b16 %v5546
    %v5610 = vunpack.c.l.b16 %v5547
    %v5611 = vunpack.c.h.b16 %v5547
    %v5612 = vunpack.c.l.b16 %v5548
    %v5613 = vunpack.c.h.b16 %v5548
    %v5614 = vunpack.c.l.b16 %v5549
    %v5615 = vunpack.c.h.b16 %v5549
    %v5616 = vunpack.c.l.b16 %v5550
    %v5617 = vunpack.c.h.b16 %v5550
    %v5618 = vunpack.c.l.b16 %v5551
    %v5619 = vunpack.c.h.b16 %v5551
    %v5620 = vunpack.c.l.b16 %v5552
    %v5621 = vunpack.c.h.b16 %v5552
    %v5622 = vunpack.c.l.b16 %v5553
    %v5623 = vunpack.c.h.b16 %v5553
    %v5624 = vunpack.c.l.b16 %v5554
    %v5625 = vunpack.c.h.b16 %v5554
    %v5626 = vunpack.c.l.b16 %v5555
    %v5627 = vunpack.c.h.b16 %v5555
    %v5628 = vpack.c.b16 %v5586, %v5580
    %v5629 = vpack.c.b16 %v5587, %v5581
    %v5630 = vpack.c.b16 %v5588, %v5582
    %v5631 = vpack.c.b16 %v5589, %v5583
    %v5632 = vpack.c.b16 %v5590, %v5584
    %v5633 = vpack.c.b16 %v5591, %v5585
    %v5634 = vpack.c.b16 %v5598, %v5592
    %v5635 = vpack.c.b16 %v5599, %v5593
    %v5636 = vpack.c.b16 %v5600, %v5594
    %v5637 = vpack.c.b16 %v5601, %v5595
    %v5638 = vpack.c.b16 %v5602, %v5596
    %v5639 = vpack.c.b16 %v5603, %v5597
    %v5640 = vpack.c.b16 %v5610, %v5604
    %v5641 = vpack.c.b16 %v5611, %v5605
    %v5642 = vpack.c.b16 %v5612, %v5606
    %v5643 = vpack.c.b16 %v5613, %v5607
    %v5644 = vpack.c.b16 %v5614, %v5608
    %v5645 = vpack.c.b16 %v5615, %v5609
    %v5646 = vpack.c.b16 %v5622, %v5616
    %v5647 = vpack.c.b16 %v5623, %v5617
    %v5648 = vpack.c.b16 %v5624, %v5618
    %v5649 = vpack.c.b16 %v5625, %v5619
    %v5650 = vpack.c.b16 %v5626, %v5620
    %v5651 = vpack.c.b16 %v5627, %v5621
    %v5677 = vsel %vm100, %v5530, 0
    %5679 = vmatprep.subr.bf16.mxu0 %v5629
    %5680 = vmatpush1.bf16.msra.mxu0 %v5628
    %5681 = vmatprep.subr.bf16.mxu0 %v5635
    %5682 = vmatpush1.bf16.msra.mxu0 %v5634
    %5683 = vmatprep.subr.bf16.mxu0 %v5641
    %5684 = vmatpush1.bf16.msra.mxu0 %v5640
    %5685 = vmatprep.subr.bf16.mxu0 %v5647
    %5686 = vmatpush1.bf16.msra.mxu0 %v5646
    %5687 = vmatprep.subr.bf16.mxu0 0
    %5688 = vmatpush1.bf16.msra.mxu0 0
    %5689 = vmatprep.subr.bf16.mxu0 0
    %5690 = vmatpush1.bf16.msra.mxu0 0
    %5691 = vmatprep.subr.bf16.mxu0 0
    %5692 = vmatpush1.bf16.msra.mxu0 0
    %5693 = vmatprep.subr.bf16.mxu0 0
    %5694 = vmatpush1.bf16.msra.mxu0 0
    %5695 = vmatprep.subr.bf16.mxu0 0
    %5696 = vmatpush1.bf16.msra.mxu0 0
    %5697 = vmatprep.subr.bf16.mxu0 0
    %5698 = vmatpush1.bf16.msra.mxu0 0
    %5699 = vmatprep.subr.bf16.mxu0 0
    %5700 = vmatpush1.bf16.msra.mxu0 0
    %5701 = vmatprep.subr.bf16.mxu0 0
    %5702 = vmatpush1.bf16.msra.mxu0 0
    %5703 = vmatprep.subr.bf16.mxu0 0
    %5704 = vmatpush1.bf16.msra.mxu0 0
    %5705 = vmatprep.subr.bf16.mxu0 0
    %5706 = vmatpush1.bf16.msra.mxu0 0
    %5707 = vmatprep.subr.bf16.mxu0 0
    %5708 = vmatpush1.bf16.msra.mxu0 0
    %5709 = vmatprep.subr.bf16.mxu0 0
    %5710 = vmatpush1.bf16.msra.mxu0 0
    %5711 = vmatprep.mubr.bf16.mxu0 0
    %5712 = vmatmul.mubr.bf16.gmra.mrb[0].mxu0 %v5677
    %v5713 = vpop.f32.mrb[0].mxu0
    %v5714 = vadd.f32 0.0, %v5713
    %v5715 = vpop.f32.mrb[0].mxu0
    %v5716 = vadd.f32 0.0, %v5715
    %v5717 = vpop.f32.mrb[0].mxu0
    %v5718 = vadd.f32 0.0, %v5717
    %v5719 = vpop.f32.mrb[0].mxu0
    %v5720 = vadd.f32 0.0, %v5719
    %5721 = vdwg.mxu0
    %5722 = vmatprep.subr.bf16.mxu0 %v5631
    %5723 = vmatpush1.bf16.msra.mxu0 %v5630
    %5724 = vmatprep.subr.bf16.mxu0 %v5637
    %5725 = vmatpush1.bf16.msra.mxu0 %v5636
    %5726 = vmatprep.subr.bf16.mxu0 %v5643
    %5727 = vmatpush1.bf16.msra.mxu0 %v5642
    %5728 = vmatprep.subr.bf16.mxu0 %v5649
    %5729 = vmatpush1.bf16.msra.mxu0 %v5648
    %5730 = vmatprep.subr.bf16.mxu0 0
    %5731 = vmatpush1.bf16.msra.mxu0 0
    %5732 = vmatprep.subr.bf16.mxu0 0
    %5733 = vmatpush1.bf16.msra.mxu0 0
    %5734 = vmatprep.subr.bf16.mxu0 0
    %5735 = vmatpush1.bf16.msra.mxu0 0
    %5736 = vmatprep.subr.bf16.mxu0 0
    %5737 = vmatpush1.bf16.msra.mxu0 0
    %5738 = vmatprep.subr.bf16.mxu0 0
    %5739 = vmatpush1.bf16.msra.mxu0 0
    %5740 = vmatprep.subr.bf16.mxu0 0
    %5741 = vmatpush1.bf16.msra.mxu0 0
    %5742 = vmatprep.subr.bf16.mxu0 0
    %5743 = vmatpush1.bf16.msra.mxu0 0
    %5744 = vmatprep.subr.bf16.mxu0 0
    %5745 = vmatpush1.bf16.msra.mxu0 0
    %5746 = vmatprep.subr.bf16.mxu0 0
    %5747 = vmatpush1.bf16.msra.mxu0 0
    %5748 = vmatprep.subr.bf16.mxu0 0
    %5749 = vmatpush1.bf16.msra.mxu0 0
    %5750 = vmatprep.subr.bf16.mxu0 0
    %5751 = vmatpush1.bf16.msra.mxu0 0
    %5752 = vmatprep.subr.bf16.mxu0 0
    %5753 = vmatpush1.bf16.msra.mxu0 0
    %5754 = vmatprep.mubr.bf16.mxu0 0
    %5755 = vmatmul.mubr.bf16.gmra.mrb[0].mxu0 %v5677
    %v5756 = vpop.f32.mrb[0].mxu0
    %v5757 = vadd.f32 0.0, %v5756
    %v5758 = vpop.f32.mrb[0].mxu0
    %v5759 = vadd.f32 0.0, %v5758
    %v5760 = vpop.f32.mrb[0].mxu0
    %v5761 = vadd.f32 0.0, %v5760
    %v5762 = vpop.f32.mrb[0].mxu0
    %v5763 = vadd.f32 0.0, %v5762
    %5764 = vdwg.mxu0
    %5765 = vmatprep.subr.bf16.mxu0 %v5633
    %5766 = vmatpush1.bf16.msra.mxu0 %v5632
    %5767 = vmatprep.subr.bf16.mxu0 %v5639
    %5768 = vmatpush1.bf16.msra.mxu0 %v5638
    %5769 = vmatprep.subr.bf16.mxu0 %v5645
    %5770 = vmatpush1.bf16.msra.mxu0 %v5644
    %5771 = vmatprep.subr.bf16.mxu0 %v5651
    %5772 = vmatpush1.bf16.msra.mxu0 %v5650
    %5773 = vmatprep.subr.bf16.mxu0 0
    %5774 = vmatpush1.bf16.msra.mxu0 0
    %5775 = vmatprep.subr.bf16.mxu0 0
    %5776 = vmatpush1.bf16.msra.mxu0 0
    %5777 = vmatprep.subr.bf16.mxu0 0
    %5778 = vmatpush1.bf16.msra.mxu0 0
    %5779 = vmatprep.subr.bf16.mxu0 0
    %5780 = vmatpush1.bf16.msra.mxu0 0
    %5781 = vmatprep.subr.bf16.mxu0 0
    %5782 = vmatpush1.bf16.msra.mxu0 0
    %5783 = vmatprep.subr.bf16.mxu0 0
    %5784 = vmatpush1.bf16.msra.mxu0 0
    %5785 = vmatprep.subr.bf16.mxu0 0
    %5786 = vmatpush1.bf16.msra.mxu0 0
    %5787 = vmatprep.subr.bf16.mxu0 0
    %5788 = vmatpush1.bf16.msra.mxu0 0
    %5789 = vmatprep.subr.bf16.mxu0 0
    %5790 = vmatpush1.bf16.msra.mxu0 0
    %5791 = vmatprep.subr.bf16.mxu0 0
    %5792 = vmatpush1.bf16.msra.mxu0 0
    %5793 = vmatprep.subr.bf16.mxu0 0
    %5794 = vmatpush1.bf16.msra.mxu0 0
    %5795 = vmatprep.subr.bf16.mxu0 0
    %5796 = vmatpush1.bf16.msra.mxu0 0
    %5797 = vmatprep.mubr.bf16.mxu0 0
    %5798 = vmatmul.mubr.bf16.gmra.mrb[0].mxu0 %v5677
    %v5799 = vpop.f32.mrb[0].mxu0
    %v5800 = vadd.f32 0.0, %v5799
    %v5801 = vpop.f32.mrb[0].mxu0
    %v5802 = vadd.f32 0.0, %v5801
    %v5803 = vpop.f32.mrb[0].mxu0
    %v5804 = vadd.f32 0.0, %v5803
    %v5805 = vpop.f32.mrb[0].mxu0
    %v5806 = vadd.f32 0.0, %v5805
    %5807 = vdwg.mxu0
    %v5808 = vadd.f32 %v5518, %v5714
    %v5809 = vadd.f32 %v5519, %v5716
    %v5810 = vadd.f32 %v5520, %v5757
    %v5811 = vadd.f32 %v5521, %v5759
    %v5812 = vadd.f32 %v5522, %v5800
    %v5813 = vadd.f32 %v5523, %v5802
    %v5814 = vadd.f32 %v5524, %v5718
    %v5815 = vadd.f32 %v5525, %v5720
    %v5816 = vadd.f32 %v5526, %v5761
    %v5817 = vadd.f32 %v5527, %v5763
    %v5818 = vadd.f32 %v5528, %v5804
    %v5819 = vadd.f32 %v5529, %v5806
    %v5820 = vpack.c.bf16 %v2650, %v2098
    %s5821 = scalar_lea.vmem %s5, 2112
    %v5822 = vld [vmem:[%s5821] sm:$0xff]
    %v5823 = vld [vmem:[%s5821 + $0x8] sm:$0xff]
    %v5824 = vld [vmem:[%s5821 + $0x10] sm:$0xff]
    %v5825 = vld [vmem:[%s5821 + $0x18] sm:$0xff]
    %v5826 = vld [vmem:[%s5821 + $0x20] sm:$0xff]
    %v5827 = vld [vmem:[%s5821 + $0x28] sm:$0xff]
    %v5828 = vld [vmem:[%s5821 + $0x30] sm:$0xff]
    %v5829 = vld [vmem:[%s5821 + $0x38] sm:$0xff]
    %v5830 = vld [vmem:[%s5821 + $0x40] sm:$0xff]
    %v5831 = vld [vmem:[%s5821 + $0x48] sm:$0xff]
    %v5832 = vld [vmem:[%s5821 + $0x50] sm:$0xff]
    %v5833 = vld [vmem:[%s5821 + $0x58] sm:$0xff]
    %v5834 = vld [vmem:[%s5821 + $0x60] sm:$0xff]
    %v5835 = vld [vmem:[%s5821 + $0x68] sm:$0xff]
    %v5836 = vld [vmem:[%s5821 + $0x70] sm:$0xff]
    %v5837 = vld [vmem:[%s5821 + $0x78] sm:$0xff]
    %v5838 = vld [vmem:[%s5821 + $0x80] sm:$0xff]
    %v5839 = vld [vmem:[%s5821 + $0x88] sm:$0xff]
    %v5840 = vld [vmem:[%s5821 + $0x90] sm:$0xff]
    %v5841 = vld [vmem:[%s5821 + $0x98] sm:$0xff]
    %v5842 = vld [vmem:[%s5821 + $0xa0] sm:$0xff]
    %v5843 = vld [vmem:[%s5821 + $0xa8] sm:$0xff]
    %v5844 = vld [vmem:[%s5821 + $0xb0] sm:$0xff]
    %v5845 = vld [vmem:[%s5821 + $0xb8] sm:$0xff]
    %v5870 = vunpack.c.l.b16 %v5822
    %v5871 = vunpack.c.h.b16 %v5822
    %v5872 = vunpack.c.l.b16 %v5823
    %v5873 = vunpack.c.h.b16 %v5823
    %v5874 = vunpack.c.l.b16 %v5824
    %v5875 = vunpack.c.h.b16 %v5824
    %v5876 = vunpack.c.l.b16 %v5825
    %v5877 = vunpack.c.h.b16 %v5825
    %v5878 = vunpack.c.l.b16 %v5826
    %v5879 = vunpack.c.h.b16 %v5826
    %v5880 = vunpack.c.l.b16 %v5827
    %v5881 = vunpack.c.h.b16 %v5827
    %v5882 = vunpack.c.l.b16 %v5828
    %v5883 = vunpack.c.h.b16 %v5828
    %v5884 = vunpack.c.l.b16 %v5829
    %v5885 = vunpack.c.h.b16 %v5829
    %v5886 = vunpack.c.l.b16 %v5830
    %v5887 = vunpack.c.h.b16 %v5830
    %v5888 = vunpack.c.l.b16 %v5831
    %v5889 = vunpack.c.h.b16 %v5831
    %v5890 = vunpack.c.l.b16 %v5832
    %v5891 = vunpack.c.h.b16 %v5832
    %v5892 = vunpack.c.l.b16 %v5833
    %v5893 = vunpack.c.h.b16 %v5833
    %v5894 = vunpack.c.l.b16 %v5834
    %v5895 = vunpack.c.h.b16 %v5834
    %v5896 = vunpack.c.l.b16 %v5835
    %v5897 = vunpack.c.h.b16 %v5835
    %v5898 = vunpack.c.l.b16 %v5836
    %v5899 = vunpack.c.h.b16 %v5836
    %v5900 = vunpack.c.l.b16 %v5837
    %v5901 = vunpack.c.h.b16 %v5837
    %v5902 = vunpack.c.l.b16 %v5838
    %v5903 = vunpack.c.h.b16 %v5838
    %v5904 = vunpack.c.l.b16 %v5839
    %v5905 = vunpack.c.h.b16 %v5839
    %v5906 = vunpack.c.l.b16 %v5840
    %v5907 = vunpack.c.h.b16 %v5840
    %v5908 = vunpack.c.l.b16 %v5841
    %v5909 = vunpack.c.h.b16 %v5841
    %v5910 = vunpack.c.l.b16 %v5842
    %v5911 = vunpack.c.h.b16 %v5842
    %v5912 = vunpack.c.l.b16 %v5843
    %v5913 = vunpack.c.h.b16 %v5843
    %v5914 = vunpack.c.l.b16 %v5844
    %v5915 = vunpack.c.h.b16 %v5844
    %v5916 = vunpack.c.l.b16 %v5845
    %v5917 = vunpack.c.h.b16 %v5845
    %v5918 = vpack.c.b16 %v5876, %v5870
    %v5919 = vpack.c.b16 %v5877, %v5871
    %v5920 = vpack.c.b16 %v5878, %v5872
    %v5921 = vpack.c.b16 %v5879, %v5873
    %v5922 = vpack.c.b16 %v5880, %v5874
    %v5923 = vpack.c.b16 %v5881, %v5875
    %v5924 = vpack.c.b16 %v5888, %v5882
    %v5925 = vpack.c.b16 %v5889, %v5883
    %v5926 = vpack.c.b16 %v5890, %v5884
    %v5927 = vpack.c.b16 %v5891, %v5885
    %v5928 = vpack.c.b16 %v5892, %v5886
    %v5929 = vpack.c.b16 %v5893, %v5887
    %v5930 = vpack.c.b16 %v5900, %v5894
    %v5931 = vpack.c.b16 %v5901, %v5895
    %v5932 = vpack.c.b16 %v5902, %v5896
    %v5933 = vpack.c.b16 %v5903, %v5897
    %v5934 = vpack.c.b16 %v5904, %v5898
    %v5935 = vpack.c.b16 %v5905, %v5899
    %v5936 = vpack.c.b16 %v5912, %v5906
    %v5937 = vpack.c.b16 %v5913, %v5907
    %v5938 = vpack.c.b16 %v5914, %v5908
    %v5939 = vpack.c.b16 %v5915, %v5909
    %v5940 = vpack.c.b16 %v5916, %v5910
    %v5941 = vpack.c.b16 %v5917, %v5911
    %v5967 = vsel %vm100, %v5820, 0
    %5969 = vmatprep.subr.bf16.mxu0 %v5919
    %5970 = vmatpush1.bf16.msra.mxu0 %v5918
    %5971 = vmatprep.subr.bf16.mxu0 %v5925
    %5972 = vmatpush1.bf16.msra.mxu0 %v5924
    %5973 = vmatprep.subr.bf16.mxu0 %v5931
    %5974 = vmatpush1.bf16.msra.mxu0 %v5930
    %5975 = vmatprep.subr.bf16.mxu0 %v5937
    %5976 = vmatpush1.bf16.msra.mxu0 %v5936
    %5977 = vmatprep.subr.bf16.mxu0 0
    %5978 = vmatpush1.bf16.msra.mxu0 0
    %5979 = vmatprep.subr.bf16.mxu0 0
    %5980 = vmatpush1.bf16.msra.mxu0 0
    %5981 = vmatprep.subr.bf16.mxu0 0
    %5982 = vmatpush1.bf16.msra.mxu0 0
    %5983 = vmatprep.subr.bf16.mxu0 0
    %5984 = vmatpush1.bf16.msra.mxu0 0
    %5985 = vmatprep.subr.bf16.mxu0 0
    %5986 = vmatpush1.bf16.msra.mxu0 0
    %5987 = vmatprep.subr.bf16.mxu0 0
    %5988 = vmatpush1.bf16.msra.mxu0 0
    %5989 = vmatprep.subr.bf16.mxu0 0
    %5990 = vmatpush1.bf16.msra.mxu0 0
    %5991 = vmatprep.subr.bf16.mxu0 0
    %5992 = vmatpush1.bf16.msra.mxu0 0
    %5993 = vmatprep.subr.bf16.mxu0 0
    %5994 = vmatpush1.bf16.msra.mxu0 0
    %5995 = vmatprep.subr.bf16.mxu0 0
    %5996 = vmatpush1.bf16.msra.mxu0 0
    %5997 = vmatprep.subr.bf16.mxu0 0
    %5998 = vmatpush1.bf16.msra.mxu0 0
    %5999 = vmatprep.subr.bf16.mxu0 0
    %6000 = vmatpush1.bf16.msra.mxu0 0
    %6001 = vmatprep.mubr.bf16.mxu0 0
    %6002 = vmatmul.mubr.bf16.gmra.mrb[0].mxu0 %v5967
    %v6003 = vpop.f32.mrb[0].mxu0
    %v6004 = vadd.f32 0.0, %v6003
    %v6005 = vpop.f32.mrb[0].mxu0
    %v6006 = vadd.f32 0.0, %v6005
    %v6007 = vpop.f32.mrb[0].mxu0
    %v6008 = vadd.f32 0.0, %v6007
    %v6009 = vpop.f32.mrb[0].mxu0
    %v6010 = vadd.f32 0.0, %v6009
    %6011 = vdwg.mxu0
    %6012 = vmatprep.subr.bf16.mxu0 %v5921
    %6013 = vmatpush1.bf16.msra.mxu0 %v5920
    %6014 = vmatprep.subr.bf16.mxu0 %v5927
    %6015 = vmatpush1.bf16.msra.mxu0 %v5926
    %6016 = vmatprep.subr.bf16.mxu0 %v5933
    %6017 = vmatpush1.bf16.msra.mxu0 %v5932
    %6018 = vmatprep.subr.bf16.mxu0 %v5939
    %6019 = vmatpush1.bf16.msra.mxu0 %v5938
    %6020 = vmatprep.subr.bf16.mxu0 0
    %6021 = vmatpush1.bf16.msra.mxu0 0
    %6022 = vmatprep.subr.bf16.mxu0 0
    %6023 = vmatpush1.bf16.msra.mxu0 0
    %6024 = vmatprep.subr.bf16.mxu0 0
    %6025 = vmatpush1.bf16.msra.mxu0 0
    %6026 = vmatprep.subr.bf16.mxu0 0
    %6027 = vmatpush1.bf16.msra.mxu0 0
    %6028 = vmatprep.subr.bf16.mxu0 0
    %6029 = vmatpush1.bf16.msra.mxu0 0
    %6030 = vmatprep.subr.bf16.mxu0 0
    %6031 = vmatpush1.bf16.msra.mxu0 0
    %6032 = vmatprep.subr.bf16.mxu0 0
    %6033 = vmatpush1.bf16.msra.mxu0 0
    %6034 = vmatprep.subr.bf16.mxu0 0
    %6035 = vmatpush1.bf16.msra.mxu0 0
    %6036 = vmatprep.subr.bf16.mxu0 0
    %6037 = vmatpush1.bf16.msra.mxu0 0
    %6038 = vmatprep.subr.bf16.mxu0 0
    %6039 = vmatpush1.bf16.msra.mxu0 0
    %6040 = vmatprep.subr.bf16.mxu0 0
    %6041 = vmatpush1.bf16.msra.mxu0 0
    %6042 = vmatprep.subr.bf16.mxu0 0
    %6043 = vmatpush1.bf16.msra.mxu0 0
    %6044 = vmatprep.mubr.bf16.mxu0 0
    %6045 = vmatmul.mubr.bf16.gmra.mrb[0].mxu0 %v5967
    %v6046 = vpop.f32.mrb[0].mxu0
    %v6047 = vadd.f32 0.0, %v6046
    %v6048 = vpop.f32.mrb[0].mxu0
    %v6049 = vadd.f32 0.0, %v6048
    %v6050 = vpop.f32.mrb[0].mxu0
    %v6051 = vadd.f32 0.0, %v6050
    %v6052 = vpop.f32.mrb[0].mxu0
    %v6053 = vadd.f32 0.0, %v6052
    %6054 = vdwg.mxu0
    %6055 = vmatprep.subr.bf16.mxu0 %v5923
    %6056 = vmatpush1.bf16.msra.mxu0 %v5922
    %6057 = vmatprep.subr.bf16.mxu0 %v5929
    %6058 = vmatpush1.bf16.msra.mxu0 %v5928
    %6059 = vmatprep.subr.bf16.mxu0 %v5935
    %6060 = vmatpush1.bf16.msra.mxu0 %v5934
    %6061 = vmatprep.subr.bf16.mxu0 %v5941
    %6062 = vmatpush1.bf16.msra.mxu0 %v5940
    %6063 = vmatprep.subr.bf16.mxu0 0
    %6064 = vmatpush1.bf16.msra.mxu0 0
    %6065 = vmatprep.subr.bf16.mxu0 0
    %6066 = vmatpush1.bf16.msra.mxu0 0
    %6067 = vmatprep.subr.bf16.mxu0 0
    %6068 = vmatpush1.bf16.msra.mxu0 0
    %6069 = vmatprep.subr.bf16.mxu0 0
    %6070 = vmatpush1.bf16.msra.mxu0 0
    %6071 = vmatprep.subr.bf16.mxu0 0
    %6072 = vmatpush1.bf16.msra.mxu0 0
    %6073 = vmatprep.subr.bf16.mxu0 0
    %6074 = vmatpush1.bf16.msra.mxu0 0
    %6075 = vmatprep.subr.bf16.mxu0 0
    %6076 = vmatpush1.bf16.msra.mxu0 0
    %6077 = vmatprep.subr.bf16.mxu0 0
    %6078 = vmatpush1.bf16.msra.mxu0 0
    %6079 = vmatprep.subr.bf16.mxu0 0
    %6080 = vmatpush1.bf16.msra.mxu0 0
    %6081 = vmatprep.subr.bf16.mxu0 0
    %6082 = vmatpush1.bf16.msra.mxu0 0
    %6083 = vmatprep.subr.bf16.mxu0 0
    %6084 = vmatpush1.bf16.msra.mxu0 0
    %6085 = vmatprep.subr.bf16.mxu0 0
    %6086 = vmatpush1.bf16.msra.mxu0 0
    %6087 = vmatprep.mubr.bf16.mxu0 0
    %6088 = vmatmul.mubr.bf16.gmra.mrb[0].mxu0 %v5967
    %v6089 = vpop.f32.mrb[0].mxu0
    %v6090 = vadd.f32 0.0, %v6089
    %v6091 = vpop.f32.mrb[0].mxu0
    %v6092 = vadd.f32 0.0, %v6091
    %v6093 = vpop.f32.mrb[0].mxu0
    %v6094 = vadd.f32 0.0, %v6093
    %v6095 = vpop.f32.mrb[0].mxu0
    %v6096 = vadd.f32 0.0, %v6095
    %6097 = vdwg.mxu0
    %v6098 = vadd.f32 %v5808, %v6004
    %v6099 = vadd.f32 %v5809, %v6006
    %v6100 = vadd.f32 %v5810, %v6047
    %v6101 = vadd.f32 %v5811, %v6049
    %v6102 = vadd.f32 %v5812, %v6090
    %v6103 = vadd.f32 %v5813, %v6092
    %v6104 = vadd.f32 %v5814, %v6008
    %v6105 = vadd.f32 %v5815, %v6010
    %v6106 = vadd.f32 %v5816, %v6051
    %v6107 = vadd.f32 %v5817, %v6053
    %v6108 = vadd.f32 %v5818, %v6094
    %v6109 = vadd.f32 %v5819, %v6096
    %v6110 = vld [vmem:[%s6] sm:$0x3f]
    %v6112 = vlaneseq
    %v6113 = vshrl.u32 %v6112, 7
    %v6114 = vsub.s32 0, %v6113
    %v6115 = vrot.slane %v6110, %v6114
    %v6116 = vlaneseq
    %v6117 = vshrl.u32 %v6116, 7
    %v6118 = vsub.s32 1, %v6117
    %v6119 = vrot.slane %v6110, %v6118
    %v6120 = vlaneseq
    %v6121 = vshrl.u32 %v6120, 7
    %v6122 = vsub.s32 2, %v6121
    %v6123 = vrot.slane %v6110, %v6122
    %v6124 = vlaneseq
    %v6125 = vshrl.u32 %v6124, 7
    %v6126 = vsub.s32 3, %v6125
    %v6127 = vrot.slane %v6110, %v6126
    %v6128 = vlaneseq
    %v6129 = vshrl.u32 %v6128, 7
    %v6130 = vsub.s32 4, %v6129
    %v6131 = vrot.slane %v6110, %v6130
    %v6132 = vlaneseq
    %v6133 = vshrl.u32 %v6132, 7
    %v6134 = vsub.s32 5, %v6133
    %v6135 = vrot.slane %v6110, %v6134
    %v6142 = vadd.f32 %v6098, %v6115
    %v6143 = vadd.f32 %v6099, %v6119
    %v6144 = vadd.f32 %v6100, %v6123
    %v6145 = vadd.f32 %v6101, %v6127
    %v6146 = vadd.f32 %v6102, %v6131
    %v6147 = vadd.f32 %v6103, %v6135
    %v6148 = vadd.f32 %v6104, %v6115
    %v6149 = vadd.f32 %v6105, %v6119
    %v6150 = vadd.f32 %v6106, %v6123
    %v6151 = vadd.f32 %v6107, %v6127
    %v6152 = vadd.f32 %v6108, %v6131
    %v6153 = vadd.f32 %v6109, %v6135
    %v6154 = vrot.slane %v6142, 4
    %v6155 = vmax.f32 %v6142, %v6154
    %v6156 = vrot.slane %v6155, 2
    %v6157 = vmax.f32 %v6155, %v6156
    %v6158 = vrot.slane %v6157, 1
    %v6159 = vmax.f32 %v6157, %v6158
    %v6160 = vrot.slane %v6143, 4
    %v6161 = vmax.f32 %v6143, %v6160
    %v6162 = vrot.slane %v6161, 2
    %v6163 = vmax.f32 %v6161, %v6162
    %v6164 = vrot.slane %v6163, 1
    %v6165 = vmax.f32 %v6163, %v6164
    %v6166 = vrot.slane %v6144, 4
    %v6167 = vmax.f32 %v6144, %v6166
    %v6168 = vrot.slane %v6167, 2
    %v6169 = vmax.f32 %v6167, %v6168
    %v6170 = vrot.slane %v6169, 1
    %v6171 = vmax.f32 %v6169, %v6170
    %v6172 = vrot.slane %v6145, 4
    %v6173 = vmax.f32 %v6145, %v6172
    %v6174 = vrot.slane %v6173, 2
    %v6175 = vmax.f32 %v6173, %v6174
    %v6176 = vrot.slane %v6175, 1
    %v6177 = vmax.f32 %v6175, %v6176
    %v6178 = vrot.slane %v6146, 4
    %v6179 = vmax.f32 %v6146, %v6178
    %v6180 = vrot.slane %v6179, 2
    %v6181 = vmax.f32 %v6179, %v6180
    %v6182 = vrot.slane %v6181, 1
    %v6183 = vmax.f32 %v6181, %v6182
    %v6184 = vrot.slane %v6147, 4
    %v6185 = vmax.f32 %v6147, %v6184
    %v6186 = vrot.slane %v6185, 2
    %v6187 = vmax.f32 %v6185, %v6186
    %v6188 = vrot.slane %v6187, 1
    %v6189 = vmax.f32 %v6187, %v6188
    %v6190 = vrot.slane %v6148, 4
    %v6191 = vmax.f32 %v6148, %v6190
    %v6192 = vrot.slane %v6191, 2
    %v6193 = vmax.f32 %v6191, %v6192
    %v6194 = vrot.slane %v6193, 1
    %v6195 = vmax.f32 %v6193, %v6194
    %v6196 = vrot.slane %v6149, 4
    %v6197 = vmax.f32 %v6149, %v6196
    %v6198 = vrot.slane %v6197, 2
    %v6199 = vmax.f32 %v6197, %v6198
    %v6200 = vrot.slane %v6199, 1
    %v6201 = vmax.f32 %v6199, %v6200
    %v6202 = vrot.slane %v6150, 4
    %v6203 = vmax.f32 %v6150, %v6202
    %v6204 = vrot.slane %v6203, 2
    %v6205 = vmax.f32 %v6203, %v6204
    %v6206 = vrot.slane %v6205, 1
    %v6207 = vmax.f32 %v6205, %v6206
    %v6208 = vrot.slane %v6151, 4
    %v6209 = vmax.f32 %v6151, %v6208
    %v6210 = vrot.slane %v6209, 2
    %v6211 = vmax.f32 %v6209, %v6210
    %v6212 = vrot.slane %v6211, 1
    %v6213 = vmax.f32 %v6211, %v6212
    %v6214 = vrot.slane %v6152, 4
    %v6215 = vmax.f32 %v6152, %v6214
    %v6216 = vrot.slane %v6215, 2
    %v6217 = vmax.f32 %v6215, %v6216
    %v6218 = vrot.slane %v6217, 1
    %v6219 = vmax.f32 %v6217, %v6218
    %v6220 = vrot.slane %v6153, 4
    %v6221 = vmax.f32 %v6153, %v6220
    %v6222 = vrot.slane %v6221, 2
    %v6223 = vmax.f32 %v6221, %v6222
    %v6224 = vrot.slane %v6223, 1
    %v6225 = vmax.f32 %v6223, %v6224
    %v6226 = vsub.f32 %v6142, %v6159
    %v6227 = vsub.f32 %v6143, %v6165
    %v6228 = vsub.f32 %v6144, %v6171
    %v6229 = vsub.f32 %v6145, %v6177
    %v6230 = vsub.f32 %v6146, %v6183
    %v6231 = vsub.f32 %v6147, %v6189
    %v6232 = vsub.f32 %v6148, %v6195
    %v6233 = vsub.f32 %v6149, %v6201
    %v6234 = vsub.f32 %v6150, %v6207
    %v6235 = vsub.f32 %v6151, %v6213
    %v6236 = vsub.f32 %v6152, %v6219
    %v6237 = vsub.f32 %v6153, %v6225
    %v6238 = vmul.f32 %v6226, 1.442695
    %v6239 = vpow.pop %v6238
    %v6240 = vmul.f32 %v6227, 1.442695
    %v6241 = vpow.pop %v6240
    %v6242 = vmul.f32 %v6228, 1.442695
    %v6243 = vpow.pop %v6242
    %v6244 = vmul.f32 %v6229, 1.442695
    %v6245 = vpow.pop %v6244
    %v6246 = vmul.f32 %v6230, 1.442695
    %v6247 = vpow.pop %v6246
    %v6248 = vmul.f32 %v6231, 1.442695
    %v6249 = vpow.pop %v6248
    %v6250 = vmul.f32 %v6232, 1.442695
    %v6251 = vpow.pop %v6250
    %v6252 = vmul.f32 %v6233, 1.442695
    %v6253 = vpow.pop %v6252
    %v6254 = vmul.f32 %v6234, 1.442695
    %v6255 = vpow.pop %v6254
    %v6256 = vmul.f32 %v6235, 1.442695
    %v6257 = vpow.pop %v6256
    %v6258 = vmul.f32 %v6236, 1.442695
    %v6259 = vpow.pop %v6258
    %v6260 = vmul.f32 %v6237, 1.442695
    %v6261 = vpow.pop %v6260
    %v6262 = vrot.slane %v6239, 4
    %v6263 = vadd.f32 %v6239, %v6262
    %v6264 = vrot.slane %v6263, 2
    %v6265 = vadd.f32 %v6263, %v6264
    %v6266 = vrot.slane %v6265, 1
    %v6267 = vadd.f32 %v6265, %v6266
    %v6268 = vrot.slane %v6241, 4
    %v6269 = vadd.f32 %v6241, %v6268
    %v6270 = vrot.slane %v6269, 2
    %v6271 = vadd.f32 %v6269, %v6270
    %v6272 = vrot.slane %v6271, 1
    %v6273 = vadd.f32 %v6271, %v6272
    %v6274 = vrot.slane %v6243, 4
    %v6275 = vadd.f32 %v6243, %v6274
    %v6276 = vrot.slane %v6275, 2
    %v6277 = vadd.f32 %v6275, %v6276
    %v6278 = vrot.slane %v6277, 1
    %v6279 = vadd.f32 %v6277, %v6278
    %v6280 = vrot.slane %v6245, 4
    %v6281 = vadd.f32 %v6245, %v6280
    %v6282 = vrot.slane %v6281, 2
    %v6283 = vadd.f32 %v6281, %v6282
    %v6284 = vrot.slane %v6283, 1
    %v6285 = vadd.f32 %v6283, %v6284
    %v6286 = vrot.slane %v6247, 4
    %v6287 = vadd.f32 %v6247, %v6286
    %v6288 = vrot.slane %v6287, 2
    %v6289 = vadd.f32 %v6287, %v6288
    %v6290 = vrot.slane %v6289, 1
    %v6291 = vadd.f32 %v6289, %v6290
    %v6292 = vrot.slane %v6249, 4
    %v6293 = vadd.f32 %v6249, %v6292
    %v6294 = vrot.slane %v6293, 2
    %v6295 = vadd.f32 %v6293, %v6294
    %v6296 = vrot.slane %v6295, 1
    %v6297 = vadd.f32 %v6295, %v6296
    %v6298 = vrot.slane %v6251, 4
    %v6299 = vadd.f32 %v6251, %v6298
    %v6300 = vrot.slane %v6299, 2
    %v6301 = vadd.f32 %v6299, %v6300
    %v6302 = vrot.slane %v6301, 1
    %v6303 = vadd.f32 %v6301, %v6302
    %v6304 = vrot.slane %v6253, 4
    %v6305 = vadd.f32 %v6253, %v6304
    %v6306 = vrot.slane %v6305, 2
    %v6307 = vadd.f32 %v6305, %v6306
    %v6308 = vrot.slane %v6307, 1
    %v6309 = vadd.f32 %v6307, %v6308
    %v6310 = vrot.slane %v6255, 4
    %v6311 = vadd.f32 %v6255, %v6310
    %v6312 = vrot.slane %v6311, 2
    %v6313 = vadd.f32 %v6311, %v6312
    %v6314 = vrot.slane %v6313, 1
    %v6315 = vadd.f32 %v6313, %v6314
    %v6316 = vrot.slane %v6257, 4
    %v6317 = vadd.f32 %v6257, %v6316
    %v6318 = vrot.slane %v6317, 2
    %v6319 = vadd.f32 %v6317, %v6318
    %v6320 = vrot.slane %v6319, 1
    %v6321 = vadd.f32 %v6319, %v6320
    %v6322 = vrot.slane %v6259, 4
    %v6323 = vadd.f32 %v6259, %v6322
    %v6324 = vrot.slane %v6323, 2
    %v6325 = vadd.f32 %v6323, %v6324
    %v6326 = vrot.slane %v6325, 1
    %v6327 = vadd.f32 %v6325, %v6326
    %v6328 = vrot.slane %v6261, 4
    %v6329 = vadd.f32 %v6261, %v6328
    %v6330 = vrot.slane %v6329, 2
    %v6331 = vadd.f32 %v6329, %v6330
    %v6332 = vrot.slane %v6331, 1
    %v6333 = vadd.f32 %v6331, %v6332
    %v6334 = vrcp.pop %v6267
    %v6335 = vrcp.pop %v6273
    %v6336 = vrcp.pop %v6279
    %v6337 = vrcp.pop %v6285
    %v6338 = vrcp.pop %v6291
    %v6339 = vrcp.pop %v6297
    %v6340 = vrcp.pop %v6303
    %v6341 = vrcp.pop %v6309
    %v6342 = vrcp.pop %v6315
    %v6343 = vrcp.pop %v6321
    %v6344 = vrcp.pop %v6327
    %v6345 = vrcp.pop %v6333
    %v6346 = vmul.f32 %v6239, %v6334
    %v6347 = vmul.f32 %v6241, %v6335
    %v6348 = vmul.f32 %v6243, %v6336
    %v6349 = vmul.f32 %v6245, %v6337
    %v6350 = vmul.f32 %v6247, %v6338
    %v6351 = vmul.f32 %v6249, %v6339
    %v6352 = vmul.f32 %v6251, %v6340
    %v6353 = vmul.f32 %v6253, %v6341
    %v6354 = vmul.f32 %v6255, %v6342
    %v6355 = vmul.f32 %v6257, %v6343
    %v6356 = vmul.f32 %v6259, %v6344
    %v6357 = vmul.f32 %v6261, %v6345
    %v6358 = vld [vmem:[%s4] sm:$0xff]
    %v6359 = vld [vmem:[%s4 + $0x8] sm:$0xff]
    %v6360 = vld [vmem:[%s4 + $0x10] sm:$0xff]
    %v6361 = vld [vmem:[%s4 + $0x18] sm:$0xff]
    %v6362 = vld [vmem:[%s4 + $0x20] sm:$0xff]
    %v6363 = vld [vmem:[%s4 + $0x28] sm:$0xff]
    %v6364 = vld [vmem:[%s4 + $0x30] sm:$0xff]
    %v6365 = vld [vmem:[%s4 + $0x38] sm:$0xff]
    %v6366 = vld [vmem:[%s4 + $0x40] sm:$0xff]
    %v6367 = vld [vmem:[%s4 + $0x48] sm:$0xff]
    %v6368 = vld [vmem:[%s4 + $0x50] sm:$0xff]
    %v6369 = vld [vmem:[%s4 + $0x58] sm:$0xff]
    %v6370 = vadd.f32 %v6358, %v6346
    %v6371 = vadd.f32 %v6359, %v6347
    %v6372 = vadd.f32 %v6360, %v6348
    %v6373 = vadd.f32 %v6361, %v6349
    %v6374 = vadd.f32 %v6362, %v6350
    %v6375 = vadd.f32 %v6363, %v6351
    %v6376 = vadd.f32 %v6364, %v6352
    %v6377 = vadd.f32 %v6365, %v6353
    %v6378 = vadd.f32 %v6366, %v6354
    %v6379 = vadd.f32 %v6367, %v6355
    %v6380 = vadd.f32 %v6368, %v6356
    %v6381 = vadd.f32 %v6369, %v6357
    %v6382 = vadd.f32 %v6370, %v6371
    %v6383 = vadd.f32 %v6382, %v6372
    %v6384 = vadd.f32 %v6383, %v6373
    %v6385 = vadd.f32 %v6384, %v6374
    %v6386 = vadd.f32 %v6385, %v6375
    %6387 = vadd.xlane.f32.xlu0 %v6386
    %v6388 = vpop.xlane.xlu0 %6387
    %v6389 = vadd.f32 %v6376, %v6377
    %v6390 = vadd.f32 %v6389, %v6378
    %v6391 = vadd.f32 %v6390, %v6379
    %v6392 = vadd.f32 %v6391, %v6380
    %v6393 = vadd.f32 %v6392, %v6381
    %6394 = vadd.xlane.f32.xlu0 %v6393
    %v6395 = vpop.xlane.xlu0 %6394
    %v6396 = vrcp.pop 768.0
    %v6397 = vmul.f32 %v6388, %v6396
    %v6398 = vmul.f32 %v6395, %v6396
    %v6399 = vsub.f32 %v6370, %v6397
    %v6400 = vsub.f32 %v6371, %v6397
    %v6401 = vsub.f32 %v6372, %v6397
    %v6402 = vsub.f32 %v6373, %v6397
    %v6403 = vsub.f32 %v6374, %v6397
    %v6404 = vsub.f32 %v6375, %v6397
    %v6405 = vsub.f32 %v6376, %v6398
    %v6406 = vsub.f32 %v6377, %v6398
    %v6407 = vsub.f32 %v6378, %v6398
    %v6408 = vsub.f32 %v6379, %v6398
    %v6409 = vsub.f32 %v6380, %v6398
    %v6410 = vsub.f32 %v6381, %v6398
    %v6411 = vmul.f32 %v6399, %v6399
    %v6412 = vmul.f32 %v6400, %v6400
    %v6413 = vmul.f32 %v6401, %v6401
    %v6414 = vmul.f32 %v6402, %v6402
    %v6415 = vmul.f32 %v6403, %v6403
    %v6416 = vmul.f32 %v6404, %v6404
    %v6417 = vmul.f32 %v6405, %v6405
    %v6418 = vmul.f32 %v6406, %v6406
    %v6419 = vmul.f32 %v6407, %v6407
    %v6420 = vmul.f32 %v6408, %v6408
    %v6421 = vmul.f32 %v6409, %v6409
    %v6422 = vmul.f32 %v6410, %v6410
    %v6423 = vadd.f32 %v6411, %v6412
    %v6424 = vadd.f32 %v6423, %v6413
    %v6425 = vadd.f32 %v6424, %v6414
    %v6426 = vadd.f32 %v6425, %v6415
    %v6427 = vadd.f32 %v6426, %v6416
    %6428 = vadd.xlane.f32.xlu0 %v6427
    %v6429 = vpop.xlane.xlu0 %6428
    %v6430 = vadd.f32 %v6417, %v6418
    %v6431 = vadd.f32 %v6430, %v6419
    %v6432 = vadd.f32 %v6431, %v6420
    %v6433 = vadd.f32 %v6432, %v6421
    %v6434 = vadd.f32 %v6433, %v6422
    %6435 = vadd.xlane.f32.xlu0 %v6434
    %v6436 = vpop.xlane.xlu0 %6435
    %v6437 = vmul.f32 %v6429, %v6396
    %v6438 = vmul.f32 %v6436, %v6396
    %v6439 = vadd.f32 %v6437, 1e-05
    %v6440 = vadd.f32 %v6438, 1e-05
    %v6441 = vrsqrt.pop %v6439
    %v6442 = vrsqrt.pop %v6440
    %v6443 = vmul.f32 %v6399, %v6441
    %v6444 = vmul.f32 %v6400, %v6441
    %v6445 = vmul.f32 %v6401, %v6441
    %v6446 = vmul.f32 %v6402, %v6441
    %v6447 = vmul.f32 %v6403, %v6441
    %v6448 = vmul.f32 %v6404, %v6441
    %v6449 = vmul.f32 %v6405, %v6442
    %v6450 = vmul.f32 %v6406, %v6442
    %v6451 = vmul.f32 %v6407, %v6442
    %v6452 = vmul.f32 %v6408, %v6442
    %v6453 = vmul.f32 %v6409, %v6442
    %v6454 = vmul.f32 %v6410, %v6442
    %6455 = vst [vmem:[#allocation2] sm:$0xff] %v6443
    %6456 = vst [vmem:[#allocation2 + $0x8] sm:$0xff] %v6444
    %6457 = vst [vmem:[#allocation2 + $0x10] sm:$0xff] %v6445
    %6458 = vst [vmem:[#allocation2 + $0x18] sm:$0xff] %v6446
    %6459 = vst [vmem:[#allocation2 + $0x20] sm:$0xff] %v6447
    %6460 = vst [vmem:[#allocation2 + $0x28] sm:$0xff] %v6448
    %6461 = vst [vmem:[#allocation2 + $0x30] sm:$0xff] %v6449
    %6462 = vst [vmem:[#allocation2 + $0x38] sm:$0xff] %v6450
    %6463 = vst [vmem:[#allocation2 + $0x40] sm:$0xff] %v6451
    %6464 = vst [vmem:[#allocation2 + $0x48] sm:$0xff] %v6452
    %6465 = vst [vmem:[#allocation2 + $0x50] sm:$0xff] %v6453
    %6466 = vst [vmem:[#allocation2 + $0x58] sm:$0xff] %v6454
    // Predicated region
    $region30: #{_forward_self.3} parent=1 // pred_check
      _
    $region31: #{_forward_self.3} parent=1 // pred_check_branch
      %6468 = sbr.rel (0) target = $region33
    $region32: #{_forward_self.3} parent=1 // pred_region
      %s6470 = ssub.s32 1536, 1536
      %6471 = vsyncadd [#allocation3], %s6470
      %s6472 = sshll.u32 [#allocation2], 4
      %s6473 = int_to_ptr.vmem [resolvable:$true] %s6472
      %6478 = dma.vmem_to_hbm [thread:$0]  %s6473, 1536, %s7, [#allocation3], 768, 768, 48
    $region33: #{_forward_self.3} parent=1 // pred_fallthru
      _
    // Predicated region
    $region34: #{_forward_self.3} parent=1 // pred_check
      _
    $region35: #{_forward_self.3} parent=1 // pred_check_branch
      %6480 = sbr.rel (0) target = $region37
    $region36: #{_forward_self.3} parent=1 // pred_region
      %6481 = dma.done [#allocation3], 1536
    $region37: #{_forward_self.3} parent=1 // pred_fallthru
      _
    %6482 = vsyncpa [#allocation3], 1

// kernel: _forward_self.2
$region0: #{_forward_self.2}
  #allocation0 [shape = 'u32[]', space=smem, size = 0x4, offset = 0x4, fixed_abs, tag = 'smem constant byte address 0x4 - core index']
  #allocation1 [shape = 'u32[144,128]{1,0:T(1,128)}', space=vmem, size = 0x12000, scoped, tag = 'internal scratch']
  %s0 = inlined_call_operand.hbm [shape: f32[16,768], index: 0, kind: input, shape index: {}]
  %s1 = inlined_call_operand.hbm [shape: bf16[2304,768], index: 1, kind: input, shape index: {}]
  %s2 = inlined_call_operand.vmem [shape: bf16[16,2304], index: 2, kind: output, shape index: {}]
  %s3 = sld [smem:[#allocation0]]
  $region26: #{_forward_self.2} parent=0
    _
  %s5 = ssub.s32 1, %s3
  %s6 = scalar_select 0, %s5, %s3
  $region1: #{_forward_self.2} parent=0
    #allocation2 [shape = 'u8[49152]{0}', space=vmem, size = 0xc000, scoped, tag = 'input window, operand 0, single buffered']
    #allocation3 [shape = 's32[1]{0}', space=sflag, size = 0x4, scoped, tag = 'scoped memory for _forward_self.2']
    #allocation4 [shape = 'u8[3538944]{0}', space=vmem, size = 0x360000, scoped, tag = 'input window, operand 1, single buffered']
    #allocation5 [shape = 's32[1]{0}', space=sflag, size = 0x4, scoped, tag = 'scoped memory for _forward_self.2']
    %7 = vsyncpa [#allocation3], 0
    %8 = vsyncpa [#allocation5], 0
    // Predicated region
    $region2: #{_forward_self.2} parent=1 // pred_check
      _
    $region3: #{_forward_self.2} parent=1 // pred_check_branch
      %10 = sbr.rel (0) target = $region5
    $region4: #{_forward_self.2} parent=1 // pred_region
      %s12 = ssub.s32 1536, 1536
      %13 = vsyncadd [#allocation3], %s12
      %s14 = sshll.u32 [#allocation2], 4
      %s15 = int_to_ptr.vmem [resolvable:$true] %s14
      %20 = dma.hbm_to_vmem [thread:$0]  %s0, 1536, %s15, [#allocation3], 768, 768, 48
    $region5: #{_forward_self.2} parent=1 // pred_fallthru
      _
    // Predicated region
    $region6: #{_forward_self.2} parent=1 // pred_check
      _
    $region7: #{_forward_self.2} parent=1 // pred_check_branch
      %22 = sbr.rel (0) target = $region9
    $region8: #{_forward_self.2} parent=1 // pred_region
      %s24 = ssub.s32 110592, 110592
      %25 = vsyncadd [#allocation5], %s24
      %s26 = sshll.u32 [#allocation4], 4
      %s27 = int_to_ptr.vmem [resolvable:$true] %s26
      %32 = dma.hbm_to_vmem [thread:$0]  %s1, 110592, %s27, [#allocation5], 384, 384, 24
    $region9: #{_forward_self.2} parent=1 // pred_fallthru
      _
    // Predicated region
    $region10: #{_forward_self.2} parent=1 // pred_check
      _
    $region11: #{_forward_self.2} parent=1 // pred_check_branch
      %34 = sbr.rel (0) target = $region13
    $region12: #{_forward_self.2} parent=1 // pred_region
      %35 = dma.done [#allocation3], 1536
    $region13: #{_forward_self.2} parent=1 // pred_fallthru
      _
    // Predicated region
    $region14: #{_forward_self.2} parent=1 // pred_check
      _
    $region15: #{_forward_self.2} parent=1 // pred_check_branch
      %37 = sbr.rel (0) target = $region17
    $region16: #{_forward_self.2} parent=1 // pred_region
      %38 = dma.done [#allocation5], 110592
    $region17: #{_forward_self.2} parent=1 // pred_fallthru
      _
    %v39 = vld [vmem:[#allocation2] sm:$0xff]
    %v40 = vld [vmem:[#allocation2 + $0x8] sm:$0xff]
    %v41 = vld [vmem:[#allocation2 + $0x10] sm:$0xff]
    %v42 = vld [vmem:[#allocation2 + $0x18] sm:$0xff]
    %v43 = vld [vmem:[#allocation2 + $0x20] sm:$0xff]
    %v44 = vld [vmem:[#allocation2 + $0x28] sm:$0xff]
    %v45 = vld [vmem:[#allocation2 + $0x30] sm:$0xff]
    %v46 = vld [vmem:[#allocation2 + $0x38] sm:$0xff]
    %v47 = vld [vmem:[#allocation2 + $0x40] sm:$0xff]
    %v48 = vld [vmem:[#allocation2 + $0x48] sm:$0xff]
    %v49 = vld [vmem:[#allocation2 + $0x50] sm:$0xff]
    %v50 = vld [vmem:[#allocation2 + $0x58] sm:$0xff]
    %v51 = vpack.c.bf16 %v45, %v39
    %v52 = vpack.c.bf16 %v46, %v40
    %v53 = vpack.c.bf16 %v47, %v41
    %v54 = vpack.c.bf16 %v48, %v42
    %v55 = vpack.c.bf16 %v49, %v43
    %v56 = vpack.c.bf16 %v50, %v44
    %v57 = vld [vmem:[#allocation4] sm:$0xff]
    %v58 = vld [vmem:[#allocation4 + $0x8] sm:$0xff]
    %v59 = vld [vmem:[#allocation4 + $0x10] sm:$0xff]
    %v60 = vld [vmem:[#allocation4 + $0x18] sm:$0xff]
    %v61 = vld [vmem:[#allocation4 + $0x20] sm:$0xff]
    %v62 = vld [vmem:[#allocation4 + $0x28] sm:$0xff]
    %v63 = vld [vmem:[#allocation4 + $0x30] sm:$0xff]
    %v64 = vld [vmem:[#allocation4 + $0x38] sm:$0xff]
    %v65 = vld [vmem:[#allocation4 + $0x40] sm:$0xff]
    %v66 = vld [vmem:[#allocation4 + $0x48] sm:$0xff]
    %v67 = vld [vmem:[#allocation4 + $0x50] sm:$0xff]
    %v68 = vld [vmem:[#allocation4 + $0x58] sm:$0xff]
    %v69 = vld [vmem:[#allocation4 + $0x60] sm:$0xff]
    %v70 = vld [vmem:[#allocation4 + $0x68] sm:$0xff]
    %v71 = vld [vmem:[#allocation4 + $0x70] sm:$0xff]
    %v72 = vld [vmem:[#allocation4 + $0x78] sm:$0xff]
    %v73 = vld [vmem:[#allocation4 + $0x80] sm:$0xff]
    %v74 = vld [vmem:[#allocation4 + $0x88] sm:$0xff]
    %v75 = vld [vmem:[#allocation4 + $0x90] sm:$0xff]
    %v76 = vld [vmem:[#allocation4 + $0x98] sm:$0xff]
    %v77 = vld [vmem:[#allocation4 + $0xa0] sm:$0xff]
    %v78 = vld [vmem:[#allocation4 + $0xa8] sm:$0xff]
    %v79 = vld [vmem:[#allocation4 + $0xb0] sm:$0xff]
    %v80 = vld [vmem:[#allocation4 + $0xb8] sm:$0xff]
    %v81 = vld [vmem:[#allocation4 + $0xc0] sm:$0xff]
    %v82 = vld [vmem:[#allocation4 + $0xc8] sm:$0xff]
    %v83 = vld [vmem:[#allocation4 + $0xd0] sm:$0xff]
    %v84 = vld [vmem:[#allocation4 + $0xd8] sm:$0xff]
    %v85 = vld [vmem:[#allocation4 + $0xe0] sm:$0xff]
    %v86 = vld [vmem:[#allocation4 + $0xe8] sm:$0xff]
    %v87 = vld [vmem:[#allocation4 + $0xf0] sm:$0xff]
    %v88 = vld [vmem:[#allocation4 + $0xf8] sm:$0xff]
    %v89 = vld [vmem:[#allocation4 + $0x100] sm:$0xff]
    %v90 = vld [vmem:[#allocation4 + $0x108] sm:$0xff]
    %v91 = vld [vmem:[#allocation4 + $0x110] sm:$0xff]
    %v92 = vld [vmem:[#allocation4 + $0x118] sm:$0xff]
    %v93 = vld [vmem:[#allocation4 + $0x120] sm:$0xff]
    %v94 = vld [vmem:[#allocation4 + $0x128] sm:$0xff]
    %v95 = vld [vmem:[#allocation4 + $0x130] sm:$0xff]
    %v96 = vld [vmem:[#allocation4 + $0x138] sm:$0xff]
    %v97 = vld [vmem:[#allocation4 + $0x140] sm:$0xff]
    %v98 = vld [vmem:[#allocation4 + $0x148] sm:$0xff]
    %v99 = vld [vmem:[#allocation4 + $0x150] sm:$0xff]
    %v100 = vld [vmem:[#allocation4 + $0x158] sm:$0xff]
    %v101 = vld [vmem:[#allocation4 + $0x160] sm:$0xff]
    %v102 = vld [vmem:[#allocation4 + $0x168] sm:$0xff]
    %v103 = vld [vmem:[#allocation4 + $0x170] sm:$0xff]
    %v104 = vld [vmem:[#allocation4 + $0x178] sm:$0xff]
    %v105 = vld [vmem:[#allocation4 + $0x180] sm:$0xff]
    %v106 = vld [vmem:[#allocation4 + $0x188] sm:$0xff]
    %v107 = vld [vmem:[#allocation4 + $0x190] sm:$0xff]
    %v108 = vld [vmem:[#allocation4 + $0x198] sm:$0xff]
    %v109 = vld [vmem:[#allocation4 + $0x1a0] sm:$0xff]
    %v110 = vld [vmem:[#allocation4 + $0x1a8] sm:$0xff]
    %v111 = vld [vmem:[#allocation4 + $0x1b0] sm:$0xff]
    %v112 = vld [vmem:[#allocation4 + $0x1b8] sm:$0xff]
    %v113 = vld [vmem:[#allocation4 + $0x1c0] sm:$0xff]
    %v114 = vld [vmem:[#allocation4 + $0x1c8] sm:$0xff]
    %v115 = vld [vmem:[#allocation4 + $0x1d0] sm:$0xff]
    %v116 = vld [vmem:[#allocation4 + $0x1d8] sm:$0xff]
    %v117 = vld [vmem:[#allocation4 + $0x1e0] sm:$0xff]
    %v118 = vld [vmem:[#allocation4 + $0x1e8] sm:$0xff]
    %v119 = vld [vmem:[#allocation4 + $0x1f0] sm:$0xff]
    %v120 = vld [vmem:[#allocation4 + $0x1f8] sm:$0xff]
    %v121 = vld [vmem:[#allocation4 + $0x200] sm:$0xff]
    %v122 = vld [vmem:[#allocation4 + $0x208] sm:$0xff]
    %v123 = vld [vmem:[#allocation4 + $0x210] sm:$0xff]
    %v124 = vld [vmem:[#allocation4 + $0x218] sm:$0xff]
    %v125 = vld [vmem:[#allocation4 + $0x220] sm:$0xff]
    %v126 = vld [vmem:[#allocation4 + $0x228] sm:$0xff]
    %v127 = vld [vmem:[#allocation4 + $0x230] sm:$0xff]
    %v128 = vld [vmem:[#allocation4 + $0x238] sm:$0xff]
    %v129 = vld [vmem:[#allocation4 + $0x240] sm:$0xff]
    %v130 = vld [vmem:[#allocation4 + $0x248] sm:$0xff]
    %v131 = vld [vmem:[#allocation4 + $0x250] sm:$0xff]
    %v132 = vld [vmem:[#allocation4 + $0x258] sm:$0xff]
    %v133 = vld [vmem:[#allocation4 + $0x260] sm:$0xff]
    %v134 = vld [vmem:[#allocation4 + $0x268] sm:$0xff]
    %v135 = vld [vmem:[#allocation4 + $0x270] sm:$0xff]
    %v136 = vld [vmem:[#allocation4 + $0x278] sm:$0xff]
    %v137 = vld [vmem:[#allocation4 + $0x280] sm:$0xff]
    %v138 = vld [vmem:[#allocation4 + $0x288] sm:$0xff]
    %v139 = vld [vmem:[#allocation4 + $0x290] sm:$0xff]
    %v140 = vld [vmem:[#allocation4 + $0x298] sm:$0xff]
    %v141 = vld [vmem:[#allocation4 + $0x2a0] sm:$0xff]
    %v142 = vld [vmem:[#allocation4 + $0x2a8] sm:$0xff]
    %v143 = vld [vmem:[#allocation4 + $0x2b0] sm:$0xff]
    %v144 = vld [vmem:[#allocation4 + $0x2b8] sm:$0xff]
    %v145 = vld [vmem:[#allocation4 + $0x2c0] sm:$0xff]
    %v146 = vld [vmem:[#allocation4 + $0x2c8] sm:$0xff]
    %v147 = vld [vmem:[#allocation4 + $0x2d0] sm:$0xff]
    %v148 = vld [vmem:[#allocation4 + $0x2d8] sm:$0xff]
    %v149 = vld [vmem:[#allocation4 + $0x2e0] sm:$0xff]
    %v150 = vld [vmem:[#allocation4 + $0x2e8] sm:$0xff]
    %v151 = vld [vmem:[#allocation4 + $0x2f0] sm:$0xff]
    %v152 = vld [vmem:[#allocation4 + $0x2f8] sm:$0xff]
    %v153 = vld [vmem:[#allocation4 + $0x300] sm:$0xff]
    %v154 = vld [vmem:[#allocation4 + $0x308] sm:$0xff]
    %v155 = vld [vmem:[#allocation4 + $0x310] sm:$0xff]
    %v156 = vld [vmem:[#allocation4 + $0x318] sm:$0xff]
    %v157 = vld [vmem:[#allocation4 + $0x320] sm:$0xff]
    %v158 = vld [vmem:[#allocation4 + $0x328] sm:$0xff]
    %v159 = vld [vmem:[#allocation4 + $0x330] sm:$0xff]
    %v160 = vld [vmem:[#allocation4 + $0x338] sm:$0xff]
    %v161 = vld [vmem:[#allocation4 + $0x340] sm:$0xff]
    %v162 = vld [vmem:[#allocation4 + $0x348] sm:$0xff]
    %v163 = vld [vmem:[#allocation4 + $0x350] sm:$0xff]
    %v164 = vld [vmem:[#allocation4 + $0x358] sm:$0xff]
    %v165 = vld [vmem:[#allocation4 + $0x360] sm:$0xff]
    %v166 = vld [vmem:[#allocation4 + $0x368] sm:$0xff]
    %v167 = vld [vmem:[#allocation4 + $0x370] sm:$0xff]
    %v168 = vld [vmem:[#allocation4 + $0x378] sm:$0xff]
    %v169 = vld [vmem:[#allocation4 + $0x380] sm:$0xff]
    %v170 = vld [vmem:[#allocation4 + $0x388] sm:$0xff]
    %v171 = vld [vmem:[#allocation4 + $0x390] sm:$0xff]
    %v172 = vld [vmem:[#allocation4 + $0x398] sm:$0xff]
    %v173 = vld [vmem:[#allocation4 + $0x3a0] sm:$0xff]
    %v174 = vld [vmem:[#allocation4 + $0x3a8] sm:$0xff]
    %v175 = vld [vmem:[#allocation4 + $0x3b0] sm:$0xff]
    %v176 = vld [vmem:[#allocation4 + $0x3b8] sm:$0xff]
    %v177 = vld [vmem:[#allocation4 + $0x3c0] sm:$0xff]
    %v178 = vld [vmem:[#allocation4 + $0x3c8] sm:$0xff]
    %v179 = vld [vmem:[#allocation4 + $0x3d0] sm:$0xff]
    %v180 = vld [vmem:[#allocation4 + $0x3d8] sm:$0xff]
    %v181 = vld [vmem:[#allocation4 + $0x3e0] sm:$0xff]
    %v182 = vld [vmem:[#allocation4 + $0x3e8] sm:$0xff]
    %v183 = vld [vmem:[#allocation4 + $0x3f0] sm:$0xff]
    %v184 = vld [vmem:[#allocation4 + $0x3f8] sm:$0xff]
    %v185 = vld [vmem:[#allocation4 + $0x400] sm:$0xff]
    %v186 = vld [vmem:[#allocation4 + $0x408] sm:$0xff]
    %v187 = vld [vmem:[#allocation4 + $0x410] sm:$0xff]
    %v188 = vld [vmem:[#allocation4 + $0x418] sm:$0xff]
    %v189 = vld [vmem:[#allocation4 + $0x420] sm:$0xff]
    %v190 = vld [vmem:[#allocation4 + $0x428] sm:$0xff]
    %v191 = vld [vmem:[#allocation4 + $0x430] sm:$0xff]
    %v192 = vld [vmem:[#allocation4 + $0x438] sm:$0xff]
    %v193 = vld [vmem:[#allocation4 + $0x440] sm:$0xff]
    %v194 = vld [vmem:[#allocation4 + $0x448] sm:$0xff]
    %v195 = vld [vmem:[#allocation4 + $0x450] sm:$0xff]
    %v196 = vld [vmem:[#allocation4 + $0x458] sm:$0xff]
    %v197 = vld [vmem:[#allocation4 + $0x460] sm:$0xff]
    %v198 = vld [vmem:[#allocation4 + $0x468] sm:$0xff]
    %v199 = vld [vmem:[#allocation4 + $0x470] sm:$0xff]
    %v200 = vld [vmem:[#allocation4 + $0x478] sm:$0xff]
    %v201 = vld [vmem:[#allocation4 + $0x480] sm:$0xff]
    %v202 = vld [vmem:[#allocation4 + $0x488] sm:$0xff]
    %v203 = vld [vmem:[#allocation4 + $0x490] sm:$0xff]
    %v204 = vld [vmem:[#allocation4 + $0x498] sm:$0xff]
    %v205 = vld [vmem:[#allocation4 + $0x4a0] sm:$0xff]
    %v206 = vld [vmem:[#allocation4 + $0x4a8] sm:$0xff]
    %v207 = vld [vmem:[#allocation4 + $0x4b0] sm:$0xff]
    %v208 = vld [vmem:[#allocation4 + $0x4b8] sm:$0xff]
    %v209 = vld [vmem:[#allocation4 + $0x4c0] sm:$0xff]
    %v210 = vld [vmem:[#allocation4 + $0x4c8] sm:$0xff]
    %v211 = vld [vmem:[#allocation4 + $0x4d0] sm:$0xff]
    %v212 = vld [vmem:[#allocation4 + $0x4d8] sm:$0xff]
    %v213 = vld [vmem:[#allocation4 + $0x4e0] sm:$0xff]
    %v214 = vld [vmem:[#allocation4 + $0x4e8] sm:$0xff]
    %v215 = vld [vmem:[#allocation4 + $0x4f0] sm:$0xff]
    %v216 = vld [vmem:[#allocation4 + $0x4f8] sm:$0xff]
    %v217 = vld [vmem:[#allocation4 + $0x500] sm:$0xff]
    %v218 = vld [vmem:[#allocation4 + $0x508] sm:$0xff]
    %v219 = vld [vmem:[#allocation4 + $0x510] sm:$0xff]
    %v220 = vld [vmem:[#allocation4 + $0x518] sm:$0xff]
    %v221 = vld [vmem:[#allocation4 + $0x520] sm:$0xff]
    %v222 = vld [vmem:[#allocation4 + $0x528] sm:$0xff]
    %v223 = vld [vmem:[#allocation4 + $0x530] sm:$0xff]
    %v224 = vld [vmem:[#allocation4 + $0x538] sm:$0xff]
    %v225 = vld [vmem:[#allocation4 + $0x540] sm:$0xff]
    %v226 = vld [vmem:[#allocation4 + $0x548] sm:$0xff]
    %v227 = vld [vmem:[#allocation4 + $0x550] sm:$0xff]
    %v228 = vld [vmem:[#allocation4 + $0x558] sm:$0xff]
    %v229 = vld [vmem:[#allocation4 + $0x560] sm:$0xff]
    %v230 = vld [vmem:[#allocation4 + $0x568] sm:$0xff]
    %v231 = vld [vmem:[#allocation4 + $0x570] sm:$0xff]
    %v232 = vld [vmem:[#allocation4 + $0x578] sm:$0xff]
    %v233 = vld [vmem:[#allocation4 + $0x580] sm:$0xff]
    %v234 = vld [vmem:[#allocation4 + $0x588] sm:$0xff]
    %v235 = vld [vmem:[#allocation4 + $0x590] sm:$0xff]
    %v236 = vld [vmem:[#allocation4 + $0x598] sm:$0xff]
    %v237 = vld [vmem:[#allocation4 + $0x5a0] sm:$0xff]
    %v238 = vld [vmem:[#allocation4 + $0x5a8] sm:$0xff]
    %v239 = vld [vmem:[#allocation4 + $0x5b0] sm:$0xff]
    %v240 = vld [vmem:[#allocation4 + $0x5b8] sm:$0xff]
    %v241 = vld [vmem:[#allocation4 + $0x5c0] sm:$0xff]
    %v242 = vld [vmem:[#allocation4 + $0x5c8] sm:$0xff]
    %v243 = vld [vmem:[#allocation4 + $0x5d0] sm:$0xff]
    %v244 = vld [vmem:[#allocation4 + $0x5d8] sm:$0xff]
    %v245 = vld [vmem:[#allocation4 + $0x5e0] sm:$0xff]
    %v246 = vld [vmem:[#allocation4 + $0x5e8] sm:$0xff]
    %v247 = vld [vmem:[#allocation4 + $0x5f0] sm:$0xff]
    %v248 = vld [vmem:[#allocation4 + $0x5f8] sm:$0xff]
    %v249 = vld [vmem:[#allocation4 + $0x600] sm:$0xff]
    %v250 = vld [vmem:[#allocation4 + $0x608] sm:$0xff]
    %v251 = vld [vmem:[#allocation4 + $0x610] sm:$0xff]
    %v252 = vld [vmem:[#allocation4 + $0x618] sm:$0xff]
    %v253 = vld [vmem:[#allocation4 + $0x620] sm:$0xff]
    %v254 = vld [vmem:[#allocation4 + $0x628] sm:$0xff]
    %v255 = vld [vmem:[#allocation4 + $0x630] sm:$0xff]
    %v256 = vld [vmem:[#allocation4 + $0x638] sm:$0xff]
    %v257 = vld [vmem:[#allocation4 + $0x640] sm:$0xff]
    %v258 = vld [vmem:[#allocation4 + $0x648] sm:$0xff]
    %v259 = vld [vmem:[#allocation4 + $0x650] sm:$0xff]
    %v260 = vld [vmem:[#allocation4 + $0x658] sm:$0xff]
    %v261 = vld [vmem:[#allocation4 + $0x660] sm:$0xff]
    %v262 = vld [vmem:[#allocation4 + $0x668] sm:$0xff]
    %v263 = vld [vmem:[#allocation4 + $0x670] sm:$0xff]
    %v264 = vld [vmem:[#allocation4 + $0x678] sm:$0xff]
    %v265 = vld [vmem:[#allocation4 + $0x680] sm:$0xff]
    %v266 = vld [vmem:[#allocation4 + $0x688] sm:$0xff]
    %v267 = vld [vmem:[#allocation4 + $0x690] sm:$0xff]
    %v268 = vld [vmem:[#allocation4 + $0x698] sm:$0xff]
    %v269 = vld [vmem:[#allocation4 + $0x6a0] sm:$0xff]
    %v270 = vld [vmem:[#allocation4 + $0x6a8] sm:$0xff]
    %v271 = vld [vmem:[#allocation4 + $0x6b0] sm:$0xff]
    %v272 = vld [vmem:[#allocation4 + $0x6b8] sm:$0xff]
    %v273 = vld [vmem:[#allocation4 + $0x6c0] sm:$0xff]
    %v274 = vld [vmem:[#allocation4 + $0x6c8] sm:$0xff]
    %v275 = vld [vmem:[#allocation4 + $0x6d0] sm:$0xff]
    %v276 = vld [vmem:[#allocation4 + $0x6d8] sm:$0xff]
    %v277 = vld [vmem:[#allocation4 + $0x6e0] sm:$0xff]
    %v278 = vld [vmem:[#allocation4 + $0x6e8] sm:$0xff]
    %v279 = vld [vmem:[#allocation4 + $0x6f0] sm:$0xff]
    %v280 = vld [vmem:[#allocation4 + $0x6f8] sm:$0xff]
    %v281 = vld [vmem:[#allocation4 + $0x700] sm:$0xff]
    %v282 = vld [vmem:[#allocation4 + $0x708] sm:$0xff]
    %v283 = vld [vmem:[#allocation4 + $0x710] sm:$0xff]
    %v284 = vld [vmem:[#allocation4 + $0x718] sm:$0xff]
    %v285 = vld [vmem:[#allocation4 + $0x720] sm:$0xff]
    %v286 = vld [vmem:[#allocation4 + $0x728] sm:$0xff]
    %v287 = vld [vmem:[#allocation4 + $0x730] sm:$0xff]
    %v288 = vld [vmem:[#allocation4 + $0x738] sm:$0xff]
    %v289 = vld [vmem:[#allocation4 + $0x740] sm:$0xff]
    %v290 = vld [vmem:[#allocation4 + $0x748] sm:$0xff]
    %v291 = vld [vmem:[#allocation4 + $0x750] sm:$0xff]
    %v292 = vld [vmem:[#allocation4 + $0x758] sm:$0xff]
    %v293 = vld [vmem:[#allocation4 + $0x760] sm:$0xff]
    %v294 = vld [vmem:[#allocation4 + $0x768] sm:$0xff]
    %v295 = vld [vmem:[#allocation4 + $0x770] sm:$0xff]
    %v296 = vld [vmem:[#allocation4 + $0x778] sm:$0xff]
    %v297 = vld [vmem:[#allocation4 + $0x780] sm:$0xff]
    %v298 = vld [vmem:[#allocation4 + $0x788] sm:$0xff]
    %v299 = vld [vmem:[#allocation4 + $0x790] sm:$0xff]
    %v300 = vld [vmem:[#allocation4 + $0x798] sm:$0xff]
    %v301 = vld [vmem:[#allocation4 + $0x7a0] sm:$0xff]
    %v302 = vld [vmem:[#allocation4 + $0x7a8] sm:$0xff]
    %v303 = vld [vmem:[#allocation4 + $0x7b0] sm:$0xff]
    %v304 = vld [vmem:[#allocation4 + $0x7b8] sm:$0xff]
    %v305 = vld [vmem:[#allocation4 + $0x7c0] sm:$0xff]
    %v306 = vld [vmem:[#allocation4 + $0x7c8] sm:$0xff]
    %v307 = vld [vmem:[#allocation4 + $0x7d0] sm:$0xff]
    %v308 = vld [vmem:[#allocation4 + $0x7d8] sm:$0xff]
    %v309 = vld [vmem:[#allocation4 + $0x7e0] sm:$0xff]
    %v310 = vld [vmem:[#allocation4 + $0x7e8] sm:$0xff]
    %v311 = vld [vmem:[#allocation4 + $0x7f0] sm:$0xff]
    %v312 = vld [vmem:[#allocation4 + $0x7f8] sm:$0xff]
    %v313 = vld [vmem:[#allocation4 + $0x800] sm:$0xff]
    %v314 = vld [vmem:[#allocation4 + $0x808] sm:$0xff]
    %v315 = vld [vmem:[#allocation4 + $0x810] sm:$0xff]
    %v316 = vld [vmem:[#allocation4 + $0x818] sm:$0xff]
    %v317 = vld [vmem:[#allocation4 + $0x820] sm:$0xff]
    %v318 = vld [vmem:[#allocation4 + $0x828] sm:$0xff]
    %v319 = vld [vmem:[#allocation4 + $0x830] sm:$0xff]
    %v320 = vld [vmem:[#allocation4 + $0x838] sm:$0xff]
    %v321 = vld [vmem:[#allocation4 + $0x840] sm:$0xff]
    %v322 = vld [vmem:[#allocation4 + $0x848] sm:$0xff]
    %v323 = vld [vmem:[#allocation4 + $0x850] sm:$0xff]
    %v324 = vld [vmem:[#allocation4 + $0x858] sm:$0xff]
    %v325 = vld [vmem:[#allocation4 + $0x860] sm:$0xff]
    %v326 = vld [vmem:[#allocation4 + $0x868] sm:$0xff]
    %v327 = vld [vmem:[#allocation4 + $0x870] sm:$0xff]
    %v328 = vld [vmem:[#allocation4 + $0x878] sm:$0xff]
    %v329 = vld [vmem:[#allocation4 + $0x880] sm:$0xff]
    %v330 = vld [vmem:[#allocation4 + $0x888] sm:$0xff]
    %v331 = vld [vmem:[#allocation4 + $0x890] sm:$0xff]
    %v332 = vld [vmem:[#allocation4 + $0x898] sm:$0xff]
    %v333 = vld [vmem:[#allocation4 + $0x8a0] sm:$0xff]
    %v334 = vld [vmem:[#allocation4 + $0x8a8] sm:$0xff]
    %v335 = vld [vmem:[#allocation4 + $0x8b0] sm:$0xff]
    %v336 = vld [vmem:[#allocation4 + $0x8b8] sm:$0xff]
    %v337 = vld [vmem:[#allocation4 + $0x8c0] sm:$0xff]
    %v338 = vld [vmem:[#allocation4 + $0x8c8] sm:$0xff]
    %v339 = vld [vmem:[#allocation4 + $0x8d0] sm:$0xff]
    %v340 = vld [vmem:[#allocation4 + $0x8d8] sm:$0xff]
    %v341 = vld [vmem:[#allocation4 + $0x8e0] sm:$0xff]
    %v342 = vld [vmem:[#allocation4 + $0x8e8] sm:$0xff]
    %v343 = vld [vmem:[#allocation4 + $0x8f0] sm:$0xff]
    %v344 = vld [vmem:[#allocation4 + $0x8f8] sm:$0xff]
    %v345 = vld [vmem:[#allocation4 + $0x900] sm:$0xff]
    %v346 = vld [vmem:[#allocation4 + $0x908] sm:$0xff]
    %v347 = vld [vmem:[#allocation4 + $0x910] sm:$0xff]
    %v348 = vld [vmem:[#allocation4 + $0x918] sm:$0xff]
    %v349 = vld [vmem:[#allocation4 + $0x920] sm:$0xff]
    %v350 = vld [vmem:[#allocation4 + $0x928] sm:$0xff]
    %v351 = vld [vmem:[#allocation4 + $0x930] sm:$0xff]
    %v352 = vld [vmem:[#allocation4 + $0x938] sm:$0xff]
    %v353 = vld [vmem:[#allocation4 + $0x940] sm:$0xff]
    %v354 = vld [vmem:[#allocation4 + $0x948] sm:$0xff]
    %v355 = vld [vmem:[#allocation4 + $0x950] sm:$0xff]
    %v356 = vld [vmem:[#allocation4 + $0x958] sm:$0xff]
    %v357 = vld [vmem:[#allocation4 + $0x960] sm:$0xff]
    %v358 = vld [vmem:[#allocation4 + $0x968] sm:$0xff]
    %v359 = vld [vmem:[#allocation4 + $0x970] sm:$0xff]
    %v360 = vld [vmem:[#allocation4 + $0x978] sm:$0xff]
    %v361 = vld [vmem:[#allocation4 + $0x980] sm:$0xff]
    %v362 = vld [vmem:[#allocation4 + $0x988] sm:$0xff]
    %v363 = vld [vmem:[#allocation4 + $0x990] sm:$0xff]
    %v364 = vld [vmem:[#allocation4 + $0x998] sm:$0xff]
    %v365 = vld [vmem:[#allocation4 + $0x9a0] sm:$0xff]
    %v366 = vld [vmem:[#allocation4 + $0x9a8] sm:$0xff]
    %v367 = vld [vmem:[#allocation4 + $0x9b0] sm:$0xff]
    %v368 = vld [vmem:[#allocation4 + $0x9b8] sm:$0xff]
    %v369 = vld [vmem:[#allocation4 + $0x9c0] sm:$0xff]
    %v370 = vld [vmem:[#allocation4 + $0x9c8] sm:$0xff]
    %v371 = vld [vmem:[#allocation4 + $0x9d0] sm:$0xff]
    %v372 = vld [vmem:[#allocation4 + $0x9d8] sm:$0xff]
    %v373 = vld [vmem:[#allocation4 + $0x9e0] sm:$0xff]
    %v374 = vld [vmem:[#allocation4 + $0x9e8] sm:$0xff]
    %v375 = vld [vmem:[#allocation4 + $0x9f0] sm:$0xff]
    %v376 = vld [vmem:[#allocation4 + $0x9f8] sm:$0xff]
    %v377 = vld [vmem:[#allocation4 + $0xa00] sm:$0xff]
    %v378 = vld [vmem:[#allocation4 + $0xa08] sm:$0xff]
    %v379 = vld [vmem:[#allocation4 + $0xa10] sm:$0xff]
    %v380 = vld [vmem:[#allocation4 + $0xa18] sm:$0xff]
    %v381 = vld [vmem:[#allocation4 + $0xa20] sm:$0xff]
    %v382 = vld [vmem:[#allocation4 + $0xa28] sm:$0xff]
    %v383 = vld [vmem:[#allocation4 + $0xa30] sm:$0xff]
    %v384 = vld [vmem:[#allocation4 + $0xa38] sm:$0xff]
    %v385 = vld [vmem:[#allocation4 + $0xa40] sm:$0xff]
    %v386 = vld [vmem:[#allocation4 + $0xa48] sm:$0xff]
    %v387 = vld [vmem:[#allocation4 + $0xa50] sm:$0xff]
    %v388 = vld [vmem:[#allocation4 + $0xa58] sm:$0xff]
    %v389 = vld [vmem:[#allocation4 + $0xa60] sm:$0xff]
    %v390 = vld [vmem:[#allocation4 + $0xa68] sm:$0xff]
    %v391 = vld [vmem:[#allocation4 + $0xa70] sm:$0xff]
    %v392 = vld [vmem:[#allocation4 + $0xa78] sm:$0xff]
    %v393 = vld [vmem:[#allocation4 + $0xa80] sm:$0xff]
    %v394 = vld [vmem:[#allocation4 + $0xa88] sm:$0xff]
    %v395 = vld [vmem:[#allocation4 + $0xa90] sm:$0xff]
    %v396 = vld [vmem:[#allocation4 + $0xa98] sm:$0xff]
    %v397 = vld [vmem:[#allocation4 + $0xaa0] sm:$0xff]
    %v398 = vld [vmem:[#allocation4 + $0xaa8] sm:$0xff]
    %v399 = vld [vmem:[#allocation4 + $0xab0] sm:$0xff]
    %v400 = vld [vmem:[#allocation4 + $0xab8] sm:$0xff]
    %v401 = vld [vmem:[#allocation4 + $0xac0] sm:$0xff]
    %v402 = vld [vmem:[#allocation4 + $0xac8] sm:$0xff]
    %v403 = vld [vmem:[#allocation4 + $0xad0] sm:$0xff]
    %v404 = vld [vmem:[#allocation4 + $0xad8] sm:$0xff]
    %v405 = vld [vmem:[#allocation4 + $0xae0] sm:$0xff]
    %v406 = vld [vmem:[#allocation4 + $0xae8] sm:$0xff]
    %v407 = vld [vmem:[#allocation4 + $0xaf0] sm:$0xff]
    %v408 = vld [vmem:[#allocation4 + $0xaf8] sm:$0xff]
    %v409 = vld [vmem:[#allocation4 + $0xb00] sm:$0xff]
    %v410 = vld [vmem:[#allocation4 + $0xb08] sm:$0xff]
    %v411 = vld [vmem:[#allocation4 + $0xb10] sm:$0xff]
    %v412 = vld [vmem:[#allocation4 + $0xb18] sm:$0xff]
    %v413 = vld [vmem:[#allocation4 + $0xb20] sm:$0xff]
    %v414 = vld [vmem:[#allocation4 + $0xb28] sm:$0xff]
    %v415 = vld [vmem:[#allocation4 + $0xb30] sm:$0xff]
    %v416 = vld [vmem:[#allocation4 + $0xb38] sm:$0xff]
    %v417 = vld [vmem:[#allocation4 + $0xb40] sm:$0xff]
    %v418 = vld [vmem:[#allocation4 + $0xb48] sm:$0xff]
    %v419 = vld [vmem:[#allocation4 + $0xb50] sm:$0xff]
    %v420 = vld [vmem:[#allocation4 + $0xb58] sm:$0xff]
    %v421 = vld [vmem:[#allocation4 + $0xb60] sm:$0xff]
    %v422 = vld [vmem:[#allocation4 + $0xb68] sm:$0xff]
    %v423 = vld [vmem:[#allocation4 + $0xb70] sm:$0xff]
    %v424 = vld [vmem:[#allocation4 + $0xb78] sm:$0xff]
    %v425 = vld [vmem:[#allocation4 + $0xb80] sm:$0xff]
    %v426 = vld [vmem:[#allocation4 + $0xb88] sm:$0xff]
    %v427 = vld [vmem:[#allocation4 + $0xb90] sm:$0xff]
    %v428 = vld [vmem:[#allocation4 + $0xb98] sm:$0xff]
    %v429 = vld [vmem:[#allocation4 + $0xba0] sm:$0xff]
    %v430 = vld [vmem:[#allocation4 + $0xba8] sm:$0xff]
    %v431 = vld [vmem:[#allocation4 + $0xbb0] sm:$0xff]
    %v432 = vld [vmem:[#allocation4 + $0xbb8] sm:$0xff]
    %v433 = vld [vmem:[#allocation4 + $0xbc0] sm:$0xff]
    %v434 = vld [vmem:[#allocation4 + $0xbc8] sm:$0xff]
    %v435 = vld [vmem:[#allocation4 + $0xbd0] sm:$0xff]
    %v436 = vld [vmem:[#allocation4 + $0xbd8] sm:$0xff]
    %v437 = vld [vmem:[#allocation4 + $0xbe0] sm:$0xff]
    %v438 = vld [vmem:[#allocation4 + $0xbe8] sm:$0xff]
    %v439 = vld [vmem:[#allocation4 + $0xbf0] sm:$0xff]
    %v440 = vld [vmem:[#allocation4 + $0xbf8] sm:$0xff]
    %v441 = vld [vmem:[#allocation4 + $0xc00] sm:$0xff]
    %v442 = vld [vmem:[#allocation4 + $0xc08] sm:$0xff]
    %v443 = vld [vmem:[#allocation4 + $0xc10] sm:$0xff]
    %v444 = vld [vmem:[#allocation4 + $0xc18] sm:$0xff]
    %v445 = vld [vmem:[#allocation4 + $0xc20] sm:$0xff]
    %v446 = vld [vmem:[#allocation4 + $0xc28] sm:$0xff]
    %v447 = vld [vmem:[#allocation4 + $0xc30] sm:$0xff]
    %v448 = vld [vmem:[#allocation4 + $0xc38] sm:$0xff]
    %v449 = vld [vmem:[#allocation4 + $0xc40] sm:$0xff]
    %v450 = vld [vmem:[#allocation4 + $0xc48] sm:$0xff]
    %v451 = vld [vmem:[#allocation4 + $0xc50] sm:$0xff]
    %v452 = vld [vmem:[#allocation4 + $0xc58] sm:$0xff]
    %v453 = vld [vmem:[#allocation4 + $0xc60] sm:$0xff]
    %v454 = vld [vmem:[#allocation4 + $0xc68] sm:$0xff]
    %v455 = vld [vmem:[#allocation4 + $0xc70] sm:$0xff]
    %v456 = vld [vmem:[#allocation4 + $0xc78] sm:$0xff]
    %v457 = vld [vmem:[#allocation4 + $0xc80] sm:$0xff]
    %v458 = vld [vmem:[#allocation4 + $0xc88] sm:$0xff]
    %v459 = vld [vmem:[#allocation4 + $0xc90] sm:$0xff]
    %v460 = vld [vmem:[#allocation4 + $0xc98] sm:$0xff]
    %v461 = vld [vmem:[#allocation4 + $0xca0] sm:$0xff]
    %v462 = vld [vmem:[#allocation4 + $0xca8] sm:$0xff]
    %v463 = vld [vmem:[#allocation4 + $0xcb0] sm:$0xff]
    %v464 = vld [vmem:[#allocation4 + $0xcb8] sm:$0xff]
    %v465 = vld [vmem:[#allocation4 + $0xcc0] sm:$0xff]
    %v466 = vld [vmem:[#allocation4 + $0xcc8] sm:$0xff]
    %v467 = vld [vmem:[#allocation4 + $0xcd0] sm:$0xff]
    %v468 = vld [vmem:[#allocation4 + $0xcd8] sm:$0xff]
    %v469 = vld [vmem:[#allocation4 + $0xce0] sm:$0xff]
    %v470 = vld [vmem:[#allocation4 + $0xce8] sm:$0xff]
    %v471 = vld [vmem:[#allocation4 + $0xcf0] sm:$0xff]
    %v472 = vld [vmem:[#allocation4 + $0xcf8] sm:$0xff]
    %v473 = vld [vmem:[#allocation4 + $0xd00] sm:$0xff]
    %v474 = vld [vmem:[#allocation4 + $0xd08] sm:$0xff]
    %v475 = vld [vmem:[#allocation4 + $0xd10] sm:$0xff]
    %v476 = vld [vmem:[#allocation4 + $0xd18] sm:$0xff]
    %v477 = vld [vmem:[#allocation4 + $0xd20] sm:$0xff]
    %v478 = vld [vmem:[#allocation4 + $0xd28] sm:$0xff]
    %v479 = vld [vmem:[#allocation4 + $0xd30] sm:$0xff]
    %v480 = vld [vmem:[#allocation4 + $0xd38] sm:$0xff]
    %v481 = vld [vmem:[#allocation4 + $0xd40] sm:$0xff]
    %v482 = vld [vmem:[#allocation4 + $0xd48] sm:$0xff]
    %v483 = vld [vmem:[#allocation4 + $0xd50] sm:$0xff]
    %v484 = vld [vmem:[#allocation4 + $0xd58] sm:$0xff]
    %v485 = vld [vmem:[#allocation4 + $0xd60] sm:$0xff]
    %v486 = vld [vmem:[#allocation4 + $0xd68] sm:$0xff]
    %v487 = vld [vmem:[#allocation4 + $0xd70] sm:$0xff]
    %v488 = vld [vmem:[#allocation4 + $0xd78] sm:$0xff]
    %v489 = vld [vmem:[#allocation4 + $0xd80] sm:$0xff]
    %v490 = vld [vmem:[#allocation4 + $0xd88] sm:$0xff]
    %v491 = vld [vmem:[#allocation4 + $0xd90] sm:$0xff]
    %v492 = vld [vmem:[#allocation4 + $0xd98] sm:$0xff]
    %v493 = vld [vmem:[#allocation4 + $0xda0] sm:$0xff]
    %v494 = vld [vmem:[#allocation4 + $0xda8] sm:$0xff]
    %v495 = vld [vmem:[#allocation4 + $0xdb0] sm:$0xff]
    %v496 = vld [vmem:[#allocation4 + $0xdb8] sm:$0xff]
    %v497 = vld [vmem:[#allocation4 + $0xdc0] sm:$0xff]
    %v498 = vld [vmem:[#allocation4 + $0xdc8] sm:$0xff]
    %v499 = vld [vmem:[#allocation4 + $0xdd0] sm:$0xff]
    %v500 = vld [vmem:[#allocation4 + $0xdd8] sm:$0xff]
    %v501 = vld [vmem:[#allocation4 + $0xde0] sm:$0xff]
    %v502 = vld [vmem:[#allocation4 + $0xde8] sm:$0xff]
    %v503 = vld [vmem:[#allocation4 + $0xdf0] sm:$0xff]
    %v504 = vld [vmem:[#allocation4 + $0xdf8] sm:$0xff]
    %v505 = vld [vmem:[#allocation4 + $0xe00] sm:$0xff]
    %v506 = vld [vmem:[#allocation4 + $0xe08] sm:$0xff]
    %v507 = vld [vmem:[#allocation4 + $0xe10] sm:$0xff]
    %v508 = vld [vmem:[#allocation4 + $0xe18] sm:$0xff]
    %v509 = vld [vmem:[#allocation4 + $0xe20] sm:$0xff]
    %v510 = vld [vmem:[#allocation4 + $0xe28] sm:$0xff]
    %v511 = vld [vmem:[#allocation4 + $0xe30] sm:$0xff]
    %v512 = vld [vmem:[#allocation4 + $0xe38] sm:$0xff]
    %v513 = vld [vmem:[#allocation4 + $0xe40] sm:$0xff]
    %v514 = vld [vmem:[#allocation4 + $0xe48] sm:$0xff]
    %v515 = vld [vmem:[#allocation4 + $0xe50] sm:$0xff]
    %v516 = vld [vmem:[#allocation4 + $0xe58] sm:$0xff]
    %v517 = vld [vmem:[#allocation4 + $0xe60] sm:$0xff]
    %v518 = vld [vmem:[#allocation4 + $0xe68] sm:$0xff]
    %v519 = vld [vmem:[#allocation4 + $0xe70] sm:$0xff]
    %v520 = vld [vmem:[#allocation4 + $0xe78] sm:$0xff]
    %v521 = vld [vmem:[#allocation4 + $0xe80] sm:$0xff]
    %v522 = vld [vmem:[#allocation4 + $0xe88] sm:$0xff]
    %v523 = vld [vmem:[#allocation4 + $0xe90] sm:$0xff]
    %v524 = vld [vmem:[#allocation4 + $0xe98] sm:$0xff]
    %v525 = vld [vmem:[#allocation4 + $0xea0] sm:$0xff]
    %v526 = vld [vmem:[#allocation4 + $0xea8] sm:$0xff]
    %v527 = vld [vmem:[#allocation4 + $0xeb0] sm:$0xff]
    %v528 = vld [vmem:[#allocation4 + $0xeb8] sm:$0xff]
    %v529 = vld [vmem:[#allocation4 + $0xec0] sm:$0xff]
    %v530 = vld [vmem:[#allocation4 + $0xec8] sm:$0xff]
    %v531 = vld [vmem:[#allocation4 + $0xed0] sm:$0xff]
    %v532 = vld [vmem:[#allocation4 + $0xed8] sm:$0xff]
    %v533 = vld [vmem:[#allocation4 + $0xee0] sm:$0xff]
    %v534 = vld [vmem:[#allocation4 + $0xee8] sm:$0xff]
    %v535 = vld [vmem:[#allocation4 + $0xef0] sm:$0xff]
    %v536 = vld [vmem:[#allocation4 + $0xef8] sm:$0xff]
    %v537 = vld [vmem:[#allocation4 + $0xf00] sm:$0xff]
    %v538 = vld [vmem:[#allocation4 + $0xf08] sm:$0xff]
    %v539 = vld [vmem:[#allocation4 + $0xf10] sm:$0xff]
    %v540 = vld [vmem:[#allocation4 + $0xf18] sm:$0xff]
    %v541 = vld [vmem:[#allocation4 + $0xf20] sm:$0xff]
    %v542 = vld [vmem:[#allocation4 + $0xf28] sm:$0xff]
    %v543 = vld [vmem:[#allocation4 + $0xf30] sm:$0xff]
    %v544 = vld [vmem:[#allocation4 + $0xf38] sm:$0xff]
    %v545 = vld [vmem:[#allocation4 + $0xf40] sm:$0xff]
    %v546 = vld [vmem:[#allocation4 + $0xf48] sm:$0xff]
    %v547 = vld [vmem:[#allocation4 + $0xf50] sm:$0xff]
    %v548 = vld [vmem:[#allocation4 + $0xf58] sm:$0xff]
    %v549 = vld [vmem:[#allocation4 + $0xf60] sm:$0xff]
    %v550 = vld [vmem:[#allocation4 + $0xf68] sm:$0xff]
    %v551 = vld [vmem:[#allocation4 + $0xf70] sm:$0xff]
    %v552 = vld [vmem:[#allocation4 + $0xf78] sm:$0xff]
    %v553 = vld [vmem:[#allocation4 + $0xf80] sm:$0xff]
    %v554 = vld [vmem:[#allocation4 + $0xf88] sm:$0xff]
    %v555 = vld [vmem:[#allocation4 + $0xf90] sm:$0xff]
    %v556 = vld [vmem:[#allocation4 + $0xf98] sm:$0xff]
    %v557 = vld [vmem:[#allocation4 + $0xfa0] sm:$0xff]
    %v558 = vld [vmem:[#allocation4 + $0xfa8] sm:$0xff]
    %v559 = vld [vmem:[#allocation4 + $0xfb0] sm:$0xff]
    %v560 = vld [vmem:[#allocation4 + $0xfb8] sm:$0xff]
    %v561 = vld [vmem:[#allocation4 + $0xfc0] sm:$0xff]
    %v562 = vld [vmem:[#allocation4 + $0xfc8] sm:$0xff]
    %v563 = vld [vmem:[#allocation4 + $0xfd0] sm:$0xff]
    %v564 = vld [vmem:[#allocation4 + $0xfd8] sm:$0xff]
    %v565 = vld [vmem:[#allocation4 + $0xfe0] sm:$0xff]
    %v566 = vld [vmem:[#allocation4 + $0xfe8] sm:$0xff]
    %v567 = vld [vmem:[#allocation4 + $0xff0] sm:$0xff]
    %v568 = vld [vmem:[#allocation4 + $0xff8] sm:$0xff]
    %v569 = vld [vmem:[#allocation4 + $0x1000] sm:$0xff]
    %v570 = vld [vmem:[#allocation4 + $0x1008] sm:$0xff]
    %v571 = vld [vmem:[#allocation4 + $0x1010] sm:$0xff]
    %v572 = vld [vmem:[#allocation4 + $0x1018] sm:$0xff]
    %v573 = vld [vmem:[#allocation4 + $0x1020] sm:$0xff]
    %v574 = vld [vmem:[#allocation4 + $0x1028] sm:$0xff]
    %v575 = vld [vmem:[#allocation4 + $0x1030] sm:$0xff]
    %v576 = vld [vmem:[#allocation4 + $0x1038] sm:$0xff]
    %v577 = vld [vmem:[#allocation4 + $0x1040] sm:$0xff]
    %v578 = vld [vmem:[#allocation4 + $0x1048] sm:$0xff]
    %v579 = vld [vmem:[#allocation4 + $0x1050] sm:$0xff]
    %v580 = vld [vmem:[#allocation4 + $0x1058] sm:$0xff]
    %v581 = vld [vmem:[#allocation4 + $0x1060] sm:$0xff]
    %v582 = vld [vmem:[#allocation4 + $0x1068] sm:$0xff]
    %v583 = vld [vmem:[#allocation4 + $0x1070] sm:$0xff]
    %v584 = vld [vmem:[#allocation4 + $0x1078] sm:$0xff]
    %v585 = vld [vmem:[#allocation4 + $0x1080] sm:$0xff]
    %v586 = vld [vmem:[#allocation4 + $0x1088] sm:$0xff]
    %v587 = vld [vmem:[#allocation4 + $0x1090] sm:$0xff]
    %v588 = vld [vmem:[#allocation4 + $0x1098] sm:$0xff]
    %v589 = vld [vmem:[#allocation4 + $0x10a0] sm:$0xff]
    %v590 = vld [vmem:[#allocation4 + $0x10a8] sm:$0xff]
    %v591 = vld [vmem:[#allocation4 + $0x10b0] sm:$0xff]
    %v592 = vld [vmem:[#allocation4 + $0x10b8] sm:$0xff]
    %v593 = vld [vmem:[#allocation4 + $0x10c0] sm:$0xff]
    %v594 = vld [vmem:[#allocation4 + $0x10c8] sm:$0xff]
    %v595 = vld [vmem:[#allocation4 + $0x10d0] sm:$0xff]
    %v596 = vld [vmem:[#allocation4 + $0x10d8] sm:$0xff]
    %v597 = vld [vmem:[#allocation4 + $0x10e0] sm:$0xff]
    %v598 = vld [vmem:[#allocation4 + $0x10e8] sm:$0xff]
    %v599 = vld [vmem:[#allocation4 + $0x10f0] sm:$0xff]
    %v600 = vld [vmem:[#allocation4 + $0x10f8] sm:$0xff]
    %v601 = vld [vmem:[#allocation4 + $0x1100] sm:$0xff]
    %v602 = vld [vmem:[#allocation4 + $0x1108] sm:$0xff]
    %v603 = vld [vmem:[#allocation4 + $0x1110] sm:$0xff]
    %v604 = vld [vmem:[#allocation4 + $0x1118] sm:$0xff]
    %v605 = vld [vmem:[#allocation4 + $0x1120] sm:$0xff]
    %v606 = vld [vmem:[#allocation4 + $0x1128] sm:$0xff]
    %v607 = vld [vmem:[#allocation4 + $0x1130] sm:$0xff]
    %v608 = vld [vmem:[#allocation4 + $0x1138] sm:$0xff]
    %v609 = vld [vmem:[#allocation4 + $0x1140] sm:$0xff]
    %v610 = vld [vmem:[#allocation4 + $0x1148] sm:$0xff]
    %v611 = vld [vmem:[#allocation4 + $0x1150] sm:$0xff]
    %v612 = vld [vmem:[#allocation4 + $0x1158] sm:$0xff]
    %v613 = vld [vmem:[#allocation4 + $0x1160] sm:$0xff]
    %v614 = vld [vmem:[#allocation4 + $0x1168] sm:$0xff]
    %v615 = vld [vmem:[#allocation4 + $0x1170] sm:$0xff]
    %v616 = vld [vmem:[#allocation4 + $0x1178] sm:$0xff]
    %v617 = vld [vmem:[#allocation4 + $0x1180] sm:$0xff]
    %v618 = vld [vmem:[#allocation4 + $0x1188] sm:$0xff]
    %v619 = vld [vmem:[#allocation4 + $0x1190] sm:$0xff]
    %v620 = vld [vmem:[#allocation4 + $0x1198] sm:$0xff]
    %v621 = vld [vmem:[#allocation4 + $0x11a0] sm:$0xff]
    %v622 = vld [vmem:[#allocation4 + $0x11a8] sm:$0xff]
    %v623 = vld [vmem:[#allocation4 + $0x11b0] sm:$0xff]
    %v624 = vld [vmem:[#allocation4 + $0x11b8] sm:$0xff]
    %v625 = vld [vmem:[#allocation4 + $0x11c0] sm:$0xff]
    %v626 = vld [vmem:[#allocation4 + $0x11c8] sm:$0xff]
    %v627 = vld [vmem:[#allocation4 + $0x11d0] sm:$0xff]
    %v628 = vld [vmem:[#allocation4 + $0x11d8] sm:$0xff]
    %v629 = vld [vmem:[#allocation4 + $0x11e0] sm:$0xff]
    %v630 = vld [vmem:[#allocation4 + $0x11e8] sm:$0xff]
    %v631 = vld [vmem:[#allocation4 + $0x11f0] sm:$0xff]
    %v632 = vld [vmem:[#allocation4 + $0x11f8] sm:$0xff]
    %v633 = vld [vmem:[#allocation4 + $0x1200] sm:$0xff]
    %v634 = vld [vmem:[#allocation4 + $0x1208] sm:$0xff]
    %v635 = vld [vmem:[#allocation4 + $0x1210] sm:$0xff]
    %v636 = vld [vmem:[#allocation4 + $0x1218] sm:$0xff]
    %v637 = vld [vmem:[#allocation4 + $0x1220] sm:$0xff]
    %v638 = vld [vmem:[#allocation4 + $0x1228] sm:$0xff]
    %v639 = vld [vmem:[#allocation4 + $0x1230] sm:$0xff]
    %v640 = vld [vmem:[#allocation4 + $0x1238] sm:$0xff]
    %v641 = vld [vmem:[#allocation4 + $0x1240] sm:$0xff]
    %v642 = vld [vmem:[#allocation4 + $0x1248] sm:$0xff]
    %v643 = vld [vmem:[#allocation4 + $0x1250] sm:$0xff]
    %v644 = vld [vmem:[#allocation4 + $0x1258] sm:$0xff]
    %v645 = vld [vmem:[#allocation4 + $0x1260] sm:$0xff]
    %v646 = vld [vmem:[#allocation4 + $0x1268] sm:$0xff]
    %v647 = vld [vmem:[#allocation4 + $0x1270] sm:$0xff]
    %v648 = vld [vmem:[#allocation4 + $0x1278] sm:$0xff]
    %v649 = vld [vmem:[#allocation4 + $0x1280] sm:$0xff]
    %v650 = vld [vmem:[#allocation4 + $0x1288] sm:$0xff]
    %v651 = vld [vmem:[#allocation4 + $0x1290] sm:$0xff]
    %v652 = vld [vmem:[#allocation4 + $0x1298] sm:$0xff]
    %v653 = vld [vmem:[#allocation4 + $0x12a0] sm:$0xff]
    %v654 = vld [vmem:[#allocation4 + $0x12a8] sm:$0xff]
    %v655 = vld [vmem:[#allocation4 + $0x12b0] sm:$0xff]
    %v656 = vld [vmem:[#allocation4 + $0x12b8] sm:$0xff]
    %v657 = vld [vmem:[#allocation4 + $0x12c0] sm:$0xff]
    %v658 = vld [vmem:[#allocation4 + $0x12c8] sm:$0xff]
    %v659 = vld [vmem:[#allocation4 + $0x12d0] sm:$0xff]
    %v660 = vld [vmem:[#allocation4 + $0x12d8] sm:$0xff]
    %v661 = vld [vmem:[#allocation4 + $0x12e0] sm:$0xff]
    %v662 = vld [vmem:[#allocation4 + $0x12e8] sm:$0xff]
    %v663 = vld [vmem:[#allocation4 + $0x12f0] sm:$0xff]
    %v664 = vld [vmem:[#allocation4 + $0x12f8] sm:$0xff]
    %v665 = vld [vmem:[#allocation4 + $0x1300] sm:$0xff]
    %v666 = vld [vmem:[#allocation4 + $0x1308] sm:$0xff]
    %v667 = vld [vmem:[#allocation4 + $0x1310] sm:$0xff]
    %v668 = vld [vmem:[#allocation4 + $0x1318] sm:$0xff]
    %v669 = vld [vmem:[#allocation4 + $0x1320] sm:$0xff]
    %v670 = vld [vmem:[#allocation4 + $0x1328] sm:$0xff]
    %v671 = vld [vmem:[#allocation4 + $0x1330] sm:$0xff]
    %v672 = vld [vmem:[#allocation4 + $0x1338] sm:$0xff]
    %v673 = vld [vmem:[#allocation4 + $0x1340] sm:$0xff]
    %v674 = vld [vmem:[#allocation4 + $0x1348] sm:$0xff]
    %v675 = vld [vmem:[#allocation4 + $0x1350] sm:$0xff]
    %v676 = vld [vmem:[#allocation4 + $0x1358] sm:$0xff]
    %v677 = vld [vmem:[#allocation4 + $0x1360] sm:$0xff]
    %v678 = vld [vmem:[#allocation4 + $0x1368] sm:$0xff]
    %v679 = vld [vmem:[#allocation4 + $0x1370] sm:$0xff]
    %v680 = vld [vmem:[#allocation4 + $0x1378] sm:$0xff]
    %v681 = vld [vmem:[#allocation4 + $0x1380] sm:$0xff]
    %v682 = vld [vmem:[#allocation4 + $0x1388] sm:$0xff]
    %v683 = vld [vmem:[#allocation4 + $0x1390] sm:$0xff]
    %v684 = vld [vmem:[#allocation4 + $0x1398] sm:$0xff]
    %v685 = vld [vmem:[#allocation4 + $0x13a0] sm:$0xff]
    %v686 = vld [vmem:[#allocation4 + $0x13a8] sm:$0xff]
    %v687 = vld [vmem:[#allocation4 + $0x13b0] sm:$0xff]
    %v688 = vld [vmem:[#allocation4 + $0x13b8] sm:$0xff]
    %v689 = vld [vmem:[#allocation4 + $0x13c0] sm:$0xff]
    %v690 = vld [vmem:[#allocation4 + $0x13c8] sm:$0xff]
    %v691 = vld [vmem:[#allocation4 + $0x13d0] sm:$0xff]
    %v692 = vld [vmem:[#allocation4 + $0x13d8] sm:$0xff]
    %v693 = vld [vmem:[#allocation4 + $0x13e0] sm:$0xff]
    %v694 = vld [vmem:[#allocation4 + $0x13e8] sm:$0xff]
    %v695 = vld [vmem:[#allocation4 + $0x13f0] sm:$0xff]
    %v696 = vld [vmem:[#allocation4 + $0x13f8] sm:$0xff]
    %v697 = vld [vmem:[#allocation4 + $0x1400] sm:$0xff]
    %v698 = vld [vmem:[#allocation4 + $0x1408] sm:$0xff]
    %v699 = vld [vmem:[#allocation4 + $0x1410] sm:$0xff]
    %v700 = vld [vmem:[#allocation4 + $0x1418] sm:$0xff]
    %v701 = vld [vmem:[#allocation4 + $0x1420] sm:$0xff]
    %v702 = vld [vmem:[#allocation4 + $0x1428] sm:$0xff]
    %v703 = vld [vmem:[#allocation4 + $0x1430] sm:$0xff]
    %v704 = vld [vmem:[#allocation4 + $0x1438] sm:$0xff]
    %v705 = vld [vmem:[#allocation4 + $0x1440] sm:$0xff]
    %v706 = vld [vmem:[#allocation4 + $0x1448] sm:$0xff]
    %v707 = vld [vmem:[#allocation4 + $0x1450] sm:$0xff]
    %v708 = vld [vmem:[#allocation4 + $0x1458] sm:$0xff]
    %v709 = vld [vmem:[#allocation4 + $0x1460] sm:$0xff]
    %v710 = vld [vmem:[#allocation4 + $0x1468] sm:$0xff]
    %v711 = vld [vmem:[#allocation4 + $0x1470] sm:$0xff]
    %v712 = vld [vmem:[#allocation4 + $0x1478] sm:$0xff]
    %v713 = vld [vmem:[#allocation4 + $0x1480] sm:$0xff]
    %v714 = vld [vmem:[#allocation4 + $0x1488] sm:$0xff]
    %v715 = vld [vmem:[#allocation4 + $0x1490] sm:$0xff]
    %v716 = vld [vmem:[#allocation4 + $0x1498] sm:$0xff]
    %v717 = vld [vmem:[#allocation4 + $0x14a0] sm:$0xff]
    %v718 = vld [vmem:[#allocation4 + $0x14a8] sm:$0xff]
    %v719 = vld [vmem:[#allocation4 + $0x14b0] sm:$0xff]
    %v720 = vld [vmem:[#allocation4 + $0x14b8] sm:$0xff]
    %v721 = vld [vmem:[#allocation4 + $0x14c0] sm:$0xff]
    %v722 = vld [vmem:[#allocation4 + $0x14c8] sm:$0xff]
    %v723 = vld [vmem:[#allocation4 + $0x14d0] sm:$0xff]
    %v724 = vld [vmem:[#allocation4 + $0x14d8] sm:$0xff]
    %v725 = vld [vmem:[#allocation4 + $0x14e0] sm:$0xff]
    %v726 = vld [vmem:[#allocation4 + $0x14e8] sm:$0xff]
    %v727 = vld [vmem:[#allocation4 + $0x14f0] sm:$0xff]
    %v728 = vld [vmem:[#allocation4 + $0x14f8] sm:$0xff]
    %v729 = vld [vmem:[#allocation4 + $0x1500] sm:$0xff]
    %v730 = vld [vmem:[#allocation4 + $0x1508] sm:$0xff]
    %v731 = vld [vmem:[#allocation4 + $0x1510] sm:$0xff]
    %v732 = vld [vmem:[#allocation4 + $0x1518] sm:$0xff]
    %v733 = vld [vmem:[#allocation4 + $0x1520] sm:$0xff]
    %v734 = vld [vmem:[#allocation4 + $0x1528] sm:$0xff]
    %v735 = vld [vmem:[#allocation4 + $0x1530] sm:$0xff]
    %v736 = vld [vmem:[#allocation4 + $0x1538] sm:$0xff]
    %v737 = vld [vmem:[#allocation4 + $0x1540] sm:$0xff]
    %v738 = vld [vmem:[#allocation4 + $0x1548] sm:$0xff]
    %v739 = vld [vmem:[#allocation4 + $0x1550] sm:$0xff]
    %v740 = vld [vmem:[#allocation4 + $0x1558] sm:$0xff]
    %v741 = vld [vmem:[#allocation4 + $0x1560] sm:$0xff]
    %v742 = vld [vmem:[#allocation4 + $0x1568] sm:$0xff]
    %v743 = vld [vmem:[#allocation4 + $0x1570] sm:$0xff]
    %v744 = vld [vmem:[#allocation4 + $0x1578] sm:$0xff]
    %v745 = vld [vmem:[#allocation4 + $0x1580] sm:$0xff]
    %v746 = vld [vmem:[#allocation4 + $0x1588] sm:$0xff]
    %v747 = vld [vmem:[#allocation4 + $0x1590] sm:$0xff]
    %v748 = vld [vmem:[#allocation4 + $0x1598] sm:$0xff]
    %v749 = vld [vmem:[#allocation4 + $0x15a0] sm:$0xff]
    %v750 = vld [vmem:[#allocation4 + $0x15a8] sm:$0xff]
    %v751 = vld [vmem:[#allocation4 + $0x15b0] sm:$0xff]
    %v752 = vld [vmem:[#allocation4 + $0x15b8] sm:$0xff]
    %v753 = vld [vmem:[#allocation4 + $0x15c0] sm:$0xff]
    %v754 = vld [vmem:[#allocation4 + $0x15c8] sm:$0xff]
    %v755 = vld [vmem:[#allocation4 + $0x15d0] sm:$0xff]
    %v756 = vld [vmem:[#allocation4 + $0x15d8] sm:$0xff]
    %v757 = vld [vmem:[#allocation4 + $0x15e0] sm:$0xff]
    %v758 = vld [vmem:[#allocation4 + $0x15e8] sm:$0xff]
    %v759 = vld [vmem:[#allocation4 + $0x15f0] sm:$0xff]
    %v760 = vld [vmem:[#allocation4 + $0x15f8] sm:$0xff]
    %v761 = vld [vmem:[#allocation4 + $0x1600] sm:$0xff]
    %v762 = vld [vmem:[#allocation4 + $0x1608] sm:$0xff]
    %v763 = vld [vmem:[#allocation4 + $0x1610] sm:$0xff]
    %v764 = vld [vmem:[#allocation4 + $0x1618] sm:$0xff]
    %v765 = vld [vmem:[#allocation4 + $0x1620] sm:$0xff]
    %v766 = vld [vmem:[#allocation4 + $0x1628] sm:$0xff]
    %v767 = vld [vmem:[#allocation4 + $0x1630] sm:$0xff]
    %v768 = vld [vmem:[#allocation4 + $0x1638] sm:$0xff]
    %v769 = vld [vmem:[#allocation4 + $0x1640] sm:$0xff]
    %v770 = vld [vmem:[#allocation4 + $0x1648] sm:$0xff]
    %v771 = vld [vmem:[#allocation4 + $0x1650] sm:$0xff]
    %v772 = vld [vmem:[#allocation4 + $0x1658] sm:$0xff]
    %v773 = vld [vmem:[#allocation4 + $0x1660] sm:$0xff]
    %v774 = vld [vmem:[#allocation4 + $0x1668] sm:$0xff]
    %v775 = vld [vmem:[#allocation4 + $0x1670] sm:$0xff]
    %v776 = vld [vmem:[#allocation4 + $0x1678] sm:$0xff]
    %v777 = vld [vmem:[#allocation4 + $0x1680] sm:$0xff]
    %v778 = vld [vmem:[#allocation4 + $0x1688] sm:$0xff]
    %v779 = vld [vmem:[#allocation4 + $0x1690] sm:$0xff]
    %v780 = vld [vmem:[#allocation4 + $0x1698] sm:$0xff]
    %v781 = vld [vmem:[#allocation4 + $0x16a0] sm:$0xff]
    %v782 = vld [vmem:[#allocation4 + $0x16a8] sm:$0xff]
    %v783 = vld [vmem:[#allocation4 + $0x16b0] sm:$0xff]
    %v784 = vld [vmem:[#allocation4 + $0x16b8] sm:$0xff]
    %v785 = vld [vmem:[#allocation4 + $0x16c0] sm:$0xff]
    %v786 = vld [vmem:[#allocation4 + $0x16c8] sm:$0xff]
    %v787 = vld [vmem:[#allocation4 + $0x16d0] sm:$0xff]
    %v788 = vld [vmem:[#allocation4 + $0x16d8] sm:$0xff]
    %v789 = vld [vmem:[#allocation4 + $0x16e0] sm:$0xff]
    %v790 = vld [vmem:[#allocation4 + $0x16e8] sm:$0xff]
    %v791 = vld [vmem:[#allocation4 + $0x16f0] sm:$0xff]
    %v792 = vld [vmem:[#allocation4 + $0x16f8] sm:$0xff]
    %v793 = vld [vmem:[#allocation4 + $0x1700] sm:$0xff]
    %v794 = vld [vmem:[#allocation4 + $0x1708] sm:$0xff]
    %v795 = vld [vmem:[#allocation4 + $0x1710] sm:$0xff]
    %v796 = vld [vmem:[#allocation4 + $0x1718] sm:$0xff]
    %v797 = vld [vmem:[#allocation4 + $0x1720] sm:$0xff]
    %v798 = vld [vmem:[#allocation4 + $0x1728] sm:$0xff]
    %v799 = vld [vmem:[#allocation4 + $0x1730] sm:$0xff]
    %v800 = vld [vmem:[#allocation4 + $0x1738] sm:$0xff]
    %v801 = vld [vmem:[#allocation4 + $0x1740] sm:$0xff]
    %v802 = vld [vmem:[#allocation4 + $0x1748] sm:$0xff]
    %v803 = vld [vmem:[#allocation4 + $0x1750] sm:$0xff]
    %v804 = vld [vmem:[#allocation4 + $0x1758] sm:$0xff]
    %v805 = vld [vmem:[#allocation4 + $0x1760] sm:$0xff]
    %v806 = vld [vmem:[#allocation4 + $0x1768] sm:$0xff]
    %v807 = vld [vmem:[#allocation4 + $0x1770] sm:$0xff]
    %v808 = vld [vmem:[#allocation4 + $0x1778] sm:$0xff]
    %v809 = vld [vmem:[#allocation4 + $0x1780] sm:$0xff]
    %v810 = vld [vmem:[#allocation4 + $0x1788] sm:$0xff]
    %v811 = vld [vmem:[#allocation4 + $0x1790] sm:$0xff]
    %v812 = vld [vmem:[#allocation4 + $0x1798] sm:$0xff]
    %v813 = vld [vmem:[#allocation4 + $0x17a0] sm:$0xff]
    %v814 = vld [vmem:[#allocation4 + $0x17a8] sm:$0xff]
    %v815 = vld [vmem:[#allocation4 + $0x17b0] sm:$0xff]
    %v816 = vld [vmem:[#allocation4 + $0x17b8] sm:$0xff]
    %v817 = vld [vmem:[#allocation4 + $0x17c0] sm:$0xff]
    %v818 = vld [vmem:[#allocation4 + $0x17c8] sm:$0xff]
    %v819 = vld [vmem:[#allocation4 + $0x17d0] sm:$0xff]
    %v820 = vld [vmem:[#allocation4 + $0x17d8] sm:$0xff]
    %v821 = vld [vmem:[#allocation4 + $0x17e0] sm:$0xff]
    %v822 = vld [vmem:[#allocation4 + $0x17e8] sm:$0xff]
    %v823 = vld [vmem:[#allocation4 + $0x17f0] sm:$0xff]
    %v824 = vld [vmem:[#allocation4 + $0x17f8] sm:$0xff]
    %v825 = vld [vmem:[#allocation4 + $0x1800] sm:$0xff]
    %v826 = vld [vmem:[#allocation4 + $0x1808] sm:$0xff]
    %v827 = vld [vmem:[#allocation4 + $0x1810] sm:$0xff]
    %v828 = vld [vmem:[#allocation4 + $0x1818] sm:$0xff]
    %v829 = vld [vmem:[#allocation4 + $0x1820] sm:$0xff]
    %v830 = vld [vmem:[#allocation4 + $0x1828] sm:$0xff]
    %v831 = vld [vmem:[#allocation4 + $0x1830] sm:$0xff]
    %v832 = vld [vmem:[#allocation4 + $0x1838] sm:$0xff]
    %v833 = vld [vmem:[#allocation4 + $0x1840] sm:$0xff]
    %v834 = vld [vmem:[#allocation4 + $0x1848] sm:$0xff]
    %v835 = vld [vmem:[#allocation4 + $0x1850] sm:$0xff]
    %v836 = vld [vmem:[#allocation4 + $0x1858] sm:$0xff]
    %v837 = vld [vmem:[#allocation4 + $0x1860] sm:$0xff]
    %v838 = vld [vmem:[#allocation4 + $0x1868] sm:$0xff]
    %v839 = vld [vmem:[#allocation4 + $0x1870] sm:$0xff]
    %v840 = vld [vmem:[#allocation4 + $0x1878] sm:$0xff]
    %v841 = vld [vmem:[#allocation4 + $0x1880] sm:$0xff]
    %v842 = vld [vmem:[#allocation4 + $0x1888] sm:$0xff]
    %v843 = vld [vmem:[#allocation4 + $0x1890] sm:$0xff]
    %v844 = vld [vmem:[#allocation4 + $0x1898] sm:$0xff]
    %v845 = vld [vmem:[#allocation4 + $0x18a0] sm:$0xff]
    %v846 = vld [vmem:[#allocation4 + $0x18a8] sm:$0xff]
    %v847 = vld [vmem:[#allocation4 + $0x18b0] sm:$0xff]
    %v848 = vld [vmem:[#allocation4 + $0x18b8] sm:$0xff]
    %v849 = vld [vmem:[#allocation4 + $0x18c0] sm:$0xff]
    %v850 = vld [vmem:[#allocation4 + $0x18c8] sm:$0xff]
    %v851 = vld [vmem:[#allocation4 + $0x18d0] sm:$0xff]
    %v852 = vld [vmem:[#allocation4 + $0x18d8] sm:$0xff]
    %v853 = vld [vmem:[#allocation4 + $0x18e0] sm:$0xff]
    %v854 = vld [vmem:[#allocation4 + $0x18e8] sm:$0xff]
    %v855 = vld [vmem:[#allocation4 + $0x18f0] sm:$0xff]
    %v856 = vld [vmem:[#allocation4 + $0x18f8] sm:$0xff]
    %v857 = vld [vmem:[#allocation4 + $0x1900] sm:$0xff]
    %v858 = vld [vmem:[#allocation4 + $0x1908] sm:$0xff]
    %v859 = vld [vmem:[#allocation4 + $0x1910] sm:$0xff]
    %v860 = vld [vmem:[#allocation4 + $0x1918] sm:$0xff]
    %v861 = vld [vmem:[#allocation4 + $0x1920] sm:$0xff]
    %v862 = vld [vmem:[#allocation4 + $0x1928] sm:$0xff]
    %v863 = vld [vmem:[#allocation4 + $0x1930] sm:$0xff]
    %v864 = vld [vmem:[#allocation4 + $0x1938] sm:$0xff]
    %v865 = vld [vmem:[#allocation4 + $0x1940] sm:$0xff]
    %v866 = vld [vmem:[#allocation4 + $0x1948] sm:$0xff]
    %v867 = vld [vmem:[#allocation4 + $0x1950] sm:$0xff]
    %v868 = vld [vmem:[#allocation4 + $0x1958] sm:$0xff]
    %v869 = vld [vmem:[#allocation4 + $0x1960] sm:$0xff]
    %v870 = vld [vmem:[#allocation4 + $0x1968] sm:$0xff]
    %v871 = vld [vmem:[#allocation4 + $0x1970] sm:$0xff]
    %v872 = vld [vmem:[#allocation4 + $0x1978] sm:$0xff]
    %v873 = vld [vmem:[#allocation4 + $0x1980] sm:$0xff]
    %v874 = vld [vmem:[#allocation4 + $0x1988] sm:$0xff]
    %v875 = vld [vmem:[#allocation4 + $0x1990] sm:$0xff]
    %v876 = vld [vmem:[#allocation4 + $0x1998] sm:$0xff]
    %v877 = vld [vmem:[#allocation4 + $0x19a0] sm:$0xff]
    %v878 = vld [vmem:[#allocation4 + $0x19a8] sm:$0xff]
    %v879 = vld [vmem:[#allocation4 + $0x19b0] sm:$0xff]
    %v880 = vld [vmem:[#allocation4 + $0x19b8] sm:$0xff]
    %v881 = vld [vmem:[#allocation4 + $0x19c0] sm:$0xff]
    %v882 = vld [vmem:[#allocation4 + $0x19c8] sm:$0xff]
    %v883 = vld [vmem:[#allocation4 + $0x19d0] sm:$0xff]
    %v884 = vld [vmem:[#allocation4 + $0x19d8] sm:$0xff]
    %v885 = vld [vmem:[#allocation4 + $0x19e0] sm:$0xff]
    %v886 = vld [vmem:[#allocation4 + $0x19e8] sm:$0xff]
    %v887 = vld [vmem:[#allocation4 + $0x19f0] sm:$0xff]
    %v888 = vld [vmem:[#allocation4 + $0x19f8] sm:$0xff]
    %v889 = vld [vmem:[#allocation4 + $0x1a00] sm:$0xff]
    %v890 = vld [vmem:[#allocation4 + $0x1a08] sm:$0xff]
    %v891 = vld [vmem:[#allocation4 + $0x1a10] sm:$0xff]
    %v892 = vld [vmem:[#allocation4 + $0x1a18] sm:$0xff]
    %v893 = vld [vmem:[#allocation4 + $0x1a20] sm:$0xff]
    %v894 = vld [vmem:[#allocation4 + $0x1a28] sm:$0xff]
    %v895 = vld [vmem:[#allocation4 + $0x1a30] sm:$0xff]
    %v896 = vld [vmem:[#allocation4 + $0x1a38] sm:$0xff]
    %v897 = vld [vmem:[#allocation4 + $0x1a40] sm:$0xff]
    %v898 = vld [vmem:[#allocation4 + $0x1a48] sm:$0xff]
    %v899 = vld [vmem:[#allocation4 + $0x1a50] sm:$0xff]
    %v900 = vld [vmem:[#allocation4 + $0x1a58] sm:$0xff]
    %v901 = vld [vmem:[#allocation4 + $0x1a60] sm:$0xff]
    %v902 = vld [vmem:[#allocation4 + $0x1a68] sm:$0xff]
    %v903 = vld [vmem:[#allocation4 + $0x1a70] sm:$0xff]
    %v904 = vld [vmem:[#allocation4 + $0x1a78] sm:$0xff]
    %v905 = vld [vmem:[#allocation4 + $0x1a80] sm:$0xff]
    %v906 = vld [vmem:[#allocation4 + $0x1a88] sm:$0xff]
    %v907 = vld [vmem:[#allocation4 + $0x1a90] sm:$0xff]
    %v908 = vld [vmem:[#allocation4 + $0x1a98] sm:$0xff]
    %v909 = vld [vmem:[#allocation4 + $0x1aa0] sm:$0xff]
    %v910 = vld [vmem:[#allocation4 + $0x1aa8] sm:$0xff]
    %v911 = vld [vmem:[#allocation4 + $0x1ab0] sm:$0xff]
    %v912 = vld [vmem:[#allocation4 + $0x1ab8] sm:$0xff]
    %v913 = vld [vmem:[#allocation4 + $0x1ac0] sm:$0xff]
    %v914 = vld [vmem:[#allocation4 + $0x1ac8] sm:$0xff]
    %v915 = vld [vmem:[#allocation4 + $0x1ad0] sm:$0xff]
    %v916 = vld [vmem:[#allocation4 + $0x1ad8] sm:$0xff]
    %v917 = vld [vmem:[#allocation4 + $0x1ae0] sm:$0xff]
    %v918 = vld [vmem:[#allocation4 + $0x1ae8] sm:$0xff]
    %v919 = vld [vmem:[#allocation4 + $0x1af0] sm:$0xff]
    %v920 = vld [vmem:[#allocation4 + $0x1af8] sm:$0xff]
    %v1785 = vunpack.c.l.b16 %v57
    %v1786 = vunpack.c.h.b16 %v57
    %v1787 = vunpack.c.l.b16 %v58
    %v1788 = vunpack.c.h.b16 %v58
    %v1789 = vunpack.c.l.b16 %v59
    %v1790 = vunpack.c.h.b16 %v59
    %v1791 = vunpack.c.l.b16 %v60
    %v1792 = vunpack.c.h.b16 %v60
    %v1793 = vunpack.c.l.b16 %v61
    %v1794 = vunpack.c.h.b16 %v61
    %v1795 = vunpack.c.l.b16 %v62
    %v1796 = vunpack.c.h.b16 %v62
    %v1797 = vunpack.c.l.b16 %v63
    %v1798 = vunpack.c.h.b16 %v63
    %v1799 = vunpack.c.l.b16 %v64
    %v1800 = vunpack.c.h.b16 %v64
    %v1801 = vunpack.c.l.b16 %v65
    %v1802 = vunpack.c.h.b16 %v65
    %v1803 = vunpack.c.l.b16 %v66
    %v1804 = vunpack.c.h.b16 %v66
    %v1805 = vunpack.c.l.b16 %v67
    %v1806 = vunpack.c.h.b16 %v67
    %v1807 = vunpack.c.l.b16 %v68
    %v1808 = vunpack.c.h.b16 %v68
    %v1809 = vunpack.c.l.b16 %v69
    %v1810 = vunpack.c.h.b16 %v69
    %v1811 = vunpack.c.l.b16 %v70
    %v1812 = vunpack.c.h.b16 %v70
    %v1813 = vunpack.c.l.b16 %v71
    %v1814 = vunpack.c.h.b16 %v71
    %v1815 = vunpack.c.l.b16 %v72
    %v1816 = vunpack.c.h.b16 %v72
    %v1817 = vunpack.c.l.b16 %v73
    %v1818 = vunpack.c.h.b16 %v73
    %v1819 = vunpack.c.l.b16 %v74
    %v1820 = vunpack.c.h.b16 %v74
    %v1821 = vunpack.c.l.b16 %v75
    %v1822 = vunpack.c.h.b16 %v75
    %v1823 = vunpack.c.l.b16 %v76
    %v1824 = vunpack.c.h.b16 %v76
    %v1825 = vunpack.c.l.b16 %v77
    %v1826 = vunpack.c.h.b16 %v77
    %v1827 = vunpack.c.l.b16 %v78
    %v1828 = vunpack.c.h.b16 %v78
    %v1829 = vunpack.c.l.b16 %v79
    %v1830 = vunpack.c.h.b16 %v79
    %v1831 = vunpack.c.l.b16 %v80
    %v1832 = vunpack.c.h.b16 %v80
    %v1833 = vunpack.c.l.b16 %v81
    %v1834 = vunpack.c.h.b16 %v81
    %v1835 = vunpack.c.l.b16 %v82
    %v1836 = vunpack.c.h.b16 %v82
    %v1837 = vunpack.c.l.b16 %v83
    %v1838 = vunpack.c.h.b16 %v83
    %v1839 = vunpack.c.l.b16 %v84
    %v1840 = vunpack.c.h.b16 %v84
    %v1841 = vunpack.c.l.b16 %v85
    %v1842 = vunpack.c.h.b16 %v85
    %v1843 = vunpack.c.l.b16 %v86
    %v1844 = vunpack.c.h.b16 %v86
    %v1845 = vunpack.c.l.b16 %v87
    %v1846 = vunpack.c.h.b16 %v87
    %v1847 = vunpack.c.l.b16 %v88
    %v1848 = vunpack.c.h.b16 %v88
    %v1849 = vunpack.c.l.b16 %v89
    %v1850 = vunpack.c.h.b16 %v89
    %v1851 = vunpack.c.l.b16 %v90
    %v1852 = vunpack.c.h.b16 %v90
    %v1853 = vunpack.c.l.b16 %v91
    %v1854 = vunpack.c.h.b16 %v91
    %v1855 = vunpack.c.l.b16 %v92
    %v1856 = vunpack.c.h.b16 %v92
    %v1857 = vunpack.c.l.b16 %v93
    %v1858 = vunpack.c.h.b16 %v93
    %v1859 = vunpack.c.l.b16 %v94
    %v1860 = vunpack.c.h.b16 %v94
    %v1861 = vunpack.c.l.b16 %v95
    %v1862 = vunpack.c.h.b16 %v95
    %v1863 = vunpack.c.l.b16 %v96
    %v1864 = vunpack.c.h.b16 %v96
    %v1865 = vunpack.c.l.b16 %v97
    %v1866 = vunpack.c.h.b16 %v97
    %v1867 = vunpack.c.l.b16 %v98
    %v1868 = vunpack.c.h.b16 %v98
    %v1869 = vunpack.c.l.b16 %v99
    %v1870 = vunpack.c.h.b16 %v99
    %v1871 = vunpack.c.l.b16 %v100
    %v1872 = vunpack.c.h.b16 %v100
    %v1873 = vunpack.c.l.b16 %v101
    %v1874 = vunpack.c.h.b16 %v101
    %v1875 = vunpack.c.l.b16 %v102
    %v1876 = vunpack.c.h.b16 %v102
    %v1877 = vunpack.c.l.b16 %v103
    %v1878 = vunpack.c.h.b16 %v103
    %v1879 = vunpack.c.l.b16 %v104
    %v1880 = vunpack.c.h.b16 %v104
    %v1881 = vunpack.c.l.b16 %v105
    %v1882 = vunpack.c.h.b16 %v105
    %v1883 = vunpack.c.l.b16 %v106
    %v1884 = vunpack.c.h.b16 %v106
    %v1885 = vunpack.c.l.b16 %v107
    %v1886 = vunpack.c.h.b16 %v107
    %v1887 = vunpack.c.l.b16 %v108
    %v1888 = vunpack.c.h.b16 %v108
    %v1889 = vunpack.c.l.b16 %v109
    %v1890 = vunpack.c.h.b16 %v109
    %v1891 = vunpack.c.l.b16 %v110
    %v1892 = vunpack.c.h.b16 %v110
    %v1893 = vunpack.c.l.b16 %v111
    %v1894 = vunpack.c.h.b16 %v111
    %v1895 = vunpack.c.l.b16 %v112
    %v1896 = vunpack.c.h.b16 %v112
    %v1897 = vunpack.c.l.b16 %v113
    %v1898 = vunpack.c.h.b16 %v113
    %v1899 = vunpack.c.l.b16 %v114
    %v1900 = vunpack.c.h.b16 %v114
    %v1901 = vunpack.c.l.b16 %v115
    %v1902 = vunpack.c.h.b16 %v115
    %v1903 = vunpack.c.l.b16 %v116
    %v1904 = vunpack.c.h.b16 %v116
    %v1905 = vunpack.c.l.b16 %v117
    %v1906 = vunpack.c.h.b16 %v117
    %v1907 = vunpack.c.l.b16 %v118
    %v1908 = vunpack.c.h.b16 %v118
    %v1909 = vunpack.c.l.b16 %v119
    %v1910 = vunpack.c.h.b16 %v119
    %v1911 = vunpack.c.l.b16 %v120
    %v1912 = vunpack.c.h.b16 %v120
    %v1913 = vunpack.c.l.b16 %v121
    %v1914 = vunpack.c.h.b16 %v121
    %v1915 = vunpack.c.l.b16 %v122
    %v1916 = vunpack.c.h.b16 %v122
    %v1917 = vunpack.c.l.b16 %v123
    %v1918 = vunpack.c.h.b16 %v123
    %v1919 = vunpack.c.l.b16 %v124
    %v1920 = vunpack.c.h.b16 %v124
    %v1921 = vunpack.c.l.b16 %v125
    %v1922 = vunpack.c.h.b16 %v125
    %v1923 = vunpack.c.l.b16 %v126
    %v1924 = vunpack.c.h.b16 %v126
    %v1925 = vunpack.c.l.b16 %v127
    %v1926 = vunpack.c.h.b16 %v127
    %v1927 = vunpack.c.l.b16 %v128
    %v1928 = vunpack.c.h.b16 %v128
    %v1929 = vunpack.c.l.b16 %v129
    %v1930 = vunpack.c.h.b16 %v129
    %v1931 = vunpack.c.l.b16 %v130
    %v1932 = vunpack.c.h.b16 %v130
    %v1933 = vunpack.c.l.b16 %v131
    %v1934 = vunpack.c.h.b16 %v131
    %v1935 = vunpack.c.l.b16 %v132
    %v1936 = vunpack.c.h.b16 %v132
    %v1937 = vunpack.c.l.b16 %v133
    %v1938 = vunpack.c.h.b16 %v133
    %v1939 = vunpack.c.l.b16 %v134
    %v1940 = vunpack.c.h.b16 %v134
    %v1941 = vunpack.c.l.b16 %v135
    %v1942 = vunpack.c.h.b16 %v135
    %v1943 = vunpack.c.l.b16 %v136
    %v1944 = vunpack.c.h.b16 %v136
    %v1945 = vunpack.c.l.b16 %v137
    %v1946 = vunpack.c.h.b16 %v137
    %v1947 = vunpack.c.l.b16 %v138
    %v1948 = vunpack.c.h.b16 %v138
    %v1949 = vunpack.c.l.b16 %v139
    %v1950 = vunpack.c.h.b16 %v139
    %v1951 = vunpack.c.l.b16 %v140
    %v1952 = vunpack.c.h.b16 %v140
    %v1953 = vunpack.c.l.b16 %v141
    %v1954 = vunpack.c.h.b16 %v141
    %v1955 = vunpack.c.l.b16 %v142
    %v1956 = vunpack.c.h.b16 %v142
    %v1957 = vunpack.c.l.b16 %v143
    %v1958 = vunpack.c.h.b16 %v143
    %v1959 = vunpack.c.l.b16 %v144
    %v1960 = vunpack.c.h.b16 %v144
    %v1961 = vunpack.c.l.b16 %v145
    %v1962 = vunpack.c.h.b16 %v145
    %v1963 = vunpack.c.l.b16 %v146
    %v1964 = vunpack.c.h.b16 %v146
    %v1965 = vunpack.c.l.b16 %v147
    %v1966 = vunpack.c.h.b16 %v147
    %v1967 = vunpack.c.l.b16 %v148
    %v1968 = vunpack.c.h.b16 %v148
    %v1969 = vunpack.c.l.b16 %v149
    %v1970 = vunpack.c.h.b16 %v149
    %v1971 = vunpack.c.l.b16 %v150
    %v1972 = vunpack.c.h.b16 %v150
    %v1973 = vunpack.c.l.b16 %v151
    %v1974 = vunpack.c.h.b16 %v151
    %v1975 = vunpack.c.l.b16 %v152
    %v1976 = vunpack.c.h.b16 %v152
    %v1977 = vunpack.c.l.b16 %v153
    %v1978 = vunpack.c.h.b16 %v153
    %v1979 = vunpack.c.l.b16 %v154
    %v1980 = vunpack.c.h.b16 %v154
    %v1981 = vunpack.c.l.b16 %v155
    %v1982 = vunpack.c.h.b16 %v155
    %v1983 = vunpack.c.l.b16 %v156
    %v1984 = vunpack.c.h.b16 %v156
    %v1985 = vunpack.c.l.b16 %v157
    %v1986 = vunpack.c.h.b16 %v157
    %v1987 = vunpack.c.l.b16 %v158
    %v1988 = vunpack.c.h.b16 %v158
    %v1989 = vunpack.c.l.b16 %v159
    %v1990 = vunpack.c.h.b16 %v159
    %v1991 = vunpack.c.l.b16 %v160
    %v1992 = vunpack.c.h.b16 %v160
    %v1993 = vunpack.c.l.b16 %v161
    %v1994 = vunpack.c.h.b16 %v161
    %v1995 = vunpack.c.l.b16 %v162
    %v1996 = vunpack.c.h.b16 %v162
    %v1997 = vunpack.c.l.b16 %v163
    %v1998 = vunpack.c.h.b16 %v163
    %v1999 = vunpack.c.l.b16 %v164
    %v2000 = vunpack.c.h.b16 %v164
    %v2001 = vunpack.c.l.b16 %v165
    %v2002 = vunpack.c.h.b16 %v165
    %v2003 = vunpack.c.l.b16 %v166
    %v2004 = vunpack.c.h.b16 %v166
    %v2005 = vunpack.c.l.b16 %v167
    %v2006 = vunpack.c.h.b16 %v167
    %v2007 = vunpack.c.l.b16 %v168
    %v2008 = vunpack.c.h.b16 %v168
    %v2009 = vunpack.c.l.b16 %v169
    %v2010 = vunpack.c.h.b16 %v169
    %v2011 = vunpack.c.l.b16 %v170
    %v2012 = vunpack.c.h.b16 %v170
    %v2013 = vunpack.c.l.b16 %v171
    %v2014 = vunpack.c.h.b16 %v171
    %v2015 = vunpack.c.l.b16 %v172
    %v2016 = vunpack.c.h.b16 %v172
    %v2017 = vunpack.c.l.b16 %v173
    %v2018 = vunpack.c.h.b16 %v173
    %v2019 = vunpack.c.l.b16 %v174
    %v2020 = vunpack.c.h.b16 %v174
    %v2021 = vunpack.c.l.b16 %v175
    %v2022 = vunpack.c.h.b16 %v175
    %v2023 = vunpack.c.l.b16 %v176
    %v2024 = vunpack.c.h.b16 %v176
    %v2025 = vunpack.c.l.b16 %v177
    %v2026 = vunpack.c.h.b16 %v177
    %v2027 = vunpack.c.l.b16 %v178
    %v2028 = vunpack.c.h.b16 %v178
    %v2029 = vunpack.c.l.b16 %v179
    %v2030 = vunpack.c.h.b16 %v179
    %v2031 = vunpack.c.l.b16 %v180
    %v2032 = vunpack.c.h.b16 %v180
    %v2033 = vunpack.c.l.b16 %v181
    %v2034 = vunpack.c.h.b16 %v181
    %v2035 = vunpack.c.l.b16 %v182
    %v2036 = vunpack.c.h.b16 %v182
    %v2037 = vunpack.c.l.b16 %v183
    %v2038 = vunpack.c.h.b16 %v183
    %v2039 = vunpack.c.l.b16 %v184
    %v2040 = vunpack.c.h.b16 %v184
    %v2041 = vunpack.c.l.b16 %v185
    %v2042 = vunpack.c.h.b16 %v185
    %v2043 = vunpack.c.l.b16 %v186
    %v2044 = vunpack.c.h.b16 %v186
    %v2045 = vunpack.c.l.b16 %v187
    %v2046 = vunpack.c.h.b16 %v187
    %v2047 = vunpack.c.l.b16 %v188
    %v2048 = vunpack.c.h.b16 %v188
    %v2049 = vunpack.c.l.b16 %v189
    %v2050 = vunpack.c.h.b16 %v189
    %v2051 = vunpack.c.l.b16 %v190
    %v2052 = vunpack.c.h.b16 %v190
    %v2053 = vunpack.c.l.b16 %v191
    %v2054 = vunpack.c.h.b16 %v191
    %v2055 = vunpack.c.l.b16 %v192
    %v2056 = vunpack.c.h.b16 %v192
    %v2057 = vunpack.c.l.b16 %v193
    %v2058 = vunpack.c.h.b16 %v193
    %v2059 = vunpack.c.l.b16 %v194
    %v2060 = vunpack.c.h.b16 %v194
    %v2061 = vunpack.c.l.b16 %v195
    %v2062 = vunpack.c.h.b16 %v195
    %v2063 = vunpack.c.l.b16 %v196
    %v2064 = vunpack.c.h.b16 %v196
    %v2065 = vunpack.c.l.b16 %v197
    %v2066 = vunpack.c.h.b16 %v197
    %v2067 = vunpack.c.l.b16 %v198
    %v2068 = vunpack.c.h.b16 %v198
    %v2069 = vunpack.c.l.b16 %v199
    %v2070 = vunpack.c.h.b16 %v199
    %v2071 = vunpack.c.l.b16 %v200
    %v2072 = vunpack.c.h.b16 %v200
    %v2073 = vunpack.c.l.b16 %v201
    %v2074 = vunpack.c.h.b16 %v201
    %v2075 = vunpack.c.l.b16 %v202
    %v2076 = vunpack.c.h.b16 %v202
    %v2077 = vunpack.c.l.b16 %v203
    %v2078 = vunpack.c.h.b16 %v203
    %v2079 = vunpack.c.l.b16 %v204
    %v2080 = vunpack.c.h.b16 %v204
    %v2081 = vunpack.c.l.b16 %v205
    %v2082 = vunpack.c.h.b16 %v205
    %v2083 = vunpack.c.l.b16 %v206
    %v2084 = vunpack.c.h.b16 %v206
    %v2085 = vunpack.c.l.b16 %v207
    %v2086 = vunpack.c.h.b16 %v207
    %v2087 = vunpack.c.l.b16 %v208
    %v2088 = vunpack.c.h.b16 %v208
    %v2089 = vunpack.c.l.b16 %v209
    %v2090 = vunpack.c.h.b16 %v209
    %v2091 = vunpack.c.l.b16 %v210
    %v2092 = vunpack.c.h.b16 %v210
    %v2093 = vunpack.c.l.b16 %v211
    %v2094 = vunpack.c.h.b16 %v211
    %v2095 = vunpack.c.l.b16 %v212
    %v2096 = vunpack.c.h.b16 %v212
    %v2097 = vunpack.c.l.b16 %v213
    %v2098 = vunpack.c.h.b16 %v213
    %v2099 = vunpack.c.l.b16 %v214
    %v2100 = vunpack.c.h.b16 %v214
    %v2101 = vunpack.c.l.b16 %v215
    %v2102 = vunpack.c.h.b16 %v215
    %v2103 = vunpack.c.l.b16 %v216
    %v2104 = vunpack.c.h.b16 %v216
    %v2105 = vunpack.c.l.b16 %v217
    %v2106 = vunpack.c.h.b16 %v217
    %v2107 = vunpack.c.l.b16 %v218
    %v2108 = vunpack.c.h.b16 %v218
    %v2109 = vunpack.c.l.b16 %v219
    %v2110 = vunpack.c.h.b16 %v219
    %v2111 = vunpack.c.l.b16 %v220
    %v2112 = vunpack.c.h.b16 %v220
    %v2113 = vunpack.c.l.b16 %v221
    %v2114 = vunpack.c.h.b16 %v221
    %v2115 = vunpack.c.l.b16 %v222
    %v2116 = vunpack.c.h.b16 %v222
    %v2117 = vunpack.c.l.b16 %v223
    %v2118 = vunpack.c.h.b16 %v223
    %v2119 = vunpack.c.l.b16 %v224
    %v2120 = vunpack.c.h.b16 %v224
    %v2121 = vunpack.c.l.b16 %v225
    %v2122 = vunpack.c.h.b16 %v225
    %v2123 = vunpack.c.l.b16 %v226
    %v2124 = vunpack.c.h.b16 %v226
    %v2125 = vunpack.c.l.b16 %v227
    %v2126 = vunpack.c.h.b16 %v227
    %v2127 = vunpack.c.l.b16 %v228
    %v2128 = vunpack.c.h.b16 %v228
    %v2129 = vunpack.c.l.b16 %v229
    %v2130 = vunpack.c.h.b16 %v229
    %v2131 = vunpack.c.l.b16 %v230
    %v2132 = vunpack.c.h.b16 %v230
    %v2133 = vunpack.c.l.b16 %v231
    %v2134 = vunpack.c.h.b16 %v231
    %v2135 = vunpack.c.l.b16 %v232
    %v2136 = vunpack.c.h.b16 %v232
    %v2137 = vunpack.c.l.b16 %v233
    %v2138 = vunpack.c.h.b16 %v233
    %v2139 = vunpack.c.l.b16 %v234
    %v2140 = vunpack.c.h.b16 %v234
    %v2141 = vunpack.c.l.b16 %v235
    %v2142 = vunpack.c.h.b16 %v235
    %v2143 = vunpack.c.l.b16 %v236
    %v2144 = vunpack.c.h.b16 %v236
    %v2145 = vunpack.c.l.b16 %v237
    %v2146 = vunpack.c.h.b16 %v237
    %v2147 = vunpack.c.l.b16 %v238
    %v2148 = vunpack.c.h.b16 %v238
    %v2149 = vunpack.c.l.b16 %v239
    %v2150 = vunpack.c.h.b16 %v239
    %v2151 = vunpack.c.l.b16 %v240
    %v2152 = vunpack.c.h.b16 %v240
    %v2153 = vunpack.c.l.b16 %v241
    %v2154 = vunpack.c.h.b16 %v241
    %v2155 = vunpack.c.l.b16 %v242
    %v2156 = vunpack.c.h.b16 %v242
    %v2157 = vunpack.c.l.b16 %v243
    %v2158 = vunpack.c.h.b16 %v243
    %v2159 = vunpack.c.l.b16 %v244
    %v2160 = vunpack.c.h.b16 %v244
    %v2161 = vunpack.c.l.b16 %v245
    %v2162 = vunpack.c.h.b16 %v245
    %v2163 = vunpack.c.l.b16 %v246
    %v2164 = vunpack.c.h.b16 %v246
    %v2165 = vunpack.c.l.b16 %v247
    %v2166 = vunpack.c.h.b16 %v247
    %v2167 = vunpack.c.l.b16 %v248
    %v2168 = vunpack.c.h.b16 %v248
    %v2169 = vunpack.c.l.b16 %v249
    %v2170 = vunpack.c.h.b16 %v249
    %v2171 = vunpack.c.l.b16 %v250
    %v2172 = vunpack.c.h.b16 %v250
    %v2173 = vunpack.c.l.b16 %v251
    %v2174 = vunpack.c.h.b16 %v251
    %v2175 = vunpack.c.l.b16 %v252
    %v2176 = vunpack.c.h.b16 %v252
    %v2177 = vunpack.c.l.b16 %v253
    %v2178 = vunpack.c.h.b16 %v253
    %v2179 = vunpack.c.l.b16 %v254
    %v2180 = vunpack.c.h.b16 %v254
    %v2181 = vunpack.c.l.b16 %v255
    %v2182 = vunpack.c.h.b16 %v255
    %v2183 = vunpack.c.l.b16 %v256
    %v2184 = vunpack.c.h.b16 %v256
    %v2185 = vunpack.c.l.b16 %v257
    %v2186 = vunpack.c.h.b16 %v257
    %v2187 = vunpack.c.l.b16 %v258
    %v2188 = vunpack.c.h.b16 %v258
    %v2189 = vunpack.c.l.b16 %v259
    %v2190 = vunpack.c.h.b16 %v259
    %v2191 = vunpack.c.l.b16 %v260
    %v2192 = vunpack.c.h.b16 %v260
    %v2193 = vunpack.c.l.b16 %v261
    %v2194 = vunpack.c.h.b16 %v261
    %v2195 = vunpack.c.l.b16 %v262
    %v2196 = vunpack.c.h.b16 %v262
    %v2197 = vunpack.c.l.b16 %v263
    %v2198 = vunpack.c.h.b16 %v263
    %v2199 = vunpack.c.l.b16 %v264
    %v2200 = vunpack.c.h.b16 %v264
    %v2201 = vunpack.c.l.b16 %v265
    %v2202 = vunpack.c.h.b16 %v265
    %v2203 = vunpack.c.l.b16 %v266
    %v2204 = vunpack.c.h.b16 %v266
    %v2205 = vunpack.c.l.b16 %v267
    %v2206 = vunpack.c.h.b16 %v267
    %v2207 = vunpack.c.l.b16 %v268
    %v2208 = vunpack.c.h.b16 %v268
    %v2209 = vunpack.c.l.b16 %v269
    %v2210 = vunpack.c.h.b16 %v269
    %v2211 = vunpack.c.l.b16 %v270
    %v2212 = vunpack.c.h.b16 %v270
    %v2213 = vunpack.c.l.b16 %v271
    %v2214 = vunpack.c.h.b16 %v271
    %v2215 = vunpack.c.l.b16 %v272
    %v2216 = vunpack.c.h.b16 %v272
    %v2217 = vunpack.c.l.b16 %v273
    %v2218 = vunpack.c.h.b16 %v273
    %v2219 = vunpack.c.l.b16 %v274
    %v2220 = vunpack.c.h.b16 %v274
    %v2221 = vunpack.c.l.b16 %v275
    %v2222 = vunpack.c.h.b16 %v275
    %v2223 = vunpack.c.l.b16 %v276
    %v2224 = vunpack.c.h.b16 %v276
    %v2225 = vunpack.c.l.b16 %v277
    %v2226 = vunpack.c.h.b16 %v277
    %v2227 = vunpack.c.l.b16 %v278
    %v2228 = vunpack.c.h.b16 %v278
    %v2229 = vunpack.c.l.b16 %v279
    %v2230 = vunpack.c.h.b16 %v279
    %v2231 = vunpack.c.l.b16 %v280
    %v2232 = vunpack.c.h.b16 %v280
    %v2233 = vunpack.c.l.b16 %v281
    %v2234 = vunpack.c.h.b16 %v281
    %v2235 = vunpack.c.l.b16 %v282
    %v2236 = vunpack.c.h.b16 %v282
    %v2237 = vunpack.c.l.b16 %v283
    %v2238 = vunpack.c.h.b16 %v283
    %v2239 = vunpack.c.l.b16 %v284
    %v2240 = vunpack.c.h.b16 %v284
    %v2241 = vunpack.c.l.b16 %v285
    %v2242 = vunpack.c.h.b16 %v285
    %v2243 = vunpack.c.l.b16 %v286
    %v2244 = vunpack.c.h.b16 %v286
    %v2245 = vunpack.c.l.b16 %v287
    %v2246 = vunpack.c.h.b16 %v287
    %v2247 = vunpack.c.l.b16 %v288
    %v2248 = vunpack.c.h.b16 %v288
    %v2249 = vunpack.c.l.b16 %v289
    %v2250 = vunpack.c.h.b16 %v289
    %v2251 = vunpack.c.l.b16 %v290
    %v2252 = vunpack.c.h.b16 %v290
    %v2253 = vunpack.c.l.b16 %v291
    %v2254 = vunpack.c.h.b16 %v291
    %v2255 = vunpack.c.l.b16 %v292
    %v2256 = vunpack.c.h.b16 %v292
    %v2257 = vunpack.c.l.b16 %v293
    %v2258 = vunpack.c.h.b16 %v293
    %v2259 = vunpack.c.l.b16 %v294
    %v2260 = vunpack.c.h.b16 %v294
    %v2261 = vunpack.c.l.b16 %v295
    %v2262 = vunpack.c.h.b16 %v295
    %v2263 = vunpack.c.l.b16 %v296
    %v2264 = vunpack.c.h.b16 %v296
    %v2265 = vunpack.c.l.b16 %v297
    %v2266 = vunpack.c.h.b16 %v297
    %v2267 = vunpack.c.l.b16 %v298
    %v2268 = vunpack.c.h.b16 %v298
    %v2269 = vunpack.c.l.b16 %v299
    %v2270 = vunpack.c.h.b16 %v299
    %v2271 = vunpack.c.l.b16 %v300
    %v2272 = vunpack.c.h.b16 %v300
    %v2273 = vunpack.c.l.b16 %v301
    %v2274 = vunpack.c.h.b16 %v301
    %v2275 = vunpack.c.l.b16 %v302
    %v2276 = vunpack.c.h.b16 %v302
    %v2277 = vunpack.c.l.b16 %v303
    %v2278 = vunpack.c.h.b16 %v303
    %v2279 = vunpack.c.l.b16 %v304
    %v2280 = vunpack.c.h.b16 %v304
    %v2281 = vunpack.c.l.b16 %v305
    %v2282 = vunpack.c.h.b16 %v305
    %v2283 = vunpack.c.l.b16 %v306
    %v2284 = vunpack.c.h.b16 %v306
    %v2285 = vunpack.c.l.b16 %v307
    %v2286 = vunpack.c.h.b16 %v307
    %v2287 = vunpack.c.l.b16 %v308
    %v2288 = vunpack.c.h.b16 %v308
    %v2289 = vunpack.c.l.b16 %v309
    %v2290 = vunpack.c.h.b16 %v309
    %v2291 = vunpack.c.l.b16 %v310
    %v2292 = vunpack.c.h.b16 %v310
    %v2293 = vunpack.c.l.b16 %v311
    %v2294 = vunpack.c.h.b16 %v311
    %v2295 = vunpack.c.l.b16 %v312
    %v2296 = vunpack.c.h.b16 %v312
    %v2297 = vunpack.c.l.b16 %v313
    %v2298 = vunpack.c.h.b16 %v313
    %v2299 = vunpack.c.l.b16 %v314
    %v2300 = vunpack.c.h.b16 %v314
    %v2301 = vunpack.c.l.b16 %v315
    %v2302 = vunpack.c.h.b16 %v315
    %v2303 = vunpack.c.l.b16 %v316
    %v2304 = vunpack.c.h.b16 %v316
    %v2305 = vunpack.c.l.b16 %v317
    %v2306 = vunpack.c.h.b16 %v317
    %v2307 = vunpack.c.l.b16 %v318
    %v2308 = vunpack.c.h.b16 %v318
    %v2309 = vunpack.c.l.b16 %v319
    %v2310 = vunpack.c.h.b16 %v319
    %v2311 = vunpack.c.l.b16 %v320
    %v2312 = vunpack.c.h.b16 %v320
    %v2313 = vunpack.c.l.b16 %v321
    %v2314 = vunpack.c.h.b16 %v321
    %v2315 = vunpack.c.l.b16 %v322
    %v2316 = vunpack.c.h.b16 %v322
    %v2317 = vunpack.c.l.b16 %v323
    %v2318 = vunpack.c.h.b16 %v323
    %v2319 = vunpack.c.l.b16 %v324
    %v2320 = vunpack.c.h.b16 %v324
    %v2321 = vunpack.c.l.b16 %v325
    %v2322 = vunpack.c.h.b16 %v325
    %v2323 = vunpack.c.l.b16 %v326
    %v2324 = vunpack.c.h.b16 %v326
    %v2325 = vunpack.c.l.b16 %v327
    %v2326 = vunpack.c.h.b16 %v327
    %v2327 = vunpack.c.l.b16 %v328
    %v2328 = vunpack.c.h.b16 %v328
    %v2329 = vunpack.c.l.b16 %v329
    %v2330 = vunpack.c.h.b16 %v329
    %v2331 = vunpack.c.l.b16 %v330
    %v2332 = vunpack.c.h.b16 %v330
    %v2333 = vunpack.c.l.b16 %v331
    %v2334 = vunpack.c.h.b16 %v331
    %v2335 = vunpack.c.l.b16 %v332
    %v2336 = vunpack.c.h.b16 %v332
    %v2337 = vunpack.c.l.b16 %v333
    %v2338 = vunpack.c.h.b16 %v333
    %v2339 = vunpack.c.l.b16 %v334
    %v2340 = vunpack.c.h.b16 %v334
    %v2341 = vunpack.c.l.b16 %v335
    %v2342 = vunpack.c.h.b16 %v335
    %v2343 = vunpack.c.l.b16 %v336
    %v2344 = vunpack.c.h.b16 %v336
    %v2345 = vunpack.c.l.b16 %v337
    %v2346 = vunpack.c.h.b16 %v337
    %v2347 = vunpack.c.l.b16 %v338
    %v2348 = vunpack.c.h.b16 %v338
    %v2349 = vunpack.c.l.b16 %v339
    %v2350 = vunpack.c.h.b16 %v339
    %v2351 = vunpack.c.l.b16 %v340
    %v2352 = vunpack.c.h.b16 %v340
    %v2353 = vunpack.c.l.b16 %v341
    %v2354 = vunpack.c.h.b16 %v341
    %v2355 = vunpack.c.l.b16 %v342
    %v2356 = vunpack.c.h.b16 %v342
    %v2357 = vunpack.c.l.b16 %v343
    %v2358 = vunpack.c.h.b16 %v343
    %v2359 = vunpack.c.l.b16 %v344
    %v2360 = vunpack.c.h.b16 %v344
    %v2361 = vunpack.c.l.b16 %v345
    %v2362 = vunpack.c.h.b16 %v345
    %v2363 = vunpack.c.l.b16 %v346
    %v2364 = vunpack.c.h.b16 %v346
    %v2365 = vunpack.c.l.b16 %v347
    %v2366 = vunpack.c.h.b16 %v347
    %v2367 = vunpack.c.l.b16 %v348
    %v2368 = vunpack.c.h.b16 %v348
    %v2369 = vunpack.c.l.b16 %v349
    %v2370 = vunpack.c.h.b16 %v349
    %v2371 = vunpack.c.l.b16 %v350
    %v2372 = vunpack.c.h.b16 %v350
    %v2373 = vunpack.c.l.b16 %v351
    %v2374 = vunpack.c.h.b16 %v351
    %v2375 = vunpack.c.l.b16 %v352
    %v2376 = vunpack.c.h.b16 %v352
    %v2377 = vunpack.c.l.b16 %v353
    %v2378 = vunpack.c.h.b16 %v353
    %v2379 = vunpack.c.l.b16 %v354
    %v2380 = vunpack.c.h.b16 %v354
    %v2381 = vunpack.c.l.b16 %v355
    %v2382 = vunpack.c.h.b16 %v355
    %v2383 = vunpack.c.l.b16 %v356
    %v2384 = vunpack.c.h.b16 %v356
    %v2385 = vunpack.c.l.b16 %v357
    %v2386 = vunpack.c.h.b16 %v357
    %v2387 = vunpack.c.l.b16 %v358
    %v2388 = vunpack.c.h.b16 %v358
    %v2389 = vunpack.c.l.b16 %v359
    %v2390 = vunpack.c.h.b16 %v359
    %v2391 = vunpack.c.l.b16 %v360
    %v2392 = vunpack.c.h.b16 %v360
    %v2393 = vunpack.c.l.b16 %v361
    %v2394 = vunpack.c.h.b16 %v361
    %v2395 = vunpack.c.l.b16 %v362
    %v2396 = vunpack.c.h.b16 %v362
    %v2397 = vunpack.c.l.b16 %v363
    %v2398 = vunpack.c.h.b16 %v363
    %v2399 = vunpack.c.l.b16 %v364
    %v2400 = vunpack.c.h.b16 %v364
    %v2401 = vunpack.c.l.b16 %v365
    %v2402 = vunpack.c.h.b16 %v365
    %v2403 = vunpack.c.l.b16 %v366
    %v2404 = vunpack.c.h.b16 %v366
    %v2405 = vunpack.c.l.b16 %v367
    %v2406 = vunpack.c.h.b16 %v367
    %v2407 = vunpack.c.l.b16 %v368
    %v2408 = vunpack.c.h.b16 %v368
    %v2409 = vunpack.c.l.b16 %v369
    %v2410 = vunpack.c.h.b16 %v369
    %v2411 = vunpack.c.l.b16 %v370
    %v2412 = vunpack.c.h.b16 %v370
    %v2413 = vunpack.c.l.b16 %v371
    %v2414 = vunpack.c.h.b16 %v371
    %v2415 = vunpack.c.l.b16 %v372
    %v2416 = vunpack.c.h.b16 %v372
    %v2417 = vunpack.c.l.b16 %v373
    %v2418 = vunpack.c.h.b16 %v373
    %v2419 = vunpack.c.l.b16 %v374
    %v2420 = vunpack.c.h.b16 %v374
    %v2421 = vunpack.c.l.b16 %v375
    %v2422 = vunpack.c.h.b16 %v375
    %v2423 = vunpack.c.l.b16 %v376
    %v2424 = vunpack.c.h.b16 %v376
    %v2425 = vunpack.c.l.b16 %v377
    %v2426 = vunpack.c.h.b16 %v377
    %v2427 = vunpack.c.l.b16 %v378
    %v2428 = vunpack.c.h.b16 %v378
    %v2429 = vunpack.c.l.b16 %v379
    %v2430 = vunpack.c.h.b16 %v379
    %v2431 = vunpack.c.l.b16 %v380
    %v2432 = vunpack.c.h.b16 %v380
    %v2433 = vunpack.c.l.b16 %v381
    %v2434 = vunpack.c.h.b16 %v381
    %v2435 = vunpack.c.l.b16 %v382
    %v2436 = vunpack.c.h.b16 %v382
    %v2437 = vunpack.c.l.b16 %v383
    %v2438 = vunpack.c.h.b16 %v383
    %v2439 = vunpack.c.l.b16 %v384
    %v2440 = vunpack.c.h.b16 %v384
    %v2441 = vunpack.c.l.b16 %v385
    %v2442 = vunpack.c.h.b16 %v385
    %v2443 = vunpack.c.l.b16 %v386
    %v2444 = vunpack.c.h.b16 %v386
    %v2445 = vunpack.c.l.b16 %v387
    %v2446 = vunpack.c.h.b16 %v387
    %v2447 = vunpack.c.l.b16 %v388
    %v2448 = vunpack.c.h.b16 %v388
    %v2449 = vunpack.c.l.b16 %v389
    %v2450 = vunpack.c.h.b16 %v389
    %v2451 = vunpack.c.l.b16 %v390
    %v2452 = vunpack.c.h.b16 %v390
    %v2453 = vunpack.c.l.b16 %v391
    %v2454 = vunpack.c.h.b16 %v391
    %v2455 = vunpack.c.l.b16 %v392
    %v2456 = vunpack.c.h.b16 %v392
    %v2457 = vunpack.c.l.b16 %v393
    %v2458 = vunpack.c.h.b16 %v393
    %v2459 = vunpack.c.l.b16 %v394
    %v2460 = vunpack.c.h.b16 %v394
    %v2461 = vunpack.c.l.b16 %v395
    %v2462 = vunpack.c.h.b16 %v395
    %v2463 = vunpack.c.l.b16 %v396
    %v2464 = vunpack.c.h.b16 %v396
    %v2465 = vunpack.c.l.b16 %v397
    %v2466 = vunpack.c.h.b16 %v397
    %v2467 = vunpack.c.l.b16 %v398
    %v2468 = vunpack.c.h.b16 %v398
    %v2469 = vunpack.c.l.b16 %v399
    %v2470 = vunpack.c.h.b16 %v399
    %v2471 = vunpack.c.l.b16 %v400
    %v2472 = vunpack.c.h.b16 %v400
    %v2473 = vunpack.c.l.b16 %v401
    %v2474 = vunpack.c.h.b16 %v401
    %v2475 = vunpack.c.l.b16 %v402
    %v2476 = vunpack.c.h.b16 %v402
    %v2477 = vunpack.c.l.b16 %v403
    %v2478 = vunpack.c.h.b16 %v403
    %v2479 = vunpack.c.l.b16 %v404
    %v2480 = vunpack.c.h.b16 %v404
    %v2481 = vunpack.c.l.b16 %v405
    %v2482 = vunpack.c.h.b16 %v405
    %v2483 = vunpack.c.l.b16 %v406
    %v2484 = vunpack.c.h.b16 %v406
    %v2485 = vunpack.c.l.b16 %v407
    %v2486 = vunpack.c.h.b16 %v407
    %v2487 = vunpack.c.l.b16 %v408
    %v2488 = vunpack.c.h.b16 %v408
    %v2489 = vunpack.c.l.b16 %v409
    %v2490 = vunpack.c.h.b16 %v409
    %v2491 = vunpack.c.l.b16 %v410
    %v2492 = vunpack.c.h.b16 %v410
    %v2493 = vunpack.c.l.b16 %v411
    %v2494 = vunpack.c.h.b16 %v411
    %v2495 = vunpack.c.l.b16 %v412
    %v2496 = vunpack.c.h.b16 %v412
    %v2497 = vunpack.c.l.b16 %v413
    %v2498 = vunpack.c.h.b16 %v413
    %v2499 = vunpack.c.l.b16 %v414
    %v2500 = vunpack.c.h.b16 %v414
    %v2501 = vunpack.c.l.b16 %v415
    %v2502 = vunpack.c.h.b16 %v415
    %v2503 = vunpack.c.l.b16 %v416
    %v2504 = vunpack.c.h.b16 %v416
    %v2505 = vunpack.c.l.b16 %v417
    %v2506 = vunpack.c.h.b16 %v417
    %v2507 = vunpack.c.l.b16 %v418
    %v2508 = vunpack.c.h.b16 %v418
    %v2509 = vunpack.c.l.b16 %v419
    %v2510 = vunpack.c.h.b16 %v419
    %v2511 = vunpack.c.l.b16 %v420
    %v2512 = vunpack.c.h.b16 %v420
    %v2513 = vunpack.c.l.b16 %v421
    %v2514 = vunpack.c.h.b16 %v421
    %v2515 = vunpack.c.l.b16 %v422
    %v2516 = vunpack.c.h.b16 %v422
    %v2517 = vunpack.c.l.b16 %v423
    %v2518 = vunpack.c.h.b16 %v423
    %v2519 = vunpack.c.l.b16 %v424
    %v2520 = vunpack.c.h.b16 %v424
    %v2521 = vunpack.c.l.b16 %v425
    %v2522 = vunpack.c.h.b16 %v425
    %v2523 = vunpack.c.l.b16 %v426
    %v2524 = vunpack.c.h.b16 %v426
    %v2525 = vunpack.c.l.b16 %v427
    %v2526 = vunpack.c.h.b16 %v427
    %v2527 = vunpack.c.l.b16 %v428
    %v2528 = vunpack.c.h.b16 %v428
    %v2529 = vunpack.c.l.b16 %v429
    %v2530 = vunpack.c.h.b16 %v429
    %v2531 = vunpack.c.l.b16 %v430
    %v2532 = vunpack.c.h.b16 %v430
    %v2533 = vunpack.c.l.b16 %v431
    %v2534 = vunpack.c.h.b16 %v431
    %v2535 = vunpack.c.l.b16 %v432
    %v2536 = vunpack.c.h.b16 %v432
    %v2537 = vunpack.c.l.b16 %v433
    %v2538 = vunpack.c.h.b16 %v433
    %v2539 = vunpack.c.l.b16 %v434
    %v2540 = vunpack.c.h.b16 %v434
    %v2541 = vunpack.c.l.b16 %v435
    %v2542 = vunpack.c.h.b16 %v435
    %v2543 = vunpack.c.l.b16 %v436
    %v2544 = vunpack.c.h.b16 %v436
    %v2545 = vunpack.c.l.b16 %v437
    %v2546 = vunpack.c.h.b16 %v437
    %v2547 = vunpack.c.l.b16 %v438
    %v2548 = vunpack.c.h.b16 %v438
    %v2549 = vunpack.c.l.b16 %v439
    %v2550 = vunpack.c.h.b16 %v439
    %v2551 = vunpack.c.l.b16 %v440
    %v2552 = vunpack.c.h.b16 %v440
    %v2553 = vunpack.c.l.b16 %v441
    %v2554 = vunpack.c.h.b16 %v441
    %v2555 = vunpack.c.l.b16 %v442
    %v2556 = vunpack.c.h.b16 %v442
    %v2557 = vunpack.c.l.b16 %v443
    %v2558 = vunpack.c.h.b16 %v443
    %v2559 = vunpack.c.l.b16 %v444
    %v2560 = vunpack.c.h.b16 %v444
    %v2561 = vunpack.c.l.b16 %v445
    %v2562 = vunpack.c.h.b16 %v445
    %v2563 = vunpack.c.l.b16 %v446
    %v2564 = vunpack.c.h.b16 %v446
    %v2565 = vunpack.c.l.b16 %v447
    %v2566 = vunpack.c.h.b16 %v447
    %v2567 = vunpack.c.l.b16 %v448
    %v2568 = vunpack.c.h.b16 %v448
    %v2569 = vunpack.c.l.b16 %v449
    %v2570 = vunpack.c.h.b16 %v449
    %v2571 = vunpack.c.l.b16 %v450
    %v2572 = vunpack.c.h.b16 %v450
    %v2573 = vunpack.c.l.b16 %v451
    %v2574 = vunpack.c.h.b16 %v451
    %v2575 = vunpack.c.l.b16 %v452
    %v2576 = vunpack.c.h.b16 %v452
    %v2577 = vunpack.c.l.b16 %v453
    %v2578 = vunpack.c.h.b16 %v453
    %v2579 = vunpack.c.l.b16 %v454
    %v2580 = vunpack.c.h.b16 %v454
    %v2581 = vunpack.c.l.b16 %v455
    %v2582 = vunpack.c.h.b16 %v455
    %v2583 = vunpack.c.l.b16 %v456
    %v2584 = vunpack.c.h.b16 %v456
    %v2585 = vunpack.c.l.b16 %v457
    %v2586 = vunpack.c.h.b16 %v457
    %v2587 = vunpack.c.l.b16 %v458
    %v2588 = vunpack.c.h.b16 %v458
    %v2589 = vunpack.c.l.b16 %v459
    %v2590 = vunpack.c.h.b16 %v459
    %v2591 = vunpack.c.l.b16 %v460
    %v2592 = vunpack.c.h.b16 %v460
    %v2593 = vunpack.c.l.b16 %v461
    %v2594 = vunpack.c.h.b16 %v461
    %v2595 = vunpack.c.l.b16 %v462
    %v2596 = vunpack.c.h.b16 %v462
    %v2597 = vunpack.c.l.b16 %v463
    %v2598 = vunpack.c.h.b16 %v463
    %v2599 = vunpack.c.l.b16 %v464
    %v2600 = vunpack.c.h.b16 %v464
    %v2601 = vunpack.c.l.b16 %v465
    %v2602 = vunpack.c.h.b16 %v465
    %v2603 = vunpack.c.l.b16 %v466
    %v2604 = vunpack.c.h.b16 %v466
    %v2605 = vunpack.c.l.b16 %v467
    %v2606 = vunpack.c.h.b16 %v467
    %v2607 = vunpack.c.l.b16 %v468
    %v2608 = vunpack.c.h.b16 %v468
    %v2609 = vunpack.c.l.b16 %v469
    %v2610 = vunpack.c.h.b16 %v469
    %v2611 = vunpack.c.l.b16 %v470
    %v2612 = vunpack.c.h.b16 %v470
    %v2613 = vunpack.c.l.b16 %v471
    %v2614 = vunpack.c.h.b16 %v471
    %v2615 = vunpack.c.l.b16 %v472
    %v2616 = vunpack.c.h.b16 %v472
    %v2617 = vunpack.c.l.b16 %v473
    %v2618 = vunpack.c.h.b16 %v473
    %v2619 = vunpack.c.l.b16 %v474
    %v2620 = vunpack.c.h.b16 %v474
    %v2621 = vunpack.c.l.b16 %v475
    %v2622 = vunpack.c.h.b16 %v475
    %v2623 = vunpack.c.l.b16 %v476
    %v2624 = vunpack.c.h.b16 %v476
    %v2625 = vunpack.c.l.b16 %v477
    %v2626 = vunpack.c.h.b16 %v477
    %v2627 = vunpack.c.l.b16 %v478
    %v2628 = vunpack.c.h.b16 %v478
    %v2629 = vunpack.c.l.b16 %v479
    %v2630 = vunpack.c.h.b16 %v479
    %v2631 = vunpack.c.l.b16 %v480
    %v2632 = vunpack.c.h.b16 %v480
    %v2633 = vunpack.c.l.b16 %v481
    %v2634 = vunpack.c.h.b16 %v481
    %v2635 = vunpack.c.l.b16 %v482
    %v2636 = vunpack.c.h.b16 %v482
    %v2637 = vunpack.c.l.b16 %v483
    %v2638 = vunpack.c.h.b16 %v483
    %v2639 = vunpack.c.l.b16 %v484
    %v2640 = vunpack.c.h.b16 %v484
    %v2641 = vunpack.c.l.b16 %v485
    %v2642 = vunpack.c.h.b16 %v485
    %v2643 = vunpack.c.l.b16 %v486
    %v2644 = vunpack.c.h.b16 %v486
    %v2645 = vunpack.c.l.b16 %v487
    %v2646 = vunpack.c.h.b16 %v487
    %v2647 = vunpack.c.l.b16 %v488
    %v2648 = vunpack.c.h.b16 %v488
    %v2649 = vunpack.c.l.b16 %v489
    %v2650 = vunpack.c.h.b16 %v489
    %v2651 = vunpack.c.l.b16 %v490
    %v2652 = vunpack.c.h.b16 %v490
    %v2653 = vunpack.c.l.b16 %v491
    %v2654 = vunpack.c.h.b16 %v491
    %v2655 = vunpack.c.l.b16 %v492
    %v2656 = vunpack.c.h.b16 %v492
    %v2657 = vunpack.c.l.b16 %v493
    %v2658 = vunpack.c.h.b16 %v493
    %v2659 = vunpack.c.l.b16 %v494
    %v2660 = vunpack.c.h.b16 %v494
    %v2661 = vunpack.c.l.b16 %v495
    %v2662 = vunpack.c.h.b16 %v495
    %v2663 = vunpack.c.l.b16 %v496
    %v2664 = vunpack.c.h.b16 %v496
    %v2665 = vunpack.c.l.b16 %v497
    %v2666 = vunpack.c.h.b16 %v497
    %v2667 = vunpack.c.l.b16 %v498
    %v2668 = vunpack.c.h.b16 %v498
    %v2669 = vunpack.c.l.b16 %v499
    %v2670 = vunpack.c.h.b16 %v499
    %v2671 = vunpack.c.l.b16 %v500
    %v2672 = vunpack.c.h.b16 %v500
    %v2673 = vunpack.c.l.b16 %v501
    %v2674 = vunpack.c.h.b16 %v501
    %v2675 = vunpack.c.l.b16 %v502
    %v2676 = vunpack.c.h.b16 %v502
    %v2677 = vunpack.c.l.b16 %v503
    %v2678 = vunpack.c.h.b16 %v503
    %v2679 = vunpack.c.l.b16 %v504
    %v2680 = vunpack.c.h.b16 %v504
    %v2681 = vunpack.c.l.b16 %v505
    %v2682 = vunpack.c.h.b16 %v505
    %v2683 = vunpack.c.l.b16 %v506
    %v2684 = vunpack.c.h.b16 %v506
    %v2685 = vunpack.c.l.b16 %v507
    %v2686 = vunpack.c.h.b16 %v507
    %v2687 = vunpack.c.l.b16 %v508
    %v2688 = vunpack.c.h.b16 %v508
    %v2689 = vunpack.c.l.b16 %v509
    %v2690 = vunpack.c.h.b16 %v509
    %v2691 = vunpack.c.l.b16 %v510
    %v2692 = vunpack.c.h.b16 %v510
    %v2693 = vunpack.c.l.b16 %v511
    %v2694 = vunpack.c.h.b16 %v511
    %v2695 = vunpack.c.l.b16 %v512
    %v2696 = vunpack.c.h.b16 %v512
    %v2697 = vunpack.c.l.b16 %v513
    %v2698 = vunpack.c.h.b16 %v513
    %v2699 = vunpack.c.l.b16 %v514
    %v2700 = vunpack.c.h.b16 %v514
    %v2701 = vunpack.c.l.b16 %v515
    %v2702 = vunpack.c.h.b16 %v515
    %v2703 = vunpack.c.l.b16 %v516
    %v2704 = vunpack.c.h.b16 %v516
    %v2705 = vunpack.c.l.b16 %v517
    %v2706 = vunpack.c.h.b16 %v517
    %v2707 = vunpack.c.l.b16 %v518
    %v2708 = vunpack.c.h.b16 %v518
    %v2709 = vunpack.c.l.b16 %v519
    %v2710 = vunpack.c.h.b16 %v519
    %v2711 = vunpack.c.l.b16 %v520
    %v2712 = vunpack.c.h.b16 %v520
    %v2713 = vunpack.c.l.b16 %v521
    %v2714 = vunpack.c.h.b16 %v521
    %v2715 = vunpack.c.l.b16 %v522
    %v2716 = vunpack.c.h.b16 %v522
    %v2717 = vunpack.c.l.b16 %v523
    %v2718 = vunpack.c.h.b16 %v523
    %v2719 = vunpack.c.l.b16 %v524
    %v2720 = vunpack.c.h.b16 %v524
    %v2721 = vunpack.c.l.b16 %v525
    %v2722 = vunpack.c.h.b16 %v525
    %v2723 = vunpack.c.l.b16 %v526
    %v2724 = vunpack.c.h.b16 %v526
    %v2725 = vunpack.c.l.b16 %v527
    %v2726 = vunpack.c.h.b16 %v527
    %v2727 = vunpack.c.l.b16 %v528
    %v2728 = vunpack.c.h.b16 %v528
    %v2729 = vunpack.c.l.b16 %v529
    %v2730 = vunpack.c.h.b16 %v529
    %v2731 = vunpack.c.l.b16 %v530
    %v2732 = vunpack.c.h.b16 %v530
    %v2733 = vunpack.c.l.b16 %v531
    %v2734 = vunpack.c.h.b16 %v531
    %v2735 = vunpack.c.l.b16 %v532
    %v2736 = vunpack.c.h.b16 %v532
    %v2737 = vunpack.c.l.b16 %v533
    %v2738 = vunpack.c.h.b16 %v533
    %v2739 = vunpack.c.l.b16 %v534
    %v2740 = vunpack.c.h.b16 %v534
    %v2741 = vunpack.c.l.b16 %v535
    %v2742 = vunpack.c.h.b16 %v535
    %v2743 = vunpack.c.l.b16 %v536
    %v2744 = vunpack.c.h.b16 %v536
    %v2745 = vunpack.c.l.b16 %v537
    %v2746 = vunpack.c.h.b16 %v537
    %v2747 = vunpack.c.l.b16 %v538
    %v2748 = vunpack.c.h.b16 %v538
    %v2749 = vunpack.c.l.b16 %v539
    %v2750 = vunpack.c.h.b16 %v539
    %v2751 = vunpack.c.l.b16 %v540
    %v2752 = vunpack.c.h.b16 %v540
    %v2753 = vunpack.c.l.b16 %v541
    %v2754 = vunpack.c.h.b16 %v541
    %v2755 = vunpack.c.l.b16 %v542
    %v2756 = vunpack.c.h.b16 %v542
    %v2757 = vunpack.c.l.b16 %v543
    %v2758 = vunpack.c.h.b16 %v543
    %v2759 = vunpack.c.l.b16 %v544
    %v2760 = vunpack.c.h.b16 %v544
    %v2761 = vunpack.c.l.b16 %v545
    %v2762 = vunpack.c.h.b16 %v545
    %v2763 = vunpack.c.l.b16 %v546
    %v2764 = vunpack.c.h.b16 %v546
    %v2765 = vunpack.c.l.b16 %v547
    %v2766 = vunpack.c.h.b16 %v547
    %v2767 = vunpack.c.l.b16 %v548
    %v2768 = vunpack.c.h.b16 %v548
    %v2769 = vunpack.c.l.b16 %v549
    %v2770 = vunpack.c.h.b16 %v549
    %v2771 = vunpack.c.l.b16 %v550
    %v2772 = vunpack.c.h.b16 %v550
    %v2773 = vunpack.c.l.b16 %v551
    %v2774 = vunpack.c.h.b16 %v551
    %v2775 = vunpack.c.l.b16 %v552
    %v2776 = vunpack.c.h.b16 %v552
    %v2777 = vunpack.c.l.b16 %v553
    %v2778 = vunpack.c.h.b16 %v553
    %v2779 = vunpack.c.l.b16 %v554
    %v2780 = vunpack.c.h.b16 %v554
    %v2781 = vunpack.c.l.b16 %v555
    %v2782 = vunpack.c.h.b16 %v555
    %v2783 = vunpack.c.l.b16 %v556
    %v2784 = vunpack.c.h.b16 %v556
    %v2785 = vunpack.c.l.b16 %v557
    %v2786 = vunpack.c.h.b16 %v557
    %v2787 = vunpack.c.l.b16 %v558
    %v2788 = vunpack.c.h.b16 %v558
    %v2789 = vunpack.c.l.b16 %v559
    %v2790 = vunpack.c.h.b16 %v559
    %v2791 = vunpack.c.l.b16 %v560
    %v2792 = vunpack.c.h.b16 %v560
    %v2793 = vunpack.c.l.b16 %v561
    %v2794 = vunpack.c.h.b16 %v561
    %v2795 = vunpack.c.l.b16 %v562
    %v2796 = vunpack.c.h.b16 %v562
    %v2797 = vunpack.c.l.b16 %v563
    %v2798 = vunpack.c.h.b16 %v563
    %v2799 = vunpack.c.l.b16 %v564
    %v2800 = vunpack.c.h.b16 %v564
    %v2801 = vunpack.c.l.b16 %v565
    %v2802 = vunpack.c.h.b16 %v565
    %v2803 = vunpack.c.l.b16 %v566
    %v2804 = vunpack.c.h.b16 %v566
    %v2805 = vunpack.c.l.b16 %v567
    %v2806 = vunpack.c.h.b16 %v567
    %v2807 = vunpack.c.l.b16 %v568
    %v2808 = vunpack.c.h.b16 %v568
    %v2809 = vunpack.c.l.b16 %v569
    %v2810 = vunpack.c.h.b16 %v569
    %v2811 = vunpack.c.l.b16 %v570
    %v2812 = vunpack.c.h.b16 %v570
    %v2813 = vunpack.c.l.b16 %v571
    %v2814 = vunpack.c.h.b16 %v571
    %v2815 = vunpack.c.l.b16 %v572
    %v2816 = vunpack.c.h.b16 %v572
    %v2817 = vunpack.c.l.b16 %v573
    %v2818 = vunpack.c.h.b16 %v573
    %v2819 = vunpack.c.l.b16 %v574
    %v2820 = vunpack.c.h.b16 %v574
    %v2821 = vunpack.c.l.b16 %v575
    %v2822 = vunpack.c.h.b16 %v575
    %v2823 = vunpack.c.l.b16 %v576
    %v2824 = vunpack.c.h.b16 %v576
    %v2825 = vunpack.c.l.b16 %v577
    %v2826 = vunpack.c.h.b16 %v577
    %v2827 = vunpack.c.l.b16 %v578
    %v2828 = vunpack.c.h.b16 %v578
    %v2829 = vunpack.c.l.b16 %v579
    %v2830 = vunpack.c.h.b16 %v579
    %v2831 = vunpack.c.l.b16 %v580
    %v2832 = vunpack.c.h.b16 %v580
    %v2833 = vunpack.c.l.b16 %v581
    %v2834 = vunpack.c.h.b16 %v581
    %v2835 = vunpack.c.l.b16 %v582
    %v2836 = vunpack.c.h.b16 %v582
    %v2837 = vunpack.c.l.b16 %v583
    %v2838 = vunpack.c.h.b16 %v583
    %v2839 = vunpack.c.l.b16 %v584
    %v2840 = vunpack.c.h.b16 %v584
    %v2841 = vunpack.c.l.b16 %v585
    %v2842 = vunpack.c.h.b16 %v585
    %v2843 = vunpack.c.l.b16 %v586
    %v2844 = vunpack.c.h.b16 %v586
    %v2845 = vunpack.c.l.b16 %v587
    %v2846 = vunpack.c.h.b16 %v587
    %v2847 = vunpack.c.l.b16 %v588
    %v2848 = vunpack.c.h.b16 %v588
    %v2849 = vunpack.c.l.b16 %v589
    %v2850 = vunpack.c.h.b16 %v589
    %v2851 = vunpack.c.l.b16 %v590
    %v2852 = vunpack.c.h.b16 %v590
    %v2853 = vunpack.c.l.b16 %v591
    %v2854 = vunpack.c.h.b16 %v591
    %v2855 = vunpack.c.l.b16 %v592
    %v2856 = vunpack.c.h.b16 %v592
    %v2857 = vunpack.c.l.b16 %v593
    %v2858 = vunpack.c.h.b16 %v593
    %v2859 = vunpack.c.l.b16 %v594
    %v2860 = vunpack.c.h.b16 %v594
    %v2861 = vunpack.c.l.b16 %v595
    %v2862 = vunpack.c.h.b16 %v595
    %v2863 = vunpack.c.l.b16 %v596
    %v2864 = vunpack.c.h.b16 %v596
    %v2865 = vunpack.c.l.b16 %v597
    %v2866 = vunpack.c.h.b16 %v597
    %v2867 = vunpack.c.l.b16 %v598
    %v2868 = vunpack.c.h.b16 %v598
    %v2869 = vunpack.c.l.b16 %v599
    %v2870 = vunpack.c.h.b16 %v599
    %v2871 = vunpack.c.l.b16 %v600
    %v2872 = vunpack.c.h.b16 %v600
    %v2873 = vunpack.c.l.b16 %v601
    %v2874 = vunpack.c.h.b16 %v601
    %v2875 = vunpack.c.l.b16 %v602
    %v2876 = vunpack.c.h.b16 %v602
    %v2877 = vunpack.c.l.b16 %v603
    %v2878 = vunpack.c.h.b16 %v603
    %v2879 = vunpack.c.l.b16 %v604
    %v2880 = vunpack.c.h.b16 %v604
    %v2881 = vunpack.c.l.b16 %v605
    %v2882 = vunpack.c.h.b16 %v605
    %v2883 = vunpack.c.l.b16 %v606
    %v2884 = vunpack.c.h.b16 %v606
    %v2885 = vunpack.c.l.b16 %v607
    %v2886 = vunpack.c.h.b16 %v607
    %v2887 = vunpack.c.l.b16 %v608
    %v2888 = vunpack.c.h.b16 %v608
    %v2889 = vunpack.c.l.b16 %v609
    %v2890 = vunpack.c.h.b16 %v609
    %v2891 = vunpack.c.l.b16 %v610
    %v2892 = vunpack.c.h.b16 %v610
    %v2893 = vunpack.c.l.b16 %v611
    %v2894 = vunpack.c.h.b16 %v611
    %v2895 = vunpack.c.l.b16 %v612
    %v2896 = vunpack.c.h.b16 %v612
    %v2897 = vunpack.c.l.b16 %v613
    %v2898 = vunpack.c.h.b16 %v613
    %v2899 = vunpack.c.l.b16 %v614
    %v2900 = vunpack.c.h.b16 %v614
    %v2901 = vunpack.c.l.b16 %v615
    %v2902 = vunpack.c.h.b16 %v615
    %v2903 = vunpack.c.l.b16 %v616
    %v2904 = vunpack.c.h.b16 %v616
    %v2905 = vunpack.c.l.b16 %v617
    %v2906 = vunpack.c.h.b16 %v617
    %v2907 = vunpack.c.l.b16 %v618
    %v2908 = vunpack.c.h.b16 %v618
    %v2909 = vunpack.c.l.b16 %v619
    %v2910 = vunpack.c.h.b16 %v619
    %v2911 = vunpack.c.l.b16 %v620
    %v2912 = vunpack.c.h.b16 %v620
    %v2913 = vunpack.c.l.b16 %v621
    %v2914 = vunpack.c.h.b16 %v621
    %v2915 = vunpack.c.l.b16 %v622
    %v2916 = vunpack.c.h.b16 %v622
    %v2917 = vunpack.c.l.b16 %v623
    %v2918 = vunpack.c.h.b16 %v623
    %v2919 = vunpack.c.l.b16 %v624
    %v2920 = vunpack.c.h.b16 %v624
    %v2921 = vunpack.c.l.b16 %v625
    %v2922 = vunpack.c.h.b16 %v625
    %v2923 = vunpack.c.l.b16 %v626
    %v2924 = vunpack.c.h.b16 %v626
    %v2925 = vunpack.c.l.b16 %v627
    %v2926 = vunpack.c.h.b16 %v627
    %v2927 = vunpack.c.l.b16 %v628
    %v2928 = vunpack.c.h.b16 %v628
    %v2929 = vunpack.c.l.b16 %v629
    %v2930 = vunpack.c.h.b16 %v629
    %v2931 = vunpack.c.l.b16 %v630
    %v2932 = vunpack.c.h.b16 %v630
    %v2933 = vunpack.c.l.b16 %v631
    %v2934 = vunpack.c.h.b16 %v631
    %v2935 = vunpack.c.l.b16 %v632
    %v2936 = vunpack.c.h.b16 %v632
    %v2937 = vunpack.c.l.b16 %v633
    %v2938 = vunpack.c.h.b16 %v633
    %v2939 = vunpack.c.l.b16 %v634
    %v2940 = vunpack.c.h.b16 %v634
    %v2941 = vunpack.c.l.b16 %v635
    %v2942 = vunpack.c.h.b16 %v635
    %v2943 = vunpack.c.l.b16 %v636
    %v2944 = vunpack.c.h.b16 %v636
    %v2945 = vunpack.c.l.b16 %v637
    %v2946 = vunpack.c.h.b16 %v637
    %v2947 = vunpack.c.l.b16 %v638
    %v2948 = vunpack.c.h.b16 %v638
    %v2949 = vunpack.c.l.b16 %v639
    %v2950 = vunpack.c.h.b16 %v639
    %v2951 = vunpack.c.l.b16 %v640
    %v2952 = vunpack.c.h.b16 %v640
    %v2953 = vunpack.c.l.b16 %v641
    %v2954 = vunpack.c.h.b16 %v641
    %v2955 = vunpack.c.l.b16 %v642
    %v2956 = vunpack.c.h.b16 %v642
    %v2957 = vunpack.c.l.b16 %v643
    %v2958 = vunpack.c.h.b16 %v643
    %v2959 = vunpack.c.l.b16 %v644
    %v2960 = vunpack.c.h.b16 %v644
    %v2961 = vunpack.c.l.b16 %v645
    %v2962 = vunpack.c.h.b16 %v645
    %v2963 = vunpack.c.l.b16 %v646
    %v2964 = vunpack.c.h.b16 %v646
    %v2965 = vunpack.c.l.b16 %v647
    %v2966 = vunpack.c.h.b16 %v647
    %v2967 = vunpack.c.l.b16 %v648
    %v2968 = vunpack.c.h.b16 %v648
    %v2969 = vunpack.c.l.b16 %v649
    %v2970 = vunpack.c.h.b16 %v649
    %v2971 = vunpack.c.l.b16 %v650
    %v2972 = vunpack.c.h.b16 %v650
    %v2973 = vunpack.c.l.b16 %v651
    %v2974 = vunpack.c.h.b16 %v651
    %v2975 = vunpack.c.l.b16 %v652
    %v2976 = vunpack.c.h.b16 %v652
    %v2977 = vunpack.c.l.b16 %v653
    %v2978 = vunpack.c.h.b16 %v653
    %v2979 = vunpack.c.l.b16 %v654
    %v2980 = vunpack.c.h.b16 %v654
    %v2981 = vunpack.c.l.b16 %v655
    %v2982 = vunpack.c.h.b16 %v655
    %v2983 = vunpack.c.l.b16 %v656
    %v2984 = vunpack.c.h.b16 %v656
    %v2985 = vunpack.c.l.b16 %v657
    %v2986 = vunpack.c.h.b16 %v657
    %v2987 = vunpack.c.l.b16 %v658
    %v2988 = vunpack.c.h.b16 %v658
    %v2989 = vunpack.c.l.b16 %v659
    %v2990 = vunpack.c.h.b16 %v659
    %v2991 = vunpack.c.l.b16 %v660
    %v2992 = vunpack.c.h.b16 %v660
    %v2993 = vunpack.c.l.b16 %v661
    %v2994 = vunpack.c.h.b16 %v661
    %v2995 = vunpack.c.l.b16 %v662
    %v2996 = vunpack.c.h.b16 %v662
    %v2997 = vunpack.c.l.b16 %v663
    %v2998 = vunpack.c.h.b16 %v663
    %v2999 = vunpack.c.l.b16 %v664
    %v3000 = vunpack.c.h.b16 %v664
    %v3001 = vunpack.c.l.b16 %v665
    %v3002 = vunpack.c.h.b16 %v665
    %v3003 = vunpack.c.l.b16 %v666
    %v3004 = vunpack.c.h.b16 %v666
    %v3005 = vunpack.c.l.b16 %v667
    %v3006 = vunpack.c.h.b16 %v667
    %v3007 = vunpack.c.l.b16 %v668
    %v3008 = vunpack.c.h.b16 %v668
    %v3009 = vunpack.c.l.b16 %v669
    %v3010 = vunpack.c.h.b16 %v669
    %v3011 = vunpack.c.l.b16 %v670
    %v3012 = vunpack.c.h.b16 %v670
    %v3013 = vunpack.c.l.b16 %v671
    %v3014 = vunpack.c.h.b16 %v671
    %v3015 = vunpack.c.l.b16 %v672
    %v3016 = vunpack.c.h.b16 %v672
    %v3017 = vunpack.c.l.b16 %v673
    %v3018 = vunpack.c.h.b16 %v673
    %v3019 = vunpack.c.l.b16 %v674
    %v3020 = vunpack.c.h.b16 %v674
    %v3021 = vunpack.c.l.b16 %v675
    %v3022 = vunpack.c.h.b16 %v675
    %v3023 = vunpack.c.l.b16 %v676
    %v3024 = vunpack.c.h.b16 %v676
    %v3025 = vunpack.c.l.b16 %v677
    %v3026 = vunpack.c.h.b16 %v677
    %v3027 = vunpack.c.l.b16 %v678
    %v3028 = vunpack.c.h.b16 %v678
    %v3029 = vunpack.c.l.b16 %v679
    %v3030 = vunpack.c.h.b16 %v679
    %v3031 = vunpack.c.l.b16 %v680
    %v3032 = vunpack.c.h.b16 %v680
    %v3033 = vunpack.c.l.b16 %v681
    %v3034 = vunpack.c.h.b16 %v681
    %v3035 = vunpack.c.l.b16 %v682
    %v3036 = vunpack.c.h.b16 %v682
    %v3037 = vunpack.c.l.b16 %v683
    %v3038 = vunpack.c.h.b16 %v683
    %v3039 = vunpack.c.l.b16 %v684
    %v3040 = vunpack.c.h.b16 %v684
    %v3041 = vunpack.c.l.b16 %v685
    %v3042 = vunpack.c.h.b16 %v685
    %v3043 = vunpack.c.l.b16 %v686
    %v3044 = vunpack.c.h.b16 %v686
    %v3045 = vunpack.c.l.b16 %v687
    %v3046 = vunpack.c.h.b16 %v687
    %v3047 = vunpack.c.l.b16 %v688
    %v3048 = vunpack.c.h.b16 %v688
    %v3049 = vunpack.c.l.b16 %v689
    %v3050 = vunpack.c.h.b16 %v689
    %v3051 = vunpack.c.l.b16 %v690
    %v3052 = vunpack.c.h.b16 %v690
    %v3053 = vunpack.c.l.b16 %v691
    %v3054 = vunpack.c.h.b16 %v691
    %v3055 = vunpack.c.l.b16 %v692
    %v3056 = vunpack.c.h.b16 %v692
    %v3057 = vunpack.c.l.b16 %v693
    %v3058 = vunpack.c.h.b16 %v693
    %v3059 = vunpack.c.l.b16 %v694
    %v3060 = vunpack.c.h.b16 %v694
    %v3061 = vunpack.c.l.b16 %v695
    %v3062 = vunpack.c.h.b16 %v695
    %v3063 = vunpack.c.l.b16 %v696
    %v3064 = vunpack.c.h.b16 %v696
    %v3065 = vunpack.c.l.b16 %v697
    %v3066 = vunpack.c.h.b16 %v697
    %v3067 = vunpack.c.l.b16 %v698
    %v3068 = vunpack.c.h.b16 %v698
    %v3069 = vunpack.c.l.b16 %v699
    %v3070 = vunpack.c.h.b16 %v699
    %v3071 = vunpack.c.l.b16 %v700
    %v3072 = vunpack.c.h.b16 %v700
    %v3073 = vunpack.c.l.b16 %v701
    %v3074 = vunpack.c.h.b16 %v701
    %v3075 = vunpack.c.l.b16 %v702
    %v3076 = vunpack.c.h.b16 %v702
    %v3077 = vunpack.c.l.b16 %v703
    %v3078 = vunpack.c.h.b16 %v703
    %v3079 = vunpack.c.l.b16 %v704
    %v3080 = vunpack.c.h.b16 %v704
    %v3081 = vunpack.c.l.b16 %v705
    %v3082 = vunpack.c.h.b16 %v705
    %v3083 = vunpack.c.l.b16 %v706
    %v3084 = vunpack.c.h.b16 %v706
    %v3085 = vunpack.c.l.b16 %v707
    %v3086 = vunpack.c.h.b16 %v707
    %v3087 = vunpack.c.l.b16 %v708
    %v3088 = vunpack.c.h.b16 %v708
    %v3089 = vunpack.c.l.b16 %v709
    %v3090 = vunpack.c.h.b16 %v709
    %v3091 = vunpack.c.l.b16 %v710
    %v3092 = vunpack.c.h.b16 %v710
    %v3093 = vunpack.c.l.b16 %v711
    %v3094 = vunpack.c.h.b16 %v711
    %v3095 = vunpack.c.l.b16 %v712
    %v3096 = vunpack.c.h.b16 %v712
    %v3097 = vunpack.c.l.b16 %v713
    %v3098 = vunpack.c.h.b16 %v713
    %v3099 = vunpack.c.l.b16 %v714
    %v3100 = vunpack.c.h.b16 %v714
    %v3101 = vunpack.c.l.b16 %v715
    %v3102 = vunpack.c.h.b16 %v715
    %v3103 = vunpack.c.l.b16 %v716
    %v3104 = vunpack.c.h.b16 %v716
    %v3105 = vunpack.c.l.b16 %v717
    %v3106 = vunpack.c.h.b16 %v717
    %v3107 = vunpack.c.l.b16 %v718
    %v3108 = vunpack.c.h.b16 %v718
    %v3109 = vunpack.c.l.b16 %v719
    %v3110 = vunpack.c.h.b16 %v719
    %v3111 = vunpack.c.l.b16 %v720
    %v3112 = vunpack.c.h.b16 %v720
    %v3113 = vunpack.c.l.b16 %v721
    %v3114 = vunpack.c.h.b16 %v721
    %v3115 = vunpack.c.l.b16 %v722
    %v3116 = vunpack.c.h.b16 %v722
    %v3117 = vunpack.c.l.b16 %v723
    %v3118 = vunpack.c.h.b16 %v723
    %v3119 = vunpack.c.l.b16 %v724
    %v3120 = vunpack.c.h.b16 %v724
    %v3121 = vunpack.c.l.b16 %v725
    %v3122 = vunpack.c.h.b16 %v725
    %v3123 = vunpack.c.l.b16 %v726
    %v3124 = vunpack.c.h.b16 %v726
    %v3125 = vunpack.c.l.b16 %v727
    %v3126 = vunpack.c.h.b16 %v727
    %v3127 = vunpack.c.l.b16 %v728
    %v3128 = vunpack.c.h.b16 %v728
    %v3129 = vunpack.c.l.b16 %v729
    %v3130 = vunpack.c.h.b16 %v729
    %v3131 = vunpack.c.l.b16 %v730
    %v3132 = vunpack.c.h.b16 %v730
    %v3133 = vunpack.c.l.b16 %v731
    %v3134 = vunpack.c.h.b16 %v731
    %v3135 = vunpack.c.l.b16 %v732
    %v3136 = vunpack.c.h.b16 %v732
    %v3137 = vunpack.c.l.b16 %v733
    %v3138 = vunpack.c.h.b16 %v733
    %v3139 = vunpack.c.l.b16 %v734
    %v3140 = vunpack.c.h.b16 %v734
    %v3141 = vunpack.c.l.b16 %v735
    %v3142 = vunpack.c.h.b16 %v735
    %v3143 = vunpack.c.l.b16 %v736
    %v3144 = vunpack.c.h.b16 %v736
    %v3145 = vunpack.c.l.b16 %v737
    %v3146 = vunpack.c.h.b16 %v737
    %v3147 = vunpack.c.l.b16 %v738
    %v3148 = vunpack.c.h.b16 %v738
    %v3149 = vunpack.c.l.b16 %v739
    %v3150 = vunpack.c.h.b16 %v739
    %v3151 = vunpack.c.l.b16 %v740
    %v3152 = vunpack.c.h.b16 %v740
    %v3153 = vunpack.c.l.b16 %v741
    %v3154 = vunpack.c.h.b16 %v741
    %v3155 = vunpack.c.l.b16 %v742
    %v3156 = vunpack.c.h.b16 %v742
    %v3157 = vunpack.c.l.b16 %v743
    %v3158 = vunpack.c.h.b16 %v743
    %v3159 = vunpack.c.l.b16 %v744
    %v3160 = vunpack.c.h.b16 %v744
    %v3161 = vunpack.c.l.b16 %v745
    %v3162 = vunpack.c.h.b16 %v745
    %v3163 = vunpack.c.l.b16 %v746
    %v3164 = vunpack.c.h.b16 %v746
    %v3165 = vunpack.c.l.b16 %v747
    %v3166 = vunpack.c.h.b16 %v747
    %v3167 = vunpack.c.l.b16 %v748
    %v3168 = vunpack.c.h.b16 %v748
    %v3169 = vunpack.c.l.b16 %v749
    %v3170 = vunpack.c.h.b16 %v749
    %v3171 = vunpack.c.l.b16 %v750
    %v3172 = vunpack.c.h.b16 %v750
    %v3173 = vunpack.c.l.b16 %v751
    %v3174 = vunpack.c.h.b16 %v751
    %v3175 = vunpack.c.l.b16 %v752
    %v3176 = vunpack.c.h.b16 %v752
    %v3177 = vunpack.c.l.b16 %v753
    %v3178 = vunpack.c.h.b16 %v753
    %v3179 = vunpack.c.l.b16 %v754
    %v3180 = vunpack.c.h.b16 %v754
    %v3181 = vunpack.c.l.b16 %v755
    %v3182 = vunpack.c.h.b16 %v755
    %v3183 = vunpack.c.l.b16 %v756
    %v3184 = vunpack.c.h.b16 %v756
    %v3185 = vunpack.c.l.b16 %v757
    %v3186 = vunpack.c.h.b16 %v757
    %v3187 = vunpack.c.l.b16 %v758
    %v3188 = vunpack.c.h.b16 %v758
    %v3189 = vunpack.c.l.b16 %v759
    %v3190 = vunpack.c.h.b16 %v759
    %v3191 = vunpack.c.l.b16 %v760
    %v3192 = vunpack.c.h.b16 %v760
    %v3193 = vunpack.c.l.b16 %v761
    %v3194 = vunpack.c.h.b16 %v761
    %v3195 = vunpack.c.l.b16 %v762
    %v3196 = vunpack.c.h.b16 %v762
    %v3197 = vunpack.c.l.b16 %v763
    %v3198 = vunpack.c.h.b16 %v763
    %v3199 = vunpack.c.l.b16 %v764
    %v3200 = vunpack.c.h.b16 %v764
    %v3201 = vunpack.c.l.b16 %v765
    %v3202 = vunpack.c.h.b16 %v765
    %v3203 = vunpack.c.l.b16 %v766
    %v3204 = vunpack.c.h.b16 %v766
    %v3205 = vunpack.c.l.b16 %v767
    %v3206 = vunpack.c.h.b16 %v767
    %v3207 = vunpack.c.l.b16 %v768
    %v3208 = vunpack.c.h.b16 %v768
    %v3209 = vunpack.c.l.b16 %v769
    %v3210 = vunpack.c.h.b16 %v769
    %v3211 = vunpack.c.l.b16 %v770
    %v3212 = vunpack.c.h.b16 %v770
    %v3213 = vunpack.c.l.b16 %v771
    %v3214 = vunpack.c.h.b16 %v771
    %v3215 = vunpack.c.l.b16 %v772
    %v3216 = vunpack.c.h.b16 %v772
    %v3217 = vunpack.c.l.b16 %v773
    %v3218 = vunpack.c.h.b16 %v773
    %v3219 = vunpack.c.l.b16 %v774
    %v3220 = vunpack.c.h.b16 %v774
    %v3221 = vunpack.c.l.b16 %v775
    %v3222 = vunpack.c.h.b16 %v775
    %v3223 = vunpack.c.l.b16 %v776
    %v3224 = vunpack.c.h.b16 %v776
    %v3225 = vunpack.c.l.b16 %v777
    %v3226 = vunpack.c.h.b16 %v777
    %v3227 = vunpack.c.l.b16 %v778
    %v3228 = vunpack.c.h.b16 %v778
    %v3229 = vunpack.c.l.b16 %v779
    %v3230 = vunpack.c.h.b16 %v779
    %v3231 = vunpack.c.l.b16 %v780
    %v3232 = vunpack.c.h.b16 %v780
    %v3233 = vunpack.c.l.b16 %v781
    %v3234 = vunpack.c.h.b16 %v781
    %v3235 = vunpack.c.l.b16 %v782
    %v3236 = vunpack.c.h.b16 %v782
    %v3237 = vunpack.c.l.b16 %v783
    %v3238 = vunpack.c.h.b16 %v783
    %v3239 = vunpack.c.l.b16 %v784
    %v3240 = vunpack.c.h.b16 %v784
    %v3241 = vunpack.c.l.b16 %v785
    %v3242 = vunpack.c.h.b16 %v785
    %v3243 = vunpack.c.l.b16 %v786
    %v3244 = vunpack.c.h.b16 %v786
    %v3245 = vunpack.c.l.b16 %v787
    %v3246 = vunpack.c.h.b16 %v787
    %v3247 = vunpack.c.l.b16 %v788
    %v3248 = vunpack.c.h.b16 %v788
    %v3249 = vunpack.c.l.b16 %v789
    %v3250 = vunpack.c.h.b16 %v789
    %v3251 = vunpack.c.l.b16 %v790
    %v3252 = vunpack.c.h.b16 %v790
    %v3253 = vunpack.c.l.b16 %v791
    %v3254 = vunpack.c.h.b16 %v791
    %v3255 = vunpack.c.l.b16 %v792
    %v3256 = vunpack.c.h.b16 %v792
    %v3257 = vunpack.c.l.b16 %v793
    %v3258 = vunpack.c.h.b16 %v793
    %v3259 = vunpack.c.l.b16 %v794
    %v3260 = vunpack.c.h.b16 %v794
    %v3261 = vunpack.c.l.b16 %v795
    %v3262 = vunpack.c.h.b16 %v795
    %v3263 = vunpack.c.l.b16 %v796
    %v3264 = vunpack.c.h.b16 %v796
    %v3265 = vunpack.c.l.b16 %v797
    %v3266 = vunpack.c.h.b16 %v797
    %v3267 = vunpack.c.l.b16 %v798
    %v3268 = vunpack.c.h.b16 %v798
    %v3269 = vunpack.c.l.b16 %v799
    %v3270 = vunpack.c.h.b16 %v799
    %v3271 = vunpack.c.l.b16 %v800
    %v3272 = vunpack.c.h.b16 %v800
    %v3273 = vunpack.c.l.b16 %v801
    %v3274 = vunpack.c.h.b16 %v801
    %v3275 = vunpack.c.l.b16 %v802
    %v3276 = vunpack.c.h.b16 %v802
    %v3277 = vunpack.c.l.b16 %v803
    %v3278 = vunpack.c.h.b16 %v803
    %v3279 = vunpack.c.l.b16 %v804
    %v3280 = vunpack.c.h.b16 %v804
    %v3281 = vunpack.c.l.b16 %v805
    %v3282 = vunpack.c.h.b16 %v805
    %v3283 = vunpack.c.l.b16 %v806
    %v3284 = vunpack.c.h.b16 %v806
    %v3285 = vunpack.c.l.b16 %v807
    %v3286 = vunpack.c.h.b16 %v807
    %v3287 = vunpack.c.l.b16 %v808
    %v3288 = vunpack.c.h.b16 %v808
    %v3289 = vunpack.c.l.b16 %v809
    %v3290 = vunpack.c.h.b16 %v809
    %v3291 = vunpack.c.l.b16 %v810
    %v3292 = vunpack.c.h.b16 %v810
    %v3293 = vunpack.c.l.b16 %v811
    %v3294 = vunpack.c.h.b16 %v811
    %v3295 = vunpack.c.l.b16 %v812
    %v3296 = vunpack.c.h.b16 %v812
    %v3297 = vunpack.c.l.b16 %v813
    %v3298 = vunpack.c.h.b16 %v813
    %v3299 = vunpack.c.l.b16 %v814
    %v3300 = vunpack.c.h.b16 %v814
    %v3301 = vunpack.c.l.b16 %v815
    %v3302 = vunpack.c.h.b16 %v815
    %v3303 = vunpack.c.l.b16 %v816
    %v3304 = vunpack.c.h.b16 %v816
    %v3305 = vunpack.c.l.b16 %v817
    %v3306 = vunpack.c.h.b16 %v817
    %v3307 = vunpack.c.l.b16 %v818
    %v3308 = vunpack.c.h.b16 %v818
    %v3309 = vunpack.c.l.b16 %v819
    %v3310 = vunpack.c.h.b16 %v819
    %v3311 = vunpack.c.l.b16 %v820
    %v3312 = vunpack.c.h.b16 %v820
    %v3313 = vunpack.c.l.b16 %v821
    %v3314 = vunpack.c.h.b16 %v821
    %v3315 = vunpack.c.l.b16 %v822
    %v3316 = vunpack.c.h.b16 %v822
    %v3317 = vunpack.c.l.b16 %v823
    %v3318 = vunpack.c.h.b16 %v823
    %v3319 = vunpack.c.l.b16 %v824
    %v3320 = vunpack.c.h.b16 %v824
    %v3321 = vunpack.c.l.b16 %v825
    %v3322 = vunpack.c.h.b16 %v825
    %v3323 = vunpack.c.l.b16 %v826
    %v3324 = vunpack.c.h.b16 %v826
    %v3325 = vunpack.c.l.b16 %v827
    %v3326 = vunpack.c.h.b16 %v827
    %v3327 = vunpack.c.l.b16 %v828
    %v3328 = vunpack.c.h.b16 %v828
    %v3329 = vunpack.c.l.b16 %v829
    %v3330 = vunpack.c.h.b16 %v829
    %v3331 = vunpack.c.l.b16 %v830
    %v3332 = vunpack.c.h.b16 %v830
    %v3333 = vunpack.c.l.b16 %v831
    %v3334 = vunpack.c.h.b16 %v831
    %v3335 = vunpack.c.l.b16 %v832
    %v3336 = vunpack.c.h.b16 %v832
    %v3337 = vunpack.c.l.b16 %v833
    %v3338 = vunpack.c.h.b16 %v833
    %v3339 = vunpack.c.l.b16 %v834
    %v3340 = vunpack.c.h.b16 %v834
    %v3341 = vunpack.c.l.b16 %v835
    %v3342 = vunpack.c.h.b16 %v835
    %v3343 = vunpack.c.l.b16 %v836
    %v3344 = vunpack.c.h.b16 %v836
    %v3345 = vunpack.c.l.b16 %v837
    %v3346 = vunpack.c.h.b16 %v837
    %v3347 = vunpack.c.l.b16 %v838
    %v3348 = vunpack.c.h.b16 %v838
    %v3349 = vunpack.c.l.b16 %v839
    %v3350 = vunpack.c.h.b16 %v839
    %v3351 = vunpack.c.l.b16 %v840
    %v3352 = vunpack.c.h.b16 %v840
    %v3353 = vunpack.c.l.b16 %v841
    %v3354 = vunpack.c.h.b16 %v841
    %v3355 = vunpack.c.l.b16 %v842
    %v3356 = vunpack.c.h.b16 %v842
    %v3357 = vunpack.c.l.b16 %v843
    %v3358 = vunpack.c.h.b16 %v843
    %v3359 = vunpack.c.l.b16 %v844
    %v3360 = vunpack.c.h.b16 %v844
    %v3361 = vunpack.c.l.b16 %v845
    %v3362 = vunpack.c.h.b16 %v845
    %v3363 = vunpack.c.l.b16 %v846
    %v3364 = vunpack.c.h.b16 %v846
    %v3365 = vunpack.c.l.b16 %v847
    %v3366 = vunpack.c.h.b16 %v847
    %v3367 = vunpack.c.l.b16 %v848
    %v3368 = vunpack.c.h.b16 %v848
    %v3369 = vunpack.c.l.b16 %v849
    %v3370 = vunpack.c.h.b16 %v849
    %v3371 = vunpack.c.l.b16 %v850
    %v3372 = vunpack.c.h.b16 %v850
    %v3373 = vunpack.c.l.b16 %v851
    %v3374 = vunpack.c.h.b16 %v851
    %v3375 = vunpack.c.l.b16 %v852
    %v3376 = vunpack.c.h.b16 %v852
    %v3377 = vunpack.c.l.b16 %v853
    %v3378 = vunpack.c.h.b16 %v853
    %v3379 = vunpack.c.l.b16 %v854
    %v3380 = vunpack.c.h.b16 %v854
    %v3381 = vunpack.c.l.b16 %v855
    %v3382 = vunpack.c.h.b16 %v855
    %v3383 = vunpack.c.l.b16 %v856
    %v3384 = vunpack.c.h.b16 %v856
    %v3385 = vunpack.c.l.b16 %v857
    %v3386 = vunpack.c.h.b16 %v857
    %v3387 = vunpack.c.l.b16 %v858
    %v3388 = vunpack.c.h.b16 %v858
    %v3389 = vunpack.c.l.b16 %v859
    %v3390 = vunpack.c.h.b16 %v859
    %v3391 = vunpack.c.l.b16 %v860
    %v3392 = vunpack.c.h.b16 %v860
    %v3393 = vunpack.c.l.b16 %v861
    %v3394 = vunpack.c.h.b16 %v861
    %v3395 = vunpack.c.l.b16 %v862
    %v3396 = vunpack.c.h.b16 %v862
    %v3397 = vunpack.c.l.b16 %v863
    %v3398 = vunpack.c.h.b16 %v863
    %v3399 = vunpack.c.l.b16 %v864
    %v3400 = vunpack.c.h.b16 %v864
    %v3401 = vunpack.c.l.b16 %v865
    %v3402 = vunpack.c.h.b16 %v865
    %v3403 = vunpack.c.l.b16 %v866
    %v3404 = vunpack.c.h.b16 %v866
    %v3405 = vunpack.c.l.b16 %v867
    %v3406 = vunpack.c.h.b16 %v867
    %v3407 = vunpack.c.l.b16 %v868
    %v3408 = vunpack.c.h.b16 %v868
    %v3409 = vunpack.c.l.b16 %v869
    %v3410 = vunpack.c.h.b16 %v869
    %v3411 = vunpack.c.l.b16 %v870
    %v3412 = vunpack.c.h.b16 %v870
    %v3413 = vunpack.c.l.b16 %v871
    %v3414 = vunpack.c.h.b16 %v871
    %v3415 = vunpack.c.l.b16 %v872
    %v3416 = vunpack.c.h.b16 %v872
    %v3417 = vunpack.c.l.b16 %v873
    %v3418 = vunpack.c.h.b16 %v873
    %v3419 = vunpack.c.l.b16 %v874
    %v3420 = vunpack.c.h.b16 %v874
    %v3421 = vunpack.c.l.b16 %v875
    %v3422 = vunpack.c.h.b16 %v875
    %v3423 = vunpack.c.l.b16 %v876
    %v3424 = vunpack.c.h.b16 %v876
    %v3425 = vunpack.c.l.b16 %v877
    %v3426 = vunpack.c.h.b16 %v877
    %v3427 = vunpack.c.l.b16 %v878
    %v3428 = vunpack.c.h.b16 %v878
    %v3429 = vunpack.c.l.b16 %v879
    %v3430 = vunpack.c.h.b16 %v879
    %v3431 = vunpack.c.l.b16 %v880
    %v3432 = vunpack.c.h.b16 %v880
    %v3433 = vunpack.c.l.b16 %v881
    %v3434 = vunpack.c.h.b16 %v881
    %v3435 = vunpack.c.l.b16 %v882
    %v3436 = vunpack.c.h.b16 %v882
    %v3437 = vunpack.c.l.b16 %v883
    %v3438 = vunpack.c.h.b16 %v883
    %v3439 = vunpack.c.l.b16 %v884
    %v3440 = vunpack.c.h.b16 %v884
    %v3441 = vunpack.c.l.b16 %v885
    %v3442 = vunpack.c.h.b16 %v885
    %v3443 = vunpack.c.l.b16 %v886
    %v3444 = vunpack.c.h.b16 %v886
    %v3445 = vunpack.c.l.b16 %v887
    %v3446 = vunpack.c.h.b16 %v887
    %v3447 = vunpack.c.l.b16 %v888
    %v3448 = vunpack.c.h.b16 %v888
    %v3449 = vunpack.c.l.b16 %v889
    %v3450 = vunpack.c.h.b16 %v889
    %v3451 = vunpack.c.l.b16 %v890
    %v3452 = vunpack.c.h.b16 %v890
    %v3453 = vunpack.c.l.b16 %v891
    %v3454 = vunpack.c.h.b16 %v891
    %v3455 = vunpack.c.l.b16 %v892
    %v3456 = vunpack.c.h.b16 %v892
    %v3457 = vunpack.c.l.b16 %v893
    %v3458 = vunpack.c.h.b16 %v893
    %v3459 = vunpack.c.l.b16 %v894
    %v3460 = vunpack.c.h.b16 %v894
    %v3461 = vunpack.c.l.b16 %v895
    %v3462 = vunpack.c.h.b16 %v895
    %v3463 = vunpack.c.l.b16 %v896
    %v3464 = vunpack.c.h.b16 %v896
    %v3465 = vunpack.c.l.b16 %v897
    %v3466 = vunpack.c.h.b16 %v897
    %v3467 = vunpack.c.l.b16 %v898
    %v3468 = vunpack.c.h.b16 %v898
    %v3469 = vunpack.c.l.b16 %v899
    %v3470 = vunpack.c.h.b16 %v899
    %v3471 = vunpack.c.l.b16 %v900
    %v3472 = vunpack.c.h.b16 %v900
    %v3473 = vunpack.c.l.b16 %v901
    %v3474 = vunpack.c.h.b16 %v901
    %v3475 = vunpack.c.l.b16 %v902
    %v3476 = vunpack.c.h.b16 %v902
    %v3477 = vunpack.c.l.b16 %v903
    %v3478 = vunpack.c.h.b16 %v903
    %v3479 = vunpack.c.l.b16 %v904
    %v3480 = vunpack.c.h.b16 %v904
    %v3481 = vunpack.c.l.b16 %v905
    %v3482 = vunpack.c.h.b16 %v905
    %v3483 = vunpack.c.l.b16 %v906
    %v3484 = vunpack.c.h.b16 %v906
    %v3485 = vunpack.c.l.b16 %v907
    %v3486 = vunpack.c.h.b16 %v907
    %v3487 = vunpack.c.l.b16 %v908
    %v3488 = vunpack.c.h.b16 %v908
    %v3489 = vunpack.c.l.b16 %v909
    %v3490 = vunpack.c.h.b16 %v909
    %v3491 = vunpack.c.l.b16 %v910
    %v3492 = vunpack.c.h.b16 %v910
    %v3493 = vunpack.c.l.b16 %v911
    %v3494 = vunpack.c.h.b16 %v911
    %v3495 = vunpack.c.l.b16 %v912
    %v3496 = vunpack.c.h.b16 %v912
    %v3497 = vunpack.c.l.b16 %v913
    %v3498 = vunpack.c.h.b16 %v913
    %v3499 = vunpack.c.l.b16 %v914
    %v3500 = vunpack.c.h.b16 %v914
    %v3501 = vunpack.c.l.b16 %v915
    %v3502 = vunpack.c.h.b16 %v915
    %v3503 = vunpack.c.l.b16 %v916
    %v3504 = vunpack.c.h.b16 %v916
    %v3505 = vunpack.c.l.b16 %v917
    %v3506 = vunpack.c.h.b16 %v917
    %v3507 = vunpack.c.l.b16 %v918
    %v3508 = vunpack.c.h.b16 %v918
    %v3509 = vunpack.c.l.b16 %v919
    %v3510 = vunpack.c.h.b16 %v919
    %v3511 = vunpack.c.l.b16 %v920
    %v3512 = vunpack.c.h.b16 %v920
    %v3513 = vpack.c.b16 %v1791, %v1785
    %v3514 = vpack.c.b16 %v1792, %v1786
    %v3515 = vpack.c.b16 %v1793, %v1787
    %v3516 = vpack.c.b16 %v1794, %v1788
    %v3517 = vpack.c.b16 %v1795, %v1789
    %v3518 = vpack.c.b16 %v1796, %v1790
    %v3519 = vpack.c.b16 %v1803, %v1797
    %v3520 = vpack.c.b16 %v1804, %v1798
    %v3521 = vpack.c.b16 %v1805, %v1799
    %v3522 = vpack.c.b16 %v1806, %v1800
    %v3523 = vpack.c.b16 %v1807, %v1801
    %v3524 = vpack.c.b16 %v1808, %v1802
    %v3525 = vpack.c.b16 %v1815, %v1809
    %v3526 = vpack.c.b16 %v1816, %v1810
    %v3527 = vpack.c.b16 %v1817, %v1811
    %v3528 = vpack.c.b16 %v1818, %v1812
    %v3529 = vpack.c.b16 %v1819, %v1813
    %v3530 = vpack.c.b16 %v1820, %v1814
    %v3531 = vpack.c.b16 %v1827, %v1821
    %v3532 = vpack.c.b16 %v1828, %v1822
    %v3533 = vpack.c.b16 %v1829, %v1823
    %v3534 = vpack.c.b16 %v1830, %v1824
    %v3535 = vpack.c.b16 %v1831, %v1825
    %v3536 = vpack.c.b16 %v1832, %v1826
    %v3537 = vpack.c.b16 %v1839, %v1833
    %v3538 = vpack.c.b16 %v1840, %v1834
    %v3539 = vpack.c.b16 %v1841, %v1835
    %v3540 = vpack.c.b16 %v1842, %v1836
    %v3541 = vpack.c.b16 %v1843, %v1837
    %v3542 = vpack.c.b16 %v1844, %v1838
    %v3543 = vpack.c.b16 %v1851, %v1845
    %v3544 = vpack.c.b16 %v1852, %v1846
    %v3545 = vpack.c.b16 %v1853, %v1847
    %v3546 = vpack.c.b16 %v1854, %v1848
    %v3547 = vpack.c.b16 %v1855, %v1849
    %v3548 = vpack.c.b16 %v1856, %v1850
    %v3549 = vpack.c.b16 %v1863, %v1857
    %v3550 = vpack.c.b16 %v1864, %v1858
    %v3551 = vpack.c.b16 %v1865, %v1859
    %v3552 = vpack.c.b16 %v1866, %v1860
    %v3553 = vpack.c.b16 %v1867, %v1861
    %v3554 = vpack.c.b16 %v1868, %v1862
    %v3555 = vpack.c.b16 %v1875, %v1869
    %v3556 = vpack.c.b16 %v1876, %v1870
    %v3557 = vpack.c.b16 %v1877, %v1871
    %v3558 = vpack.c.b16 %v1878, %v1872
    %v3559 = vpack.c.b16 %v1879, %v1873
    %v3560 = vpack.c.b16 %v1880, %v1874
    %v3561 = vpack.c.b16 %v1887, %v1881
    %v3562 = vpack.c.b16 %v1888, %v1882
    %v3563 = vpack.c.b16 %v1889, %v1883
    %v3564 = vpack.c.b16 %v1890, %v1884
    %v3565 = vpack.c.b16 %v1891, %v1885
    %v3566 = vpack.c.b16 %v1892, %v1886
    %v3567 = vpack.c.b16 %v1899, %v1893
    %v3568 = vpack.c.b16 %v1900, %v1894
    %v3569 = vpack.c.b16 %v1901, %v1895
    %v3570 = vpack.c.b16 %v1902, %v1896
    %v3571 = vpack.c.b16 %v1903, %v1897
    %v3572 = vpack.c.b16 %v1904, %v1898
    %v3573 = vpack.c.b16 %v1911, %v1905
    %v3574 = vpack.c.b16 %v1912, %v1906
    %v3575 = vpack.c.b16 %v1913, %v1907
    %v3576 = vpack.c.b16 %v1914, %v1908
    %v3577 = vpack.c.b16 %v1915, %v1909
    %v3578 = vpack.c.b16 %v1916, %v1910
    %v3579 = vpack.c.b16 %v1923, %v1917
    %v3580 = vpack.c.b16 %v1924, %v1918
    %v3581 = vpack.c.b16 %v1925, %v1919
    %v3582 = vpack.c.b16 %v1926, %v1920
    %v3583 = vpack.c.b16 %v1927, %v1921
    %v3584 = vpack.c.b16 %v1928, %v1922
    %v3585 = vpack.c.b16 %v1935, %v1929
    %v3586 = vpack.c.b16 %v1936, %v1930
    %v3587 = vpack.c.b16 %v1937, %v1931
    %v3588 = vpack.c.b16 %v1938, %v1932
    %v3589 = vpack.c.b16 %v1939, %v1933
    %v3590 = vpack.c.b16 %v1940, %v1934
    %v3591 = vpack.c.b16 %v1947, %v1941
    %v3592 = vpack.c.b16 %v1948, %v1942
    %v3593 = vpack.c.b16 %v1949, %v1943
    %v3594 = vpack.c.b16 %v1950, %v1944
    %v3595 = vpack.c.b16 %v1951, %v1945
    %v3596 = vpack.c.b16 %v1952, %v1946
    %v3597 = vpack.c.b16 %v1959, %v1953
    %v3598 = vpack.c.b16 %v1960, %v1954
    %v3599 = vpack.c.b16 %v1961, %v1955
    %v3600 = vpack.c.b16 %v1962, %v1956
    %v3601 = vpack.c.b16 %v1963, %v1957
    %v3602 = vpack.c.b16 %v1964, %v1958
    %v3603 = vpack.c.b16 %v1971, %v1965
    %v3604 = vpack.c.b16 %v1972, %v1966
    %v3605 = vpack.c.b16 %v1973, %v1967
    %v3606 = vpack.c.b16 %v1974, %v1968
    %v3607 = vpack.c.b16 %v1975, %v1969
    %v3608 = vpack.c.b16 %v1976, %v1970
    %v3609 = vpack.c.b16 %v1983, %v1977
    %v3610 = vpack.c.b16 %v1984, %v1978
    %v3611 = vpack.c.b16 %v1985, %v1979
    %v3612 = vpack.c.b16 %v1986, %v1980
    %v3613 = vpack.c.b16 %v1987, %v1981
    %v3614 = vpack.c.b16 %v1988, %v1982
    %v3615 = vpack.c.b16 %v1995, %v1989
    %v3616 = vpack.c.b16 %v1996, %v1990
    %v3617 = vpack.c.b16 %v1997, %v1991
    %v3618 = vpack.c.b16 %v1998, %v1992
    %v3619 = vpack.c.b16 %v1999, %v1993
    %v3620 = vpack.c.b16 %v2000, %v1994
    %v3621 = vpack.c.b16 %v2007, %v2001
    %v3622 = vpack.c.b16 %v2008, %v2002
    %v3623 = vpack.c.b16 %v2009, %v2003
    %v3624 = vpack.c.b16 %v2010, %v2004
    %v3625 = vpack.c.b16 %v2011, %v2005
    %v3626 = vpack.c.b16 %v2012, %v2006
    %v3627 = vpack.c.b16 %v2019, %v2013
    %v3628 = vpack.c.b16 %v2020, %v2014
    %v3629 = vpack.c.b16 %v2021, %v2015
    %v3630 = vpack.c.b16 %v2022, %v2016
    %v3631 = vpack.c.b16 %v2023, %v2017
    %v3632 = vpack.c.b16 %v2024, %v2018
    %v3633 = vpack.c.b16 %v2031, %v2025
    %v3634 = vpack.c.b16 %v2032, %v2026
    %v3635 = vpack.c.b16 %v2033, %v2027
    %v3636 = vpack.c.b16 %v2034, %v2028
    %v3637 = vpack.c.b16 %v2035, %v2029
    %v3638 = vpack.c.b16 %v2036, %v2030
    %v3639 = vpack.c.b16 %v2043, %v2037
    %v3640 = vpack.c.b16 %v2044, %v2038
    %v3641 = vpack.c.b16 %v2045, %v2039
    %v3642 = vpack.c.b16 %v2046, %v2040
    %v3643 = vpack.c.b16 %v2047, %v2041
    %v3644 = vpack.c.b16 %v2048, %v2042
    %v3645 = vpack.c.b16 %v2055, %v2049
    %v3646 = vpack.c.b16 %v2056, %v2050
    %v3647 = vpack.c.b16 %v2057, %v2051
    %v3648 = vpack.c.b16 %v2058, %v2052
    %v3649 = vpack.c.b16 %v2059, %v2053
    %v3650 = vpack.c.b16 %v2060, %v2054
    %v3651 = vpack.c.b16 %v2067, %v2061
    %v3652 = vpack.c.b16 %v2068, %v2062
    %v3653 = vpack.c.b16 %v2069, %v2063
    %v3654 = vpack.c.b16 %v2070, %v2064
    %v3655 = vpack.c.b16 %v2071, %v2065
    %v3656 = vpack.c.b16 %v2072, %v2066
    %v3657 = vpack.c.b16 %v2079, %v2073
    %v3658 = vpack.c.b16 %v2080, %v2074
    %v3659 = vpack.c.b16 %v2081, %v2075
    %v3660 = vpack.c.b16 %v2082, %v2076
    %v3661 = vpack.c.b16 %v2083, %v2077
    %v3662 = vpack.c.b16 %v2084, %v2078
    %v3663 = vpack.c.b16 %v2091, %v2085
    %v3664 = vpack.c.b16 %v2092, %v2086
    %v3665 = vpack.c.b16 %v2093, %v2087
    %v3666 = vpack.c.b16 %v2094, %v2088
    %v3667 = vpack.c.b16 %v2095, %v2089
    %v3668 = vpack.c.b16 %v2096, %v2090
    %v3669 = vpack.c.b16 %v2103, %v2097
    %v3670 = vpack.c.b16 %v2104, %v2098
    %v3671 = vpack.c.b16 %v2105, %v2099
    %v3672 = vpack.c.b16 %v2106, %v2100
    %v3673 = vpack.c.b16 %v2107, %v2101
    %v3674 = vpack.c.b16 %v2108, %v2102
    %v3675 = vpack.c.b16 %v2115, %v2109
    %v3676 = vpack.c.b16 %v2116, %v2110
    %v3677 = vpack.c.b16 %v2117, %v2111
    %v3678 = vpack.c.b16 %v2118, %v2112
    %v3679 = vpack.c.b16 %v2119, %v2113
    %v3680 = vpack.c.b16 %v2120, %v2114
    %v3681 = vpack.c.b16 %v2127, %v2121
    %v3682 = vpack.c.b16 %v2128, %v2122
    %v3683 = vpack.c.b16 %v2129, %v2123
    %v3684 = vpack.c.b16 %v2130, %v2124
    %v3685 = vpack.c.b16 %v2131, %v2125
    %v3686 = vpack.c.b16 %v2132, %v2126
    %v3687 = vpack.c.b16 %v2139, %v2133
    %v3688 = vpack.c.b16 %v2140, %v2134
    %v3689 = vpack.c.b16 %v2141, %v2135
    %v3690 = vpack.c.b16 %v2142, %v2136
    %v3691 = vpack.c.b16 %v2143, %v2137
    %v3692 = vpack.c.b16 %v2144, %v2138
    %v3693 = vpack.c.b16 %v2151, %v2145
    %v3694 = vpack.c.b16 %v2152, %v2146
    %v3695 = vpack.c.b16 %v2153, %v2147
    %v3696 = vpack.c.b16 %v2154, %v2148
    %v3697 = vpack.c.b16 %v2155, %v2149
    %v3698 = vpack.c.b16 %v2156, %v2150
    %v3699 = vpack.c.b16 %v2163, %v2157
    %v3700 = vpack.c.b16 %v2164, %v2158
    %v3701 = vpack.c.b16 %v2165, %v2159
    %v3702 = vpack.c.b16 %v2166, %v2160
    %v3703 = vpack.c.b16 %v2167, %v2161
    %v3704 = vpack.c.b16 %v2168, %v2162
    %v3705 = vpack.c.b16 %v2175, %v2169
    %v3706 = vpack.c.b16 %v2176, %v2170
    %v3707 = vpack.c.b16 %v2177, %v2171
    %v3708 = vpack.c.b16 %v2178, %v2172
    %v3709 = vpack.c.b16 %v2179, %v2173
    %v3710 = vpack.c.b16 %v2180, %v2174
    %v3711 = vpack.c.b16 %v2187, %v2181
    %v3712 = vpack.c.b16 %v2188, %v2182
    %v3713 = vpack.c.b16 %v2189, %v2183
    %v3714 = vpack.c.b16 %v2190, %v2184
    %v3715 = vpack.c.b16 %v2191, %v2185
    %v3716 = vpack.c.b16 %v2192, %v2186
    %v3717 = vpack.c.b16 %v2199, %v2193
    %v3718 = vpack.c.b16 %v2200, %v2194
    %v3719 = vpack.c.b16 %v2201, %v2195
    %v3720 = vpack.c.b16 %v2202, %v2196
    %v3721 = vpack.c.b16 %v2203, %v2197
    %v3722 = vpack.c.b16 %v2204, %v2198
    %v3723 = vpack.c.b16 %v2211, %v2205
    %v3724 = vpack.c.b16 %v2212, %v2206
    %v3725 = vpack.c.b16 %v2213, %v2207
    %v3726 = vpack.c.b16 %v2214, %v2208
    %v3727 = vpack.c.b16 %v2215, %v2209
    %v3728 = vpack.c.b16 %v2216, %v2210
    %v3729 = vpack.c.b16 %v2223, %v2217
    %v3730 = vpack.c.b16 %v2224, %v2218
    %v3731 = vpack.c.b16 %v2225, %v2219
    %v3732 = vpack.c.b16 %v2226, %v2220
    %v3733 = vpack.c.b16 %v2227, %v2221
    %v3734 = vpack.c.b16 %v2228, %v2222
    %v3735 = vpack.c.b16 %v2235, %v2229
    %v3736 = vpack.c.b16 %v2236, %v2230
    %v3737 = vpack.c.b16 %v2237, %v2231
    %v3738 = vpack.c.b16 %v2238, %v2232
    %v3739 = vpack.c.b16 %v2239, %v2233
    %v3740 = vpack.c.b16 %v2240, %v2234
    %v3741 = vpack.c.b16 %v2247, %v2241
    %v3742 = vpack.c.b16 %v2248, %v2242
    %v3743 = vpack.c.b16 %v2249, %v2243
    %v3744 = vpack.c.b16 %v2250, %v2244
    %v3745 = vpack.c.b16 %v2251, %v2245
    %v3746 = vpack.c.b16 %v2252, %v2246
    %v3747 = vpack.c.b16 %v2259, %v2253
    %v3748 = vpack.c.b16 %v2260, %v2254
    %v3749 = vpack.c.b16 %v2261, %v2255
    %v3750 = vpack.c.b16 %v2262, %v2256
    %v3751 = vpack.c.b16 %v2263, %v2257
    %v3752 = vpack.c.b16 %v2264, %v2258
    %v3753 = vpack.c.b16 %v2271, %v2265
    %v3754 = vpack.c.b16 %v2272, %v2266
    %v3755 = vpack.c.b16 %v2273, %v2267
    %v3756 = vpack.c.b16 %v2274, %v2268
    %v3757 = vpack.c.b16 %v2275, %v2269
    %v3758 = vpack.c.b16 %v2276, %v2270
    %v3759 = vpack.c.b16 %v2283, %v2277
    %v3760 = vpack.c.b16 %v2284, %v2278
    %v3761 = vpack.c.b16 %v2285, %v2279
    %v3762 = vpack.c.b16 %v2286, %v2280
    %v3763 = vpack.c.b16 %v2287, %v2281
    %v3764 = vpack.c.b16 %v2288, %v2282
    %v3765 = vpack.c.b16 %v2295, %v2289
    %v3766 = vpack.c.b16 %v2296, %v2290
    %v3767 = vpack.c.b16 %v2297, %v2291
    %v3768 = vpack.c.b16 %v2298, %v2292
    %v3769 = vpack.c.b16 %v2299, %v2293
    %v3770 = vpack.c.b16 %v2300, %v2294
    %v3771 = vpack.c.b16 %v2307, %v2301
    %v3772 = vpack.c.b16 %v2308, %v2302
    %v3773 = vpack.c.b16 %v2309, %v2303
    %v3774 = vpack.c.b16 %v2310, %v2304
    %v3775 = vpack.c.b16 %v2311, %v2305
    %v3776 = vpack.c.b16 %v2312, %v2306
    %v3777 = vpack.c.b16 %v2319, %v2313
    %v3778 = vpack.c.b16 %v2320, %v2314
    %v3779 = vpack.c.b16 %v2321, %v2315
    %v3780 = vpack.c.b16 %v2322, %v2316
    %v3781 = vpack.c.b16 %v2323, %v2317
    %v3782 = vpack.c.b16 %v2324, %v2318
    %v3783 = vpack.c.b16 %v2331, %v2325
    %v3784 = vpack.c.b16 %v2332, %v2326
    %v3785 = vpack.c.b16 %v2333, %v2327
    %v3786 = vpack.c.b16 %v2334, %v2328
    %v3787 = vpack.c.b16 %v2335, %v2329
    %v3788 = vpack.c.b16 %v2336, %v2330
    %v3789 = vpack.c.b16 %v2343, %v2337
    %v3790 = vpack.c.b16 %v2344, %v2338
    %v3791 = vpack.c.b16 %v2345, %v2339
    %v3792 = vpack.c.b16 %v2346, %v2340
    %v3793 = vpack.c.b16 %v2347, %v2341
    %v3794 = vpack.c.b16 %v2348, %v2342
    %v3795 = vpack.c.b16 %v2355, %v2349
    %v3796 = vpack.c.b16 %v2356, %v2350
    %v3797 = vpack.c.b16 %v2357, %v2351
    %v3798 = vpack.c.b16 %v2358, %v2352
    %v3799 = vpack.c.b16 %v2359, %v2353
    %v3800 = vpack.c.b16 %v2360, %v2354
    %v3801 = vpack.c.b16 %v2367, %v2361
    %v3802 = vpack.c.b16 %v2368, %v2362
    %v3803 = vpack.c.b16 %v2369, %v2363
    %v3804 = vpack.c.b16 %v2370, %v2364
    %v3805 = vpack.c.b16 %v2371, %v2365
    %v3806 = vpack.c.b16 %v2372, %v2366
    %v3807 = vpack.c.b16 %v2379, %v2373
    %v3808 = vpack.c.b16 %v2380, %v2374
    %v3809 = vpack.c.b16 %v2381, %v2375
    %v3810 = vpack.c.b16 %v2382, %v2376
    %v3811 = vpack.c.b16 %v2383, %v2377
    %v3812 = vpack.c.b16 %v2384, %v2378
    %v3813 = vpack.c.b16 %v2391, %v2385
    %v3814 = vpack.c.b16 %v2392, %v2386
    %v3815 = vpack.c.b16 %v2393, %v2387
    %v3816 = vpack.c.b16 %v2394, %v2388
    %v3817 = vpack.c.b16 %v2395, %v2389
    %v3818 = vpack.c.b16 %v2396, %v2390
    %v3819 = vpack.c.b16 %v2403, %v2397
    %v3820 = vpack.c.b16 %v2404, %v2398
    %v3821 = vpack.c.b16 %v2405, %v2399
    %v3822 = vpack.c.b16 %v2406, %v2400
    %v3823 = vpack.c.b16 %v2407, %v2401
    %v3824 = vpack.c.b16 %v2408, %v2402
    %v3825 = vpack.c.b16 %v2415, %v2409
    %v3826 = vpack.c.b16 %v2416, %v2410
    %v3827 = vpack.c.b16 %v2417, %v2411
    %v3828 = vpack.c.b16 %v2418, %v2412
    %v3829 = vpack.c.b16 %v2419, %v2413
    %v3830 = vpack.c.b16 %v2420, %v2414
    %v3831 = vpack.c.b16 %v2427, %v2421
    %v3832 = vpack.c.b16 %v2428, %v2422
    %v3833 = vpack.c.b16 %v2429, %v2423
    %v3834 = vpack.c.b16 %v2430, %v2424
    %v3835 = vpack.c.b16 %v2431, %v2425
    %v3836 = vpack.c.b16 %v2432, %v2426
    %v3837 = vpack.c.b16 %v2439, %v2433
    %v3838 = vpack.c.b16 %v2440, %v2434
    %v3839 = vpack.c.b16 %v2441, %v2435
    %v3840 = vpack.c.b16 %v2442, %v2436
    %v3841 = vpack.c.b16 %v2443, %v2437
    %v3842 = vpack.c.b16 %v2444, %v2438
    %v3843 = vpack.c.b16 %v2451, %v2445
    %v3844 = vpack.c.b16 %v2452, %v2446
    %v3845 = vpack.c.b16 %v2453, %v2447
    %v3846 = vpack.c.b16 %v2454, %v2448
    %v3847 = vpack.c.b16 %v2455, %v2449
    %v3848 = vpack.c.b16 %v2456, %v2450
    %v3849 = vpack.c.b16 %v2463, %v2457
    %v3850 = vpack.c.b16 %v2464, %v2458
    %v3851 = vpack.c.b16 %v2465, %v2459
    %v3852 = vpack.c.b16 %v2466, %v2460
    %v3853 = vpack.c.b16 %v2467, %v2461
    %v3854 = vpack.c.b16 %v2468, %v2462
    %v3855 = vpack.c.b16 %v2475, %v2469
    %v3856 = vpack.c.b16 %v2476, %v2470
    %v3857 = vpack.c.b16 %v2477, %v2471
    %v3858 = vpack.c.b16 %v2478, %v2472
    %v3859 = vpack.c.b16 %v2479, %v2473
    %v3860 = vpack.c.b16 %v2480, %v2474
    %v3861 = vpack.c.b16 %v2487, %v2481
    %v3862 = vpack.c.b16 %v2488, %v2482
    %v3863 = vpack.c.b16 %v2489, %v2483
    %v3864 = vpack.c.b16 %v2490, %v2484
    %v3865 = vpack.c.b16 %v2491, %v2485
    %v3866 = vpack.c.b16 %v2492, %v2486
    %v3867 = vpack.c.b16 %v2499, %v2493
    %v3868 = vpack.c.b16 %v2500, %v2494
    %v3869 = vpack.c.b16 %v2501, %v2495
    %v3870 = vpack.c.b16 %v2502, %v2496
    %v3871 = vpack.c.b16 %v2503, %v2497
    %v3872 = vpack.c.b16 %v2504, %v2498
    %v3873 = vpack.c.b16 %v2511, %v2505
    %v3874 = vpack.c.b16 %v2512, %v2506
    %v3875 = vpack.c.b16 %v2513, %v2507
    %v3876 = vpack.c.b16 %v2514, %v2508
    %v3877 = vpack.c.b16 %v2515, %v2509
    %v3878 = vpack.c.b16 %v2516, %v2510
    %v3879 = vpack.c.b16 %v2523, %v2517
    %v3880 = vpack.c.b16 %v2524, %v2518
    %v3881 = vpack.c.b16 %v2525, %v2519
    %v3882 = vpack.c.b16 %v2526, %v2520
    %v3883 = vpack.c.b16 %v2527, %v2521
    %v3884 = vpack.c.b16 %v2528, %v2522
    %v3885 = vpack.c.b16 %v2535, %v2529
    %v3886 = vpack.c.b16 %v2536, %v2530
    %v3887 = vpack.c.b16 %v2537, %v2531
    %v3888 = vpack.c.b16 %v2538, %v2532
    %v3889 = vpack.c.b16 %v2539, %v2533
    %v3890 = vpack.c.b16 %v2540, %v2534
    %v3891 = vpack.c.b16 %v2547, %v2541
    %v3892 = vpack.c.b16 %v2548, %v2542
    %v3893 = vpack.c.b16 %v2549, %v2543
    %v3894 = vpack.c.b16 %v2550, %v2544
    %v3895 = vpack.c.b16 %v2551, %v2545
    %v3896 = vpack.c.b16 %v2552, %v2546
    %v3897 = vpack.c.b16 %v2559, %v2553
    %v3898 = vpack.c.b16 %v2560, %v2554
    %v3899 = vpack.c.b16 %v2561, %v2555
    %v3900 = vpack.c.b16 %v2562, %v2556
    %v3901 = vpack.c.b16 %v2563, %v2557
    %v3902 = vpack.c.b16 %v2564, %v2558
    %v3903 = vpack.c.b16 %v2571, %v2565
    %v3904 = vpack.c.b16 %v2572, %v2566
    %v3905 = vpack.c.b16 %v2573, %v2567
    %v3906 = vpack.c.b16 %v2574, %v2568
    %v3907 = vpack.c.b16 %v2575, %v2569
    %v3908 = vpack.c.b16 %v2576, %v2570
    %v3909 = vpack.c.b16 %v2583, %v2577
    %v3910 = vpack.c.b16 %v2584, %v2578
    %v3911 = vpack.c.b16 %v2585, %v2579
    %v3912 = vpack.c.b16 %v2586, %v2580
    %v3913 = vpack.c.b16 %v2587, %v2581
    %v3914 = vpack.c.b16 %v2588, %v2582
    %v3915 = vpack.c.b16 %v2595, %v2589
    %v3916 = vpack.c.b16 %v2596, %v2590
    %v3917 = vpack.c.b16 %v2597, %v2591
    %v3918 = vpack.c.b16 %v2598, %v2592
    %v3919 = vpack.c.b16 %v2599, %v2593
    %v3920 = vpack.c.b16 %v2600, %v2594
    %v3921 = vpack.c.b16 %v2607, %v2601
    %v3922 = vpack.c.b16 %v2608, %v2602
    %v3923 = vpack.c.b16 %v2609, %v2603
    %v3924 = vpack.c.b16 %v2610, %v2604
    %v3925 = vpack.c.b16 %v2611, %v2605
    %v3926 = vpack.c.b16 %v2612, %v2606
    %v3927 = vpack.c.b16 %v2619, %v2613
    %v3928 = vpack.c.b16 %v2620, %v2614
    %v3929 = vpack.c.b16 %v2621, %v2615
    %v3930 = vpack.c.b16 %v2622, %v2616
    %v3931 = vpack.c.b16 %v2623, %v2617
    %v3932 = vpack.c.b16 %v2624, %v2618
    %v3933 = vpack.c.b16 %v2631, %v2625
    %v3934 = vpack.c.b16 %v2632, %v2626
    %v3935 = vpack.c.b16 %v2633, %v2627
    %v3936 = vpack.c.b16 %v2634, %v2628
    %v3937 = vpack.c.b16 %v2635, %v2629
    %v3938 = vpack.c.b16 %v2636, %v2630
    %v3939 = vpack.c.b16 %v2643, %v2637
    %v3940 = vpack.c.b16 %v2644, %v2638
    %v3941 = vpack.c.b16 %v2645, %v2639
    %v3942 = vpack.c.b16 %v2646, %v2640
    %v3943 = vpack.c.b16 %v2647, %v2641
    %v3944 = vpack.c.b16 %v2648, %v2642
    %v3945 = vpack.c.b16 %v2655, %v2649
    %v3946 = vpack.c.b16 %v2656, %v2650
    %v3947 = vpack.c.b16 %v2657, %v2651
    %v3948 = vpack.c.b16 %v2658, %v2652
    %v3949 = vpack.c.b16 %v2659, %v2653
    %v3950 = vpack.c.b16 %v2660, %v2654
    %v3951 = vpack.c.b16 %v2667, %v2661
    %v3952 = vpack.c.b16 %v2668, %v2662
    %v3953 = vpack.c.b16 %v2669, %v2663
    %v3954 = vpack.c.b16 %v2670, %v2664
    %v3955 = vpack.c.b16 %v2671, %v2665
    %v3956 = vpack.c.b16 %v2672, %v2666
    %v3957 = vpack.c.b16 %v2679, %v2673
    %v3958 = vpack.c.b16 %v2680, %v2674
    %v3959 = vpack.c.b16 %v2681, %v2675
    %v3960 = vpack.c.b16 %v2682, %v2676
    %v3961 = vpack.c.b16 %v2683, %v2677
    %v3962 = vpack.c.b16 %v2684, %v2678
    %v3963 = vpack.c.b16 %v2691, %v2685
    %v3964 = vpack.c.b16 %v2692, %v2686
    %v3965 = vpack.c.b16 %v2693, %v2687
    %v3966 = vpack.c.b16 %v2694, %v2688
    %v3967 = vpack.c.b16 %v2695, %v2689
    %v3968 = vpack.c.b16 %v2696, %v2690
    %v3969 = vpack.c.b16 %v2703, %v2697
    %v3970 = vpack.c.b16 %v2704, %v2698
    %v3971 = vpack.c.b16 %v2705, %v2699
    %v3972 = vpack.c.b16 %v2706, %v2700
    %v3973 = vpack.c.b16 %v2707, %v2701
    %v3974 = vpack.c.b16 %v2708, %v2702
    %v3975 = vpack.c.b16 %v2715, %v2709
    %v3976 = vpack.c.b16 %v2716, %v2710
    %v3977 = vpack.c.b16 %v2717, %v2711
    %v3978 = vpack.c.b16 %v2718, %v2712
    %v3979 = vpack.c.b16 %v2719, %v2713
    %v3980 = vpack.c.b16 %v2720, %v2714
    %v3981 = vpack.c.b16 %v2727, %v2721
    %v3982 = vpack.c.b16 %v2728, %v2722
    %v3983 = vpack.c.b16 %v2729, %v2723
    %v3984 = vpack.c.b16 %v2730, %v2724
    %v3985 = vpack.c.b16 %v2731, %v2725
    %v3986 = vpack.c.b16 %v2732, %v2726
    %v3987 = vpack.c.b16 %v2739, %v2733
    %v3988 = vpack.c.b16 %v2740, %v2734
    %v3989 = vpack.c.b16 %v2741, %v2735
    %v3990 = vpack.c.b16 %v2742, %v2736
    %v3991 = vpack.c.b16 %v2743, %v2737
    %v3992 = vpack.c.b16 %v2744, %v2738
    %v3993 = vpack.c.b16 %v2751, %v2745
    %v3994 = vpack.c.b16 %v2752, %v2746
    %v3995 = vpack.c.b16 %v2753, %v2747
    %v3996 = vpack.c.b16 %v2754, %v2748
    %v3997 = vpack.c.b16 %v2755, %v2749
    %v3998 = vpack.c.b16 %v2756, %v2750
    %v3999 = vpack.c.b16 %v2763, %v2757
    %v4000 = vpack.c.b16 %v2764, %v2758
    %v4001 = vpack.c.b16 %v2765, %v2759
    %v4002 = vpack.c.b16 %v2766, %v2760
    %v4003 = vpack.c.b16 %v2767, %v2761
    %v4004 = vpack.c.b16 %v2768, %v2762
    %v4005 = vpack.c.b16 %v2775, %v2769
    %v4006 = vpack.c.b16 %v2776, %v2770
    %v4007 = vpack.c.b16 %v2777, %v2771
    %v4008 = vpack.c.b16 %v2778, %v2772
    %v4009 = vpack.c.b16 %v2779, %v2773
    %v4010 = vpack.c.b16 %v2780, %v2774
    %v4011 = vpack.c.b16 %v2787, %v2781
    %v4012 = vpack.c.b16 %v2788, %v2782
    %v4013 = vpack.c.b16 %v2789, %v2783
    %v4014 = vpack.c.b16 %v2790, %v2784
    %v4015 = vpack.c.b16 %v2791, %v2785
    %v4016 = vpack.c.b16 %v2792, %v2786
    %v4017 = vpack.c.b16 %v2799, %v2793
    %v4018 = vpack.c.b16 %v2800, %v2794
    %v4019 = vpack.c.b16 %v2801, %v2795
    %v4020 = vpack.c.b16 %v2802, %v2796
    %v4021 = vpack.c.b16 %v2803, %v2797
    %v4022 = vpack.c.b16 %v2804, %v2798
    %v4023 = vpack.c.b16 %v2811, %v2805
    %v4024 = vpack.c.b16 %v2812, %v2806
    %v4025 = vpack.c.b16 %v2813, %v2807
    %v4026 = vpack.c.b16 %v2814, %v2808
    %v4027 = vpack.c.b16 %v2815, %v2809
    %v4028 = vpack.c.b16 %v2816, %v2810
    %v4029 = vpack.c.b16 %v2823, %v2817
    %v4030 = vpack.c.b16 %v2824, %v2818
    %v4031 = vpack.c.b16 %v2825, %v2819
    %v4032 = vpack.c.b16 %v2826, %v2820
    %v4033 = vpack.c.b16 %v2827, %v2821
    %v4034 = vpack.c.b16 %v2828, %v2822
    %v4035 = vpack.c.b16 %v2835, %v2829
    %v4036 = vpack.c.b16 %v2836, %v2830
    %v4037 = vpack.c.b16 %v2837, %v2831
    %v4038 = vpack.c.b16 %v2838, %v2832
    %v4039 = vpack.c.b16 %v2839, %v2833
    %v4040 = vpack.c.b16 %v2840, %v2834
    %v4041 = vpack.c.b16 %v2847, %v2841
    %v4042 = vpack.c.b16 %v2848, %v2842
    %v4043 = vpack.c.b16 %v2849, %v2843
    %v4044 = vpack.c.b16 %v2850, %v2844
    %v4045 = vpack.c.b16 %v2851, %v2845
    %v4046 = vpack.c.b16 %v2852, %v2846
    %v4047 = vpack.c.b16 %v2859, %v2853
    %v4048 = vpack.c.b16 %v2860, %v2854
    %v4049 = vpack.c.b16 %v2861, %v2855
    %v4050 = vpack.c.b16 %v2862, %v2856
    %v4051 = vpack.c.b16 %v2863, %v2857
    %v4052 = vpack.c.b16 %v2864, %v2858
    %v4053 = vpack.c.b16 %v2871, %v2865
    %v4054 = vpack.c.b16 %v2872, %v2866
    %v4055 = vpack.c.b16 %v2873, %v2867
    %v4056 = vpack.c.b16 %v2874, %v2868
    %v4057 = vpack.c.b16 %v2875, %v2869
    %v4058 = vpack.c.b16 %v2876, %v2870
    %v4059 = vpack.c.b16 %v2883, %v2877
    %v4060 = vpack.c.b16 %v2884, %v2878
    %v4061 = vpack.c.b16 %v2885, %v2879
    %v4062 = vpack.c.b16 %v2886, %v2880
    %v4063 = vpack.c.b16 %v2887, %v2881
    %v4064 = vpack.c.b16 %v2888, %v2882
    %v4065 = vpack.c.b16 %v2895, %v2889
    %v4066 = vpack.c.b16 %v2896, %v2890
    %v4067 = vpack.c.b16 %v2897, %v2891
    %v4068 = vpack.c.b16 %v2898, %v2892
    %v4069 = vpack.c.b16 %v2899, %v2893
    %v4070 = vpack.c.b16 %v2900, %v2894
    %v4071 = vpack.c.b16 %v2907, %v2901
    %v4072 = vpack.c.b16 %v2908, %v2902
    %v4073 = vpack.c.b16 %v2909, %v2903
    %v4074 = vpack.c.b16 %v2910, %v2904
    %v4075 = vpack.c.b16 %v2911, %v2905
    %v4076 = vpack.c.b16 %v2912, %v2906
    %v4077 = vpack.c.b16 %v2919, %v2913
    %v4078 = vpack.c.b16 %v2920, %v2914
    %v4079 = vpack.c.b16 %v2921, %v2915
    %v4080 = vpack.c.b16 %v2922, %v2916
    %v4081 = vpack.c.b16 %v2923, %v2917
    %v4082 = vpack.c.b16 %v2924, %v2918
    %v4083 = vpack.c.b16 %v2931, %v2925
    %v4084 = vpack.c.b16 %v2932, %v2926
    %v4085 = vpack.c.b16 %v2933, %v2927
    %v4086 = vpack.c.b16 %v2934, %v2928
    %v4087 = vpack.c.b16 %v2935, %v2929
    %v4088 = vpack.c.b16 %v2936, %v2930
    %v4089 = vpack.c.b16 %v2943, %v2937
    %v4090 = vpack.c.b16 %v2944, %v2938
    %v4091 = vpack.c.b16 %v2945, %v2939
    %v4092 = vpack.c.b16 %v2946, %v2940
    %v4093 = vpack.c.b16 %v2947, %v2941
    %v4094 = vpack.c.b16 %v2948, %v2942
    %v4095 = vpack.c.b16 %v2955, %v2949
    %v4096 = vpack.c.b16 %v2956, %v2950
    %v4097 = vpack.c.b16 %v2957, %v2951
    %v4098 = vpack.c.b16 %v2958, %v2952
    %v4099 = vpack.c.b16 %v2959, %v2953
    %v4100 = vpack.c.b16 %v2960, %v2954
    %v4101 = vpack.c.b16 %v2967, %v2961
    %v4102 = vpack.c.b16 %v2968, %v2962
    %v4103 = vpack.c.b16 %v2969, %v2963
    %v4104 = vpack.c.b16 %v2970, %v2964
    %v4105 = vpack.c.b16 %v2971, %v2965
    %v4106 = vpack.c.b16 %v2972, %v2966
    %v4107 = vpack.c.b16 %v2979, %v2973
    %v4108 = vpack.c.b16 %v2980, %v2974
    %v4109 = vpack.c.b16 %v2981, %v2975
    %v4110 = vpack.c.b16 %v2982, %v2976
    %v4111 = vpack.c.b16 %v2983, %v2977
    %v4112 = vpack.c.b16 %v2984, %v2978
    %v4113 = vpack.c.b16 %v2991, %v2985
    %v4114 = vpack.c.b16 %v2992, %v2986
    %v4115 = vpack.c.b16 %v2993, %v2987
    %v4116 = vpack.c.b16 %v2994, %v2988
    %v4117 = vpack.c.b16 %v2995, %v2989
    %v4118 = vpack.c.b16 %v2996, %v2990
    %v4119 = vpack.c.b16 %v3003, %v2997
    %v4120 = vpack.c.b16 %v3004, %v2998
    %v4121 = vpack.c.b16 %v3005, %v2999
    %v4122 = vpack.c.b16 %v3006, %v3000
    %v4123 = vpack.c.b16 %v3007, %v3001
    %v4124 = vpack.c.b16 %v3008, %v3002
    %v4125 = vpack.c.b16 %v3015, %v3009
    %v4126 = vpack.c.b16 %v3016, %v3010
    %v4127 = vpack.c.b16 %v3017, %v3011
    %v4128 = vpack.c.b16 %v3018, %v3012
    %v4129 = vpack.c.b16 %v3019, %v3013
    %v4130 = vpack.c.b16 %v3020, %v3014
    %v4131 = vpack.c.b16 %v3027, %v3021
    %v4132 = vpack.c.b16 %v3028, %v3022
    %v4133 = vpack.c.b16 %v3029, %v3023
    %v4134 = vpack.c.b16 %v3030, %v3024
    %v4135 = vpack.c.b16 %v3031, %v3025
    %v4136 = vpack.c.b16 %v3032, %v3026
    %v4137 = vpack.c.b16 %v3039, %v3033
    %v4138 = vpack.c.b16 %v3040, %v3034
    %v4139 = vpack.c.b16 %v3041, %v3035
    %v4140 = vpack.c.b16 %v3042, %v3036
    %v4141 = vpack.c.b16 %v3043, %v3037
    %v4142 = vpack.c.b16 %v3044, %v3038
    %v4143 = vpack.c.b16 %v3051, %v3045
    %v4144 = vpack.c.b16 %v3052, %v3046
    %v4145 = vpack.c.b16 %v3053, %v3047
    %v4146 = vpack.c.b16 %v3054, %v3048
    %v4147 = vpack.c.b16 %v3055, %v3049
    %v4148 = vpack.c.b16 %v3056, %v3050
    %v4149 = vpack.c.b16 %v3063, %v3057
    %v4150 = vpack.c.b16 %v3064, %v3058
    %v4151 = vpack.c.b16 %v3065, %v3059
    %v4152 = vpack.c.b16 %v3066, %v3060
    %v4153 = vpack.c.b16 %v3067, %v3061
    %v4154 = vpack.c.b16 %v3068, %v3062
    %v4155 = vpack.c.b16 %v3075, %v3069
    %v4156 = vpack.c.b16 %v3076, %v3070
    %v4157 = vpack.c.b16 %v3077, %v3071
    %v4158 = vpack.c.b16 %v3078, %v3072
    %v4159 = vpack.c.b16 %v3079, %v3073
    %v4160 = vpack.c.b16 %v3080, %v3074
    %v4161 = vpack.c.b16 %v3087, %v3081
    %v4162 = vpack.c.b16 %v3088, %v3082
    %v4163 = vpack.c.b16 %v3089, %v3083
    %v4164 = vpack.c.b16 %v3090, %v3084
    %v4165 = vpack.c.b16 %v3091, %v3085
    %v4166 = vpack.c.b16 %v3092, %v3086
    %v4167 = vpack.c.b16 %v3099, %v3093
    %v4168 = vpack.c.b16 %v3100, %v3094
    %v4169 = vpack.c.b16 %v3101, %v3095
    %v4170 = vpack.c.b16 %v3102, %v3096
    %v4171 = vpack.c.b16 %v3103, %v3097
    %v4172 = vpack.c.b16 %v3104, %v3098
    %v4173 = vpack.c.b16 %v3111, %v3105
    %v4174 = vpack.c.b16 %v3112, %v3106
    %v4175 = vpack.c.b16 %v3113, %v3107
    %v4176 = vpack.c.b16 %v3114, %v3108
    %v4177 = vpack.c.b16 %v3115, %v3109
    %v4178 = vpack.c.b16 %v3116, %v3110
    %v4179 = vpack.c.b16 %v3123, %v3117
    %v4180 = vpack.c.b16 %v3124, %v3118
    %v4181 = vpack.c.b16 %v3125, %v3119
    %v4182 = vpack.c.b16 %v3126, %v3120
    %v4183 = vpack.c.b16 %v3127, %v3121
    %v4184 = vpack.c.b16 %v3128, %v3122
    %v4185 = vpack.c.b16 %v3135, %v3129
    %v4186 = vpack.c.b16 %v3136, %v3130
    %v4187 = vpack.c.b16 %v3137, %v3131
    %v4188 = vpack.c.b16 %v3138, %v3132
    %v4189 = vpack.c.b16 %v3139, %v3133
    %v4190 = vpack.c.b16 %v3140, %v3134
    %v4191 = vpack.c.b16 %v3147, %v3141
    %v4192 = vpack.c.b16 %v3148, %v3142
    %v4193 = vpack.c.b16 %v3149, %v3143
    %v4194 = vpack.c.b16 %v3150, %v3144
    %v4195 = vpack.c.b16 %v3151, %v3145
    %v4196 = vpack.c.b16 %v3152, %v3146
    %v4197 = vpack.c.b16 %v3159, %v3153
    %v4198 = vpack.c.b16 %v3160, %v3154
    %v4199 = vpack.c.b16 %v3161, %v3155
    %v4200 = vpack.c.b16 %v3162, %v3156
    %v4201 = vpack.c.b16 %v3163, %v3157
    %v4202 = vpack.c.b16 %v3164, %v3158
    %v4203 = vpack.c.b16 %v3171, %v3165
    %v4204 = vpack.c.b16 %v3172, %v3166
    %v4205 = vpack.c.b16 %v3173, %v3167
    %v4206 = vpack.c.b16 %v3174, %v3168
    %v4207 = vpack.c.b16 %v3175, %v3169
    %v4208 = vpack.c.b16 %v3176, %v3170
    %v4209 = vpack.c.b16 %v3183, %v3177
    %v4210 = vpack.c.b16 %v3184, %v3178
    %v4211 = vpack.c.b16 %v3185, %v3179
    %v4212 = vpack.c.b16 %v3186, %v3180
    %v4213 = vpack.c.b16 %v3187, %v3181
    %v4214 = vpack.c.b16 %v3188, %v3182
    %v4215 = vpack.c.b16 %v3195, %v3189
    %v4216 = vpack.c.b16 %v3196, %v3190
    %v4217 = vpack.c.b16 %v3197, %v3191
    %v4218 = vpack.c.b16 %v3198, %v3192
    %v4219 = vpack.c.b16 %v3199, %v3193
    %v4220 = vpack.c.b16 %v3200, %v3194
    %v4221 = vpack.c.b16 %v3207, %v3201
    %v4222 = vpack.c.b16 %v3208, %v3202
    %v4223 = vpack.c.b16 %v3209, %v3203
    %v4224 = vpack.c.b16 %v3210, %v3204
    %v4225 = vpack.c.b16 %v3211, %v3205
    %v4226 = vpack.c.b16 %v3212, %v3206
    %v4227 = vpack.c.b16 %v3219, %v3213
    %v4228 = vpack.c.b16 %v3220, %v3214
    %v4229 = vpack.c.b16 %v3221, %v3215
    %v4230 = vpack.c.b16 %v3222, %v3216
    %v4231 = vpack.c.b16 %v3223, %v3217
    %v4232 = vpack.c.b16 %v3224, %v3218
    %v4233 = vpack.c.b16 %v3231, %v3225
    %v4234 = vpack.c.b16 %v3232, %v3226
    %v4235 = vpack.c.b16 %v3233, %v3227
    %v4236 = vpack.c.b16 %v3234, %v3228
    %v4237 = vpack.c.b16 %v3235, %v3229
    %v4238 = vpack.c.b16 %v3236, %v3230
    %v4239 = vpack.c.b16 %v3243, %v3237
    %v4240 = vpack.c.b16 %v3244, %v3238
    %v4241 = vpack.c.b16 %v3245, %v3239
    %v4242 = vpack.c.b16 %v3246, %v3240
    %v4243 = vpack.c.b16 %v3247, %v3241
    %v4244 = vpack.c.b16 %v3248, %v3242
    %v4245 = vpack.c.b16 %v3255, %v3249
    %v4246 = vpack.c.b16 %v3256, %v3250
    %v4247 = vpack.c.b16 %v3257, %v3251
    %v4248 = vpack.c.b16 %v3258, %v3252
    %v4249 = vpack.c.b16 %v3259, %v3253
    %v4250 = vpack.c.b16 %v3260, %v3254
    %v4251 = vpack.c.b16 %v3267, %v3261
    %v4252 = vpack.c.b16 %v3268, %v3262
    %v4253 = vpack.c.b16 %v3269, %v3263
    %v4254 = vpack.c.b16 %v3270, %v3264
    %v4255 = vpack.c.b16 %v3271, %v3265
    %v4256 = vpack.c.b16 %v3272, %v3266
    %v4257 = vpack.c.b16 %v3279, %v3273
    %v4258 = vpack.c.b16 %v3280, %v3274
    %v4259 = vpack.c.b16 %v3281, %v3275
    %v4260 = vpack.c.b16 %v3282, %v3276
    %v4261 = vpack.c.b16 %v3283, %v3277
    %v4262 = vpack.c.b16 %v3284, %v3278
    %v4263 = vpack.c.b16 %v3291, %v3285
    %v4264 = vpack.c.b16 %v3292, %v3286
    %v4265 = vpack.c.b16 %v3293, %v3287
    %v4266 = vpack.c.b16 %v3294, %v3288
    %v4267 = vpack.c.b16 %v3295, %v3289
    %v4268 = vpack.c.b16 %v3296, %v3290
    %v4269 = vpack.c.b16 %v3303, %v3297
    %v4270 = vpack.c.b16 %v3304, %v3298
    %v4271 = vpack.c.b16 %v3305, %v3299
    %v4272 = vpack.c.b16 %v3306, %v3300
    %v4273 = vpack.c.b16 %v3307, %v3301
    %v4274 = vpack.c.b16 %v3308, %v3302
    %v4275 = vpack.c.b16 %v3315, %v3309
    %v4276 = vpack.c.b16 %v3316, %v3310
    %v4277 = vpack.c.b16 %v3317, %v3311
    %v4278 = vpack.c.b16 %v3318, %v3312
    %v4279 = vpack.c.b16 %v3319, %v3313
    %v4280 = vpack.c.b16 %v3320, %v3314
    %v4281 = vpack.c.b16 %v3327, %v3321
    %v4282 = vpack.c.b16 %v3328, %v3322
    %v4283 = vpack.c.b16 %v3329, %v3323
    %v4284 = vpack.c.b16 %v3330, %v3324
    %v4285 = vpack.c.b16 %v3331, %v3325
    %v4286 = vpack.c.b16 %v3332, %v3326
    %v4287 = vpack.c.b16 %v3339, %v3333
    %v4288 = vpack.c.b16 %v3340, %v3334
    %v4289 = vpack.c.b16 %v3341, %v3335
    %v4290 = vpack.c.b16 %v3342, %v3336
    %v4291 = vpack.c.b16 %v3343, %v3337
    %v4292 = vpack.c.b16 %v3344, %v3338
    %v4293 = vpack.c.b16 %v3351, %v3345
    %v4294 = vpack.c.b16 %v3352, %v3346
    %v4295 = vpack.c.b16 %v3353, %v3347
    %v4296 = vpack.c.b16 %v3354, %v3348
    %v4297 = vpack.c.b16 %v3355, %v3349
    %v4298 = vpack.c.b16 %v3356, %v3350
    %v4299 = vpack.c.b16 %v3363, %v3357
    %v4300 = vpack.c.b16 %v3364, %v3358
    %v4301 = vpack.c.b16 %v3365, %v3359
    %v4302 = vpack.c.b16 %v3366, %v3360
    %v4303 = vpack.c.b16 %v3367, %v3361
    %v4304 = vpack.c.b16 %v3368, %v3362
    %v4305 = vpack.c.b16 %v3375, %v3369
    %v4306 = vpack.c.b16 %v3376, %v3370
    %v4307 = vpack.c.b16 %v3377, %v3371
    %v4308 = vpack.c.b16 %v3378, %v3372
    %v4309 = vpack.c.b16 %v3379, %v3373
    %v4310 = vpack.c.b16 %v3380, %v3374
    %v4311 = vpack.c.b16 %v3387, %v3381
    %v4312 = vpack.c.b16 %v3388, %v3382
    %v4313 = vpack.c.b16 %v3389, %v3383
    %v4314 = vpack.c.b16 %v3390, %v3384
    %v4315 = vpack.c.b16 %v3391, %v3385
    %v4316 = vpack.c.b16 %v3392, %v3386
    %v4317 = vpack.c.b16 %v3399, %v3393
    %v4318 = vpack.c.b16 %v3400, %v3394
    %v4319 = vpack.c.b16 %v3401, %v3395
    %v4320 = vpack.c.b16 %v3402, %v3396
    %v4321 = vpack.c.b16 %v3403, %v3397
    %v4322 = vpack.c.b16 %v3404, %v3398
    %v4323 = vpack.c.b16 %v3411, %v3405
    %v4324 = vpack.c.b16 %v3412, %v3406
    %v4325 = vpack.c.b16 %v3413, %v3407
    %v4326 = vpack.c.b16 %v3414, %v3408
    %v4327 = vpack.c.b16 %v3415, %v3409
    %v4328 = vpack.c.b16 %v3416, %v3410
    %v4329 = vpack.c.b16 %v3423, %v3417
    %v4330 = vpack.c.b16 %v3424, %v3418
    %v4331 = vpack.c.b16 %v3425, %v3419
    %v4332 = vpack.c.b16 %v3426, %v3420
    %v4333 = vpack.c.b16 %v3427, %v3421
    %v4334 = vpack.c.b16 %v3428, %v3422
    %v4335 = vpack.c.b16 %v3435, %v3429
    %v4336 = vpack.c.b16 %v3436, %v3430
    %v4337 = vpack.c.b16 %v3437, %v3431
    %v4338 = vpack.c.b16 %v3438, %v3432
    %v4339 = vpack.c.b16 %v3439, %v3433
    %v4340 = vpack.c.b16 %v3440, %v3434
    %v4341 = vpack.c.b16 %v3447, %v3441
    %v4342 = vpack.c.b16 %v3448, %v3442
    %v4343 = vpack.c.b16 %v3449, %v3443
    %v4344 = vpack.c.b16 %v3450, %v3444
    %v4345 = vpack.c.b16 %v3451, %v3445
    %v4346 = vpack.c.b16 %v3452, %v3446
    %v4347 = vpack.c.b16 %v3459, %v3453
    %v4348 = vpack.c.b16 %v3460, %v3454
    %v4349 = vpack.c.b16 %v3461, %v3455
    %v4350 = vpack.c.b16 %v3462, %v3456
    %v4351 = vpack.c.b16 %v3463, %v3457
    %v4352 = vpack.c.b16 %v3464, %v3458
    %v4353 = vpack.c.b16 %v3471, %v3465
    %v4354 = vpack.c.b16 %v3472, %v3466
    %v4355 = vpack.c.b16 %v3473, %v3467
    %v4356 = vpack.c.b16 %v3474, %v3468
    %v4357 = vpack.c.b16 %v3475, %v3469
    %v4358 = vpack.c.b16 %v3476, %v3470
    %v4359 = vpack.c.b16 %v3483, %v3477
    %v4360 = vpack.c.b16 %v3484, %v3478
    %v4361 = vpack.c.b16 %v3485, %v3479
    %v4362 = vpack.c.b16 %v3486, %v3480
    %v4363 = vpack.c.b16 %v3487, %v3481
    %v4364 = vpack.c.b16 %v3488, %v3482
    %v4365 = vpack.c.b16 %v3495, %v3489
    %v4366 = vpack.c.b16 %v3496, %v3490
    %v4367 = vpack.c.b16 %v3497, %v3491
    %v4368 = vpack.c.b16 %v3498, %v3492
    %v4369 = vpack.c.b16 %v3499, %v3493
    %v4370 = vpack.c.b16 %v3500, %v3494
    %v4371 = vpack.c.b16 %v3507, %v3501
    %v4372 = vpack.c.b16 %v3508, %v3502
    %v4373 = vpack.c.b16 %v3509, %v3503
    %v4374 = vpack.c.b16 %v3510, %v3504
    %v4375 = vpack.c.b16 %v3511, %v3505
    %v4376 = vpack.c.b16 %v3512, %v3506
    %5241 = vmatprep.subr.bf16.mxu0 %v3514
    %5242 = vmatpush1.bf16.xpose.msra.mxu0 %v3513
    %5243 = vmatprep.subr.bf16.mxu0 %v3520
    %5244 = vmatpush1.bf16.xpose.msra.mxu0 %v3519
    %5245 = vmatprep.subr.bf16.mxu0 %v3526
    %5246 = vmatpush1.bf16.xpose.msra.mxu0 %v3525
    %5247 = vmatprep.subr.bf16.mxu0 %v3532
    %5248 = vmatpush1.bf16.xpose.msra.mxu0 %v3531
    %5249 = vmatprep.subr.bf16.mxu0 %v3538
    %5250 = vmatpush1.bf16.xpose.msra.mxu0 %v3537
    %5251 = vmatprep.subr.bf16.mxu0 %v3544
    %5252 = vmatpush1.bf16.xpose.msra.mxu0 %v3543
    %5253 = vmatprep.subr.bf16.mxu0 %v3550
    %5254 = vmatpush1.bf16.xpose.msra.mxu0 %v3549
    %5255 = vmatprep.subr.bf16.mxu0 %v3556
    %5256 = vmatpush1.bf16.xpose.msra.mxu0 %v3555
    %5257 = vmatprep.subr.bf16.mxu0 %v3562
    %5258 = vmatpush1.bf16.xpose.msra.mxu0 %v3561
    %5259 = vmatprep.subr.bf16.mxu0 %v3568
    %5260 = vmatpush1.bf16.xpose.msra.mxu0 %v3567
    %5261 = vmatprep.subr.bf16.mxu0 %v3574
    %5262 = vmatpush1.bf16.xpose.msra.mxu0 %v3573
    %5263 = vmatprep.subr.bf16.mxu0 %v3580
    %5264 = vmatpush1.bf16.xpose.msra.mxu0 %v3579
    %5265 = vmatprep.subr.bf16.mxu0 %v3586
    %5266 = vmatpush1.bf16.xpose.msra.mxu0 %v3585
    %5267 = vmatprep.subr.bf16.mxu0 %v3592
    %5268 = vmatpush1.bf16.xpose.msra.mxu0 %v3591
    %5269 = vmatprep.subr.bf16.mxu0 %v3598
    %5270 = vmatpush1.bf16.xpose.msra.mxu0 %v3597
    %5271 = vmatprep.subr.bf16.mxu0 %v3604
    %5272 = vmatpush1.bf16.xpose.msra.mxu0 %v3603
    %5273 = vmatprep.mubr.bf16.mxu0 %v52
    %5274 = vmatmul.mubr.bf16.gmra.mrb[0].mxu0 %v51
    %v5275 = vpop.f32.mrb[0].mxu0
    %v5276 = vadd.f32 0.0, %v5275
    %v5277 = vpop.f32.mrb[0].mxu0
    %v5278 = vadd.f32 0.0, %v5277
    %v5279 = vpop.f32.mrb[0].mxu0
    %v5280 = vadd.f32 0.0, %v5279
    %v5281 = vpop.f32.mrb[0].mxu0
    %v5282 = vadd.f32 0.0, %v5281
    %5283 = vdwg.mxu0
    %5284 = vmatprep.subr.bf16.mxu0 %v3516
    %5285 = vmatpush1.bf16.xpose.msra.mxu0 %v3515
    %5286 = vmatprep.subr.bf16.mxu0 %v3522
    %5287 = vmatpush1.bf16.xpose.msra.mxu0 %v3521
    %5288 = vmatprep.subr.bf16.mxu0 %v3528
    %5289 = vmatpush1.bf16.xpose.msra.mxu0 %v3527
    %5290 = vmatprep.subr.bf16.mxu0 %v3534
    %5291 = vmatpush1.bf16.xpose.msra.mxu0 %v3533
    %5292 = vmatprep.subr.bf16.mxu0 %v3540
    %5293 = vmatpush1.bf16.xpose.msra.mxu0 %v3539
    %5294 = vmatprep.subr.bf16.mxu0 %v3546
    %5295 = vmatpush1.bf16.xpose.msra.mxu0 %v3545
    %5296 = vmatprep.subr.bf16.mxu0 %v3552
    %5297 = vmatpush1.bf16.xpose.msra.mxu0 %v3551
    %5298 = vmatprep.subr.bf16.mxu0 %v3558
    %5299 = vmatpush1.bf16.xpose.msra.mxu0 %v3557
    %5300 = vmatprep.subr.bf16.mxu0 %v3564
    %5301 = vmatpush1.bf16.xpose.msra.mxu0 %v3563
    %5302 = vmatprep.subr.bf16.mxu0 %v3570
    %5303 = vmatpush1.bf16.xpose.msra.mxu0 %v3569
    %5304 = vmatprep.subr.bf16.mxu0 %v3576
    %5305 = vmatpush1.bf16.xpose.msra.mxu0 %v3575
    %5306 = vmatprep.subr.bf16.mxu0 %v3582
    %5307 = vmatpush1.bf16.xpose.msra.mxu0 %v3581
    %5308 = vmatprep.subr.bf16.mxu0 %v3588
    %5309 = vmatpush1.bf16.xpose.msra.mxu0 %v3587
    %5310 = vmatprep.subr.bf16.mxu0 %v3594
    %5311 = vmatpush1.bf16.xpose.msra.mxu0 %v3593
    %5312 = vmatprep.subr.bf16.mxu0 %v3600
    %5313 = vmatpush1.bf16.xpose.msra.mxu0 %v3599
    %5314 = vmatprep.subr.bf16.mxu0 %v3606
    %5315 = vmatpush1.bf16.xpose.msra.mxu0 %v3605
    %5316 = vmatprep.mubr.bf16.mxu0 %v54
    %5317 = vmatmul.mubr.bf16.gmra.mrb[0].mxu0 %v53
    %v5318 = vpop.f32.mrb[0].mxu0
    %v5319 = vadd.f32 %v5276, %v5318
    %v5320 = vpop.f32.mrb[0].mxu0
    %v5321 = vadd.f32 %v5278, %v5320
    %v5322 = vpop.f32.mrb[0].mxu0
    %v5323 = vadd.f32 %v5280, %v5322
    %v5324 = vpop.f32.mrb[0].mxu0
    %v5325 = vadd.f32 %v5282, %v5324
    %5326 = vdwg.mxu0
    %5327 = vmatprep.subr.bf16.mxu0 %v3518
    %5328 = vmatpush1.bf16.xpose.msra.mxu0 %v3517
    %5329 = vmatprep.subr.bf16.mxu0 %v3524
    %5330 = vmatpush1.bf16.xpose.msra.mxu0 %v3523
    %5331 = vmatprep.subr.bf16.mxu0 %v3530
    %5332 = vmatpush1.bf16.xpose.msra.mxu0 %v3529
    %5333 = vmatprep.subr.bf16.mxu0 %v3536
    %5334 = vmatpush1.bf16.xpose.msra.mxu0 %v3535
    %5335 = vmatprep.subr.bf16.mxu0 %v3542
    %5336 = vmatpush1.bf16.xpose.msra.mxu0 %v3541
    %5337 = vmatprep.subr.bf16.mxu0 %v3548
    %5338 = vmatpush1.bf16.xpose.msra.mxu0 %v3547
    %5339 = vmatprep.subr.bf16.mxu0 %v3554
    %5340 = vmatpush1.bf16.xpose.msra.mxu0 %v3553
    %5341 = vmatprep.subr.bf16.mxu0 %v3560
    %5342 = vmatpush1.bf16.xpose.msra.mxu0 %v3559
    %5343 = vmatprep.subr.bf16.mxu0 %v3566
    %5344 = vmatpush1.bf16.xpose.msra.mxu0 %v3565
    %5345 = vmatprep.subr.bf16.mxu0 %v3572
    %5346 = vmatpush1.bf16.xpose.msra.mxu0 %v3571
    %5347 = vmatprep.subr.bf16.mxu0 %v3578
    %5348 = vmatpush1.bf16.xpose.msra.mxu0 %v3577
    %5349 = vmatprep.subr.bf16.mxu0 %v3584
    %5350 = vmatpush1.bf16.xpose.msra.mxu0 %v3583
    %5351 = vmatprep.subr.bf16.mxu0 %v3590
    %5352 = vmatpush1.bf16.xpose.msra.mxu0 %v3589
    %5353 = vmatprep.subr.bf16.mxu0 %v3596
    %5354 = vmatpush1.bf16.xpose.msra.mxu0 %v3595
    %5355 = vmatprep.subr.bf16.mxu0 %v3602
    %5356 = vmatpush1.bf16.xpose.msra.mxu0 %v3601
    %5357 = vmatprep.subr.bf16.mxu0 %v3608
    %5358 = vmatpush1.bf16.xpose.msra.mxu0 %v3607
    %5359 = vmatprep.mubr.bf16.mxu0 %v56
    %5360 = vmatmul.mubr.bf16.gmra.mrb[0].mxu0 %v55
    %v5361 = vpop.f32.mrb[0].mxu0
    %v5362 = vadd.f32 %v5319, %v5361
    %v5363 = vpop.f32.mrb[0].mxu0
    %v5364 = vadd.f32 %v5321, %v5363
    %v5365 = vpop.f32.mrb[0].mxu0
    %v5366 = vadd.f32 %v5323, %v5365
    %v5367 = vpop.f32.mrb[0].mxu0
    %v5368 = vadd.f32 %v5325, %v5367
    %5369 = vdwg.mxu0
    %5370 = vmatprep.subr.bf16.mxu0 %v3610
    %5371 = vmatpush1.bf16.xpose.msra.mxu0 %v3609
    %5372 = vmatprep.subr.bf16.mxu0 %v3616
    %5373 = vmatpush1.bf16.xpose.msra.mxu0 %v3615
    %5374 = vmatprep.subr.bf16.mxu0 %v3622
    %5375 = vmatpush1.bf16.xpose.msra.mxu0 %v3621
    %5376 = vmatprep.subr.bf16.mxu0 %v3628
    %5377 = vmatpush1.bf16.xpose.msra.mxu0 %v3627
    %5378 = vmatprep.subr.bf16.mxu0 %v3634
    %5379 = vmatpush1.bf16.xpose.msra.mxu0 %v3633
    %5380 = vmatprep.subr.bf16.mxu0 %v3640
    %5381 = vmatpush1.bf16.xpose.msra.mxu0 %v3639
    %5382 = vmatprep.subr.bf16.mxu0 %v3646
    %5383 = vmatpush1.bf16.xpose.msra.mxu0 %v3645
    %5384 = vmatprep.subr.bf16.mxu0 %v3652
    %5385 = vmatpush1.bf16.xpose.msra.mxu0 %v3651
    %5386 = vmatprep.subr.bf16.mxu0 %v3658
    %5387 = vmatpush1.bf16.xpose.msra.mxu0 %v3657
    %5388 = vmatprep.subr.bf16.mxu0 %v3664
    %5389 = vmatpush1.bf16.xpose.msra.mxu0 %v3663
    %5390 = vmatprep.subr.bf16.mxu0 %v3670
    %5391 = vmatpush1.bf16.xpose.msra.mxu0 %v3669
    %5392 = vmatprep.subr.bf16.mxu0 %v3676
    %5393 = vmatpush1.bf16.xpose.msra.mxu0 %v3675
    %5394 = vmatprep.subr.bf16.mxu0 %v3682
    %5395 = vmatpush1.bf16.xpose.msra.mxu0 %v3681
    %5396 = vmatprep.subr.bf16.mxu0 %v3688
    %5397 = vmatpush1.bf16.xpose.msra.mxu0 %v3687
    %5398 = vmatprep.subr.bf16.mxu0 %v3694
    %5399 = vmatpush1.bf16.xpose.msra.mxu0 %v3693
    %5400 = vmatprep.subr.bf16.mxu0 %v3700
    %5401 = vmatpush1.bf16.xpose.msra.mxu0 %v3699
    %5402 = vmatprep.mubr.bf16.mxu0 %v52
    %5403 = vmatmul.mubr.bf16.gmra.mrb[0].mxu0 %v51
    %v5404 = vpop.f32.mrb[0].mxu0
    %v5405 = vadd.f32 0.0, %v5404
    %v5406 = vpop.f32.mrb[0].mxu0
    %v5407 = vadd.f32 0.0, %v5406
    %v5408 = vpop.f32.mrb[0].mxu0
    %v5409 = vadd.f32 0.0, %v5408
    %v5410 = vpop.f32.mrb[0].mxu0
    %v5411 = vadd.f32 0.0, %v5410
    %5412 = vdwg.mxu0
    %5413 = vmatprep.subr.bf16.mxu0 %v3612
    %5414 = vmatpush1.bf16.xpose.msra.mxu0 %v3611
    %5415 = vmatprep.subr.bf16.mxu0 %v3618
    %5416 = vmatpush1.bf16.xpose.msra.mxu0 %v3617
    %5417 = vmatprep.subr.bf16.mxu0 %v3624
    %5418 = vmatpush1.bf16.xpose.msra.mxu0 %v3623
    %5419 = vmatprep.subr.bf16.mxu0 %v3630
    %5420 = vmatpush1.bf16.xpose.msra.mxu0 %v3629
    %5421 = vmatprep.subr.bf16.mxu0 %v3636
    %5422 = vmatpush1.bf16.xpose.msra.mxu0 %v3635
    %5423 = vmatprep.subr.bf16.mxu0 %v3642
    %5424 = vmatpush1.bf16.xpose.msra.mxu0 %v3641
    %5425 = vmatprep.subr.bf16.mxu0 %v3648
    %5426 = vmatpush1.bf16.xpose.msra.mxu0 %v3647
    %5427 = vmatprep.subr.bf16.mxu0 %v3654
    %5428 = vmatpush1.bf16.xpose.msra.mxu0 %v3653
    %5429 = vmatprep.subr.bf16.mxu0 %v3660
    %5430 = vmatpush1.bf16.xpose.msra.mxu0 %v3659
    %5431 = vmatprep.subr.bf16.mxu0 %v3666
    %5432 = vmatpush1.bf16.xpose.msra.mxu0 %v3665
    %5433 = vmatprep.subr.bf16.mxu0 %v3672
    %5434 = vmatpush1.bf16.xpose.msra.mxu0 %v3671
    %5435 = vmatprep.subr.bf16.mxu0 %v3678
    %5436 = vmatpush1.bf16.xpose.msra.mxu0 %v3677
    %5437 = vmatprep.subr.bf16.mxu0 %v3684
    %5438 = vmatpush1.bf16.xpose.msra.mxu0 %v3683
    %5439 = vmatprep.subr.bf16.mxu0 %v3690
    %5440 = vmatpush1.bf16.xpose.msra.mxu0 %v3689
    %5441 = vmatprep.subr.bf16.mxu0 %v3696
    %5442 = vmatpush1.bf16.xpose.msra.mxu0 %v3695
    %5443 = vmatprep.subr.bf16.mxu0 %v3702
    %5444 = vmatpush1.bf16.xpose.msra.mxu0 %v3701
    %5445 = vmatprep.mubr.bf16.mxu0 %v54
    %5446 = vmatmul.mubr.bf16.gmra.mrb[0].mxu0 %v53
    %v5447 = vpop.f32.mrb[0].mxu0
    %v5448 = vadd.f32 %v5405, %v5447
    %v5449 = vpop.f32.mrb[0].mxu0
    %v5450 = vadd.f32 %v5407, %v5449
    %v5451 = vpop.f32.mrb[0].mxu0
    %v5452 = vadd.f32 %v5409, %v5451
    %v5453 = vpop.f32.mrb[0].mxu0
    %v5454 = vadd.f32 %v5411, %v5453
    %5455 = vdwg.mxu0
    %5456 = vmatprep.subr.bf16.mxu0 %v3614
    %5457 = vmatpush1.bf16.xpose.msra.mxu0 %v3613
    %5458 = vmatprep.subr.bf16.mxu0 %v3620
    %5459 = vmatpush1.bf16.xpose.msra.mxu0 %v3619
    %5460 = vmatprep.subr.bf16.mxu0 %v3626
    %5461 = vmatpush1.bf16.xpose.msra.mxu0 %v3625
    %5462 = vmatprep.subr.bf16.mxu0 %v3632
    %5463 = vmatpush1.bf16.xpose.msra.mxu0 %v3631
    %5464 = vmatprep.subr.bf16.mxu0 %v3638
    %5465 = vmatpush1.bf16.xpose.msra.mxu0 %v3637
    %5466 = vmatprep.subr.bf16.mxu0 %v3644
    %5467 = vmatpush1.bf16.xpose.msra.mxu0 %v3643
    %5468 = vmatprep.subr.bf16.mxu0 %v3650
    %5469 = vmatpush1.bf16.xpose.msra.mxu0 %v3649
    %5470 = vmatprep.subr.bf16.mxu0 %v3656
    %5471 = vmatpush1.bf16.xpose.msra.mxu0 %v3655
    %5472 = vmatprep.subr.bf16.mxu0 %v3662
    %5473 = vmatpush1.bf16.xpose.msra.mxu0 %v3661
    %5474 = vmatprep.subr.bf16.mxu0 %v3668
    %5475 = vmatpush1.bf16.xpose.msra.mxu0 %v3667
    %5476 = vmatprep.subr.bf16.mxu0 %v3674
    %5477 = vmatpush1.bf16.xpose.msra.mxu0 %v3673
    %5478 = vmatprep.subr.bf16.mxu0 %v3680
    %5479 = vmatpush1.bf16.xpose.msra.mxu0 %v3679
    %5480 = vmatprep.subr.bf16.mxu0 %v3686
    %5481 = vmatpush1.bf16.xpose.msra.mxu0 %v3685
    %5482 = vmatprep.subr.bf16.mxu0 %v3692
    %5483 = vmatpush1.bf16.xpose.msra.mxu0 %v3691
    %5484 = vmatprep.subr.bf16.mxu0 %v3698
    %5485 = vmatpush1.bf16.xpose.msra.mxu0 %v3697
    %5486 = vmatprep.subr.bf16.mxu0 %v3704
    %5487 = vmatpush1.bf16.xpose.msra.mxu0 %v3703
    %5488 = vmatprep.mubr.bf16.mxu0 %v56
    %5489 = vmatmul.mubr.bf16.gmra.mrb[0].mxu0 %v55
    %v5490 = vpop.f32.mrb[0].mxu0
    %v5491 = vadd.f32 %v5448, %v5490
    %v5492 = vpop.f32.mrb[0].mxu0
    %v5493 = vadd.f32 %v5450, %v5492
    %v5494 = vpop.f32.mrb[0].mxu0
    %v5495 = vadd.f32 %v5452, %v5494
    %v5496 = vpop.f32.mrb[0].mxu0
    %v5497 = vadd.f32 %v5454, %v5496
    %5498 = vdwg.mxu0
    %5499 = vmatprep.subr.bf16.mxu0 %v3706
    %5500 = vmatpush1.bf16.xpose.msra.mxu0 %v3705
    %5501 = vmatprep.subr.bf16.mxu0 %v3712
    %5502 = vmatpush1.bf16.xpose.msra.mxu0 %v3711
    %5503 = vmatprep.subr.bf16.mxu0 %v3718
    %5504 = vmatpush1.bf16.xpose.msra.mxu0 %v3717
    %5505 = vmatprep.subr.bf16.mxu0 %v3724
    %5506 = vmatpush1.bf16.xpose.msra.mxu0 %v3723
    %5507 = vmatprep.subr.bf16.mxu0 %v3730
    %5508 = vmatpush1.bf16.xpose.msra.mxu0 %v3729
    %5509 = vmatprep.subr.bf16.mxu0 %v3736
    %5510 = vmatpush1.bf16.xpose.msra.mxu0 %v3735
    %5511 = vmatprep.subr.bf16.mxu0 %v3742
    %5512 = vmatpush1.bf16.xpose.msra.mxu0 %v3741
    %5513 = vmatprep.subr.bf16.mxu0 %v3748
    %5514 = vmatpush1.bf16.xpose.msra.mxu0 %v3747
    %5515 = vmatprep.subr.bf16.mxu0 %v3754
    %5516 = vmatpush1.bf16.xpose.msra.mxu0 %v3753
    %5517 = vmatprep.subr.bf16.mxu0 %v3760
    %5518 = vmatpush1.bf16.xpose.msra.mxu0 %v3759
    %5519 = vmatprep.subr.bf16.mxu0 %v3766
    %5520 = vmatpush1.bf16.xpose.msra.mxu0 %v3765
    %5521 = vmatprep.subr.bf16.mxu0 %v3772
    %5522 = vmatpush1.bf16.xpose.msra.mxu0 %v3771
    %5523 = vmatprep.subr.bf16.mxu0 %v3778
    %5524 = vmatpush1.bf16.xpose.msra.mxu0 %v3777
    %5525 = vmatprep.subr.bf16.mxu0 %v3784
    %5526 = vmatpush1.bf16.xpose.msra.mxu0 %v3783
    %5527 = vmatprep.subr.bf16.mxu0 %v3790
    %5528 = vmatpush1.bf16.xpose.msra.mxu0 %v3789
    %5529 = vmatprep.subr.bf16.mxu0 %v3796
    %5530 = vmatpush1.bf16.xpose.msra.mxu0 %v3795
    %5531 = vmatprep.mubr.bf16.mxu0 %v52
    %5532 = vmatmul.mubr.bf16.gmra.mrb[0].mxu0 %v51
    %v5533 = vpop.f32.mrb[0].mxu0
    %v5534 = vadd.f32 0.0, %v5533
    %v5535 = vpop.f32.mrb[0].mxu0
    %v5536 = vadd.f32 0.0, %v5535
    %v5537 = vpop.f32.mrb[0].mxu0
    %v5538 = vadd.f32 0.0, %v5537
    %v5539 = vpop.f32.mrb[0].mxu0
    %v5540 = vadd.f32 0.0, %v5539
    %5541 = vdwg.mxu0
    %5542 = vmatprep.subr.bf16.mxu0 %v3708
    %5543 = vmatpush1.bf16.xpose.msra.mxu0 %v3707
    %5544 = vmatprep.subr.bf16.mxu0 %v3714
    %5545 = vmatpush1.bf16.xpose.msra.mxu0 %v3713
    %5546 = vmatprep.subr.bf16.mxu0 %v3720
    %5547 = vmatpush1.bf16.xpose.msra.mxu0 %v3719
    %5548 = vmatprep.subr.bf16.mxu0 %v3726
    %5549 = vmatpush1.bf16.xpose.msra.mxu0 %v3725
    %5550 = vmatprep.subr.bf16.mxu0 %v3732
    %5551 = vmatpush1.bf16.xpose.msra.mxu0 %v3731
    %5552 = vmatprep.subr.bf16.mxu0 %v3738
    %5553 = vmatpush1.bf16.xpose.msra.mxu0 %v3737
    %5554 = vmatprep.subr.bf16.mxu0 %v3744
    %5555 = vmatpush1.bf16.xpose.msra.mxu0 %v3743
    %5556 = vmatprep.subr.bf16.mxu0 %v3750
    %5557 = vmatpush1.bf16.xpose.msra.mxu0 %v3749
    %5558 = vmatprep.subr.bf16.mxu0 %v3756
    %5559 = vmatpush1.bf16.xpose.msra.mxu0 %v3755
    %5560 = vmatprep.subr.bf16.mxu0 %v3762
    %5561 = vmatpush1.bf16.xpose.msra.mxu0 %v3761
    %5562 = vmatprep.subr.bf16.mxu0 %v3768
    %5563 = vmatpush1.bf16.xpose.msra.mxu0 %v3767
    %5564 = vmatprep.subr.bf16.mxu0 %v3774
    %5565 = vmatpush1.bf16.xpose.msra.mxu0 %v3773
    %5566 = vmatprep.subr.bf16.mxu0 %v3780
    %5567 = vmatpush1.bf16.xpose.msra.mxu0 %v3779
    %5568 = vmatprep.subr.bf16.mxu0 %v3786
    %5569 = vmatpush1.bf16.xpose.msra.mxu0 %v3785
    %5570 = vmatprep.subr.bf16.mxu0 %v3792
    %5571 = vmatpush1.bf16.xpose.msra.mxu0 %v3791
    %5572 = vmatprep.subr.bf16.mxu0 %v3798
    %5573 = vmatpush1.bf16.xpose.msra.mxu0 %v3797
    %5574 = vmatprep.mubr.bf16.mxu0 %v54
    %5575 = vmatmul.mubr.bf16.gmra.mrb[0].mxu0 %v53
    %v5576 = vpop.f32.mrb[0].mxu0
    %v5577 = vadd.f32 %v5534, %v5576
    %v5578 = vpop.f32.mrb[0].mxu0
    %v5579 = vadd.f32 %v5536, %v5578
    %v5580 = vpop.f32.mrb[0].mxu0
    %v5581 = vadd.f32 %v5538, %v5580
    %v5582 = vpop.f32.mrb[0].mxu0
    %v5583 = vadd.f32 %v5540, %v5582
    %5584 = vdwg.mxu0
    %5585 = vmatprep.subr.bf16.mxu0 %v3710
    %5586 = vmatpush1.bf16.xpose.msra.mxu0 %v3709
    %5587 = vmatprep.subr.bf16.mxu0 %v3716
    %5588 = vmatpush1.bf16.xpose.msra.mxu0 %v3715
    %5589 = vmatprep.subr.bf16.mxu0 %v3722
    %5590 = vmatpush1.bf16.xpose.msra.mxu0 %v3721
    %5591 = vmatprep.subr.bf16.mxu0 %v3728
    %5592 = vmatpush1.bf16.xpose.msra.mxu0 %v3727
    %5593 = vmatprep.subr.bf16.mxu0 %v3734
    %5594 = vmatpush1.bf16.xpose.msra.mxu0 %v3733
    %5595 = vmatprep.subr.bf16.mxu0 %v3740
    %5596 = vmatpush1.bf16.xpose.msra.mxu0 %v3739
    %5597 = vmatprep.subr.bf16.mxu0 %v3746
    %5598 = vmatpush1.bf16.xpose.msra.mxu0 %v3745
    %5599 = vmatprep.subr.bf16.mxu0 %v3752
    %5600 = vmatpush1.bf16.xpose.msra.mxu0 %v3751
    %5601 = vmatprep.subr.bf16.mxu0 %v3758
    %5602 = vmatpush1.bf16.xpose.msra.mxu0 %v3757
    %5603 = vmatprep.subr.bf16.mxu0 %v3764
    %5604 = vmatpush1.bf16.xpose.msra.mxu0 %v3763
    %5605 = vmatprep.subr.bf16.mxu0 %v3770
    %5606 = vmatpush1.bf16.xpose.msra.mxu0 %v3769
    %5607 = vmatprep.subr.bf16.mxu0 %v3776
    %5608 = vmatpush1.bf16.xpose.msra.mxu0 %v3775
    %5609 = vmatprep.subr.bf16.mxu0 %v3782
    %5610 = vmatpush1.bf16.xpose.msra.mxu0 %v3781
    %5611 = vmatprep.subr.bf16.mxu0 %v3788
    %5612 = vmatpush1.bf16.xpose.msra.mxu0 %v3787
    %5613 = vmatprep.subr.bf16.mxu0 %v3794
    %5614 = vmatpush1.bf16.xpose.msra.mxu0 %v3793
    %5615 = vmatprep.subr.bf16.mxu0 %v3800
    %5616 = vmatpush1.bf16.xpose.msra.mxu0 %v3799
    %5617 = vmatprep.mubr.bf16.mxu0 %v56
    %5618 = vmatmul.mubr.bf16.gmra.mrb[0].mxu0 %v55
    %v5619 = vpop.f32.mrb[0].mxu0
    %v5620 = vadd.f32 %v5577, %v5619
    %v5621 = vpop.f32.mrb[0].mxu0
    %v5622 = vadd.f32 %v5579, %v5621
    %v5623 = vpop.f32.mrb[0].mxu0
    %v5624 = vadd.f32 %v5581, %v5623
    %v5625 = vpop.f32.mrb[0].mxu0
    %v5626 = vadd.f32 %v5583, %v5625
    %5627 = vdwg.mxu0
    %5628 = vmatprep.subr.bf16.mxu0 %v3802
    %5629 = vmatpush1.bf16.xpose.msra.mxu0 %v3801
    %5630 = vmatprep.subr.bf16.mxu0 %v3808
    %5631 = vmatpush1.bf16.xpose.msra.mxu0 %v3807
    %5632 = vmatprep.subr.bf16.mxu0 %v3814
    %5633 = vmatpush1.bf16.xpose.msra.mxu0 %v3813
    %5634 = vmatprep.subr.bf16.mxu0 %v3820
    %5635 = vmatpush1.bf16.xpose.msra.mxu0 %v3819
    %5636 = vmatprep.subr.bf16.mxu0 %v3826
    %5637 = vmatpush1.bf16.xpose.msra.mxu0 %v3825
    %5638 = vmatprep.subr.bf16.mxu0 %v3832
    %5639 = vmatpush1.bf16.xpose.msra.mxu0 %v3831
    %5640 = vmatprep.subr.bf16.mxu0 %v3838
    %5641 = vmatpush1.bf16.xpose.msra.mxu0 %v3837
    %5642 = vmatprep.subr.bf16.mxu0 %v3844
    %5643 = vmatpush1.bf16.xpose.msra.mxu0 %v3843
    %5644 = vmatprep.subr.bf16.mxu0 %v3850
    %5645 = vmatpush1.bf16.xpose.msra.mxu0 %v3849
    %5646 = vmatprep.subr.bf16.mxu0 %v3856
    %5647 = vmatpush1.bf16.xpose.msra.mxu0 %v3855
    %5648 = vmatprep.subr.bf16.mxu0 %v3862
    %5649 = vmatpush1.bf16.xpose.msra.mxu0 %v3861
    %5650 = vmatprep.subr.bf16.mxu0 %v3868
    %5651 = vmatpush1.bf16.xpose.msra.mxu0 %v3867
    %5652 = vmatprep.subr.bf16.mxu0 %v3874
    %5653 = vmatpush1.bf16.xpose.msra.mxu0 %v3873
    %5654 = vmatprep.subr.bf16.mxu0 %v3880
    %5655 = vmatpush1.bf16.xpose.msra.mxu0 %v3879
    %5656 = vmatprep.subr.bf16.mxu0 %v3886
    %5657 = vmatpush1.bf16.xpose.msra.mxu0 %v3885
    %5658 = vmatprep.subr.bf16.mxu0 %v3892
    %5659 = vmatpush1.bf16.xpose.msra.mxu0 %v3891
    %5660 = vmatprep.mubr.bf16.mxu0 %v52
    %5661 = vmatmul.mubr.bf16.gmra.mrb[0].mxu0 %v51
    %v5662 = vpop.f32.mrb[0].mxu0
    %v5663 = vadd.f32 0.0, %v5662
    %v5664 = vpop.f32.mrb[0].mxu0
    %v5665 = vadd.f32 0.0, %v5664
    %v5666 = vpop.f32.mrb[0].mxu0
    %v5667 = vadd.f32 0.0, %v5666
    %v5668 = vpop.f32.mrb[0].mxu0
    %v5669 = vadd.f32 0.0, %v5668
    %5670 = vdwg.mxu0
    %5671 = vmatprep.subr.bf16.mxu0 %v3804
    %5672 = vmatpush1.bf16.xpose.msra.mxu0 %v3803
    %5673 = vmatprep.subr.bf16.mxu0 %v3810
    %5674 = vmatpush1.bf16.xpose.msra.mxu0 %v3809
    %5675 = vmatprep.subr.bf16.mxu0 %v3816
    %5676 = vmatpush1.bf16.xpose.msra.mxu0 %v3815
    %5677 = vmatprep.subr.bf16.mxu0 %v3822
    %5678 = vmatpush1.bf16.xpose.msra.mxu0 %v3821
    %5679 = vmatprep.subr.bf16.mxu0 %v3828
    %5680 = vmatpush1.bf16.xpose.msra.mxu0 %v3827
    %5681 = vmatprep.subr.bf16.mxu0 %v3834
    %5682 = vmatpush1.bf16.xpose.msra.mxu0 %v3833
    %5683 = vmatprep.subr.bf16.mxu0 %v3840
    %5684 = vmatpush1.bf16.xpose.msra.mxu0 %v3839
    %5685 = vmatprep.subr.bf16.mxu0 %v3846
    %5686 = vmatpush1.bf16.xpose.msra.mxu0 %v3845
    %5687 = vmatprep.subr.bf16.mxu0 %v3852
    %5688 = vmatpush1.bf16.xpose.msra.mxu0 %v3851
    %5689 = vmatprep.subr.bf16.mxu0 %v3858
    %5690 = vmatpush1.bf16.xpose.msra.mxu0 %v3857
    %5691 = vmatprep.subr.bf16.mxu0 %v3864
    %5692 = vmatpush1.bf16.xpose.msra.mxu0 %v3863
    %5693 = vmatprep.subr.bf16.mxu0 %v3870
    %5694 = vmatpush1.bf16.xpose.msra.mxu0 %v3869
    %5695 = vmatprep.subr.bf16.mxu0 %v3876
    %5696 = vmatpush1.bf16.xpose.msra.mxu0 %v3875
    %5697 = vmatprep.subr.bf16.mxu0 %v3882
    %5698 = vmatpush1.bf16.xpose.msra.mxu0 %v3881
    %5699 = vmatprep.subr.bf16.mxu0 %v3888
    %5700 = vmatpush1.bf16.xpose.msra.mxu0 %v3887
    %5701 = vmatprep.subr.bf16.mxu0 %v3894
    %5702 = vmatpush1.bf16.xpose.msra.mxu0 %v3893
    %5703 = vmatprep.mubr.bf16.mxu0 %v54
    %5704 = vmatmul.mubr.bf16.gmra.mrb[0].mxu0 %v53
    %v5705 = vpop.f32.mrb[0].mxu0
    %v5706 = vadd.f32 %v5663, %v5705
    %v5707 = vpop.f32.mrb[0].mxu0
    %v5708 = vadd.f32 %v5665, %v5707
    %v5709 = vpop.f32.mrb[0].mxu0
    %v5710 = vadd.f32 %v5667, %v5709
    %v5711 = vpop.f32.mrb[0].mxu0
    %v5712 = vadd.f32 %v5669, %v5711
    %5713 = vdwg.mxu0
    %5714 = vmatprep.subr.bf16.mxu0 %v3806
    %5715 = vmatpush1.bf16.xpose.msra.mxu0 %v3805
    %5716 = vmatprep.subr.bf16.mxu0 %v3812
    %5717 = vmatpush1.bf16.xpose.msra.mxu0 %v3811
    %5718 = vmatprep.subr.bf16.mxu0 %v3818
    %5719 = vmatpush1.bf16.xpose.msra.mxu0 %v3817
    %5720 = vmatprep.subr.bf16.mxu0 %v3824
    %5721 = vmatpush1.bf16.xpose.msra.mxu0 %v3823
    %5722 = vmatprep.subr.bf16.mxu0 %v3830
    %5723 = vmatpush1.bf16.xpose.msra.mxu0 %v3829
    %5724 = vmatprep.subr.bf16.mxu0 %v3836
    %5725 = vmatpush1.bf16.xpose.msra.mxu0 %v3835
    %5726 = vmatprep.subr.bf16.mxu0 %v3842
    %5727 = vmatpush1.bf16.xpose.msra.mxu0 %v3841
    %5728 = vmatprep.subr.bf16.mxu0 %v3848
    %5729 = vmatpush1.bf16.xpose.msra.mxu0 %v3847
    %5730 = vmatprep.subr.bf16.mxu0 %v3854
    %5731 = vmatpush1.bf16.xpose.msra.mxu0 %v3853
    %5732 = vmatprep.subr.bf16.mxu0 %v3860
    %5733 = vmatpush1.bf16.xpose.msra.mxu0 %v3859
    %5734 = vmatprep.subr.bf16.mxu0 %v3866
    %5735 = vmatpush1.bf16.xpose.msra.mxu0 %v3865
    %5736 = vmatprep.subr.bf16.mxu0 %v3872
    %5737 = vmatpush1.bf16.xpose.msra.mxu0 %v3871
    %5738 = vmatprep.subr.bf16.mxu0 %v3878
    %5739 = vmatpush1.bf16.xpose.msra.mxu0 %v3877
    %5740 = vmatprep.subr.bf16.mxu0 %v3884
    %5741 = vmatpush1.bf16.xpose.msra.mxu0 %v3883
    %5742 = vmatprep.subr.bf16.mxu0 %v3890
    %5743 = vmatpush1.bf16.xpose.msra.mxu0 %v3889
    %5744 = vmatprep.subr.bf16.mxu0 %v3896
    %5745 = vmatpush1.bf16.xpose.msra.mxu0 %v3895
    %5746 = vmatprep.mubr.bf16.mxu0 %v56
    %5747 = vmatmul.mubr.bf16.gmra.mrb[0].mxu0 %v55
    %v5748 = vpop.f32.mrb[0].mxu0
    %v5749 = vadd.f32 %v5706, %v5748
    %v5750 = vpop.f32.mrb[0].mxu0
    %v5751 = vadd.f32 %v5708, %v5750
    %v5752 = vpop.f32.mrb[0].mxu0
    %v5753 = vadd.f32 %v5710, %v5752
    %v5754 = vpop.f32.mrb[0].mxu0
    %v5755 = vadd.f32 %v5712, %v5754
    %5756 = vdwg.mxu0
    %5757 = vmatprep.subr.bf16.mxu0 %v3898
    %5758 = vmatpush1.bf16.xpose.msra.mxu0 %v3897
    %5759 = vmatprep.subr.bf16.mxu0 %v3904
    %5760 = vmatpush1.bf16.xpose.msra.mxu0 %v3903
    %5761 = vmatprep.subr.bf16.mxu0 %v3910
    %5762 = vmatpush1.bf16.xpose.msra.mxu0 %v3909
    %5763 = vmatprep.subr.bf16.mxu0 %v3916
    %5764 = vmatpush1.bf16.xpose.msra.mxu0 %v3915
    %5765 = vmatprep.subr.bf16.mxu0 %v3922
    %5766 = vmatpush1.bf16.xpose.msra.mxu0 %v3921
    %5767 = vmatprep.subr.bf16.mxu0 %v3928
    %5768 = vmatpush1.bf16.xpose.msra.mxu0 %v3927
    %5769 = vmatprep.subr.bf16.mxu0 %v3934
    %5770 = vmatpush1.bf16.xpose.msra.mxu0 %v3933
    %5771 = vmatprep.subr.bf16.mxu0 %v3940
    %5772 = vmatpush1.bf16.xpose.msra.mxu0 %v3939
    %5773 = vmatprep.subr.bf16.mxu0 %v3946
    %5774 = vmatpush1.bf16.xpose.msra.mxu0 %v3945
    %5775 = vmatprep.subr.bf16.mxu0 %v3952
    %5776 = vmatpush1.bf16.xpose.msra.mxu0 %v3951
    %5777 = vmatprep.subr.bf16.mxu0 %v3958
    %5778 = vmatpush1.bf16.xpose.msra.mxu0 %v3957
    %5779 = vmatprep.subr.bf16.mxu0 %v3964
    %5780 = vmatpush1.bf16.xpose.msra.mxu0 %v3963
    %5781 = vmatprep.subr.bf16.mxu0 %v3970
    %5782 = vmatpush1.bf16.xpose.msra.mxu0 %v3969
    %5783 = vmatprep.subr.bf16.mxu0 %v3976
    %5784 = vmatpush1.bf16.xpose.msra.mxu0 %v3975
    %5785 = vmatprep.subr.bf16.mxu0 %v3982
    %5786 = vmatpush1.bf16.xpose.msra.mxu0 %v3981
    %5787 = vmatprep.subr.bf16.mxu0 %v3988
    %5788 = vmatpush1.bf16.xpose.msra.mxu0 %v3987
    %5789 = vmatprep.mubr.bf16.mxu0 %v52
    %5790 = vmatmul.mubr.bf16.gmra.mrb[0].mxu0 %v51
    %v5791 = vpop.f32.mrb[0].mxu0
    %v5792 = vadd.f32 0.0, %v5791
    %v5793 = vpop.f32.mrb[0].mxu0
    %v5794 = vadd.f32 0.0, %v5793
    %v5795 = vpop.f32.mrb[0].mxu0
    %v5796 = vadd.f32 0.0, %v5795
    %v5797 = vpop.f32.mrb[0].mxu0
    %v5798 = vadd.f32 0.0, %v5797
    %5799 = vdwg.mxu0
    %5800 = vmatprep.subr.bf16.mxu0 %v3900
    %5801 = vmatpush1.bf16.xpose.msra.mxu0 %v3899
    %5802 = vmatprep.subr.bf16.mxu0 %v3906
    %5803 = vmatpush1.bf16.xpose.msra.mxu0 %v3905
    %5804 = vmatprep.subr.bf16.mxu0 %v3912
    %5805 = vmatpush1.bf16.xpose.msra.mxu0 %v3911
    %5806 = vmatprep.subr.bf16.mxu0 %v3918
    %5807 = vmatpush1.bf16.xpose.msra.mxu0 %v3917
    %5808 = vmatprep.subr.bf16.mxu0 %v3924
    %5809 = vmatpush1.bf16.xpose.msra.mxu0 %v3923
    %5810 = vmatprep.subr.bf16.mxu0 %v3930
    %5811 = vmatpush1.bf16.xpose.msra.mxu0 %v3929
    %5812 = vmatprep.subr.bf16.mxu0 %v3936
    %5813 = vmatpush1.bf16.xpose.msra.mxu0 %v3935
    %5814 = vmatprep.subr.bf16.mxu0 %v3942
    %5815 = vmatpush1.bf16.xpose.msra.mxu0 %v3941
    %5816 = vmatprep.subr.bf16.mxu0 %v3948
    %5817 = vmatpush1.bf16.xpose.msra.mxu0 %v3947
    %5818 = vmatprep.subr.bf16.mxu0 %v3954
    %5819 = vmatpush1.bf16.xpose.msra.mxu0 %v3953
    %5820 = vmatprep.subr.bf16.mxu0 %v3960
    %5821 = vmatpush1.bf16.xpose.msra.mxu0 %v3959
    %5822 = vmatprep.subr.bf16.mxu0 %v3966
    %5823 = vmatpush1.bf16.xpose.msra.mxu0 %v3965
    %5824 = vmatprep.subr.bf16.mxu0 %v3972
    %5825 = vmatpush1.bf16.xpose.msra.mxu0 %v3971
    %5826 = vmatprep.subr.bf16.mxu0 %v3978
    %5827 = vmatpush1.bf16.xpose.msra.mxu0 %v3977
    %5828 = vmatprep.subr.bf16.mxu0 %v3984
    %5829 = vmatpush1.bf16.xpose.msra.mxu0 %v3983
    %5830 = vmatprep.subr.bf16.mxu0 %v3990
    %5831 = vmatpush1.bf16.xpose.msra.mxu0 %v3989
    %5832 = vmatprep.mubr.bf16.mxu0 %v54
    %5833 = vmatmul.mubr.bf16.gmra.mrb[0].mxu0 %v53
    %v5834 = vpop.f32.mrb[0].mxu0
    %v5835 = vadd.f32 %v5792, %v5834
    %v5836 = vpop.f32.mrb[0].mxu0
    %v5837 = vadd.f32 %v5794, %v5836
    %v5838 = vpop.f32.mrb[0].mxu0
    %v5839 = vadd.f32 %v5796, %v5838
    %v5840 = vpop.f32.mrb[0].mxu0
    %v5841 = vadd.f32 %v5798, %v5840
    %5842 = vdwg.mxu0
    %5843 = vmatprep.subr.bf16.mxu0 %v3902
    %5844 = vmatpush1.bf16.xpose.msra.mxu0 %v3901
    %5845 = vmatprep.subr.bf16.mxu0 %v3908
    %5846 = vmatpush1.bf16.xpose.msra.mxu0 %v3907
    %5847 = vmatprep.subr.bf16.mxu0 %v3914
    %5848 = vmatpush1.bf16.xpose.msra.mxu0 %v3913
    %5849 = vmatprep.subr.bf16.mxu0 %v3920
    %5850 = vmatpush1.bf16.xpose.msra.mxu0 %v3919
    %5851 = vmatprep.subr.bf16.mxu0 %v3926
    %5852 = vmatpush1.bf16.xpose.msra.mxu0 %v3925
    %5853 = vmatprep.subr.bf16.mxu0 %v3932
    %5854 = vmatpush1.bf16.xpose.msra.mxu0 %v3931
    %5855 = vmatprep.subr.bf16.mxu0 %v3938
    %5856 = vmatpush1.bf16.xpose.msra.mxu0 %v3937
    %5857 = vmatprep.subr.bf16.mxu0 %v3944
    %5858 = vmatpush1.bf16.xpose.msra.mxu0 %v3943
    %5859 = vmatprep.subr.bf16.mxu0 %v3950
    %5860 = vmatpush1.bf16.xpose.msra.mxu0 %v3949
    %5861 = vmatprep.subr.bf16.mxu0 %v3956
    %5862 = vmatpush1.bf16.xpose.msra.mxu0 %v3955
    %5863 = vmatprep.subr.bf16.mxu0 %v3962
    %5864 = vmatpush1.bf16.xpose.msra.mxu0 %v3961
    %5865 = vmatprep.subr.bf16.mxu0 %v3968
    %5866 = vmatpush1.bf16.xpose.msra.mxu0 %v3967
    %5867 = vmatprep.subr.bf16.mxu0 %v3974
    %5868 = vmatpush1.bf16.xpose.msra.mxu0 %v3973
    %5869 = vmatprep.subr.bf16.mxu0 %v3980
    %5870 = vmatpush1.bf16.xpose.msra.mxu0 %v3979
    %5871 = vmatprep.subr.bf16.mxu0 %v3986
    %5872 = vmatpush1.bf16.xpose.msra.mxu0 %v3985
    %5873 = vmatprep.subr.bf16.mxu0 %v3992
    %5874 = vmatpush1.bf16.xpose.msra.mxu0 %v3991
    %5875 = vmatprep.mubr.bf16.mxu0 %v56
    %5876 = vmatmul.mubr.bf16.gmra.mrb[0].mxu0 %v55
    %v5877 = vpop.f32.mrb[0].mxu0
    %v5878 = vadd.f32 %v5835, %v5877
    %v5879 = vpop.f32.mrb[0].mxu0
    %v5880 = vadd.f32 %v5837, %v5879
    %v5881 = vpop.f32.mrb[0].mxu0
    %v5882 = vadd.f32 %v5839, %v5881
    %v5883 = vpop.f32.mrb[0].mxu0
    %v5884 = vadd.f32 %v5841, %v5883
    %5885 = vdwg.mxu0
    %5886 = vmatprep.subr.bf16.mxu0 %v3994
    %5887 = vmatpush1.bf16.xpose.msra.mxu0 %v3993
    %5888 = vmatprep.subr.bf16.mxu0 %v4000
    %5889 = vmatpush1.bf16.xpose.msra.mxu0 %v3999
    %5890 = vmatprep.subr.bf16.mxu0 %v4006
    %5891 = vmatpush1.bf16.xpose.msra.mxu0 %v4005
    %5892 = vmatprep.subr.bf16.mxu0 %v4012
    %5893 = vmatpush1.bf16.xpose.msra.mxu0 %v4011
    %5894 = vmatprep.subr.bf16.mxu0 %v4018
    %5895 = vmatpush1.bf16.xpose.msra.mxu0 %v4017
    %5896 = vmatprep.subr.bf16.mxu0 %v4024
    %5897 = vmatpush1.bf16.xpose.msra.mxu0 %v4023
    %5898 = vmatprep.subr.bf16.mxu0 %v4030
    %5899 = vmatpush1.bf16.xpose.msra.mxu0 %v4029
    %5900 = vmatprep.subr.bf16.mxu0 %v4036
    %5901 = vmatpush1.bf16.xpose.msra.mxu0 %v4035
    %5902 = vmatprep.subr.bf16.mxu0 %v4042
    %5903 = vmatpush1.bf16.xpose.msra.mxu0 %v4041
    %5904 = vmatprep.subr.bf16.mxu0 %v4048
    %5905 = vmatpush1.bf16.xpose.msra.mxu0 %v4047
    %5906 = vmatprep.subr.bf16.mxu0 %v4054
    %5907 = vmatpush1.bf16.xpose.msra.mxu0 %v4053
    %5908 = vmatprep.subr.bf16.mxu0 %v4060
    %5909 = vmatpush1.bf16.xpose.msra.mxu0 %v4059
    %5910 = vmatprep.subr.bf16.mxu0 %v4066
    %5911 = vmatpush1.bf16.xpose.msra.mxu0 %v4065
    %5912 = vmatprep.subr.bf16.mxu0 %v4072
    %5913 = vmatpush1.bf16.xpose.msra.mxu0 %v4071
    %5914 = vmatprep.subr.bf16.mxu0 %v4078
    %5915 = vmatpush1.bf16.xpose.msra.mxu0 %v4077
    %5916 = vmatprep.subr.bf16.mxu0 %v4084
    %5917 = vmatpush1.bf16.xpose.msra.mxu0 %v4083
    %5918 = vmatprep.mubr.bf16.mxu0 %v52
    %5919 = vmatmul.mubr.bf16.gmra.mrb[0].mxu0 %v51
    %v5920 = vpop.f32.mrb[0].mxu0
    %v5921 = vadd.f32 0.0, %v5920
    %v5922 = vpop.f32.mrb[0].mxu0
    %v5923 = vadd.f32 0.0, %v5922
    %v5924 = vpop.f32.mrb[0].mxu0
    %v5925 = vadd.f32 0.0, %v5924
    %v5926 = vpop.f32.mrb[0].mxu0
    %v5927 = vadd.f32 0.0, %v5926
    %5928 = vdwg.mxu0
    %5929 = vmatprep.subr.bf16.mxu0 %v3996
    %5930 = vmatpush1.bf16.xpose.msra.mxu0 %v3995
    %5931 = vmatprep.subr.bf16.mxu0 %v4002
    %5932 = vmatpush1.bf16.xpose.msra.mxu0 %v4001
    %5933 = vmatprep.subr.bf16.mxu0 %v4008
    %5934 = vmatpush1.bf16.xpose.msra.mxu0 %v4007
    %5935 = vmatprep.subr.bf16.mxu0 %v4014
    %5936 = vmatpush1.bf16.xpose.msra.mxu0 %v4013
    %5937 = vmatprep.subr.bf16.mxu0 %v4020
    %5938 = vmatpush1.bf16.xpose.msra.mxu0 %v4019
    %5939 = vmatprep.subr.bf16.mxu0 %v4026
    %5940 = vmatpush1.bf16.xpose.msra.mxu0 %v4025
    %5941 = vmatprep.subr.bf16.mxu0 %v4032
    %5942 = vmatpush1.bf16.xpose.msra.mxu0 %v4031
    %5943 = vmatprep.subr.bf16.mxu0 %v4038
    %5944 = vmatpush1.bf16.xpose.msra.mxu0 %v4037
    %5945 = vmatprep.subr.bf16.mxu0 %v4044
    %5946 = vmatpush1.bf16.xpose.msra.mxu0 %v4043
    %5947 = vmatprep.subr.bf16.mxu0 %v4050
    %5948 = vmatpush1.bf16.xpose.msra.mxu0 %v4049
    %5949 = vmatprep.subr.bf16.mxu0 %v4056
    %5950 = vmatpush1.bf16.xpose.msra.mxu0 %v4055
    %5951 = vmatprep.subr.bf16.mxu0 %v4062
    %5952 = vmatpush1.bf16.xpose.msra.mxu0 %v4061
    %5953 = vmatprep.subr.bf16.mxu0 %v4068
    %5954 = vmatpush1.bf16.xpose.msra.mxu0 %v4067
    %5955 = vmatprep.subr.bf16.mxu0 %v4074
    %5956 = vmatpush1.bf16.xpose.msra.mxu0 %v4073
    %5957 = vmatprep.subr.bf16.mxu0 %v4080
    %5958 = vmatpush1.bf16.xpose.msra.mxu0 %v4079
    %5959 = vmatprep.subr.bf16.mxu0 %v4086
    %5960 = vmatpush1.bf16.xpose.msra.mxu0 %v4085
    %5961 = vmatprep.mubr.bf16.mxu0 %v54
    %5962 = vmatmul.mubr.bf16.gmra.mrb[0].mxu0 %v53
    %v5963 = vpop.f32.mrb[0].mxu0
    %v5964 = vadd.f32 %v5921, %v5963
    %v5965 = vpop.f32.mrb[0].mxu0
    %v5966 = vadd.f32 %v5923, %v5965
    %v5967 = vpop.f32.mrb[0].mxu0
    %v5968 = vadd.f32 %v5925, %v5967
    %v5969 = vpop.f32.mrb[0].mxu0
    %v5970 = vadd.f32 %v5927, %v5969
    %5971 = vdwg.mxu0
    %5972 = vmatprep.subr.bf16.mxu0 %v3998
    %5973 = vmatpush1.bf16.xpose.msra.mxu0 %v3997
    %5974 = vmatprep.subr.bf16.mxu0 %v4004
    %5975 = vmatpush1.bf16.xpose.msra.mxu0 %v4003
    %5976 = vmatprep.subr.bf16.mxu0 %v4010
    %5977 = vmatpush1.bf16.xpose.msra.mxu0 %v4009
    %5978 = vmatprep.subr.bf16.mxu0 %v4016
    %5979 = vmatpush1.bf16.xpose.msra.mxu0 %v4015
    %5980 = vmatprep.subr.bf16.mxu0 %v4022
    %5981 = vmatpush1.bf16.xpose.msra.mxu0 %v4021
    %5982 = vmatprep.subr.bf16.mxu0 %v4028
    %5983 = vmatpush1.bf16.xpose.msra.mxu0 %v4027
    %5984 = vmatprep.subr.bf16.mxu0 %v4034
    %5985 = vmatpush1.bf16.xpose.msra.mxu0 %v4033
    %5986 = vmatprep.subr.bf16.mxu0 %v4040
    %5987 = vmatpush1.bf16.xpose.msra.mxu0 %v4039
    %5988 = vmatprep.subr.bf16.mxu0 %v4046
    %5989 = vmatpush1.bf16.xpose.msra.mxu0 %v4045
    %5990 = vmatprep.subr.bf16.mxu0 %v4052
    %5991 = vmatpush1.bf16.xpose.msra.mxu0 %v4051
    %5992 = vmatprep.subr.bf16.mxu0 %v4058
    %5993 = vmatpush1.bf16.xpose.msra.mxu0 %v4057
    %5994 = vmatprep.subr.bf16.mxu0 %v4064
    %5995 = vmatpush1.bf16.xpose.msra.mxu0 %v4063
    %5996 = vmatprep.subr.bf16.mxu0 %v4070
    %5997 = vmatpush1.bf16.xpose.msra.mxu0 %v4069
    %5998 = vmatprep.subr.bf16.mxu0 %v4076
    %5999 = vmatpush1.bf16.xpose.msra.mxu0 %v4075
    %6000 = vmatprep.subr.bf16.mxu0 %v4082
    %6001 = vmatpush1.bf16.xpose.msra.mxu0 %v4081
    %6002 = vmatprep.subr.bf16.mxu0 %v4088
    %6003 = vmatpush1.bf16.xpose.msra.mxu0 %v4087
    %6004 = vmatprep.mubr.bf16.mxu0 %v56
    %6005 = vmatmul.mubr.bf16.gmra.mrb[0].mxu0 %v55
    %v6006 = vpop.f32.mrb[0].mxu0
    %v6007 = vadd.f32 %v5964, %v6006
    %v6008 = vpop.f32.mrb[0].mxu0
    %v6009 = vadd.f32 %v5966, %v6008
    %v6010 = vpop.f32.mrb[0].mxu0
    %v6011 = vadd.f32 %v5968, %v6010
    %v6012 = vpop.f32.mrb[0].mxu0
    %v6013 = vadd.f32 %v5970, %v6012
    %6014 = vdwg.mxu0
    %6015 = vmatprep.subr.bf16.mxu0 %v4090
    %6016 = vmatpush1.bf16.xpose.msra.mxu0 %v4089
    %6017 = vmatprep.subr.bf16.mxu0 %v4096
    %6018 = vmatpush1.bf16.xpose.msra.mxu0 %v4095
    %6019 = vmatprep.subr.bf16.mxu0 %v4102
    %6020 = vmatpush1.bf16.xpose.msra.mxu0 %v4101
    %6021 = vmatprep.subr.bf16.mxu0 %v4108
    %6022 = vmatpush1.bf16.xpose.msra.mxu0 %v4107
    %6023 = vmatprep.subr.bf16.mxu0 %v4114
    %6024 = vmatpush1.bf16.xpose.msra.mxu0 %v4113
    %6025 = vmatprep.subr.bf16.mxu0 %v4120
    %6026 = vmatpush1.bf16.xpose.msra.mxu0 %v4119
    %6027 = vmatprep.subr.bf16.mxu0 %v4126
    %6028 = vmatpush1.bf16.xpose.msra.mxu0 %v4125
    %6029 = vmatprep.subr.bf16.mxu0 %v4132
    %6030 = vmatpush1.bf16.xpose.msra.mxu0 %v4131
    %6031 = vmatprep.subr.bf16.mxu0 %v4138
    %6032 = vmatpush1.bf16.xpose.msra.mxu0 %v4137
    %6033 = vmatprep.subr.bf16.mxu0 %v4144
    %6034 = vmatpush1.bf16.xpose.msra.mxu0 %v4143
    %6035 = vmatprep.subr.bf16.mxu0 %v4150
    %6036 = vmatpush1.bf16.xpose.msra.mxu0 %v4149
    %6037 = vmatprep.subr.bf16.mxu0 %v4156
    %6038 = vmatpush1.bf16.xpose.msra.mxu0 %v4155
    %6039 = vmatprep.subr.bf16.mxu0 %v4162
    %6040 = vmatpush1.bf16.xpose.msra.mxu0 %v4161
    %6041 = vmatprep.subr.bf16.mxu0 %v4168
    %6042 = vmatpush1.bf16.xpose.msra.mxu0 %v4167
    %6043 = vmatprep.subr.bf16.mxu0 %v4174
    %6044 = vmatpush1.bf16.xpose.msra.mxu0 %v4173
    %6045 = vmatprep.subr.bf16.mxu0 %v4180
    %6046 = vmatpush1.bf16.xpose.msra.mxu0 %v4179
    %6047 = vmatprep.mubr.bf16.mxu0 %v52
    %6048 = vmatmul.mubr.bf16.gmra.mrb[0].mxu0 %v51
    %v6049 = vpop.f32.mrb[0].mxu0
    %v6050 = vadd.f32 0.0, %v6049
    %v6051 = vpop.f32.mrb[0].mxu0
    %v6052 = vadd.f32 0.0, %v6051
    %v6053 = vpop.f32.mrb[0].mxu0
    %v6054 = vadd.f32 0.0, %v6053
    %v6055 = vpop.f32.mrb[0].mxu0
    %v6056 = vadd.f32 0.0, %v6055
    %6057 = vdwg.mxu0
    %6058 = vmatprep.subr.bf16.mxu0 %v4092
    %6059 = vmatpush1.bf16.xpose.msra.mxu0 %v4091
    %6060 = vmatprep.subr.bf16.mxu0 %v4098
    %6061 = vmatpush1.bf16.xpose.msra.mxu0 %v4097
    %6062 = vmatprep.subr.bf16.mxu0 %v4104
    %6063 = vmatpush1.bf16.xpose.msra.mxu0 %v4103
    %6064 = vmatprep.subr.bf16.mxu0 %v4110
    %6065 = vmatpush1.bf16.xpose.msra.mxu0 %v4109
    %6066 = vmatprep.subr.bf16.mxu0 %v4116
    %6067 = vmatpush1.bf16.xpose.msra.mxu0 %v4115
    %6068 = vmatprep.subr.bf16.mxu0 %v4122
    %6069 = vmatpush1.bf16.xpose.msra.mxu0 %v4121
    %6070 = vmatprep.subr.bf16.mxu0 %v4128
    %6071 = vmatpush1.bf16.xpose.msra.mxu0 %v4127
    %6072 = vmatprep.subr.bf16.mxu0 %v4134
    %6073 = vmatpush1.bf16.xpose.msra.mxu0 %v4133
    %6074 = vmatprep.subr.bf16.mxu0 %v4140
    %6075 = vmatpush1.bf16.xpose.msra.mxu0 %v4139
    %6076 = vmatprep.subr.bf16.mxu0 %v4146
    %6077 = vmatpush1.bf16.xpose.msra.mxu0 %v4145
    %6078 = vmatprep.subr.bf16.mxu0 %v4152
    %6079 = vmatpush1.bf16.xpose.msra.mxu0 %v4151
    %6080 = vmatprep.subr.bf16.mxu0 %v4158
    %6081 = vmatpush1.bf16.xpose.msra.mxu0 %v4157
    %6082 = vmatprep.subr.bf16.mxu0 %v4164
    %6083 = vmatpush1.bf16.xpose.msra.mxu0 %v4163
    %6084 = vmatprep.subr.bf16.mxu0 %v4170
    %6085 = vmatpush1.bf16.xpose.msra.mxu0 %v4169
    %6086 = vmatprep.subr.bf16.mxu0 %v4176
    %6087 = vmatpush1.bf16.xpose.msra.mxu0 %v4175
    %6088 = vmatprep.subr.bf16.mxu0 %v4182
    %6089 = vmatpush1.bf16.xpose.msra.mxu0 %v4181
    %6090 = vmatprep.mubr.bf16.mxu0 %v54
    %6091 = vmatmul.mubr.bf16.gmra.mrb[0].mxu0 %v53
    %v6092 = vpop.f32.mrb[0].mxu0
    %v6093 = vadd.f32 %v6050, %v6092
    %v6094 = vpop.f32.mrb[0].mxu0
    %v6095 = vadd.f32 %v6052, %v6094
    %v6096 = vpop.f32.mrb[0].mxu0
    %v6097 = vadd.f32 %v6054, %v6096
    %v6098 = vpop.f32.mrb[0].mxu0
    %v6099 = vadd.f32 %v6056, %v6098
    %6100 = vdwg.mxu0
    %6101 = vmatprep.subr.bf16.mxu0 %v4094
    %6102 = vmatpush1.bf16.xpose.msra.mxu0 %v4093
    %6103 = vmatprep.subr.bf16.mxu0 %v4100
    %6104 = vmatpush1.bf16.xpose.msra.mxu0 %v4099
    %6105 = vmatprep.subr.bf16.mxu0 %v4106
    %6106 = vmatpush1.bf16.xpose.msra.mxu0 %v4105
    %6107 = vmatprep.subr.bf16.mxu0 %v4112
    %6108 = vmatpush1.bf16.xpose.msra.mxu0 %v4111
    %6109 = vmatprep.subr.bf16.mxu0 %v4118
    %6110 = vmatpush1.bf16.xpose.msra.mxu0 %v4117
    %6111 = vmatprep.subr.bf16.mxu0 %v4124
    %6112 = vmatpush1.bf16.xpose.msra.mxu0 %v4123
    %6113 = vmatprep.subr.bf16.mxu0 %v4130
    %6114 = vmatpush1.bf16.xpose.msra.mxu0 %v4129
    %6115 = vmatprep.subr.bf16.mxu0 %v4136
    %6116 = vmatpush1.bf16.xpose.msra.mxu0 %v4135
    %6117 = vmatprep.subr.bf16.mxu0 %v4142
    %6118 = vmatpush1.bf16.xpose.msra.mxu0 %v4141
    %6119 = vmatprep.subr.bf16.mxu0 %v4148
    %6120 = vmatpush1.bf16.xpose.msra.mxu0 %v4147
    %6121 = vmatprep.subr.bf16.mxu0 %v4154
    %6122 = vmatpush1.bf16.xpose.msra.mxu0 %v4153
    %6123 = vmatprep.subr.bf16.mxu0 %v4160
    %6124 = vmatpush1.bf16.xpose.msra.mxu0 %v4159
    %6125 = vmatprep.subr.bf16.mxu0 %v4166
    %6126 = vmatpush1.bf16.xpose.msra.mxu0 %v4165
    %6127 = vmatprep.subr.bf16.mxu0 %v4172
    %6128 = vmatpush1.bf16.xpose.msra.mxu0 %v4171
    %6129 = vmatprep.subr.bf16.mxu0 %v4178
    %6130 = vmatpush1.bf16.xpose.msra.mxu0 %v4177
    %6131 = vmatprep.subr.bf16.mxu0 %v4184
    %6132 = vmatpush1.bf16.xpose.msra.mxu0 %v4183
    %6133 = vmatprep.mubr.bf16.mxu0 %v56
    %6134 = vmatmul.mubr.bf16.gmra.mrb[0].mxu0 %v55
    %v6135 = vpop.f32.mrb[0].mxu0
    %v6136 = vadd.f32 %v6093, %v6135
    %v6137 = vpop.f32.mrb[0].mxu0
    %v6138 = vadd.f32 %v6095, %v6137
    %v6139 = vpop.f32.mrb[0].mxu0
    %v6140 = vadd.f32 %v6097, %v6139
    %v6141 = vpop.f32.mrb[0].mxu0
    %v6142 = vadd.f32 %v6099, %v6141
    %6143 = vdwg.mxu0
    %6144 = vmatprep.subr.bf16.mxu0 %v4186
    %6145 = vmatpush1.bf16.xpose.msra.mxu0 %v4185
    %6146 = vmatprep.subr.bf16.mxu0 %v4192
    %6147 = vmatpush1.bf16.xpose.msra.mxu0 %v4191
    %6148 = vmatprep.subr.bf16.mxu0 %v4198
    %6149 = vmatpush1.bf16.xpose.msra.mxu0 %v4197
    %6150 = vmatprep.subr.bf16.mxu0 %v4204
    %6151 = vmatpush1.bf16.xpose.msra.mxu0 %v4203
    %6152 = vmatprep.subr.bf16.mxu0 %v4210
    %6153 = vmatpush1.bf16.xpose.msra.mxu0 %v4209
    %6154 = vmatprep.subr.bf16.mxu0 %v4216
    %6155 = vmatpush1.bf16.xpose.msra.mxu0 %v4215
    %6156 = vmatprep.subr.bf16.mxu0 %v4222
    %6157 = vmatpush1.bf16.xpose.msra.mxu0 %v4221
    %6158 = vmatprep.subr.bf16.mxu0 %v4228
    %6159 = vmatpush1.bf16.xpose.msra.mxu0 %v4227
    %6160 = vmatprep.subr.bf16.mxu0 %v4234
    %6161 = vmatpush1.bf16.xpose.msra.mxu0 %v4233
    %6162 = vmatprep.subr.bf16.mxu0 %v4240
    %6163 = vmatpush1.bf16.xpose.msra.mxu0 %v4239
    %6164 = vmatprep.subr.bf16.mxu0 %v4246
    %6165 = vmatpush1.bf16.xpose.msra.mxu0 %v4245
    %6166 = vmatprep.subr.bf16.mxu0 %v4252
    %6167 = vmatpush1.bf16.xpose.msra.mxu0 %v4251
    %6168 = vmatprep.subr.bf16.mxu0 %v4258
    %6169 = vmatpush1.bf16.xpose.msra.mxu0 %v4257
    %6170 = vmatprep.subr.bf16.mxu0 %v4264
    %6171 = vmatpush1.bf16.xpose.msra.mxu0 %v4263
    %6172 = vmatprep.subr.bf16.mxu0 %v4270
    %6173 = vmatpush1.bf16.xpose.msra.mxu0 %v4269
    %6174 = vmatprep.subr.bf16.mxu0 %v4276
    %6175 = vmatpush1.bf16.xpose.msra.mxu0 %v4275
    %6176 = vmatprep.mubr.bf16.mxu0 %v52
    %6177 = vmatmul.mubr.bf16.gmra.mrb[0].mxu0 %v51
    %v6178 = vpop.f32.mrb[0].mxu0
    %v6179 = vadd.f32 0.0, %v6178
    %v6180 = vpop.f32.mrb[0].mxu0
    %v6181 = vadd.f32 0.0, %v6180
    %v6182 = vpop.f32.mrb[0].mxu0
    %v6183 = vadd.f32 0.0, %v6182
    %v6184 = vpop.f32.mrb[0].mxu0
    %v6185 = vadd.f32 0.0, %v6184
    %6186 = vdwg.mxu0
    %6187 = vmatprep.subr.bf16.mxu0 %v4188
    %6188 = vmatpush1.bf16.xpose.msra.mxu0 %v4187
    %6189 = vmatprep.subr.bf16.mxu0 %v4194
    %6190 = vmatpush1.bf16.xpose.msra.mxu0 %v4193
    %6191 = vmatprep.subr.bf16.mxu0 %v4200
    %6192 = vmatpush1.bf16.xpose.msra.mxu0 %v4199
    %6193 = vmatprep.subr.bf16.mxu0 %v4206
    %6194 = vmatpush1.bf16.xpose.msra.mxu0 %v4205
    %6195 = vmatprep.subr.bf16.mxu0 %v4212
    %6196 = vmatpush1.bf16.xpose.msra.mxu0 %v4211
    %6197 = vmatprep.subr.bf16.mxu0 %v4218
    %6198 = vmatpush1.bf16.xpose.msra.mxu0 %v4217
    %6199 = vmatprep.subr.bf16.mxu0 %v4224
    %6200 = vmatpush1.bf16.xpose.msra.mxu0 %v4223
    %6201 = vmatprep.subr.bf16.mxu0 %v4230
    %6202 = vmatpush1.bf16.xpose.msra.mxu0 %v4229
    %6203 = vmatprep.subr.bf16.mxu0 %v4236
    %6204 = vmatpush1.bf16.xpose.msra.mxu0 %v4235
    %6205 = vmatprep.subr.bf16.mxu0 %v4242
    %6206 = vmatpush1.bf16.xpose.msra.mxu0 %v4241
    %6207 = vmatprep.subr.bf16.mxu0 %v4248
    %6208 = vmatpush1.bf16.xpose.msra.mxu0 %v4247
    %6209 = vmatprep.subr.bf16.mxu0 %v4254
    %6210 = vmatpush1.bf16.xpose.msra.mxu0 %v4253
    %6211 = vmatprep.subr.bf16.mxu0 %v4260
    %6212 = vmatpush1.bf16.xpose.msra.mxu0 %v4259
    %6213 = vmatprep.subr.bf16.mxu0 %v4266
    %6214 = vmatpush1.bf16.xpose.msra.mxu0 %v4265
    %6215 = vmatprep.subr.bf16.mxu0 %v4272
    %6216 = vmatpush1.bf16.xpose.msra.mxu0 %v4271
    %6217 = vmatprep.subr.bf16.mxu0 %v4278
    %6218 = vmatpush1.bf16.xpose.msra.mxu0 %v4277
    %6219 = vmatprep.mubr.bf16.mxu0 %v54
    %6220 = vmatmul.mubr.bf16.gmra.mrb[0].mxu0 %v53
    %v6221 = vpop.f32.mrb[0].mxu0
    %v6222 = vadd.f32 %v6179, %v6221
    %v6223 = vpop.f32.mrb[0].mxu0
    %v6224 = vadd.f32 %v6181, %v6223
    %v6225 = vpop.f32.mrb[0].mxu0
    %v6226 = vadd.f32 %v6183, %v6225
    %v6227 = vpop.f32.mrb[0].mxu0
    %v6228 = vadd.f32 %v6185, %v6227
    %6229 = vdwg.mxu0
    %6230 = vmatprep.subr.bf16.mxu0 %v4190
    %6231 = vmatpush1.bf16.xpose.msra.mxu0 %v4189
    %6232 = vmatprep.subr.bf16.mxu0 %v4196
    %6233 = vmatpush1.bf16.xpose.msra.mxu0 %v4195
    %6234 = vmatprep.subr.bf16.mxu0 %v4202
    %6235 = vmatpush1.bf16.xpose.msra.mxu0 %v4201
    %6236 = vmatprep.subr.bf16.mxu0 %v4208
    %6237 = vmatpush1.bf16.xpose.msra.mxu0 %v4207
    %6238 = vmatprep.subr.bf16.mxu0 %v4214
    %6239 = vmatpush1.bf16.xpose.msra.mxu0 %v4213
    %6240 = vmatprep.subr.bf16.mxu0 %v4220
    %6241 = vmatpush1.bf16.xpose.msra.mxu0 %v4219
    %6242 = vmatprep.subr.bf16.mxu0 %v4226
    %6243 = vmatpush1.bf16.xpose.msra.mxu0 %v4225
    %6244 = vmatprep.subr.bf16.mxu0 %v4232
    %6245 = vmatpush1.bf16.xpose.msra.mxu0 %v4231
    %6246 = vmatprep.subr.bf16.mxu0 %v4238
    %6247 = vmatpush1.bf16.xpose.msra.mxu0 %v4237
    %6248 = vmatprep.subr.bf16.mxu0 %v4244
    %6249 = vmatpush1.bf16.xpose.msra.mxu0 %v4243
    %6250 = vmatprep.subr.bf16.mxu0 %v4250
    %6251 = vmatpush1.bf16.xpose.msra.mxu0 %v4249
    %6252 = vmatprep.subr.bf16.mxu0 %v4256
    %6253 = vmatpush1.bf16.xpose.msra.mxu0 %v4255
    %6254 = vmatprep.subr.bf16.mxu0 %v4262
    %6255 = vmatpush1.bf16.xpose.msra.mxu0 %v4261
    %6256 = vmatprep.subr.bf16.mxu0 %v4268
    %6257 = vmatpush1.bf16.xpose.msra.mxu0 %v4267
    %6258 = vmatprep.subr.bf16.mxu0 %v4274
    %6259 = vmatpush1.bf16.xpose.msra.mxu0 %v4273
    %6260 = vmatprep.subr.bf16.mxu0 %v4280
    %6261 = vmatpush1.bf16.xpose.msra.mxu0 %v4279
    %6262 = vmatprep.mubr.bf16.mxu0 %v56
    %6263 = vmatmul.mubr.bf16.gmra.mrb[0].mxu0 %v55
    %v6264 = vpop.f32.mrb[0].mxu0
    %v6265 = vadd.f32 %v6222, %v6264
    %v6266 = vpop.f32.mrb[0].mxu0
    %v6267 = vadd.f32 %v6224, %v6266
    %v6268 = vpop.f32.mrb[0].mxu0
    %v6269 = vadd.f32 %v6226, %v6268
    %v6270 = vpop.f32.mrb[0].mxu0
    %v6271 = vadd.f32 %v6228, %v6270
    %6272 = vdwg.mxu0
    %6273 = vmatprep.subr.bf16.mxu0 %v4282
    %6274 = vmatpush1.bf16.xpose.msra.mxu0 %v4281
    %6275 = vmatprep.subr.bf16.mxu0 %v4288
    %6276 = vmatpush1.bf16.xpose.msra.mxu0 %v4287
    %6277 = vmatprep.subr.bf16.mxu0 %v4294
    %6278 = vmatpush1.bf16.xpose.msra.mxu0 %v4293
    %6279 = vmatprep.subr.bf16.mxu0 %v4300
    %6280 = vmatpush1.bf16.xpose.msra.mxu0 %v4299
    %6281 = vmatprep.subr.bf16.mxu0 %v4306
    %6282 = vmatpush1.bf16.xpose.msra.mxu0 %v4305
    %6283 = vmatprep.subr.bf16.mxu0 %v4312
    %6284 = vmatpush1.bf16.xpose.msra.mxu0 %v4311
    %6285 = vmatprep.subr.bf16.mxu0 %v4318
    %6286 = vmatpush1.bf16.xpose.msra.mxu0 %v4317
    %6287 = vmatprep.subr.bf16.mxu0 %v4324
    %6288 = vmatpush1.bf16.xpose.msra.mxu0 %v4323
    %6289 = vmatprep.subr.bf16.mxu0 %v4330
    %6290 = vmatpush1.bf16.xpose.msra.mxu0 %v4329
    %6291 = vmatprep.subr.bf16.mxu0 %v4336
    %6292 = vmatpush1.bf16.xpose.msra.mxu0 %v4335
    %6293 = vmatprep.subr.bf16.mxu0 %v4342
    %6294 = vmatpush1.bf16.xpose.msra.mxu0 %v4341
    %6295 = vmatprep.subr.bf16.mxu0 %v4348
    %6296 = vmatpush1.bf16.xpose.msra.mxu0 %v4347
    %6297 = vmatprep.subr.bf16.mxu0 %v4354
    %6298 = vmatpush1.bf16.xpose.msra.mxu0 %v4353
    %6299 = vmatprep.subr.bf16.mxu0 %v4360
    %6300 = vmatpush1.bf16.xpose.msra.mxu0 %v4359
    %6301 = vmatprep.subr.bf16.mxu0 %v4366
    %6302 = vmatpush1.bf16.xpose.msra.mxu0 %v4365
    %6303 = vmatprep.subr.bf16.mxu0 %v4372
    %6304 = vmatpush1.bf16.xpose.msra.mxu0 %v4371
    %6305 = vmatprep.mubr.bf16.mxu0 %v52
    %6306 = vmatmul.mubr.bf16.gmra.mrb[0].mxu0 %v51
    %v6307 = vpop.f32.mrb[0].mxu0
    %v6308 = vadd.f32 0.0, %v6307
    %v6309 = vpop.f32.mrb[0].mxu0
    %v6310 = vadd.f32 0.0, %v6309
    %v6311 = vpop.f32.mrb[0].mxu0
    %v6312 = vadd.f32 0.0, %v6311
    %v6313 = vpop.f32.mrb[0].mxu0
    %v6314 = vadd.f32 0.0, %v6313
    %6315 = vdwg.mxu0
    %6316 = vmatprep.subr.bf16.mxu0 %v4284
    %6317 = vmatpush1.bf16.xpose.msra.mxu0 %v4283
    %6318 = vmatprep.subr.bf16.mxu0 %v4290
    %6319 = vmatpush1.bf16.xpose.msra.mxu0 %v4289
    %6320 = vmatprep.subr.bf16.mxu0 %v4296
    %6321 = vmatpush1.bf16.xpose.msra.mxu0 %v4295
    %6322 = vmatprep.subr.bf16.mxu0 %v4302
    %6323 = vmatpush1.bf16.xpose.msra.mxu0 %v4301
    %6324 = vmatprep.subr.bf16.mxu0 %v4308
    %6325 = vmatpush1.bf16.xpose.msra.mxu0 %v4307
    %6326 = vmatprep.subr.bf16.mxu0 %v4314
    %6327 = vmatpush1.bf16.xpose.msra.mxu0 %v4313
    %6328 = vmatprep.subr.bf16.mxu0 %v4320
    %6329 = vmatpush1.bf16.xpose.msra.mxu0 %v4319
    %6330 = vmatprep.subr.bf16.mxu0 %v4326
    %6331 = vmatpush1.bf16.xpose.msra.mxu0 %v4325
    %6332 = vmatprep.subr.bf16.mxu0 %v4332
    %6333 = vmatpush1.bf16.xpose.msra.mxu0 %v4331
    %6334 = vmatprep.subr.bf16.mxu0 %v4338
    %6335 = vmatpush1.bf16.xpose.msra.mxu0 %v4337
    %6336 = vmatprep.subr.bf16.mxu0 %v4344
    %6337 = vmatpush1.bf16.xpose.msra.mxu0 %v4343
    %6338 = vmatprep.subr.bf16.mxu0 %v4350
    %6339 = vmatpush1.bf16.xpose.msra.mxu0 %v4349
    %6340 = vmatprep.subr.bf16.mxu0 %v4356
    %6341 = vmatpush1.bf16.xpose.msra.mxu0 %v4355
    %6342 = vmatprep.subr.bf16.mxu0 %v4362
    %6343 = vmatpush1.bf16.xpose.msra.mxu0 %v4361
    %6344 = vmatprep.subr.bf16.mxu0 %v4368
    %6345 = vmatpush1.bf16.xpose.msra.mxu0 %v4367
    %6346 = vmatprep.subr.bf16.mxu0 %v4374
    %6347 = vmatpush1.bf16.xpose.msra.mxu0 %v4373
    %6348 = vmatprep.mubr.bf16.mxu0 %v54
    %6349 = vmatmul.mubr.bf16.gmra.mrb[0].mxu0 %v53
    %v6350 = vpop.f32.mrb[0].mxu0
    %v6351 = vadd.f32 %v6308, %v6350
    %v6352 = vpop.f32.mrb[0].mxu0
    %v6353 = vadd.f32 %v6310, %v6352
    %v6354 = vpop.f32.mrb[0].mxu0
    %v6355 = vadd.f32 %v6312, %v6354
    %v6356 = vpop.f32.mrb[0].mxu0
    %v6357 = vadd.f32 %v6314, %v6356
    %6358 = vdwg.mxu0
    %6359 = vmatprep.subr.bf16.mxu0 %v4286
    %6360 = vmatpush1.bf16.xpose.msra.mxu0 %v4285
    %6361 = vmatprep.subr.bf16.mxu0 %v4292
    %6362 = vmatpush1.bf16.xpose.msra.mxu0 %v4291
    %6363 = vmatprep.subr.bf16.mxu0 %v4298
    %6364 = vmatpush1.bf16.xpose.msra.mxu0 %v4297
    %6365 = vmatprep.subr.bf16.mxu0 %v4304
    %6366 = vmatpush1.bf16.xpose.msra.mxu0 %v4303
    %6367 = vmatprep.subr.bf16.mxu0 %v4310
    %6368 = vmatpush1.bf16.xpose.msra.mxu0 %v4309
    %6369 = vmatprep.subr.bf16.mxu0 %v4316
    %6370 = vmatpush1.bf16.xpose.msra.mxu0 %v4315
    %6371 = vmatprep.subr.bf16.mxu0 %v4322
    %6372 = vmatpush1.bf16.xpose.msra.mxu0 %v4321
    %6373 = vmatprep.subr.bf16.mxu0 %v4328
    %6374 = vmatpush1.bf16.xpose.msra.mxu0 %v4327
    %6375 = vmatprep.subr.bf16.mxu0 %v4334
    %6376 = vmatpush1.bf16.xpose.msra.mxu0 %v4333
    %6377 = vmatprep.subr.bf16.mxu0 %v4340
    %6378 = vmatpush1.bf16.xpose.msra.mxu0 %v4339
    %6379 = vmatprep.subr.bf16.mxu0 %v4346
    %6380 = vmatpush1.bf16.xpose.msra.mxu0 %v4345
    %6381 = vmatprep.subr.bf16.mxu0 %v4352
    %6382 = vmatpush1.bf16.xpose.msra.mxu0 %v4351
    %6383 = vmatprep.subr.bf16.mxu0 %v4358
    %6384 = vmatpush1.bf16.xpose.msra.mxu0 %v4357
    %6385 = vmatprep.subr.bf16.mxu0 %v4364
    %6386 = vmatpush1.bf16.xpose.msra.mxu0 %v4363
    %6387 = vmatprep.subr.bf16.mxu0 %v4370
    %6388 = vmatpush1.bf16.xpose.msra.mxu0 %v4369
    %6389 = vmatprep.subr.bf16.mxu0 %v4376
    %6390 = vmatpush1.bf16.xpose.msra.mxu0 %v4375
    %6391 = vmatprep.mubr.bf16.mxu0 %v56
    %6392 = vmatmul.mubr.bf16.gmra.mrb[0].mxu0 %v55
    %v6393 = vpop.f32.mrb[0].mxu0
    %v6394 = vadd.f32 %v6351, %v6393
    %v6395 = vpop.f32.mrb[0].mxu0
    %v6396 = vadd.f32 %v6353, %v6395
    %v6397 = vpop.f32.mrb[0].mxu0
    %v6398 = vadd.f32 %v6355, %v6397
    %v6399 = vpop.f32.mrb[0].mxu0
    %v6400 = vadd.f32 %v6357, %v6399
    %6401 = vdwg.mxu0
    %v6402 = vpack.c.bf16 %v5366, %v5362
    %v6403 = vpack.c.bf16 %v5368, %v5364
    %v6404 = vpack.c.bf16 %v5495, %v5491
    %v6405 = vpack.c.bf16 %v5497, %v5493
    %v6406 = vpack.c.bf16 %v5624, %v5620
    %v6407 = vpack.c.bf16 %v5626, %v5622
    %v6408 = vpack.c.bf16 %v5753, %v5749
    %v6409 = vpack.c.bf16 %v5755, %v5751
    %v6410 = vpack.c.bf16 %v5882, %v5878
    %v6411 = vpack.c.bf16 %v5884, %v5880
    %v6412 = vpack.c.bf16 %v6011, %v6007
    %v6413 = vpack.c.bf16 %v6013, %v6009
    %v6414 = vpack.c.bf16 %v6140, %v6136
    %v6415 = vpack.c.bf16 %v6142, %v6138
    %v6416 = vpack.c.bf16 %v6269, %v6265
    %v6417 = vpack.c.bf16 %v6271, %v6267
    %v6418 = vpack.c.bf16 %v6398, %v6394
    %v6419 = vpack.c.bf16 %v6400, %v6396
    %v6438 = vunpack.c.l.b16 %v6402
    %v6439 = vunpack.c.l.b16 %v6403
    %v6440 = vunpack.c.l.b16 %v6404
    %v6441 = vunpack.c.l.b16 %v6405
    %v6442 = vunpack.c.l.b16 %v6406
    %v6443 = vunpack.c.l.b16 %v6407
    %v6444 = vunpack.c.l.b16 %v6408
    %v6445 = vunpack.c.l.b16 %v6409
    %v6446 = vunpack.c.l.b16 %v6410
    %v6447 = vunpack.c.l.b16 %v6411
    %v6448 = vunpack.c.l.b16 %v6412
    %v6449 = vunpack.c.l.b16 %v6413
    %v6450 = vunpack.c.l.b16 %v6414
    %v6451 = vunpack.c.l.b16 %v6415
    %v6452 = vunpack.c.l.b16 %v6416
    %v6453 = vunpack.c.l.b16 %v6417
    %v6454 = vunpack.c.l.b16 %v6418
    %v6455 = vunpack.c.l.b16 %v6419
    %v6456 = vunpack.c.h.b16 %v6402
    %v6457 = vunpack.c.h.b16 %v6403
    %v6458 = vunpack.c.h.b16 %v6404
    %v6459 = vunpack.c.h.b16 %v6405
    %v6460 = vunpack.c.h.b16 %v6406
    %v6461 = vunpack.c.h.b16 %v6407
    %v6462 = vunpack.c.h.b16 %v6408
    %v6463 = vunpack.c.h.b16 %v6409
    %v6464 = vunpack.c.h.b16 %v6410
    %v6465 = vunpack.c.h.b16 %v6411
    %v6466 = vunpack.c.h.b16 %v6412
    %v6467 = vunpack.c.h.b16 %v6413
    %v6468 = vunpack.c.h.b16 %v6414
    %v6469 = vunpack.c.h.b16 %v6415
    %v6470 = vunpack.c.h.b16 %v6416
    %v6471 = vunpack.c.h.b16 %v6417
    %v6472 = vunpack.c.h.b16 %v6418
    %v6473 = vunpack.c.h.b16 %v6419
    %v6474 = vpack.c.b16 %v6439, %v6438
    %v6475 = vpack.c.b16 %v6441, %v6440
    %v6476 = vpack.c.b16 %v6443, %v6442
    %v6477 = vpack.c.b16 %v6445, %v6444
    %v6478 = vpack.c.b16 %v6447, %v6446
    %v6479 = vpack.c.b16 %v6449, %v6448
    %v6480 = vpack.c.b16 %v6451, %v6450
    %v6481 = vpack.c.b16 %v6453, %v6452
    %v6482 = vpack.c.b16 %v6455, %v6454
    %v6483 = vpack.c.b16 %v6457, %v6456
    %v6484 = vpack.c.b16 %v6459, %v6458
    %v6485 = vpack.c.b16 %v6461, %v6460
    %v6486 = vpack.c.b16 %v6463, %v6462
    %v6487 = vpack.c.b16 %v6465, %v6464
    %v6488 = vpack.c.b16 %v6467, %v6466
    %v6489 = vpack.c.b16 %v6469, %v6468
    %v6490 = vpack.c.b16 %v6471, %v6470
    %v6491 = vpack.c.b16 %v6473, %v6472
    %6510 = vst [vmem:[%s2] sm:$0xff] %v6474
    %6511 = vst [vmem:[%s2 + $0x8] sm:$0xff] %v6475
    %6512 = vst [vmem:[%s2 + $0x10] sm:$0xff] %v6476
    %6513 = vst [vmem:[%s2 + $0x18] sm:$0xff] %v6477
    %6514 = vst [vmem:[%s2 + $0x20] sm:$0xff] %v6478
    %6515 = vst [vmem:[%s2 + $0x28] sm:$0xff] %v6479
    %6516 = vst [vmem:[%s2 + $0x30] sm:$0xff] %v6480
    %6517 = vst [vmem:[%s2 + $0x38] sm:$0xff] %v6481
    %6518 = vst [vmem:[%s2 + $0x40] sm:$0xff] %v6482
    %6519 = vst [vmem:[%s2 + $0x48] sm:$0xff] %v6483
    %6520 = vst [vmem:[%s2 + $0x50] sm:$0xff] %v6484
    %6521 = vst [vmem:[%s2 + $0x58] sm:$0xff] %v6485
    %6522 = vst [vmem:[%s2 + $0x60] sm:$0xff] %v6486
    %6523 = vst [vmem:[%s2 + $0x68] sm:$0xff] %v6487
    %6524 = vst [vmem:[%s2 + $0x70] sm:$0xff] %v6488
    %6525 = vst [vmem:[%s2 + $0x78] sm:$0xff] %v6489
    %6526 = vst [vmem:[%s2 + $0x80] sm:$0xff] %v6490
    %6527 = vst [vmem:[%s2 + $0x88] sm:$0xff] %v6491
    // Predicated region
    $region18: #{_forward_self.2} parent=1 // pred_check
      _
    $region19: #{_forward_self.2} parent=1 // pred_check_branch
      %6529 = sbr.rel (0) target = $region21
    $region20: #{_forward_self.2} parent=1 // pred_region
      _
    $region21: #{_forward_self.2} parent=1 // pred_fallthru
      _
    // Predicated region
    $region22: #{_forward_self.2} parent=1 // pred_check
      _
    $region23: #{_forward_self.2} parent=1 // pred_check_branch
      %6531 = sbr.rel (0) target = $region25
    $region24: #{_forward_self.2} parent=1 // pred_region
      _
    $region25: #{_forward_self.2} parent=1 // pred_fallthru
      _
    %6532 = vsyncpa [#allocation3], 1
    %6533 = vsyncpa [#allocation5], 1

</llo_original>
